<compile_context>
chip_gen: v5e
topology: v5e:2x2
jax: 0.10.0
libtpu: 0.0.40
codegen_flags: <defaults>
</compile_context>

<pallas_src>
import functools

import jax
import jax.numpy as jnp
import numpy as np
from jax import lax
from jax.experimental import pallas as pl
from jax.experimental.pallas import tpu as pltpu


# ----------------------------------------------------------------------------
# Pallas kernel: fused bidirectional GRU over a (T, B_BLK, E) embedded block.
# ----------------------------------------------------------------------------
def _bigru_kernel(emb_ref,                        # (T, B, E) f32
                  wih_ref,                        # (E, 6*HP)  [fwd | bwd] gates padded
                  bias_ref,                       # (1, 6*HP)  folded biases (f32)
                  whh_ref,                        # (2*HP, 6*HP) block-diag [fwd | bwd]
                  bhn_f_ref, bhn_b_ref,           # (1, HP) each (b_hn stays inside r*(...))
                  out_ref,                        # (T, B, 2*HP)  [:, :, :HP]=fwd, [:, :, HP:]=bwd
                  hf_ref, hb_ref,                 # (B, HP) final hiddens
                  gi_scr,                         # VMEM scratch (T*B, 6*HP) f32
                  *, unroll):
    T, B, E = emb_ref.shape
    HP = whh_ref.shape[0] // 2
    G = 3 * HP

    # ---- Phase 1 (non-recurrent): hoisted input projection, both directions ----
    # One big MXU matmul; r/z biases (b_ih+b_hh) and the n-gate b_ih are already
    # folded into bias_ref.  B is a multiple of 8 so merging the leading dims is
    # a free sublane relayout (no concat, no extra VMEM temporaries).
    emb_flat = emb_ref[...].reshape(T * B, E)
    gi_scr[...] = (jnp.dot(emb_flat.astype(wih_ref.dtype), wih_ref[...],
                           preferred_element_type=jnp.float32)
                   + bias_ref[...])

    bhn_f = bhn_f_ref[...]
    bhn_b = bhn_b_ref[...]

    def gru_update(gi, gh, bhn, h):
        # PyTorch GRU equations (biases folded into gi except b_hn):
        #   r = sigmoid(W_ir x + b_ir + W_hr h + b_hr)
        #   z = sigmoid(W_iz x + b_iz + W_hz h + b_hz)
        #   n = tanh(W_in x + b_in + r * (W_hn h + b_hn))
        #   h' = (1 - z) * n + z * h  ==  n + z * (h - n)
        r = jax.nn.sigmoid(gi[:, 0:HP] + gh[:, 0:HP])
        z = jax.nn.sigmoid(gi[:, HP:2 * HP] + gh[:, HP:2 * HP])
        n = jnp.tanh(gi[:, 2 * HP:3 * HP] + r * (gh[:, 2 * HP:3 * HP] + bhn))
        return n + z * (h - n)

    h0 = jnp.zeros((B, 2 * HP), jnp.float32)      # [h_f | h_b] in one carry

    # ---- Phase 2: fused fwd/bwd recurrence; ONE block-diag matmul per step ----
    def body(t, h_fb):
        tb = T - 1 - t
        rf = pl.multiple_of(t * B, B)
        rb = pl.multiple_of(tb * B, B)
        gi_f = gi_scr[pl.ds(rf, B), 0:G]          # (B, 3*HP), lane-aligned slices
        gi_b = gi_scr[pl.ds(rb, B), G:2 * G]
        # (B, 2*HP) @ (2*HP, 6*HP): K=256 fills the v6e/v7x MXU in one pass.
        gh = jnp.dot(h_fb.astype(whh_ref.dtype), whh_ref[...],
                     preferred_element_type=jnp.float32)
        h_f = gru_update(gi_f, gh[:, 0:G], bhn_f, h_fb[:, 0:HP])
        h_b = gru_update(gi_b, gh[:, G:2 * G], bhn_b, h_fb[:, HP:2 * HP])
        out_ref[t, :, 0:HP] = h_f                 # full (8,128) lane-dense stores
        out_ref[tb, :, HP:2 * HP] = h_b
        return jnp.concatenate([h_f, h_b], axis=1)

    h_fb = lax.fori_loop(0, T, body, h0, unroll=unroll)
    hf_ref[...] = h_fb[:, 0:HP]
    hb_ref[...] = h_fb[:, HP:2 * HP]


def bigru_pallas(emb_tbe, wih_cat, bias_cat, whh_cat, bhn_f, bhn_b, *, b_blk):
    """emb_tbe: (T, B_pad, E) f32 with B_pad a multiple of b_blk."""
    T, B_pad, E = emb_tbe.shape
    HP = whh_cat.shape[0] // 2
    grid = (B_pad // b_blk,)
    unroll = True if T <= 16 else 8

    # Explicit VMEM budget: scratch + double-buffered emb/out blocks + weights.
    itm = 4
    w_bytes = (wih_cat.size * wih_cat.dtype.itemsize
               + whh_cat.size * whh_cat.dtype.itemsize)
    est = (T * b_blk * 6 * HP * itm                # gi_scr scratch
           + 2 * T * b_blk * E * itm               # emb block, 2-deep
           + 2 * T * b_blk * 2 * HP * itm          # out block, 2-deep
           + 2 * w_bytes                           # weight blocks, 2-deep
           + 8 * b_blk * HP * itm                  # hf/hb out blocks
           + (6 * HP + 2 * HP) * itm * 2)          # bias blocks
    vmem_limit = int(min(100 * 2**20, max(32 * 2**20, 2 * est)))

    out, h_f, h_b = pl.pallas_call(
        functools.partial(_bigru_kernel, unroll=unroll),
        out_shape=(
            jax.ShapeDtypeStruct((T, B_pad, 2 * HP), jnp.float32),
            jax.ShapeDtypeStruct((B_pad, HP), jnp.float32),
            jax.ShapeDtypeStruct((B_pad, HP), jnp.float32),
        ),
        grid_spec=pltpu.PrefetchScalarGridSpec(
            num_scalar_prefetch=0,
            grid=grid,
            in_specs=[
                pl.BlockSpec((T, b_blk, E), lambda b: (0, b, 0)),
                pl.BlockSpec((E, 6 * HP), lambda b: (0, 0)),
                pl.BlockSpec((1, 6 * HP), lambda b: (0, 0)),
                pl.BlockSpec((2 * HP, 6 * HP), lambda b: (0, 0)),
                pl.BlockSpec((1, HP), lambda b: (0, 0)),
                pl.BlockSpec((1, HP), lambda b: (0, 0)),
            ],
            out_specs=(
                pl.BlockSpec((T, b_blk, 2 * HP), lambda b: (0, b, 0)),
                pl.BlockSpec((b_blk, HP), lambda b: (b, 0)),
                pl.BlockSpec((b_blk, HP), lambda b: (b, 0)),
            ),
            scratch_shapes=[pltpu.VMEM((T * b_blk, 6 * HP), jnp.float32)],
        ),
        compiler_params=pltpu.CompilerParams(
            dimension_semantics=("parallel",),     # batch blocks shard across TCs
            vmem_limit_bytes=vmem_limit,
        ),
    )(emb_tbe, wih_cat, bias_cat, whh_cat, bhn_f, bhn_b)
    return out, h_f, h_b


# ----------------------------------------------------------------------------
# Parameter padding / bias folding (done ONCE, hoisted out of the forward)
# ----------------------------------------------------------------------------
def _pad_axis(x, axis, target):
    pad = [(0, 0)] * x.ndim
    pad[axis] = (0, target - x.shape[axis])
    return jnp.pad(x, pad)


def _pad_gate_cols(w, hp):
    # (..., 3H) -> (..., 3*hp): each gate's H columns land at the start of its
    # own 128-aligned lane block; padded columns are zero.
    parts = jnp.split(w, 3, axis=-1)
    return jnp.concatenate([_pad_axis(p, -1, hp) for p in parts], axis=-1)


def prepare_kernel_params(params, hp, use_bf16=False):
    """Pure weight transform; call once per parameter set, not per forward."""
    def one_direction(wih_t, whh_t, bih, bhh):
        wih_p = _pad_gate_cols(wih_t, hp)                       # (E, 3*hp)
        whh_p = _pad_axis(_pad_gate_cols(whh_t, hp), 0, hp)     # (hp, 3*hp)
        bih_r, bih_z, bih_n = jnp.split(bih, 3, axis=-1)
        bhh_r, bhh_z, bhh_n = jnp.split(bhh, 3, axis=-1)
        bias_fold = jnp.concatenate([
            _pad_axis(bih_r + bhh_r, -1, hp),                   # r: fold both
            _pad_axis(bih_z + bhh_z, -1, hp),                   # z: fold both
            _pad_axis(bih_n, -1, hp),                           # n: only b_in
        ], axis=-1)                                             # (1, 3*hp)
        bhn = _pad_axis(bhh_n, -1, hp)                          # (1, hp)
        return wih_p, whh_p, bias_fold, bhn

    wih_f, whh_f, bias_f, bhn_f = one_direction(
        params["wih_f_t"], params["whh_f_t"], params["bih_f"], params["bhh_f"])
    wih_b, whh_b, bias_b, bhn_b = one_direction(
        params["wih_b_t"], params["whh_b_t"], params["bih_b"], params["bhh_b"])

    wih_cat = jnp.concatenate([wih_f, wih_b], axis=1)           # (E, 6*hp)
    bias_cat = jnp.concatenate([bias_f, bias_b], axis=1)        # (1, 6*hp)
    zeros = jnp.zeros_like(whh_f)
    whh_cat = jnp.concatenate([                                 # (2*hp, 6*hp) block-diag
        jnp.concatenate([whh_f, zeros], axis=1),
        jnp.concatenate([zeros, whh_b], axis=1)], axis=0)

    if use_bf16:
        # bf16 MXU operands (~3x MXU throughput, half the weight VMEM);
        # accumulation stays f32 inside the kernel.
        wih_cat = wih_cat.astype(jnp.bfloat16)
        whh_cat = whh_cat.astype(jnp.bfloat16)
    return wih_cat, bias_cat, whh_cat, bhn_f, bhn_b


# ----------------------------------------------------------------------------
# Encoder wrapper (embedding glue + kernel + hidden_type combine)
# ----------------------------------------------------------------------------
def encoder_forward(embedding, kparams, token_seq, hidden_type, hidden_dim):
    """token_seq: (B, T) int32. Returns (hidden_state, outputs) like the PyTorch module."""
    B, _T = token_seq.shape
    H = hidden_dim
    wih_cat, bias_cat, whh_cat, bhn_f, bhn_b = kparams
    HP = whh_cat.shape[0] // 2

    # Batch tile: as wide as reasonable (up to 128 MXU rows), multiple of 8.
    b_blk = min(128, ((B + 7) // 8) * 8)
    B_pad = ((B + b_blk - 1) // b_blk) * b_blk

    # Time-major gather: transpose the tiny (B, T) index array, not the big
    # embedded activation tensor.
    emb_tbe = embedding[token_seq.T]                            # (T, B, E)
    if B_pad != B:
        emb_tbe = jnp.pad(emb_tbe, ((0, 0), (0, B_pad - B), (0, 0)))

    out, h_f, h_b = bigru_pallas(emb_tbe, wih_cat, bias_cat, whh_cat,
                                 bhn_f, bhn_b, b_blk=b_blk)

    out_f = out[:, :B, :H]                                      # (T, B, H)
    out_b = out[:, :B, HP:HP + H]                               # (T, B, H)
    outputs = jnp.transpose(jnp.concatenate([out_f, out_b], axis=-1), (1, 0, 2))

    h_f = h_f[:B, :H]
    h_b = h_b[:B, :H]
    if hidden_type == "sum":
        hidden_state = (h_f + h_b)[None]                        # (1, B, H)
    elif hidden_type == "mul":
        hidden_state = (h_f * h_b)[None]                        # (1, B, H)
    else:  # 'cat' and default branch
        hidden_state = jnp.concatenate([h_f, h_b], axis=1)[None]  # (1, B, 2H)
    return hidden_state, outputs


# ----------------------------------------------------------------------------
# Pure-JAX reference (for correctness checking of the kernel)
# ----------------------------------------------------------------------------
def _gru_ref_dir(emb_tbe, wih_t, whh_t, bih, bhh, reverse):
    T, B, _E = emb_tbe.shape
    H = whh_t.shape[0]
    xs = emb_tbe[::-1] if reverse else emb_tbe

    def step(h, x):
        gi = x @ wih_t + bih
        gh = h @ whh_t + bhh
        i_r, i_z, i_n = gi[:, :H], gi[:, H:2 * H], gi[:, 2 * H:]
        h_r, h_z, h_n = gh[:, :H], gh[:, H:2 * H], gh[:, 2 * H:]
        r = jax.nn.sigmoid(i_r + h_r)
        z = jax.nn.sigmoid(i_z + h_z)
        n = jnp.tanh(i_n + r * h_n)
        h_new = (1.0 - z) * n + z * h
        return h_new, h_new

    h_fin, ys = lax.scan(step, jnp.zeros((B, H), jnp.float32), xs)
    if reverse:
        ys = ys[::-1]
    return ys, h_fin


def encoder_ref(params, token_seq, hidden_type):
    embedded = params["embedding"][token_seq]
    emb_tbe = jnp.transpose(embedded, (1, 0, 2))
    yf, hf = _gru_ref_dir(emb_tbe, params["wih_f_t"], params["whh_f_t"],
                          params["bih_f"], params["bhh_f"], reverse=False)
    yb, hb = _gru_ref_dir(emb_tbe, params["wih_b_t"], params["whh_b_t"],
                          params["bih_b"], params["bhh_b"], reverse=True)
    outputs = jnp.transpose(jnp.concatenate([yf, yb], axis=-1), (1, 0, 2))
    if hidden_type == "sum":
        hidden = (hf + hb)[None]
    elif hidden_type == "mul":
        hidden = (hf * hb)[None]
    else:
        hidden = jnp.concatenate([hf, hb], axis=1)[None]
    return hidden, outputs


# ----------------------------------------------------------------------------
# Deterministic parameter init (shapes match nn.Embedding / nn.GRU)
# ----------------------------------------------------------------------------
def init_params(key, input_dim, emb_dim, hidden_dim):
    ks = jax.random.split(key, 9)
    bound = 1.0 / np.sqrt(hidden_dim)

    def u(k, shape):
        return jax.random.uniform(k, shape, jnp.float32, -bound, bound)

    return {
        "embedding": jax.random.normal(ks[0], (input_dim, emb_dim), jnp.float32),
        # stored pre-transposed: (E, 3H) / (H, 3H) so the kernel does x @ W directly
        "wih_f_t": u(ks[1], (emb_dim, 3 * hidden_dim)),
        "whh_f_t": u(ks[2], (hidden_dim, 3 * hidden_dim)),
        "bih_f":   u(ks[3], (1, 3 * hidden_dim)),
        "bhh_f":   u(ks[4], (1, 3 * hidden_dim)),
        "wih_b_t": u(ks[5], (emb_dim, 3 * hidden_dim)),
        "whh_b_t": u(ks[6], (hidden_dim, 3 * hidden_dim)),
        "bih_b":   u(ks[7], (1, 3 * hidden_dim)),
        "bhh_b":   u(ks[8], (1, 3 * hidden_dim)),
    }


if __name__ == "__main__":
    INPUT_DIM = 20    # vocab size
    EMB_DIM = 32
    HIDDEN_DIM = 32
    B, T = 2, 8

    key = jax.random.PRNGKey(0)
    k_par, k_tok = jax.random.split(key)
    params = init_params(k_par, INPUT_DIM, EMB_DIM, HIDDEN_DIM)
    token_seq = jax.random.randint(k_tok, (B, T), 0, INPUT_DIM, dtype=jnp.int32)

    HP = max(128, ((HIDDEN_DIM + 127) // 128) * 128)
    # Hoisted once (not per jitted forward call).
    kparams = prepare_kernel_params(params, HP, use_bf16=False)

    fwd = jax.jit(encoder_forward, static_argnames=("hidden_type", "hidden_dim"))
    hidden_state, outputs = fwd(params["embedding"], kparams, token_seq,
                                hidden_type="cat", hidden_dim=HIDDEN_DIM)
    jax.block_until_ready((hidden_state, outputs))

    # Sanity check against pure-JAX reference.
    hidden_ref, outputs_ref = encoder_ref(params, token_seq, "cat")
    assert hidden_state.shape == (1, B, 2 * HIDDEN_DIM)
    assert outputs.shape == (B, T, 2 * HIDDEN_DIM)
    np.testing.assert_allclose(np.asarray(outputs), np.asarray(outputs_ref),
                               rtol=2e-5, atol=2e-5)
    np.testing.assert_allclose(np.asarray(hidden_state), np.asarray(hidden_ref),
                               rtol=2e-5, atol=2e-5)

    # Also exercise the 'sum' and 'mul' hidden_type branches.
    for ht in ("sum", "mul"):
        h2, o2 = fwd(params["embedding"], kparams, token_seq,
                     hidden_type=ht, hidden_dim=HIDDEN_DIM)
        jax.block_until_ready((h2, o2))
        assert h2.shape == (1, B, HIDDEN_DIM)

    # bf16-operand fast path smoke test (f32 accumulation; looser numerics).
    kparams_bf16 = prepare_kernel_params(params, HP, use_bf16=True)
    h3, o3 = fwd(params["embedding"], kparams_bf16, token_seq,
                 hidden_type="cat", hidden_dim=HIDDEN_DIM)
    jax.block_until_ready((h3, o3))
    assert np.all(np.isfinite(np.asarray(o3)))

    print("KERNEL_OK")
</pallas_src>

<mosaic_0001>
module attributes {stable_mosaic.version = 11 : i64} {
  func.func @_bigru_kernel(%arg0: i32, %arg1: memref<8x8x32xf32, #tpu.memory_space<vmem>>, %arg2: memref<32x768xf32, #tpu.memory_space<vmem>>, %arg3: memref<1x768xf32, #tpu.memory_space<vmem>>, %arg4: memref<256x768xf32, #tpu.memory_space<vmem>>, %arg5: memref<1x128xf32, #tpu.memory_space<vmem>>, %arg6: memref<1x128xf32, #tpu.memory_space<vmem>>, %arg7: memref<8x8x256xf32, #tpu.memory_space<vmem>>, %arg8: memref<8x128xf32, #tpu.memory_space<vmem>>, %arg9: memref<8x128xf32, #tpu.memory_space<vmem>>, %arg10: memref<64x768xf32, #tpu.memory_space<vmem>>) attributes {dimension_semantics = [#tpu.dimension_semantics<parallel>], iteration_bounds = array<i64: 1>, scalar_prefetch = 0 : i64, scratch_operands = 1 : i64, tpu.core_type = #tpu.core_type<tc>, window_params = [{transform_indices = @transform_0, window_bounds = array<i64: 8, 8, 32>}, {pipeline_mode = #tpu.pipeline_mode<synchronous>, transform_indices = @transform_1, window_bounds = array<i64: 32, 768>}, {pipeline_mode = #tpu.pipeline_mode<synchronous>, transform_indices = @transform_2, window_bounds = array<i64: 1, 768>}, {pipeline_mode = #tpu.pipeline_mode<synchronous>, transform_indices = @transform_3, window_bounds = array<i64: 256, 768>}, {pipeline_mode = #tpu.pipeline_mode<synchronous>, transform_indices = @transform_4, window_bounds = array<i64: 1, 128>}, {pipeline_mode = #tpu.pipeline_mode<synchronous>, transform_indices = @transform_5, window_bounds = array<i64: 1, 128>}, {transform_indices = @transform_6, window_bounds = array<i64: 8, 8, 256>}, {transform_indices = @transform_7, window_bounds = array<i64: 8, 128>}, {transform_indices = @transform_8, window_bounds = array<i64: 8, 128>}]} {
    %c0 = arith.constant 0 : index
    %c0_0 = arith.constant 0 : index
    %c0_1 = arith.constant 0 : index
    %0 = vector.load %arg1[%c0, %c0_0, %c0_1] : memref<8x8x32xf32, #tpu.memory_space<vmem>>, vector<8x8x32xf32>
    %1 = vector.shape_cast %0 : vector<8x8x32xf32> to vector<64x32xf32>
    %c0_2 = arith.constant 0 : index
    %c0_3 = arith.constant 0 : index
    %2 = vector.load %arg2[%c0_2, %c0_3] : memref<32x768xf32, #tpu.memory_space<vmem>>, vector<32x768xf32>
    %cst = arith.constant dense<0.000000e+00> : vector<64x768xf32>
    %3 = tpu.matmul %1, %2, %cst {dimension_numbers = #tpu.dot_dimension_numbers<[1], [0], [0], [1], [0, 0, 1, 1], [], []>} : vector<64x32xf32>, vector<32x768xf32>, vector<64x768xf32> -> vector<64x768xf32>
    %c0_4 = arith.constant 0 : index
    %c0_5 = arith.constant 0 : index
    %4 = vector.load %arg3[%c0_4, %c0_5] : memref<1x768xf32, #tpu.memory_space<vmem>>, vector<1x768xf32>
    %5 = vector.broadcast %4 : vector<1x768xf32> to vector<64x768xf32>
    %6 = arith.addf %3, %5 : vector<64x768xf32>
    %c0_6 = arith.constant 0 : index
    %c0_7 = arith.constant 0 : index
    %7 = vector.load %arg10[%c0_6, %c0_7] : memref<64x768xf32, #tpu.memory_space<vmem>>, vector<64x768xf32>
    tpu.vector_store %arg10[%c0_6, %c0_7], %6 {strides = array<i32>} : memref<64x768xf32, #tpu.memory_space<vmem>>, vector<64x768xf32>,
    %c0_8 = arith.constant 0 : index
    %c0_9 = arith.constant 0 : index
    %8 = vector.load %arg5[%c0_8, %c0_9] : memref<1x128xf32, #tpu.memory_space<vmem>>, vector<1x128xf32>
    %c0_10 = arith.constant 0 : index
    %c0_11 = arith.constant 0 : index
    %9 = vector.load %arg6[%c0_10, %c0_11] : memref<1x128xf32, #tpu.memory_space<vmem>>, vector<1x128xf32>
    %cst_12 = arith.constant 0.000000e+00 : f32
    %10 = vector.broadcast %cst_12 : f32 to vector<8x256xf32>
    %c0_i32 = arith.constant 0 : i32
    %c7_i32 = arith.constant 7 : i32
    %11 = arith.subi %c7_i32, %c0_i32 : i32
    %c8_i32 = arith.constant 8 : i32
    %12 = arith.muli %c0_i32, %c8_i32 : i32
    %13 = tpu.assume_multiple %12, 8 : i32
    %c8_i32_13 = arith.constant 8 : i32
    %14 = arith.muli %11, %c8_i32_13 : i32
    %15 = tpu.assume_multiple %14, 8 : i32
    %16 = arith.index_cast %13 : i32 to index
    %c0_14 = arith.constant 0 : index
    %17 = vector.load %arg10[%16, %c0_14] : memref<64x768xf32, #tpu.memory_space<vmem>>, vector<8x384xf32>
    %18 = arith.index_cast %15 : i32 to index
    %c384 = arith.constant 384 : index
    %19 = vector.load %arg10[%18, %c384] : memref<64x768xf32, #tpu.memory_space<vmem>>, vector<8x384xf32>
    %c0_15 = arith.constant 0 : index
    %c0_16 = arith.constant 0 : index
    %20 = vector.load %arg4[%c0_15, %c0_16] : memref<256x768xf32, #tpu.memory_space<vmem>>, vector<256x768xf32>
    %cst_17 = arith.constant dense<0.000000e+00> : vector<8x768xf32>
    %21 = tpu.matmul %10, %20, %cst_17 {dimension_numbers = #tpu.dot_dimension_numbers<[1], [0], [0], [1], [0, 0, 1, 1], [], []>} : vector<8x256xf32>, vector<256x768xf32>, vector<8x768xf32> -> vector<8x768xf32>
    %22 = vector.extract_strided_slice %21 {offsets = [0, 0], sizes = [8, 384], strides = [1, 1]} : vector<8x768xf32> to vector<8x384xf32>
    %23 = vector.extract_strided_slice %10 {offsets = [0, 0], sizes = [8, 128], strides = [1, 1]} : vector<8x256xf32> to vector<8x128xf32>
    %24 = vector.extract_strided_slice %17 {offsets = [0, 0], sizes = [8, 128], strides = [1, 1]} : vector<8x384xf32> to vector<8x128xf32>
    %25 = vector.extract_strided_slice %22 {offsets = [0, 0], sizes = [8, 128], strides = [1, 1]} : vector<8x384xf32> to vector<8x128xf32>
    %26 = arith.addf %24, %25 : vector<8x128xf32>
    %27 = arith.negf %26 : vector<8x128xf32>
    %28 = math.exp %27 : vector<8x128xf32>
    %cst_18 = arith.constant 1.000000e+00 : f32
    %29 = vector.broadcast %cst_18 : f32 to vector<8x128xf32>
    %30 = arith.addf %29, %28 : vector<8x128xf32>
    %31 = arith.divf %29, %30 : vector<8x128xf32>
    %32 = vector.extract_strided_slice %17 {offsets = [0, 128], sizes = [8, 128], strides = [1, 1]} : vector<8x384xf32> to vector<8x128xf32>
    %33 = vector.extract_strided_slice %22 {offsets = [0, 128], sizes = [8, 128], strides = [1, 1]} : vector<8x384xf32> to vector<8x128xf32>
    %34 = arith.addf %32, %33 : vector<8x128xf32>
    %35 = arith.negf %34 : vector<8x128xf32>
    %36 = math.exp %35 : vector<8x128xf32>
    %cst_19 = arith.constant 1.000000e+00 : f32
    %37 = vector.broadcast %cst_19 : f32 to vector<8x128xf32>
    %38 = arith.addf %37, %36 : vector<8x128xf32>
    %39 = arith.divf %37, %38 : vector<8x128xf32>
    %40 = vector.extract_strided_slice %17 {offsets = [0, 256], sizes = [8, 128], strides = [1, 1]} : vector<8x384xf32> to vector<8x128xf32>
    %41 = vector.extract_strided_slice %22 {offsets = [0, 256], sizes = [8, 128], strides = [1, 1]} : vector<8x384xf32> to vector<8x128xf32>
    %42 = vector.broadcast %8 : vector<1x128xf32> to vector<8x128xf32>
    %43 = arith.addf %41, %42 : vector<8x128xf32>
    %44 = arith.mulf %31, %43 : vector<8x128xf32>
    %45 = arith.addf %40, %44 : vector<8x128xf32>
    %46 = math.tanh %45 : vector<8x128xf32>
    %47 = arith.subf %23, %46 : vector<8x128xf32>
    %48 = arith.mulf %39, %47 : vector<8x128xf32>
    %49 = arith.addf %46, %48 : vector<8x128xf32>
    %50 = vector.extract_strided_slice %21 {offsets = [0, 384], sizes = [8, 384], strides = [1, 1]} : vector<8x768xf32> to vector<8x384xf32>
    %51 = vector.extract_strided_slice %10 {offsets = [0, 128], sizes = [8, 128], strides = [1, 1]} : vector<8x256xf32> to vector<8x128xf32>
    %52 = vector.extract_strided_slice %19 {offsets = [0, 0], sizes = [8, 128], strides = [1, 1]} : vector<8x384xf32> to vector<8x128xf32>
    %53 = vector.extract_strided_slice %50 {offsets = [0, 0], sizes = [8, 128], strides = [1, 1]} : vector<8x384xf32> to vector<8x128xf32>
    %54 = arith.addf %52, %53 : vector<8x128xf32>
    %55 = arith.negf %54 : vector<8x128xf32>
    %56 = math.exp %55 : vector<8x128xf32>
    %cst_20 = arith.constant 1.000000e+00 : f32
    %57 = vector.broadcast %cst_20 : f32 to vector<8x128xf32>
    %58 = arith.addf %57, %56 : vector<8x128xf32>
    %59 = arith.divf %57, %58 : vector<8x128xf32>
    %60 = vector.extract_strided_slice %19 {offsets = [0, 128], sizes = [8, 128], strides = [1, 1]} : vector<8x384xf32> to vector<8x128xf32>
    %61 = vector.extract_strided_slice %50 {offsets = [0, 128], sizes = [8, 128], strides = [1, 1]} : vector<8x384xf32> to vector<8x128xf32>
    %62 = arith.addf %60, %61 : vector<8x128xf32>
    %63 = arith.negf %62 : vector<8x128xf32>
    %64 = math.exp %63 : vector<8x128xf32>
    %cst_21 = arith.constant 1.000000e+00 : f32
    %65 = vector.broadcast %cst_21 : f32 to vector<8x128xf32>
    %66 = arith.addf %65, %64 : vector<8x128xf32>
    %67 = arith.divf %65, %66 : vector<8x128xf32>
    %68 = vector.extract_strided_slice %19 {offsets = [0, 256], sizes = [8, 128], strides = [1, 1]} : vector<8x384xf32> to vector<8x128xf32>
    %69 = vector.extract_strided_slice %50 {offsets = [0, 256], sizes = [8, 128], strides = [1, 1]} : vector<8x384xf32> to vector<8x128xf32>
    %70 = vector.broadcast %9 : vector<1x128xf32> to vector<8x128xf32>
    %71 = arith.addf %69, %70 : vector<8x128xf32>
    %72 = arith.mulf %59, %71 : vector<8x128xf32>
    %73 = arith.addf %68, %72 : vector<8x128xf32>
    %74 = math.tanh %73 : vector<8x128xf32>
    %75 = arith.subf %51, %74 : vector<8x128xf32>
    %76 = arith.mulf %67, %75 : vector<8x128xf32>
    %77 = arith.addf %74, %76 : vector<8x128xf32>
    %78 = arith.index_cast %c0_i32 : i32 to index
    %c0_22 = arith.constant 0 : index
    %c0_23 = arith.constant 0 : index
    %79 = vector.load %arg7[%78, %c0_22, %c0_23] : memref<8x8x256xf32, #tpu.memory_space<vmem>>, vector<1x8x128xf32>
    %80 = vector.shape_cast %79 : vector<1x8x128xf32> to vector<8x128xf32>
    %81 = vector.shape_cast %49 : vector<8x128xf32> to vector<1x8x128xf32>
    tpu.vector_store %arg7[%78, %c0_22, %c0_23], %81 {strides = array<i32>} : memref<8x8x256xf32, #tpu.memory_space<vmem>>, vector<1x8x128xf32>,
    %82 = arith.index_cast %11 : i32 to index
    %c0_24 = arith.constant 0 : index
    %c128 = arith.constant 128 : index
    %83 = vector.load %arg7[%82, %c0_24, %c128] : memref<8x8x256xf32, #tpu.memory_space<vmem>>, vector<1x8x128xf32>
    %84 = vector.shape_cast %83 : vector<1x8x128xf32> to vector<8x128xf32>
    %85 = vector.shape_cast %77 : vector<8x128xf32> to vector<1x8x128xf32>
    tpu.vector_store %arg7[%82, %c0_24, %c128], %85 {strides = array<i32>} : memref<8x8x256xf32, #tpu.memory_space<vmem>>, vector<1x8x128xf32>,
    %86 = tpu.concatenate %49, %77 in 1 : vector<8x128xf32>, vector<8x128xf32> -> vector<8x256xf32>
    %c1_i32 = arith.constant 1 : i32
    %c7_i32_25 = arith.constant 7 : i32
    %87 = arith.subi %c7_i32_25, %c1_i32 : i32
    %c8_i32_26 = arith.constant 8 : i32
    %88 = arith.muli %c1_i32, %c8_i32_26 : i32
    %89 = tpu.assume_multiple %88, 8 : i32
    %c8_i32_27 = arith.constant 8 : i32
    %90 = arith.muli %87, %c8_i32_27 : i32
    %91 = tpu.assume_multiple %90, 8 : i32
    %92 = arith.index_cast %89 : i32 to index
    %c0_28 = arith.constant 0 : index
    %93 = vector.load %arg10[%92, %c0_28] : memref<64x768xf32, #tpu.memory_space<vmem>>, vector<8x384xf32>
    %94 = arith.index_cast %91 : i32 to index
    %c384_29 = arith.constant 384 : index
    %95 = vector.load %arg10[%94, %c384_29] : memref<64x768xf32, #tpu.memory_space<vmem>>, vector<8x384xf32>
    %c0_30 = arith.constant 0 : index
    %c0_31 = arith.constant 0 : index
    %96 = vector.load %arg4[%c0_30, %c0_31] : memref<256x768xf32, #tpu.memory_space<vmem>>, vector<256x768xf32>
    %cst_32 = arith.constant dense<0.000000e+00> : vector<8x768xf32>
    %97 = tpu.matmul %86, %96, %cst_32 {dimension_numbers = #tpu.dot_dimension_numbers<[1], [0], [0], [1], [0, 0, 1, 1], [], []>} : vector<8x256xf32>, vector<256x768xf32>, vector<8x768xf32> -> vector<8x768xf32>
    %98 = vector.extract_strided_slice %97 {offsets = [0, 0], sizes = [8, 384], strides = [1, 1]} : vector<8x768xf32> to vector<8x384xf32>
    %99 = vector.extract_strided_slice %86 {offsets = [0, 0], sizes = [8, 128], strides = [1, 1]} : vector<8x256xf32> to vector<8x128xf32>
    %100 = vector.extract_strided_slice %93 {offsets = [0, 0], sizes = [8, 128], strides = [1, 1]} : vector<8x384xf32> to vector<8x128xf32>
    %101 = vector.extract_strided_slice %98 {offsets = [0, 0], sizes = [8, 128], strides = [1, 1]} : vector<8x384xf32> to vector<8x128xf32>
    %102 = arith.addf %100, %101 : vector<8x128xf32>
    %103 = arith.negf %102 : vector<8x128xf32>
    %104 = math.exp %103 : vector<8x128xf32>
    %cst_33 = arith.constant 1.000000e+00 : f32
    %105 = vector.broadcast %cst_33 : f32 to vector<8x128xf32>
    %106 = arith.addf %105, %104 : vector<8x128xf32>
    %107 = arith.divf %105, %106 : vector<8x128xf32>
    %108 = vector.extract_strided_slice %93 {offsets = [0, 128], sizes = [8, 128], strides = [1, 1]} : vector<8x384xf32> to vector<8x128xf32>
    %109 = vector.extract_strided_slice %98 {offsets = [0, 128], sizes = [8, 128], strides = [1, 1]} : vector<8x384xf32> to vector<8x128xf32>
    %110 = arith.addf %108, %109 : vector<8x128xf32>
    %111 = arith.negf %110 : vector<8x128xf32>
    %112 = math.exp %111 : vector<8x128xf32>
    %cst_34 = arith.constant 1.000000e+00 : f32
    %113 = vector.broadcast %cst_34 : f32 to vector<8x128xf32>
    %114 = arith.addf %113, %112 : vector<8x128xf32>
    %115 = arith.divf %113, %114 : vector<8x128xf32>
    %116 = vector.extract_strided_slice %93 {offsets = [0, 256], sizes = [8, 128], strides = [1, 1]} : vector<8x384xf32> to vector<8x128xf32>
    %117 = vector.extract_strided_slice %98 {offsets = [0, 256], sizes = [8, 128], strides = [1, 1]} : vector<8x384xf32> to vector<8x128xf32>
    %118 = vector.broadcast %8 : vector<1x128xf32> to vector<8x128xf32>
    %119 = arith.addf %117, %118 : vector<8x128xf32>
    %120 = arith.mulf %107, %119 : vector<8x128xf32>
    %121 = arith.addf %116, %120 : vector<8x128xf32>
    %122 = math.tanh %121 : vector<8x128xf32>
    %123 = arith.subf %99, %122 : vector<8x128xf32>
    %124 = arith.mulf %115, %123 : vector<8x128xf32>
    %125 = arith.addf %122, %124 : vector<8x128xf32>
    %126 = vector.extract_strided_slice %97 {offsets = [0, 384], sizes = [8, 384], strides = [1, 1]} : vector<8x768xf32> to vector<8x384xf32>
    %127 = vector.extract_strided_slice %86 {offsets = [0, 128], sizes = [8, 128], strides = [1, 1]} : vector<8x256xf32> to vector<8x128xf32>
    %128 = vector.extract_strided_slice %95 {offsets = [0, 0], sizes = [8, 128], strides = [1, 1]} : vector<8x384xf32> to vector<8x128xf32>
    %129 = vector.extract_strided_slice %126 {offsets = [0, 0], sizes = [8, 128], strides = [1, 1]} : vector<8x384xf32> to vector<8x128xf32>
    %130 = arith.addf %128, %129 : vector<8x128xf32>
    %131 = arith.negf %130 : vector<8x128xf32>
    %132 = math.exp %131 : vector<8x128xf32>
    %cst_35 = arith.constant 1.000000e+00 : f32
    %133 = vector.broadcast %cst_35 : f32 to vector<8x128xf32>
    %134 = arith.addf %133, %132 : vector<8x128xf32>
    %135 = arith.divf %133, %134 : vector<8x128xf32>
    %136 = vector.extract_strided_slice %95 {offsets = [0, 128], sizes = [8, 128], strides = [1, 1]} : vector<8x384xf32> to vector<8x128xf32>
    %137 = vector.extract_strided_slice %126 {offsets = [0, 128], sizes = [8, 128], strides = [1, 1]} : vector<8x384xf32> to vector<8x128xf32>
    %138 = arith.addf %136, %137 : vector<8x128xf32>
    %139 = arith.negf %138 : vector<8x128xf32>
    %140 = math.exp %139 : vector<8x128xf32>
    %cst_36 = arith.constant 1.000000e+00 : f32
    %141 = vector.broadcast %cst_36 : f32 to vector<8x128xf32>
    %142 = arith.addf %141, %140 : vector<8x128xf32>
    %143 = arith.divf %141, %142 : vector<8x128xf32>
    %144 = vector.extract_strided_slice %95 {offsets = [0, 256], sizes = [8, 128], strides = [1, 1]} : vector<8x384xf32> to vector<8x128xf32>
    %145 = vector.extract_strided_slice %126 {offsets = [0, 256], sizes = [8, 128], strides = [1, 1]} : vector<8x384xf32> to vector<8x128xf32>
    %146 = vector.broadcast %9 : vector<1x128xf32> to vector<8x128xf32>
    %147 = arith.addf %145, %146 : vector<8x128xf32>
    %148 = arith.mulf %135, %147 : vector<8x128xf32>
    %149 = arith.addf %144, %148 : vector<8x128xf32>
    %150 = math.tanh %149 : vector<8x128xf32>
    %151 = arith.subf %127, %150 : vector<8x128xf32>
    %152 = arith.mulf %143, %151 : vector<8x128xf32>
    %153 = arith.addf %150, %152 : vector<8x128xf32>
    %154 = arith.index_cast %c1_i32 : i32 to index
    %c0_37 = arith.constant 0 : index
    %c0_38 = arith.constant 0 : index
    %155 = vector.load %arg7[%154, %c0_37, %c0_38] : memref<8x8x256xf32, #tpu.memory_space<vmem>>, vector<1x8x128xf32>
    %156 = vector.shape_cast %155 : vector<1x8x128xf32> to vector<8x128xf32>
    %157 = vector.shape_cast %125 : vector<8x128xf32> to vector<1x8x128xf32>
    tpu.vector_store %arg7[%154, %c0_37, %c0_38], %157 {strides = array<i32>} : memref<8x8x256xf32, #tpu.memory_space<vmem>>, vector<1x8x128xf32>,
    %158 = arith.index_cast %87 : i32 to index
    %c0_39 = arith.constant 0 : index
    %c128_40 = arith.constant 128 : index
    %159 = vector.load %arg7[%158, %c0_39, %c128_40] : memref<8x8x256xf32, #tpu.memory_space<vmem>>, vector<1x8x128xf32>
    %160 = vector.shape_cast %159 : vector<1x8x128xf32> to vector<8x128xf32>
    %161 = vector.shape_cast %153 : vector<8x128xf32> to vector<1x8x128xf32>
    tpu.vector_store %arg7[%158, %c0_39, %c128_40], %161 {strides = array<i32>} : memref<8x8x256xf32, #tpu.memory_space<vmem>>, vector<1x8x128xf32>,
    %162 = tpu.concatenate %125, %153 in 1 : vector<8x128xf32>, vector<8x128xf32> -> vector<8x256xf32>
    %c2_i32 = arith.constant 2 : i32
    %c7_i32_41 = arith.constant 7 : i32
    %163 = arith.subi %c7_i32_41, %c2_i32 : i32
    %c8_i32_42 = arith.constant 8 : i32
    %164 = arith.muli %c2_i32, %c8_i32_42 : i32
    %165 = tpu.assume_multiple %164, 8 : i32
    %c8_i32_43 = arith.constant 8 : i32
    %166 = arith.muli %163, %c8_i32_43 : i32
    %167 = tpu.assume_multiple %166, 8 : i32
    %168 = arith.index_cast %165 : i32 to index
    %c0_44 = arith.constant 0 : index
    %169 = vector.load %arg10[%168, %c0_44] : memref<64x768xf32, #tpu.memory_space<vmem>>, vector<8x384xf32>
    %170 = arith.index_cast %167 : i32 to index
    %c384_45 = arith.constant 384 : index
    %171 = vector.load %arg10[%170, %c384_45] : memref<64x768xf32, #tpu.memory_space<vmem>>, vector<8x384xf32>
    %c0_46 = arith.constant 0 : index
    %c0_47 = arith.constant 0 : index
    %172 = vector.load %arg4[%c0_46, %c0_47] : memref<256x768xf32, #tpu.memory_space<vmem>>, vector<256x768xf32>
    %cst_48 = arith.constant dense<0.000000e+00> : vector<8x768xf32>
    %173 = tpu.matmul %162, %172, %cst_48 {dimension_numbers = #tpu.dot_dimension_numbers<[1], [0], [0], [1], [0, 0, 1, 1], [], []>} : vector<8x256xf32>, vector<256x768xf32>, vector<8x768xf32> -> vector<8x768xf32>
    %174 = vector.extract_strided_slice %173 {offsets = [0, 0], sizes = [8, 384], strides = [1, 1]} : vector<8x768xf32> to vector<8x384xf32>
    %175 = vector.extract_strided_slice %162 {offsets = [0, 0], sizes = [8, 128], strides = [1, 1]} : vector<8x256xf32> to vector<8x128xf32>
    %176 = vector.extract_strided_slice %169 {offsets = [0, 0], sizes = [8, 128], strides = [1, 1]} : vector<8x384xf32> to vector<8x128xf32>
    %177 = vector.extract_strided_slice %174 {offsets = [0, 0], sizes = [8, 128], strides = [1, 1]} : vector<8x384xf32> to vector<8x128xf32>
    %178 = arith.addf %176, %177 : vector<8x128xf32>
    %179 = arith.negf %178 : vector<8x128xf32>
    %180 = math.exp %179 : vector<8x128xf32>
    %cst_49 = arith.constant 1.000000e+00 : f32
    %181 = vector.broadcast %cst_49 : f32 to vector<8x128xf32>
    %182 = arith.addf %181, %180 : vector<8x128xf32>
    %183 = arith.divf %181, %182 : vector<8x128xf32>
    %184 = vector.extract_strided_slice %169 {offsets = [0, 128], sizes = [8, 128], strides = [1, 1]} : vector<8x384xf32> to vector<8x128xf32>
    %185 = vector.extract_strided_slice %174 {offsets = [0, 128], sizes = [8, 128], strides = [1, 1]} : vector<8x384xf32> to vector<8x128xf32>
    %186 = arith.addf %184, %185 : vector<8x128xf32>
    %187 = arith.negf %186 : vector<8x128xf32>
    %188 = math.exp %187 : vector<8x128xf32>
    %cst_50 = arith.constant 1.000000e+00 : f32
    %189 = vector.broadcast %cst_50 : f32 to vector<8x128xf32>
    %190 = arith.addf %189, %188 : vector<8x128xf32>
    %191 = arith.divf %189, %190 : vector<8x128xf32>
    %192 = vector.extract_strided_slice %169 {offsets = [0, 256], sizes = [8, 128], strides = [1, 1]} : vector<8x384xf32> to vector<8x128xf32>
    %193 = vector.extract_strided_slice %174 {offsets = [0, 256], sizes = [8, 128], strides = [1, 1]} : vector<8x384xf32> to vector<8x128xf32>
    %194 = vector.broadcast %8 : vector<1x128xf32> to vector<8x128xf32>
    %195 = arith.addf %193, %194 : vector<8x128xf32>
    %196 = arith.mulf %183, %195 : vector<8x128xf32>
    %197 = arith.addf %192, %196 : vector<8x128xf32>
    %198 = math.tanh %197 : vector<8x128xf32>
    %199 = arith.subf %175, %198 : vector<8x128xf32>
    %200 = arith.mulf %191, %199 : vector<8x128xf32>
    %201 = arith.addf %198, %200 : vector<8x128xf32>
    %202 = vector.extract_strided_slice %173 {offsets = [0, 384], sizes = [8, 384], strides = [1, 1]} : vector<8x768xf32> to vector<8x384xf32>
    %203 = vector.extract_strided_slice %162 {offsets = [0, 128], sizes = [8, 128], strides = [1, 1]} : vector<8x256xf32> to vector<8x128xf32>
    %204 = vector.extract_strided_slice %171 {offsets = [0, 0], sizes = [8, 128], strides = [1, 1]} : vector<8x384xf32> to vector<8x128xf32>
    %205 = vector.extract_strided_slice %202 {offsets = [0, 0], sizes = [8, 128], strides = [1, 1]} : vector<8x384xf32> to vector<8x128xf32>
    %206 = arith.addf %204, %205 : vector<8x128xf32>
    %207 = arith.negf %206 : vector<8x128xf32>
    %208 = math.exp %207 : vector<8x128xf32>
    %cst_51 = arith.constant 1.000000e+00 : f32
    %209 = vector.broadcast %cst_51 : f32 to vector<8x128xf32>
    %210 = arith.addf %209, %208 : vector<8x128xf32>
    %211 = arith.divf %209, %210 : vector<8x128xf32>
    %212 = vector.extract_strided_slice %171 {offsets = [0, 128], sizes = [8, 128], strides = [1, 1]} : vector<8x384xf32> to vector<8x128xf32>
    %213 = vector.extract_strided_slice %202 {offsets = [0, 128], sizes = [8, 128], strides = [1, 1]} : vector<8x384xf32> to vector<8x128xf32>
    %214 = arith.addf %212, %213 : vector<8x128xf32>
    %215 = arith.negf %214 : vector<8x128xf32>
    %216 = math.exp %215 : vector<8x128xf32>
    %cst_52 = arith.constant 1.000000e+00 : f32
    %217 = vector.broadcast %cst_52 : f32 to vector<8x128xf32>
    %218 = arith.addf %217, %216 : vector<8x128xf32>
    %219 = arith.divf %217, %218 : vector<8x128xf32>
    %220 = vector.extract_strided_slice %171 {offsets = [0, 256], sizes = [8, 128], strides = [1, 1]} : vector<8x384xf32> to vector<8x128xf32>
    %221 = vector.extract_strided_slice %202 {offsets = [0, 256], sizes = [8, 128], strides = [1, 1]} : vector<8x384xf32> to vector<8x128xf32>
    %222 = vector.broadcast %9 : vector<1x128xf32> to vector<8x128xf32>
    %223 = arith.addf %221, %222 : vector<8x128xf32>
    %224 = arith.mulf %211, %223 : vector<8x128xf32>
    %225 = arith.addf %220, %224 : vector<8x128xf32>
    %226 = math.tanh %225 : vector<8x128xf32>
    %227 = arith.subf %203, %226 : vector<8x128xf32>
    %228 = arith.mulf %219, %227 : vector<8x128xf32>
    %229 = arith.addf %226, %228 : vector<8x128xf32>
    %230 = arith.index_cast %c2_i32 : i32 to index
    %c0_53 = arith.constant 0 : index
    %c0_54 = arith.constant 0 : index
    %231 = vector.load %arg7[%230, %c0_53, %c0_54] : memref<8x8x256xf32, #tpu.memory_space<vmem>>, vector<1x8x128xf32>
    %232 = vector.shape_cast %231 : vector<1x8x128xf32> to vector<8x128xf32>
    %233 = vector.shape_cast %201 : vector<8x128xf32> to vector<1x8x128xf32>
    tpu.vector_store %arg7[%230, %c0_53, %c0_54], %233 {strides = array<i32>} : memref<8x8x256xf32, #tpu.memory_space<vmem>>, vector<1x8x128xf32>,
    %234 = arith.index_cast %163 : i32 to index
    %c0_55 = arith.constant 0 : index
    %c128_56 = arith.constant 128 : index
    %235 = vector.load %arg7[%234, %c0_55, %c128_56] : memref<8x8x256xf32, #tpu.memory_space<vmem>>, vector<1x8x128xf32>
    %236 = vector.shape_cast %235 : vector<1x8x128xf32> to vector<8x128xf32>
    %237 = vector.shape_cast %229 : vector<8x128xf32> to vector<1x8x128xf32>
    tpu.vector_store %arg7[%234, %c0_55, %c128_56], %237 {strides = array<i32>} : memref<8x8x256xf32, #tpu.memory_space<vmem>>, vector<1x8x128xf32>,
    %238 = tpu.concatenate %201, %229 in 1 : vector<8x128xf32>, vector<8x128xf32> -> vector<8x256xf32>
    %c3_i32 = arith.constant 3 : i32
    %c7_i32_57 = arith.constant 7 : i32
    %239 = arith.subi %c7_i32_57, %c3_i32 : i32
    %c8_i32_58 = arith.constant 8 : i32
    %240 = arith.muli %c3_i32, %c8_i32_58 : i32
    %241 = tpu.assume_multiple %240, 8 : i32
    %c8_i32_59 = arith.constant 8 : i32
    %242 = arith.muli %239, %c8_i32_59 : i32
    %243 = tpu.assume_multiple %242, 8 : i32
    %244 = arith.index_cast %241 : i32 to index
    %c0_60 = arith.constant 0 : index
    %245 = vector.load %arg10[%244, %c0_60] : memref<64x768xf32, #tpu.memory_space<vmem>>, vector<8x384xf32>
    %246 = arith.index_cast %243 : i32 to index
    %c384_61 = arith.constant 384 : index
    %247 = vector.load %arg10[%246, %c384_61] : memref<64x768xf32, #tpu.memory_space<vmem>>, vector<8x384xf32>
    %c0_62 = arith.constant 0 : index
    %c0_63 = arith.constant 0 : index
    %248 = vector.load %arg4[%c0_62, %c0_63] : memref<256x768xf32, #tpu.memory_space<vmem>>, vector<256x768xf32>
    %cst_64 = arith.constant dense<0.000000e+00> : vector<8x768xf32>
    %249 = tpu.matmul %238, %248, %cst_64 {dimension_numbers = #tpu.dot_dimension_numbers<[1], [0], [0], [1], [0, 0, 1, 1], [], []>} : vector<8x256xf32>, vector<256x768xf32>, vector<8x768xf32> -> vector<8x768xf32>
    %250 = vector.extract_strided_slice %249 {offsets = [0, 0], sizes = [8, 384], strides = [1, 1]} : vector<8x768xf32> to vector<8x384xf32>
    %251 = vector.extract_strided_slice %238 {offsets = [0, 0], sizes = [8, 128], strides = [1, 1]} : vector<8x256xf32> to vector<8x128xf32>
    %252 = vector.extract_strided_slice %245 {offsets = [0, 0], sizes = [8, 128], strides = [1, 1]} : vector<8x384xf32> to vector<8x128xf32>
    %253 = vector.extract_strided_slice %250 {offsets = [0, 0], sizes = [8, 128], strides = [1, 1]} : vector<8x384xf32> to vector<8x128xf32>
    %254 = arith.addf %252, %253 : vector<8x128xf32>
    %255 = arith.negf %254 : vector<8x128xf32>
    %256 = math.exp %255 : vector<8x128xf32>
    %cst_65 = arith.constant 1.000000e+00 : f32
    %257 = vector.broadcast %cst_65 : f32 to vector<8x128xf32>
    %258 = arith.addf %257, %256 : vector<8x128xf32>
    %259 = arith.divf %257, %258 : vector<8x128xf32>
    %260 = vector.extract_strided_slice %245 {offsets = [0, 128], sizes = [8, 128], strides = [1, 1]} : vector<8x384xf32> to vector<8x128xf32>
    %261 = vector.extract_strided_slice %250 {offsets = [0, 128], sizes = [8, 128], strides = [1, 1]} : vector<8x384xf32> to vector<8x128xf32>
    %262 = arith.addf %260, %261 : vector<8x128xf32>
    %263 = arith.negf %262 : vector<8x128xf32>
    %264 = math.exp %263 : vector<8x128xf32>
    %cst_66 = arith.constant 1.000000e+00 : f32
    %265 = vector.broadcast %cst_66 : f32 to vector<8x128xf32>
    %266 = arith.addf %265, %264 : vector<8x128xf32>
    %267 = arith.divf %265, %266 : vector<8x128xf32>
    %268 = vector.extract_strided_slice %245 {offsets = [0, 256], sizes = [8, 128], strides = [1, 1]} : vector<8x384xf32> to vector<8x128xf32>
    %269 = vector.extract_strided_slice %250 {offsets = [0, 256], sizes = [8, 128], strides = [1, 1]} : vector<8x384xf32> to vector<8x128xf32>
    %270 = vector.broadcast %8 : vector<1x128xf32> to vector<8x128xf32>
    %271 = arith.addf %269, %270 : vector<8x128xf32>
    %272 = arith.mulf %259, %271 : vector<8x128xf32>
    %273 = arith.addf %268, %272 : vector<8x128xf32>
    %274 = math.tanh %273 : vector<8x128xf32>
    %275 = arith.subf %251, %274 : vector<8x128xf32>
    %276 = arith.mulf %267, %275 : vector<8x128xf32>
    %277 = arith.addf %274, %276 : vector<8x128xf32>
    %278 = vector.extract_strided_slice %249 {offsets = [0, 384], sizes = [8, 384], strides = [1, 1]} : vector<8x768xf32> to vector<8x384xf32>
    %279 = vector.extract_strided_slice %238 {offsets = [0, 128], sizes = [8, 128], strides = [1, 1]} : vector<8x256xf32> to vector<8x128xf32>
    %280 = vector.extract_strided_slice %247 {offsets = [0, 0], sizes = [8, 128], strides = [1, 1]} : vector<8x384xf32> to vector<8x128xf32>
    %281 = vector.extract_strided_slice %278 {offsets = [0, 0], sizes = [8, 128], strides = [1, 1]} : vector<8x384xf32> to vector<8x128xf32>
    %282 = arith.addf %280, %281 : vector<8x128xf32>
    %283 = arith.negf %282 : vector<8x128xf32>
    %284 = math.exp %283 : vector<8x128xf32>
    %cst_67 = arith.constant 1.000000e+00 : f32
    %285 = vector.broadcast %cst_67 : f32 to vector<8x128xf32>
    %286 = arith.addf %285, %284 : vector<8x128xf32>
    %287 = arith.divf %285, %286 : vector<8x128xf32>
    %288 = vector.extract_strided_slice %247 {offsets = [0, 128], sizes = [8, 128], strides = [1, 1]} : vector<8x384xf32> to vector<8x128xf32>
    %289 = vector.extract_strided_slice %278 {offsets = [0, 128], sizes = [8, 128], strides = [1, 1]} : vector<8x384xf32> to vector<8x128xf32>
    %290 = arith.addf %288, %289 : vector<8x128xf32>
    %291 = arith.negf %290 : vector<8x128xf32>
    %292 = math.exp %291 : vector<8x128xf32>
    %cst_68 = arith.constant 1.000000e+00 : f32
    %293 = vector.broadcast %cst_68 : f32 to vector<8x128xf32>
    %294 = arith.addf %293, %292 : vector<8x128xf32>
    %295 = arith.divf %293, %294 : vector<8x128xf32>
    %296 = vector.extract_strided_slice %247 {offsets = [0, 256], sizes = [8, 128], strides = [1, 1]} : vector<8x384xf32> to vector<8x128xf32>
    %297 = vector.extract_strided_slice %278 {offsets = [0, 256], sizes = [8, 128], strides = [1, 1]} : vector<8x384xf32> to vector<8x128xf32>
    %298 = vector.broadcast %9 : vector<1x128xf32> to vector<8x128xf32>
    %299 = arith.addf %297, %298 : vector<8x128xf32>
    %300 = arith.mulf %287, %299 : vector<8x128xf32>
    %301 = arith.addf %296, %300 : vector<8x128xf32>
    %302 = math.tanh %301 : vector<8x128xf32>
    %303 = arith.subf %279, %302 : vector<8x128xf32>
    %304 = arith.mulf %295, %303 : vector<8x128xf32>
    %305 = arith.addf %302, %304 : vector<8x128xf32>
    %306 = arith.index_cast %c3_i32 : i32 to index
    %c0_69 = arith.constant 0 : index
    %c0_70 = arith.constant 0 : index
    %307 = vector.load %arg7[%306, %c0_69, %c0_70] : memref<8x8x256xf32, #tpu.memory_space<vmem>>, vector<1x8x128xf32>
    %308 = vector.shape_cast %307 : vector<1x8x128xf32> to vector<8x128xf32>
    %309 = vector.shape_cast %277 : vector<8x128xf32> to vector<1x8x128xf32>
    tpu.vector_store %arg7[%306, %c0_69, %c0_70], %309 {strides = array<i32>} : memref<8x8x256xf32, #tpu.memory_space<vmem>>, vector<1x8x128xf32>,
    %310 = arith.index_cast %239 : i32 to index
    %c0_71 = arith.constant 0 : index
    %c128_72 = arith.constant 128 : index
    %311 = vector.load %arg7[%310, %c0_71, %c128_72] : memref<8x8x256xf32, #tpu.memory_space<vmem>>, vector<1x8x128xf32>
    %312 = vector.shape_cast %311 : vector<1x8x128xf32> to vector<8x128xf32>
    %313 = vector.shape_cast %305 : vector<8x128xf32> to vector<1x8x128xf32>
    tpu.vector_store %arg7[%310, %c0_71, %c128_72], %313 {strides = array<i32>} : memref<8x8x256xf32, #tpu.memory_space<vmem>>, vector<1x8x128xf32>,
    %314 = tpu.concatenate %277, %305 in 1 : vector<8x128xf32>, vector<8x128xf32> -> vector<8x256xf32>
    %c4_i32 = arith.constant 4 : i32
    %c7_i32_73 = arith.constant 7 : i32
    %315 = arith.subi %c7_i32_73, %c4_i32 : i32
    %c8_i32_74 = arith.constant 8 : i32
    %316 = arith.muli %c4_i32, %c8_i32_74 : i32
    %317 = tpu.assume_multiple %316, 8 : i32
    %c8_i32_75 = arith.constant 8 : i32
    %318 = arith.muli %315, %c8_i32_75 : i32
    %319 = tpu.assume_multiple %318, 8 : i32
    %320 = arith.index_cast %317 : i32 to index
    %c0_76 = arith.constant 0 : index
    %321 = vector.load %arg10[%320, %c0_76] : memref<64x768xf32, #tpu.memory_space<vmem>>, vector<8x384xf32>
    %322 = arith.index_cast %319 : i32 to index
    %c384_77 = arith.constant 384 : index
    %323 = vector.load %arg10[%322, %c384_77] : memref<64x768xf32, #tpu.memory_space<vmem>>, vector<8x384xf32>
    %c0_78 = arith.constant 0 : index
    %c0_79 = arith.constant 0 : index
    %324 = vector.load %arg4[%c0_78, %c0_79] : memref<256x768xf32, #tpu.memory_space<vmem>>, vector<256x768xf32>
    %cst_80 = arith.constant dense<0.000000e+00> : vector<8x768xf32>
    %325 = tpu.matmul %314, %324, %cst_80 {dimension_numbers = #tpu.dot_dimension_numbers<[1], [0], [0], [1], [0, 0, 1, 1], [], []>} : vector<8x256xf32>, vector<256x768xf32>, vector<8x768xf32> -> vector<8x768xf32>
    %326 = vector.extract_strided_slice %325 {offsets = [0, 0], sizes = [8, 384], strides = [1, 1]} : vector<8x768xf32> to vector<8x384xf32>
    %327 = vector.extract_strided_slice %314 {offsets = [0, 0], sizes = [8, 128], strides = [1, 1]} : vector<8x256xf32> to vector<8x128xf32>
    %328 = vector.extract_strided_slice %321 {offsets = [0, 0], sizes = [8, 128], strides = [1, 1]} : vector<8x384xf32> to vector<8x128xf32>
    %329 = vector.extract_strided_slice %326 {offsets = [0, 0], sizes = [8, 128], strides = [1, 1]} : vector<8x384xf32> to vector<8x128xf32>
    %330 = arith.addf %328, %329 : vector<8x128xf32>
    %331 = arith.negf %330 : vector<8x128xf32>
    %332 = math.exp %331 : vector<8x128xf32>
    %cst_81 = arith.constant 1.000000e+00 : f32
    %333 = vector.broadcast %cst_81 : f32 to vector<8x128xf32>
    %334 = arith.addf %333, %332 : vector<8x128xf32>
    %335 = arith.divf %333, %334 : vector<8x128xf32>
    %336 = vector.extract_strided_slice %321 {offsets = [0, 128], sizes = [8, 128], strides = [1, 1]} : vector<8x384xf32> to vector<8x128xf32>
    %337 = vector.extract_strided_slice %326 {offsets = [0, 128], sizes = [8, 128], strides = [1, 1]} : vector<8x384xf32> to vector<8x128xf32>
    %338 = arith.addf %336, %337 : vector<8x128xf32>
    %339 = arith.negf %338 : vector<8x128xf32>
    %340 = math.exp %339 : vector<8x128xf32>
    %cst_82 = arith.constant 1.000000e+00 : f32
    %341 = vector.broadcast %cst_82 : f32 to vector<8x128xf32>
    %342 = arith.addf %341, %340 : vector<8x128xf32>
    %343 = arith.divf %341, %342 : vector<8x128xf32>
    %344 = vector.extract_strided_slice %321 {offsets = [0, 256], sizes = [8, 128], strides = [1, 1]} : vector<8x384xf32> to vector<8x128xf32>
    %345 = vector.extract_strided_slice %326 {offsets = [0, 256], sizes = [8, 128], strides = [1, 1]} : vector<8x384xf32> to vector<8x128xf32>
    %346 = vector.broadcast %8 : vector<1x128xf32> to vector<8x128xf32>
    %347 = arith.addf %345, %346 : vector<8x128xf32>
    %348 = arith.mulf %335, %347 : vector<8x128xf32>
    %349 = arith.addf %344, %348 : vector<8x128xf32>
    %350 = math.tanh %349 : vector<8x128xf32>
    %351 = arith.subf %327, %350 : vector<8x128xf32>
    %352 = arith.mulf %343, %351 : vector<8x128xf32>
    %353 = arith.addf %350, %352 : vector<8x128xf32>
    %354 = vector.extract_strided_slice %325 {offsets = [0, 384], sizes = [8, 384], strides = [1, 1]} : vector<8x768xf32> to vector<8x384xf32>
    %355 = vector.extract_strided_slice %314 {offsets = [0, 128], sizes = [8, 128], strides = [1, 1]} : vector<8x256xf32> to vector<8x128xf32>
    %356 = vector.extract_strided_slice %323 {offsets = [0, 0], sizes = [8, 128], strides = [1, 1]} : vector<8x384xf32> to vector<8x128xf32>
    %357 = vector.extract_strided_slice %354 {offsets = [0, 0], sizes = [8, 128], strides = [1, 1]} : vector<8x384xf32> to vector<8x128xf32>
    %358 = arith.addf %356, %357 : vector<8x128xf32>
    %359 = arith.negf %358 : vector<8x128xf32>
    %360 = math.exp %359 : vector<8x128xf32>
    %cst_83 = arith.constant 1.000000e+00 : f32
    %361 = vector.broadcast %cst_83 : f32 to vector<8x128xf32>
    %362 = arith.addf %361, %360 : vector<8x128xf32>
    %363 = arith.divf %361, %362 : vector<8x128xf32>
    %364 = vector.extract_strided_slice %323 {offsets = [0, 128], sizes = [8, 128], strides = [1, 1]} : vector<8x384xf32> to vector<8x128xf32>
    %365 = vector.extract_strided_slice %354 {offsets = [0, 128], sizes = [8, 128], strides = [1, 1]} : vector<8x384xf32> to vector<8x128xf32>
    %366 = arith.addf %364, %365 : vector<8x128xf32>
    %367 = arith.negf %366 : vector<8x128xf32>
    %368 = math.exp %367 : vector<8x128xf32>
    %cst_84 = arith.constant 1.000000e+00 : f32
    %369 = vector.broadcast %cst_84 : f32 to vector<8x128xf32>
    %370 = arith.addf %369, %368 : vector<8x128xf32>
    %371 = arith.divf %369, %370 : vector<8x128xf32>
    %372 = vector.extract_strided_slice %323 {offsets = [0, 256], sizes = [8, 128], strides = [1, 1]} : vector<8x384xf32> to vector<8x128xf32>
    %373 = vector.extract_strided_slice %354 {offsets = [0, 256], sizes = [8, 128], strides = [1, 1]} : vector<8x384xf32> to vector<8x128xf32>
    %374 = vector.broadcast %9 : vector<1x128xf32> to vector<8x128xf32>
    %375 = arith.addf %373, %374 : vector<8x128xf32>
    %376 = arith.mulf %363, %375 : vector<8x128xf32>
    %377 = arith.addf %372, %376 : vector<8x128xf32>
    %378 = math.tanh %377 : vector<8x128xf32>
    %379 = arith.subf %355, %378 : vector<8x128xf32>
    %380 = arith.mulf %371, %379 : vector<8x128xf32>
    %381 = arith.addf %378, %380 : vector<8x128xf32>
    %382 = arith.index_cast %c4_i32 : i32 to index
    %c0_85 = arith.constant 0 : index
    %c0_86 = arith.constant 0 : index
    %383 = vector.load %arg7[%382, %c0_85, %c0_86] : memref<8x8x256xf32, #tpu.memory_space<vmem>>, vector<1x8x128xf32>
    %384 = vector.shape_cast %383 : vector<1x8x128xf32> to vector<8x128xf32>
    %385 = vector.shape_cast %353 : vector<8x128xf32> to vector<1x8x128xf32>
    tpu.vector_store %arg7[%382, %c0_85, %c0_86], %385 {strides = array<i32>} : memref<8x8x256xf32, #tpu.memory_space<vmem>>, vector<1x8x128xf32>,
    %386 = arith.index_cast %315 : i32 to index
    %c0_87 = arith.constant 0 : index
    %c128_88 = arith.constant 128 : index
    %387 = vector.load %arg7[%386, %c0_87, %c128_88] : memref<8x8x256xf32, #tpu.memory_space<vmem>>, vector<1x8x128xf32>
    %388 = vector.shape_cast %387 : vector<1x8x128xf32> to vector<8x128xf32>
    %389 = vector.shape_cast %381 : vector<8x128xf32> to vector<1x8x128xf32>
    tpu.vector_store %arg7[%386, %c0_87, %c128_88], %389 {strides = array<i32>} : memref<8x8x256xf32, #tpu.memory_space<vmem>>, vector<1x8x128xf32>,
    %390 = tpu.concatenate %353, %381 in 1 : vector<8x128xf32>, vector<8x128xf32> -> vector<8x256xf32>
    %c5_i32 = arith.constant 5 : i32
    %c7_i32_89 = arith.constant 7 : i32
    %391 = arith.subi %c7_i32_89, %c5_i32 : i32
    %c8_i32_90 = arith.constant 8 : i32
    %392 = arith.muli %c5_i32, %c8_i32_90 : i32
    %393 = tpu.assume_multiple %392, 8 : i32
    %c8_i32_91 = arith.constant 8 : i32
    %394 = arith.muli %391, %c8_i32_91 : i32
    %395 = tpu.assume_multiple %394, 8 : i32
    %396 = arith.index_cast %393 : i32 to index
    %c0_92 = arith.constant 0 : index
    %397 = vector.load %arg10[%396, %c0_92] : memref<64x768xf32, #tpu.memory_space<vmem>>, vector<8x384xf32>
    %398 = arith.index_cast %395 : i32 to index
    %c384_93 = arith.constant 384 : index
    %399 = vector.load %arg10[%398, %c384_93] : memref<64x768xf32, #tpu.memory_space<vmem>>, vector<8x384xf32>
    %c0_94 = arith.constant 0 : index
    %c0_95 = arith.constant 0 : index
    %400 = vector.load %arg4[%c0_94, %c0_95] : memref<256x768xf32, #tpu.memory_space<vmem>>, vector<256x768xf32>
    %cst_96 = arith.constant dense<0.000000e+00> : vector<8x768xf32>
    %401 = tpu.matmul %390, %400, %cst_96 {dimension_numbers = #tpu.dot_dimension_numbers<[1], [0], [0], [1], [0, 0, 1, 1], [], []>} : vector<8x256xf32>, vector<256x768xf32>, vector<8x768xf32> -> vector<8x768xf32>
    %402 = vector.extract_strided_slice %401 {offsets = [0, 0], sizes = [8, 384], strides = [1, 1]} : vector<8x768xf32> to vector<8x384xf32>
    %403 = vector.extract_strided_slice %390 {offsets = [0, 0], sizes = [8, 128], strides = [1, 1]} : vector<8x256xf32> to vector<8x128xf32>
    %404 = vector.extract_strided_slice %397 {offsets = [0, 0], sizes = [8, 128], strides = [1, 1]} : vector<8x384xf32> to vector<8x128xf32>
    %405 = vector.extract_strided_slice %402 {offsets = [0, 0], sizes = [8, 128], strides = [1, 1]} : vector<8x384xf32> to vector<8x128xf32>
    %406 = arith.addf %404, %405 : vector<8x128xf32>
    %407 = arith.negf %406 : vector<8x128xf32>
    %408 = math.exp %407 : vector<8x128xf32>
    %cst_97 = arith.constant 1.000000e+00 : f32
    %409 = vector.broadcast %cst_97 : f32 to vector<8x128xf32>
    %410 = arith.addf %409, %408 : vector<8x128xf32>
    %411 = arith.divf %409, %410 : vector<8x128xf32>
    %412 = vector.extract_strided_slice %397 {offsets = [0, 128], sizes = [8, 128], strides = [1, 1]} : vector<8x384xf32> to vector<8x128xf32>
    %413 = vector.extract_strided_slice %402 {offsets = [0, 128], sizes = [8, 128], strides = [1, 1]} : vector<8x384xf32> to vector<8x128xf32>
    %414 = arith.addf %412, %413 : vector<8x128xf32>
    %415 = arith.negf %414 : vector<8x128xf32>
    %416 = math.exp %415 : vector<8x128xf32>
    %cst_98 = arith.constant 1.000000e+00 : f32
    %417 = vector.broadcast %cst_98 : f32 to vector<8x128xf32>
    %418 = arith.addf %417, %416 : vector<8x128xf32>
    %419 = arith.divf %417, %418 : vector<8x128xf32>
    %420 = vector.extract_strided_slice %397 {offsets = [0, 256], sizes = [8, 128], strides = [1, 1]} : vector<8x384xf32> to vector<8x128xf32>
    %421 = vector.extract_strided_slice %402 {offsets = [0, 256], sizes = [8, 128], strides = [1, 1]} : vector<8x384xf32> to vector<8x128xf32>
    %422 = vector.broadcast %8 : vector<1x128xf32> to vector<8x128xf32>
    %423 = arith.addf %421, %422 : vector<8x128xf32>
    %424 = arith.mulf %411, %423 : vector<8x128xf32>
    %425 = arith.addf %420, %424 : vector<8x128xf32>
    %426 = math.tanh %425 : vector<8x128xf32>
    %427 = arith.subf %403, %426 : vector<8x128xf32>
    %428 = arith.mulf %419, %427 : vector<8x128xf32>
    %429 = arith.addf %426, %428 : vector<8x128xf32>
    %430 = vector.extract_strided_slice %401 {offsets = [0, 384], sizes = [8, 384], strides = [1, 1]} : vector<8x768xf32> to vector<8x384xf32>
    %431 = vector.extract_strided_slice %390 {offsets = [0, 128], sizes = [8, 128], strides = [1, 1]} : vector<8x256xf32> to vector<8x128xf32>
    %432 = vector.extract_strided_slice %399 {offsets = [0, 0], sizes = [8, 128], strides = [1, 1]} : vector<8x384xf32> to vector<8x128xf32>
    %433 = vector.extract_strided_slice %430 {offsets = [0, 0], sizes = [8, 128], strides = [1, 1]} : vector<8x384xf32> to vector<8x128xf32>
    %434 = arith.addf %432, %433 : vector<8x128xf32>
    %435 = arith.negf %434 : vector<8x128xf32>
    %436 = math.exp %435 : vector<8x128xf32>
    %cst_99 = arith.constant 1.000000e+00 : f32
    %437 = vector.broadcast %cst_99 : f32 to vector<8x128xf32>
    %438 = arith.addf %437, %436 : vector<8x128xf32>
    %439 = arith.divf %437, %438 : vector<8x128xf32>
    %440 = vector.extract_strided_slice %399 {offsets = [0, 128], sizes = [8, 128], strides = [1, 1]} : vector<8x384xf32> to vector<8x128xf32>
    %441 = vector.extract_strided_slice %430 {offsets = [0, 128], sizes = [8, 128], strides = [1, 1]} : vector<8x384xf32> to vector<8x128xf32>
    %442 = arith.addf %440, %441 : vector<8x128xf32>
    %443 = arith.negf %442 : vector<8x128xf32>
    %444 = math.exp %443 : vector<8x128xf32>
    %cst_100 = arith.constant 1.000000e+00 : f32
    %445 = vector.broadcast %cst_100 : f32 to vector<8x128xf32>
    %446 = arith.addf %445, %444 : vector<8x128xf32>
    %447 = arith.divf %445, %446 : vector<8x128xf32>
    %448 = vector.extract_strided_slice %399 {offsets = [0, 256], sizes = [8, 128], strides = [1, 1]} : vector<8x384xf32> to vector<8x128xf32>
    %449 = vector.extract_strided_slice %430 {offsets = [0, 256], sizes = [8, 128], strides = [1, 1]} : vector<8x384xf32> to vector<8x128xf32>
    %450 = vector.broadcast %9 : vector<1x128xf32> to vector<8x128xf32>
    %451 = arith.addf %449, %450 : vector<8x128xf32>
    %452 = arith.mulf %439, %451 : vector<8x128xf32>
    %453 = arith.addf %448, %452 : vector<8x128xf32>
    %454 = math.tanh %453 : vector<8x128xf32>
    %455 = arith.subf %431, %454 : vector<8x128xf32>
    %456 = arith.mulf %447, %455 : vector<8x128xf32>
    %457 = arith.addf %454, %456 : vector<8x128xf32>
    %458 = arith.index_cast %c5_i32 : i32 to index
    %c0_101 = arith.constant 0 : index
    %c0_102 = arith.constant 0 : index
    %459 = vector.load %arg7[%458, %c0_101, %c0_102] : memref<8x8x256xf32, #tpu.memory_space<vmem>>, vector<1x8x128xf32>
    %460 = vector.shape_cast %459 : vector<1x8x128xf32> to vector<8x128xf32>
    %461 = vector.shape_cast %429 : vector<8x128xf32> to vector<1x8x128xf32>
    tpu.vector_store %arg7[%458, %c0_101, %c0_102], %461 {strides = array<i32>} : memref<8x8x256xf32, #tpu.memory_space<vmem>>, vector<1x8x128xf32>,
    %462 = arith.index_cast %391 : i32 to index
    %c0_103 = arith.constant 0 : index
    %c128_104 = arith.constant 128 : index
    %463 = vector.load %arg7[%462, %c0_103, %c128_104] : memref<8x8x256xf32, #tpu.memory_space<vmem>>, vector<1x8x128xf32>
    %464 = vector.shape_cast %463 : vector<1x8x128xf32> to vector<8x128xf32>
    %465 = vector.shape_cast %457 : vector<8x128xf32> to vector<1x8x128xf32>
    tpu.vector_store %arg7[%462, %c0_103, %c128_104], %465 {strides = array<i32>} : memref<8x8x256xf32, #tpu.memory_space<vmem>>, vector<1x8x128xf32>,
    %466 = tpu.concatenate %429, %457 in 1 : vector<8x128xf32>, vector<8x128xf32> -> vector<8x256xf32>
    %c6_i32 = arith.constant 6 : i32
    %c7_i32_105 = arith.constant 7 : i32
    %467 = arith.subi %c7_i32_105, %c6_i32 : i32
    %c8_i32_106 = arith.constant 8 : i32
    %468 = arith.muli %c6_i32, %c8_i32_106 : i32
    %469 = tpu.assume_multiple %468, 8 : i32
    %c8_i32_107 = arith.constant 8 : i32
    %470 = arith.muli %467, %c8_i32_107 : i32
    %471 = tpu.assume_multiple %470, 8 : i32
    %472 = arith.index_cast %469 : i32 to index
    %c0_108 = arith.constant 0 : index
    %473 = vector.load %arg10[%472, %c0_108] : memref<64x768xf32, #tpu.memory_space<vmem>>, vector<8x384xf32>
    %474 = arith.index_cast %471 : i32 to index
    %c384_109 = arith.constant 384 : index
    %475 = vector.load %arg10[%474, %c384_109] : memref<64x768xf32, #tpu.memory_space<vmem>>, vector<8x384xf32>
    %c0_110 = arith.constant 0 : index
    %c0_111 = arith.constant 0 : index
    %476 = vector.load %arg4[%c0_110, %c0_111] : memref<256x768xf32, #tpu.memory_space<vmem>>, vector<256x768xf32>
    %cst_112 = arith.constant dense<0.000000e+00> : vector<8x768xf32>
    %477 = tpu.matmul %466, %476, %cst_112 {dimension_numbers = #tpu.dot_dimension_numbers<[1], [0], [0], [1], [0, 0, 1, 1], [], []>} : vector<8x256xf32>, vector<256x768xf32>, vector<8x768xf32> -> vector<8x768xf32>
    %478 = vector.extract_strided_slice %477 {offsets = [0, 0], sizes = [8, 384], strides = [1, 1]} : vector<8x768xf32> to vector<8x384xf32>
    %479 = vector.extract_strided_slice %466 {offsets = [0, 0], sizes = [8, 128], strides = [1, 1]} : vector<8x256xf32> to vector<8x128xf32>
    %480 = vector.extract_strided_slice %473 {offsets = [0, 0], sizes = [8, 128], strides = [1, 1]} : vector<8x384xf32> to vector<8x128xf32>
    %481 = vector.extract_strided_slice %478 {offsets = [0, 0], sizes = [8, 128], strides = [1, 1]} : vector<8x384xf32> to vector<8x128xf32>
    %482 = arith.addf %480, %481 : vector<8x128xf32>
    %483 = arith.negf %482 : vector<8x128xf32>
    %484 = math.exp %483 : vector<8x128xf32>
    %cst_113 = arith.constant 1.000000e+00 : f32
    %485 = vector.broadcast %cst_113 : f32 to vector<8x128xf32>
    %486 = arith.addf %485, %484 : vector<8x128xf32>
    %487 = arith.divf %485, %486 : vector<8x128xf32>
    %488 = vector.extract_strided_slice %473 {offsets = [0, 128], sizes = [8, 128], strides = [1, 1]} : vector<8x384xf32> to vector<8x128xf32>
    %489 = vector.extract_strided_slice %478 {offsets = [0, 128], sizes = [8, 128], strides = [1, 1]} : vector<8x384xf32> to vector<8x128xf32>
    %490 = arith.addf %488, %489 : vector<8x128xf32>
    %491 = arith.negf %490 : vector<8x128xf32>
    %492 = math.exp %491 : vector<8x128xf32>
    %cst_114 = arith.constant 1.000000e+00 : f32
    %493 = vector.broadcast %cst_114 : f32 to vector<8x128xf32>
    %494 = arith.addf %493, %492 : vector<8x128xf32>
    %495 = arith.divf %493, %494 : vector<8x128xf32>
    %496 = vector.extract_strided_slice %473 {offsets = [0, 256], sizes = [8, 128], strides = [1, 1]} : vector<8x384xf32> to vector<8x128xf32>
    %497 = vector.extract_strided_slice %478 {offsets = [0, 256], sizes = [8, 128], strides = [1, 1]} : vector<8x384xf32> to vector<8x128xf32>
    %498 = vector.broadcast %8 : vector<1x128xf32> to vector<8x128xf32>
    %499 = arith.addf %497, %498 : vector<8x128xf32>
    %500 = arith.mulf %487, %499 : vector<8x128xf32>
    %501 = arith.addf %496, %500 : vector<8x128xf32>
    %502 = math.tanh %501 : vector<8x128xf32>
    %503 = arith.subf %479, %502 : vector<8x128xf32>
    %504 = arith.mulf %495, %503 : vector<8x128xf32>
    %505 = arith.addf %502, %504 : vector<8x128xf32>
    %506 = vector.extract_strided_slice %477 {offsets = [0, 384], sizes = [8, 384], strides = [1, 1]} : vector<8x768xf32> to vector<8x384xf32>
    %507 = vector.extract_strided_slice %466 {offsets = [0, 128], sizes = [8, 128], strides = [1, 1]} : vector<8x256xf32> to vector<8x128xf32>
    %508 = vector.extract_strided_slice %475 {offsets = [0, 0], sizes = [8, 128], strides = [1, 1]} : vector<8x384xf32> to vector<8x128xf32>
    %509 = vector.extract_strided_slice %506 {offsets = [0, 0], sizes = [8, 128], strides = [1, 1]} : vector<8x384xf32> to vector<8x128xf32>
    %510 = arith.addf %508, %509 : vector<8x128xf32>
    %511 = arith.negf %510 : vector<8x128xf32>
    %512 = math.exp %511 : vector<8x128xf32>
    %cst_115 = arith.constant 1.000000e+00 : f32
    %513 = vector.broadcast %cst_115 : f32 to vector<8x128xf32>
    %514 = arith.addf %513, %512 : vector<8x128xf32>
    %515 = arith.divf %513, %514 : vector<8x128xf32>
    %516 = vector.extract_strided_slice %475 {offsets = [0, 128], sizes = [8, 128], strides = [1, 1]} : vector<8x384xf32> to vector<8x128xf32>
    %517 = vector.extract_strided_slice %506 {offsets = [0, 128], sizes = [8, 128], strides = [1, 1]} : vector<8x384xf32> to vector<8x128xf32>
    %518 = arith.addf %516, %517 : vector<8x128xf32>
    %519 = arith.negf %518 : vector<8x128xf32>
    %520 = math.exp %519 : vector<8x128xf32>
    %cst_116 = arith.constant 1.000000e+00 : f32
    %521 = vector.broadcast %cst_116 : f32 to vector<8x128xf32>
    %522 = arith.addf %521, %520 : vector<8x128xf32>
    %523 = arith.divf %521, %522 : vector<8x128xf32>
    %524 = vector.extract_strided_slice %475 {offsets = [0, 256], sizes = [8, 128], strides = [1, 1]} : vector<8x384xf32> to vector<8x128xf32>
    %525 = vector.extract_strided_slice %506 {offsets = [0, 256], sizes = [8, 128], strides = [1, 1]} : vector<8x384xf32> to vector<8x128xf32>
    %526 = vector.broadcast %9 : vector<1x128xf32> to vector<8x128xf32>
    %527 = arith.addf %525, %526 : vector<8x128xf32>
    %528 = arith.mulf %515, %527 : vector<8x128xf32>
    %529 = arith.addf %524, %528 : vector<8x128xf32>
    %530 = math.tanh %529 : vector<8x128xf32>
    %531 = arith.subf %507, %530 : vector<8x128xf32>
    %532 = arith.mulf %523, %531 : vector<8x128xf32>
    %533 = arith.addf %530, %532 : vector<8x128xf32>
    %534 = arith.index_cast %c6_i32 : i32 to index
    %c0_117 = arith.constant 0 : index
    %c0_118 = arith.constant 0 : index
    %535 = vector.load %arg7[%534, %c0_117, %c0_118] : memref<8x8x256xf32, #tpu.memory_space<vmem>>, vector<1x8x128xf32>
    %536 = vector.shape_cast %535 : vector<1x8x128xf32> to vector<8x128xf32>
    %537 = vector.shape_cast %505 : vector<8x128xf32> to vector<1x8x128xf32>
    tpu.vector_store %arg7[%534, %c0_117, %c0_118], %537 {strides = array<i32>} : memref<8x8x256xf32, #tpu.memory_space<vmem>>, vector<1x8x128xf32>,
    %538 = arith.index_cast %467 : i32 to index
    %c0_119 = arith.constant 0 : index
    %c128_120 = arith.constant 128 : index
    %539 = vector.load %arg7[%538, %c0_119, %c128_120] : memref<8x8x256xf32, #tpu.memory_space<vmem>>, vector<1x8x128xf32>
    %540 = vector.shape_cast %539 : vector<1x8x128xf32> to vector<8x128xf32>
    %541 = vector.shape_cast %533 : vector<8x128xf32> to vector<1x8x128xf32>
    tpu.vector_store %arg7[%538, %c0_119, %c128_120], %541 {strides = array<i32>} : memref<8x8x256xf32, #tpu.memory_space<vmem>>, vector<1x8x128xf32>,
    %542 = tpu.concatenate %505, %533 in 1 : vector<8x128xf32>, vector<8x128xf32> -> vector<8x256xf32>
    %c7_i32_121 = arith.constant 7 : i32
    %c7_i32_122 = arith.constant 7 : i32
    %543 = arith.subi %c7_i32_122, %c7_i32_121 : i32
    %c8_i32_123 = arith.constant 8 : i32
    %544 = arith.muli %c7_i32_121, %c8_i32_123 : i32
    %545 = tpu.assume_multiple %544, 8 : i32
    %c8_i32_124 = arith.constant 8 : i32
    %546 = arith.muli %543, %c8_i32_124 : i32
    %547 = tpu.assume_multiple %546, 8 : i32
    %548 = arith.index_cast %545 : i32 to index
    %c0_125 = arith.constant 0 : index
    %549 = vector.load %arg10[%548, %c0_125] : memref<64x768xf32, #tpu.memory_space<vmem>>, vector<8x384xf32>
    %550 = arith.index_cast %547 : i32 to index
    %c384_126 = arith.constant 384 : index
    %551 = vector.load %arg10[%550, %c384_126] : memref<64x768xf32, #tpu.memory_space<vmem>>, vector<8x384xf32>
    %c0_127 = arith.constant 0 : index
    %c0_128 = arith.constant 0 : index
    %552 = vector.load %arg4[%c0_127, %c0_128] : memref<256x768xf32, #tpu.memory_space<vmem>>, vector<256x768xf32>
    %cst_129 = arith.constant dense<0.000000e+00> : vector<8x768xf32>
    %553 = tpu.matmul %542, %552, %cst_129 {dimension_numbers = #tpu.dot_dimension_numbers<[1], [0], [0], [1], [0, 0, 1, 1], [], []>} : vector<8x256xf32>, vector<256x768xf32>, vector<8x768xf32> -> vector<8x768xf32>
    %554 = vector.extract_strided_slice %553 {offsets = [0, 0], sizes = [8, 384], strides = [1, 1]} : vector<8x768xf32> to vector<8x384xf32>
    %555 = vector.extract_strided_slice %542 {offsets = [0, 0], sizes = [8, 128], strides = [1, 1]} : vector<8x256xf32> to vector<8x128xf32>
    %556 = vector.extract_strided_slice %549 {offsets = [0, 0], sizes = [8, 128], strides = [1, 1]} : vector<8x384xf32> to vector<8x128xf32>
    %557 = vector.extract_strided_slice %554 {offsets = [0, 0], sizes = [8, 128], strides = [1, 1]} : vector<8x384xf32> to vector<8x128xf32>
    %558 = arith.addf %556, %557 : vector<8x128xf32>
    %559 = arith.negf %558 : vector<8x128xf32>
    %560 = math.exp %559 : vector<8x128xf32>
    %cst_130 = arith.constant 1.000000e+00 : f32
    %561 = vector.broadcast %cst_130 : f32 to vector<8x128xf32>
    %562 = arith.addf %561, %560 : vector<8x128xf32>
    %563 = arith.divf %561, %562 : vector<8x128xf32>
    %564 = vector.extract_strided_slice %549 {offsets = [0, 128], sizes = [8, 128], strides = [1, 1]} : vector<8x384xf32> to vector<8x128xf32>
    %565 = vector.extract_strided_slice %554 {offsets = [0, 128], sizes = [8, 128], strides = [1, 1]} : vector<8x384xf32> to vector<8x128xf32>
    %566 = arith.addf %564, %565 : vector<8x128xf32>
    %567 = arith.negf %566 : vector<8x128xf32>
    %568 = math.exp %567 : vector<8x128xf32>
    %cst_131 = arith.constant 1.000000e+00 : f32
    %569 = vector.broadcast %cst_131 : f32 to vector<8x128xf32>
    %570 = arith.addf %569, %568 : vector<8x128xf32>
    %571 = arith.divf %569, %570 : vector<8x128xf32>
    %572 = vector.extract_strided_slice %549 {offsets = [0, 256], sizes = [8, 128], strides = [1, 1]} : vector<8x384xf32> to vector<8x128xf32>
    %573 = vector.extract_strided_slice %554 {offsets = [0, 256], sizes = [8, 128], strides = [1, 1]} : vector<8x384xf32> to vector<8x128xf32>
    %574 = vector.broadcast %8 : vector<1x128xf32> to vector<8x128xf32>
    %575 = arith.addf %573, %574 : vector<8x128xf32>
    %576 = arith.mulf %563, %575 : vector<8x128xf32>
    %577 = arith.addf %572, %576 : vector<8x128xf32>
    %578 = math.tanh %577 : vector<8x128xf32>
    %579 = arith.subf %555, %578 : vector<8x128xf32>
    %580 = arith.mulf %571, %579 : vector<8x128xf32>
    %581 = arith.addf %578, %580 : vector<8x128xf32>
    %582 = vector.extract_strided_slice %553 {offsets = [0, 384], sizes = [8, 384], strides = [1, 1]} : vector<8x768xf32> to vector<8x384xf32>
    %583 = vector.extract_strided_slice %542 {offsets = [0, 128], sizes = [8, 128], strides = [1, 1]} : vector<8x256xf32> to vector<8x128xf32>
    %584 = vector.extract_strided_slice %551 {offsets = [0, 0], sizes = [8, 128], strides = [1, 1]} : vector<8x384xf32> to vector<8x128xf32>
    %585 = vector.extract_strided_slice %582 {offsets = [0, 0], sizes = [8, 128], strides = [1, 1]} : vector<8x384xf32> to vector<8x128xf32>
    %586 = arith.addf %584, %585 : vector<8x128xf32>
    %587 = arith.negf %586 : vector<8x128xf32>
    %588 = math.exp %587 : vector<8x128xf32>
    %cst_132 = arith.constant 1.000000e+00 : f32
    %589 = vector.broadcast %cst_132 : f32 to vector<8x128xf32>
    %590 = arith.addf %589, %588 : vector<8x128xf32>
    %591 = arith.divf %589, %590 : vector<8x128xf32>
    %592 = vector.extract_strided_slice %551 {offsets = [0, 128], sizes = [8, 128], strides = [1, 1]} : vector<8x384xf32> to vector<8x128xf32>
    %593 = vector.extract_strided_slice %582 {offsets = [0, 128], sizes = [8, 128], strides = [1, 1]} : vector<8x384xf32> to vector<8x128xf32>
    %594 = arith.addf %592, %593 : vector<8x128xf32>
    %595 = arith.negf %594 : vector<8x128xf32>
    %596 = math.exp %595 : vector<8x128xf32>
    %cst_133 = arith.constant 1.000000e+00 : f32
    %597 = vector.broadcast %cst_133 : f32 to vector<8x128xf32>
    %598 = arith.addf %597, %596 : vector<8x128xf32>
    %599 = arith.divf %597, %598 : vector<8x128xf32>
    %600 = vector.extract_strided_slice %551 {offsets = [0, 256], sizes = [8, 128], strides = [1, 1]} : vector<8x384xf32> to vector<8x128xf32>
    %601 = vector.extract_strided_slice %582 {offsets = [0, 256], sizes = [8, 128], strides = [1, 1]} : vector<8x384xf32> to vector<8x128xf32>
    %602 = vector.broadcast %9 : vector<1x128xf32> to vector<8x128xf32>
    %603 = arith.addf %601, %602 : vector<8x128xf32>
    %604 = arith.mulf %591, %603 : vector<8x128xf32>
    %605 = arith.addf %600, %604 : vector<8x128xf32>
    %606 = math.tanh %605 : vector<8x128xf32>
    %607 = arith.subf %583, %606 : vector<8x128xf32>
    %608 = arith.mulf %599, %607 : vector<8x128xf32>
    %609 = arith.addf %606, %608 : vector<8x128xf32>
    %610 = arith.index_cast %c7_i32_121 : i32 to index
    %c0_134 = arith.constant 0 : index
    %c0_135 = arith.constant 0 : index
    %611 = vector.load %arg7[%610, %c0_134, %c0_135] : memref<8x8x256xf32, #tpu.memory_space<vmem>>, vector<1x8x128xf32>
    %612 = vector.shape_cast %611 : vector<1x8x128xf32> to vector<8x128xf32>
    %613 = vector.shape_cast %581 : vector<8x128xf32> to vector<1x8x128xf32>
    tpu.vector_store %arg7[%610, %c0_134, %c0_135], %613 {strides = array<i32>} : memref<8x8x256xf32, #tpu.memory_space<vmem>>, vector<1x8x128xf32>,
    %614 = arith.index_cast %543 : i32 to index
    %c0_136 = arith.constant 0 : index
    %c128_137 = arith.constant 128 : index
    %615 = vector.load %arg7[%614, %c0_136, %c128_137] : memref<8x8x256xf32, #tpu.memory_space<vmem>>, vector<1x8x128xf32>
    %616 = vector.shape_cast %615 : vector<1x8x128xf32> to vector<8x128xf32>
    %617 = vector.shape_cast %609 : vector<8x128xf32> to vector<1x8x128xf32>
    tpu.vector_store %arg7[%614, %c0_136, %c128_137], %617 {strides = array<i32>} : memref<8x8x256xf32, #tpu.memory_space<vmem>>, vector<1x8x128xf32>,
    %618 = tpu.concatenate %581, %609 in 1 : vector<8x128xf32>, vector<8x128xf32> -> vector<8x256xf32>
    %c8_i32_138 = arith.constant 8 : i32
    %619 = vector.extract_strided_slice %618 {offsets = [0, 0], sizes = [8, 128], strides = [1, 1]} : vector<8x256xf32> to vector<8x128xf32>
    %c0_139 = arith.constant 0 : index
    %c0_140 = arith.constant 0 : index
    %620 = vector.load %arg8[%c0_139, %c0_140] : memref<8x128xf32, #tpu.memory_space<vmem>>, vector<8x128xf32>
    tpu.vector_store %arg8[%c0_139, %c0_140], %619 {strides = array<i32>} : memref<8x128xf32, #tpu.memory_space<vmem>>, vector<8x128xf32>,
    %621 = vector.extract_strided_slice %618 {offsets = [0, 128], sizes = [8, 128], strides = [1, 1]} : vector<8x256xf32> to vector<8x128xf32>
    %c0_141 = arith.constant 0 : index
    %c0_142 = arith.constant 0 : index
    %622 = vector.load %arg9[%c0_141, %c0_142] : memref<8x128xf32, #tpu.memory_space<vmem>>, vector<8x128xf32>
    tpu.vector_store %arg9[%c0_141, %c0_142], %621 {strides = array<i32>} : memref<8x128xf32, #tpu.memory_space<vmem>>, vector<8x128xf32>,
    return
  }
  func.func @transform_0(%arg0: i32) -> (i32, i32, i32) {
    %c0_i32 = arith.constant 0 : i32
    %c0_i32_0 = arith.constant 0 : i32
    %c0_i32_1 = arith.constant 0 : i32
    return %c0_i32, %arg0, %c0_i32_0 : i32, i32, i32
  }
  func.func @transform_1(%arg0: i32) -> (i32, i32) {
    %c0_i32 = arith.constant 0 : i32
    %c0_i32_0 = arith.constant 0 : i32
    %c0_i32_1 = arith.constant 0 : i32
    return %c0_i32, %c0_i32_0 : i32, i32
  }
  func.func @transform_2(%arg0: i32) -> (i32, i32) {
    %c0_i32 = arith.constant 0 : i32
    %c0_i32_0 = arith.constant 0 : i32
    %c0_i32_1 = arith.constant 0 : i32
    return %c0_i32, %c0_i32_0 : i32, i32
  }
  func.func @transform_3(%arg0: i32) -> (i32, i32) {
    %c0_i32 = arith.constant 0 : i32
    %c0_i32_0 = arith.constant 0 : i32
    %c0_i32_1 = arith.constant 0 : i32
    return %c0_i32, %c0_i32_0 : i32, i32
  }
  func.func @transform_4(%arg0: i32) -> (i32, i32) {
    %c0_i32 = arith.constant 0 : i32
    %c0_i32_0 = arith.constant 0 : i32
    %c0_i32_1 = arith.constant 0 : i32
    return %c0_i32, %c0_i32_0 : i32, i32
  }
  func.func @transform_5(%arg0: i32) -> (i32, i32) {
    %c0_i32 = arith.constant 0 : i32
    %c0_i32_0 = arith.constant 0 : i32
    %c0_i32_1 = arith.constant 0 : i32
    return %c0_i32, %c0_i32_0 : i32, i32
  }
  func.func @transform_6(%arg0: i32) -> (i32, i32, i32) {
    %c0_i32 = arith.constant 0 : i32
    %c0_i32_0 = arith.constant 0 : i32
    %c0_i32_1 = arith.constant 0 : i32
    return %c0_i32, %arg0, %c0_i32_0 : i32, i32, i32
  }
  func.func @transform_7(%arg0: i32) -> (i32, i32) {
    %c0_i32 = arith.constant 0 : i32
    %c0_i32_0 = arith.constant 0 : i32
    return %arg0, %c0_i32 : i32, i32
  }
  func.func @transform_8(%arg0: i32) -> (i32, i32) {
    %c0_i32 = arith.constant 0 : i32
    %c0_i32_0 = arith.constant 0 : i32
    return %arg0, %c0_i32 : i32, i32
  }
}

</mosaic_0001>

<llo_original>
// kernel: encoder_forward.1
$region0: #{encoder_forward.1}
  #allocation0 [shape = 'u32[]', space=smem, size = 0x4, offset = 0x4, fixed_abs, tag = 'smem constant byte address 0x4 - core index']
  #allocation1 [shape = 'u32[72,128]{1,0:T(1,128)}', space=vmem, size = 0x9000, scoped, tag = 'internal scratch']
  #allocation2 [shape = 'f32[64,768]{1,0:T(8,128)}', space=vmem, size = 0x30000, scoped, tag = 'scratch operand']
  %s0 = inlined_call_operand.vmem [shape: f32[8,8,32], index: 0, kind: input, shape index: {}]
  %s1 = inlined_call_operand.vmem [shape: f32[32,768], index: 1, kind: input, shape index: {}]
  %s2 = inlined_call_operand.vmem [shape: f32[1,768], index: 2, kind: input, shape index: {}]
  %s3 = inlined_call_operand.hbm [shape: f32[256,768], index: 3, kind: input, shape index: {}]
  %s4 = inlined_call_operand.vmem [shape: f32[1,128], index: 4, kind: input, shape index: {}]
  %s5 = inlined_call_operand.vmem [shape: f32[1,128], index: 5, kind: input, shape index: {}]
  %s6 = inlined_call_operand.vmem [shape: f32[8,8,256], index: 6, kind: output, shape index: {0}]
  %s7 = inlined_call_operand.vmem [shape: f32[8,128], index: 7, kind: output, shape index: {1}]
  %s8 = inlined_call_operand.vmem [shape: f32[8,128], index: 8, kind: output, shape index: {2}]
  %9 = xla_tuple %s6, %s7, %s8
  %s10 = sld [smem:[#allocation0]]
  $region54: #{encoder_forward.1} parent=0
    _
  %s12 = ssub.s32 1, %s10
  %s13 = scalar_select 0, %s12, %s10
  $region1: #{encoder_forward.1} parent=0
    #allocation3 [shape = 'u8[786432]{0}', space=vmem, size = 0xc0000, scoped, tag = 'input window, operand 3, single buffered']
    #allocation4 [shape = 's32[1]{0}', space=sflag, size = 0x4, scoped, tag = 'scoped memory for encoder_forward.1']
    %14 = vsyncpa [#allocation4], 0
    // Predicated region
    $region2: #{encoder_forward.1} parent=1 // pred_check
      _
    $region3: #{encoder_forward.1} parent=1 // pred_check_branch
      %16 = sbr.rel (0) target = $region5
    $region4: #{encoder_forward.1} parent=1 // pred_region
      _
    $region5: #{encoder_forward.1} parent=1 // pred_fallthru
      _
    // Predicated region
    $region6: #{encoder_forward.1} parent=1 // pred_check
      _
    $region7: #{encoder_forward.1} parent=1 // pred_check_branch
      %18 = sbr.rel (0) target = $region9
    $region8: #{encoder_forward.1} parent=1 // pred_region
      _
    $region9: #{encoder_forward.1} parent=1 // pred_fallthru
      _
    // Predicated region
    $region10: #{encoder_forward.1} parent=1 // pred_check
      _
    $region11: #{encoder_forward.1} parent=1 // pred_check_branch
      %20 = sbr.rel (0) target = $region13
    $region12: #{encoder_forward.1} parent=1 // pred_region
      _
    $region13: #{encoder_forward.1} parent=1 // pred_fallthru
      _
    // Predicated region
    $region14: #{encoder_forward.1} parent=1 // pred_check
      _
    $region15: #{encoder_forward.1} parent=1 // pred_check_branch
      %22 = sbr.rel (0) target = $region17
    $region16: #{encoder_forward.1} parent=1 // pred_region
      %24 = vsyncadd [#allocation4], 0
      %s25 = sshll.u32 %s3, 4
      %s26 = int_to_ptr.hbm [resolvable:$true] %s25
      %s27 = sshll.u32 [#allocation3], 4
      %s28 = int_to_ptr.vmem [resolvable:$true] %s27
      %33 = dma.hbm_to_vmem [thread:$0]  %s26, 24576, %s28, [#allocation4], 768, 768, 48
    $region17: #{encoder_forward.1} parent=1 // pred_fallthru
      _
    // Predicated region
    $region18: #{encoder_forward.1} parent=1 // pred_check
      _
    $region19: #{encoder_forward.1} parent=1 // pred_check_branch
      %35 = sbr.rel (0) target = $region21
    $region20: #{encoder_forward.1} parent=1 // pred_region
      _
    $region21: #{encoder_forward.1} parent=1 // pred_fallthru
      _
    // Predicated region
    $region22: #{encoder_forward.1} parent=1 // pred_check
      _
    $region23: #{encoder_forward.1} parent=1 // pred_check_branch
      %37 = sbr.rel (0) target = $region25
    $region24: #{encoder_forward.1} parent=1 // pred_region
      _
    $region25: #{encoder_forward.1} parent=1 // pred_fallthru
      _
    // Predicated region
    $region26: #{encoder_forward.1} parent=1 // pred_check
      _
    $region27: #{encoder_forward.1} parent=1 // pred_check_branch
      %39 = sbr.rel (0) target = $region29
    $region28: #{encoder_forward.1} parent=1 // pred_region
      %41 = dma.done [#allocation4], 24576
    $region29: #{encoder_forward.1} parent=1 // pred_fallthru
      _
    %v42 = vld [vmem:[%s0] sm:$0xff]
    %v43 = vld [vmem:[%s0 + $0x8] sm:$0xff]
    %v44 = vld [vmem:[%s0 + $0x10] sm:$0xff]
    %v45 = vld [vmem:[%s0 + $0x18] sm:$0xff]
    %v46 = vld [vmem:[%s0 + $0x20] sm:$0xff]
    %v47 = vld [vmem:[%s0 + $0x28] sm:$0xff]
    %v48 = vld [vmem:[%s0 + $0x30] sm:$0xff]
    %v49 = vld [vmem:[%s0 + $0x38] sm:$0xff]
    %v50 = vld [vmem:[%s1] sm:$0xff]
    %v51 = vld [vmem:[%s1 + $0x8] sm:$0xff]
    %v52 = vld [vmem:[%s1 + $0x10] sm:$0xff]
    %v53 = vld [vmem:[%s1 + $0x18] sm:$0xff]
    %v54 = vld [vmem:[%s1 + $0x20] sm:$0xff]
    %v55 = vld [vmem:[%s1 + $0x28] sm:$0xff]
    %v56 = vld [vmem:[%s1 + $0x30] sm:$0xff]
    %v57 = vld [vmem:[%s1 + $0x38] sm:$0xff]
    %v58 = vld [vmem:[%s1 + $0x40] sm:$0xff]
    %v59 = vld [vmem:[%s1 + $0x48] sm:$0xff]
    %v60 = vld [vmem:[%s1 + $0x50] sm:$0xff]
    %v61 = vld [vmem:[%s1 + $0x58] sm:$0xff]
    %v62 = vld [vmem:[%s1 + $0x60] sm:$0xff]
    %v63 = vld [vmem:[%s1 + $0x68] sm:$0xff]
    %v64 = vld [vmem:[%s1 + $0x70] sm:$0xff]
    %v65 = vld [vmem:[%s1 + $0x78] sm:$0xff]
    %v66 = vld [vmem:[%s1 + $0x80] sm:$0xff]
    %v67 = vld [vmem:[%s1 + $0x88] sm:$0xff]
    %v68 = vld [vmem:[%s1 + $0x90] sm:$0xff]
    %v69 = vld [vmem:[%s1 + $0x98] sm:$0xff]
    %v70 = vld [vmem:[%s1 + $0xa0] sm:$0xff]
    %v71 = vld [vmem:[%s1 + $0xa8] sm:$0xff]
    %v72 = vld [vmem:[%s1 + $0xb0] sm:$0xff]
    %v73 = vld [vmem:[%s1 + $0xb8] sm:$0xff]
    %v74 = vld [vmem:[%s2] sm:$0x3f]
    %v76 = vperm.slane %v74, 0
    %v77 = vperm.slane %v74, 1
    %v78 = vperm.slane %v74, 2
    %v79 = vperm.slane %v74, 3
    %v80 = vperm.slane %v74, 4
    %v81 = vperm.slane %v74, 5
    %vm88 = vcmask 261120
    %v90 = vsel %vm88, %v42, 0
    %v93 = vsel %vm88, %v43, 0
    %v96 = vsel %vm88, %v44, 0
    %v99 = vsel %vm88, %v45, 0
    %v102 = vsel %vm88, %v46, 0
    %v105 = vsel %vm88, %v47, 0
    %v108 = vsel %vm88, %v48, 0
    %v111 = vsel %vm88, %v49, 0
    %113 = vmatpush.msra.mxu0 0.0
    %114 = vmatpush.msra.mxu0 0.0
    %115 = vmatpush.msra.mxu0 0.0
    %116 = vmatpush.msra.mxu0 0.0
    %117 = vmatpush.msra.mxu0 0.0
    %118 = vmatpush.msra.mxu0 0.0
    %119 = vmatpush.msra.mxu0 0.0
    %120 = vmatpush.msra.mxu0 0.0
    %121 = vmatpush.msra.mxu0 0.0
    %122 = vmatpush.msra.mxu0 0.0
    %123 = vmatpush.msra.mxu0 0.0
    %124 = vmatpush.msra.mxu0 0.0
    %125 = vmatpush.msra.mxu0 %v68
    %126 = vmatpush.msra.mxu0 %v62
    %127 = vmatpush.msra.mxu0 %v56
    %128 = vmatpush.msra.mxu0 %v50
    %129 = vmatmul.f32.gmra.mxu0 %v90
    %v130 = vpop.f32.mrf.mxu0
    %v131 = vadd.f32 %v76, %v130
    %132 = vmatmul.f32.gmra.mxu0 %v93
    %v133 = vpop.f32.mrf.mxu0
    %v134 = vadd.f32 %v76, %v133
    %135 = vmatmul.f32.gmra.mxu0 %v96
    %v136 = vpop.f32.mrf.mxu0
    %v137 = vadd.f32 %v76, %v136
    %138 = vmatmul.f32.gmra.mxu0 %v99
    %v139 = vpop.f32.mrf.mxu0
    %v140 = vadd.f32 %v76, %v139
    %141 = vmatmul.f32.gmra.mxu0 %v102
    %v142 = vpop.f32.mrf.mxu0
    %v143 = vadd.f32 %v76, %v142
    %144 = vmatmul.f32.gmra.mxu0 %v105
    %v145 = vpop.f32.mrf.mxu0
    %v146 = vadd.f32 %v76, %v145
    %147 = vmatmul.f32.gmra.mxu0 %v108
    %v148 = vpop.f32.mrf.mxu0
    %v149 = vadd.f32 %v76, %v148
    %150 = vmatmul.f32.gmra.mxu0 %v111
    %v151 = vpop.f32.mrf.mxu0
    %v152 = vadd.f32 %v76, %v151
    %153 = vdwg.mxu0
    %154 = vmatpush.msra.mxu0 0.0
    %155 = vmatpush.msra.mxu0 0.0
    %156 = vmatpush.msra.mxu0 0.0
    %157 = vmatpush.msra.mxu0 0.0
    %158 = vmatpush.msra.mxu0 0.0
    %159 = vmatpush.msra.mxu0 0.0
    %160 = vmatpush.msra.mxu0 0.0
    %161 = vmatpush.msra.mxu0 0.0
    %162 = vmatpush.msra.mxu0 0.0
    %163 = vmatpush.msra.mxu0 0.0
    %164 = vmatpush.msra.mxu0 0.0
    %165 = vmatpush.msra.mxu0 0.0
    %166 = vmatpush.msra.mxu0 %v69
    %167 = vmatpush.msra.mxu0 %v63
    %168 = vmatpush.msra.mxu0 %v57
    %169 = vmatpush.msra.mxu0 %v51
    %170 = vmatmul.f32.gmra.mxu0 %v90
    %v171 = vpop.f32.mrf.mxu0
    %v172 = vadd.f32 %v77, %v171
    %173 = vmatmul.f32.gmra.mxu0 %v93
    %v174 = vpop.f32.mrf.mxu0
    %v175 = vadd.f32 %v77, %v174
    %176 = vmatmul.f32.gmra.mxu0 %v96
    %v177 = vpop.f32.mrf.mxu0
    %v178 = vadd.f32 %v77, %v177
    %179 = vmatmul.f32.gmra.mxu0 %v99
    %v180 = vpop.f32.mrf.mxu0
    %v181 = vadd.f32 %v77, %v180
    %182 = vmatmul.f32.gmra.mxu0 %v102
    %v183 = vpop.f32.mrf.mxu0
    %v184 = vadd.f32 %v77, %v183
    %185 = vmatmul.f32.gmra.mxu0 %v105
    %v186 = vpop.f32.mrf.mxu0
    %v187 = vadd.f32 %v77, %v186
    %188 = vmatmul.f32.gmra.mxu0 %v108
    %v189 = vpop.f32.mrf.mxu0
    %v190 = vadd.f32 %v77, %v189
    %191 = vmatmul.f32.gmra.mxu0 %v111
    %v192 = vpop.f32.mrf.mxu0
    %v193 = vadd.f32 %v77, %v192
    %194 = vdwg.mxu0
    %195 = vmatpush.msra.mxu0 0.0
    %196 = vmatpush.msra.mxu0 0.0
    %197 = vmatpush.msra.mxu0 0.0
    %198 = vmatpush.msra.mxu0 0.0
    %199 = vmatpush.msra.mxu0 0.0
    %200 = vmatpush.msra.mxu0 0.0
    %201 = vmatpush.msra.mxu0 0.0
    %202 = vmatpush.msra.mxu0 0.0
    %203 = vmatpush.msra.mxu0 0.0
    %204 = vmatpush.msra.mxu0 0.0
    %205 = vmatpush.msra.mxu0 0.0
    %206 = vmatpush.msra.mxu0 0.0
    %207 = vmatpush.msra.mxu0 %v70
    %208 = vmatpush.msra.mxu0 %v64
    %209 = vmatpush.msra.mxu0 %v58
    %210 = vmatpush.msra.mxu0 %v52
    %211 = vmatmul.f32.gmra.mxu0 %v90
    %v212 = vpop.f32.mrf.mxu0
    %v213 = vadd.f32 %v78, %v212
    %214 = vmatmul.f32.gmra.mxu0 %v93
    %v215 = vpop.f32.mrf.mxu0
    %v216 = vadd.f32 %v78, %v215
    %217 = vmatmul.f32.gmra.mxu0 %v96
    %v218 = vpop.f32.mrf.mxu0
    %v219 = vadd.f32 %v78, %v218
    %220 = vmatmul.f32.gmra.mxu0 %v99
    %v221 = vpop.f32.mrf.mxu0
    %v222 = vadd.f32 %v78, %v221
    %223 = vmatmul.f32.gmra.mxu0 %v102
    %v224 = vpop.f32.mrf.mxu0
    %v225 = vadd.f32 %v78, %v224
    %226 = vmatmul.f32.gmra.mxu0 %v105
    %v227 = vpop.f32.mrf.mxu0
    %v228 = vadd.f32 %v78, %v227
    %229 = vmatmul.f32.gmra.mxu0 %v108
    %v230 = vpop.f32.mrf.mxu0
    %v231 = vadd.f32 %v78, %v230
    %232 = vmatmul.f32.gmra.mxu0 %v111
    %v233 = vpop.f32.mrf.mxu0
    %v234 = vadd.f32 %v78, %v233
    %235 = vdwg.mxu0
    %236 = vmatpush.msra.mxu0 0.0
    %237 = vmatpush.msra.mxu0 0.0
    %238 = vmatpush.msra.mxu0 0.0
    %239 = vmatpush.msra.mxu0 0.0
    %240 = vmatpush.msra.mxu0 0.0
    %241 = vmatpush.msra.mxu0 0.0
    %242 = vmatpush.msra.mxu0 0.0
    %243 = vmatpush.msra.mxu0 0.0
    %244 = vmatpush.msra.mxu0 0.0
    %245 = vmatpush.msra.mxu0 0.0
    %246 = vmatpush.msra.mxu0 0.0
    %247 = vmatpush.msra.mxu0 0.0
    %248 = vmatpush.msra.mxu0 %v71
    %249 = vmatpush.msra.mxu0 %v65
    %250 = vmatpush.msra.mxu0 %v59
    %251 = vmatpush.msra.mxu0 %v53
    %252 = vmatmul.f32.gmra.mxu0 %v90
    %v253 = vpop.f32.mrf.mxu0
    %v254 = vadd.f32 %v79, %v253
    %255 = vmatmul.f32.gmra.mxu0 %v93
    %v256 = vpop.f32.mrf.mxu0
    %v257 = vadd.f32 %v79, %v256
    %258 = vmatmul.f32.gmra.mxu0 %v96
    %v259 = vpop.f32.mrf.mxu0
    %v260 = vadd.f32 %v79, %v259
    %261 = vmatmul.f32.gmra.mxu0 %v99
    %v262 = vpop.f32.mrf.mxu0
    %v263 = vadd.f32 %v79, %v262
    %264 = vmatmul.f32.gmra.mxu0 %v102
    %v265 = vpop.f32.mrf.mxu0
    %v266 = vadd.f32 %v79, %v265
    %267 = vmatmul.f32.gmra.mxu0 %v105
    %v268 = vpop.f32.mrf.mxu0
    %v269 = vadd.f32 %v79, %v268
    %270 = vmatmul.f32.gmra.mxu0 %v108
    %v271 = vpop.f32.mrf.mxu0
    %v272 = vadd.f32 %v79, %v271
    %273 = vmatmul.f32.gmra.mxu0 %v111
    %v274 = vpop.f32.mrf.mxu0
    %v275 = vadd.f32 %v79, %v274
    %276 = vdwg.mxu0
    %277 = vmatpush.msra.mxu0 0.0
    %278 = vmatpush.msra.mxu0 0.0
    %279 = vmatpush.msra.mxu0 0.0
    %280 = vmatpush.msra.mxu0 0.0
    %281 = vmatpush.msra.mxu0 0.0
    %282 = vmatpush.msra.mxu0 0.0
    %283 = vmatpush.msra.mxu0 0.0
    %284 = vmatpush.msra.mxu0 0.0
    %285 = vmatpush.msra.mxu0 0.0
    %286 = vmatpush.msra.mxu0 0.0
    %287 = vmatpush.msra.mxu0 0.0
    %288 = vmatpush.msra.mxu0 0.0
    %289 = vmatpush.msra.mxu0 %v72
    %290 = vmatpush.msra.mxu0 %v66
    %291 = vmatpush.msra.mxu0 %v60
    %292 = vmatpush.msra.mxu0 %v54
    %293 = vmatmul.f32.gmra.mxu0 %v90
    %v294 = vpop.f32.mrf.mxu0
    %v295 = vadd.f32 %v80, %v294
    %296 = vmatmul.f32.gmra.mxu0 %v93
    %v297 = vpop.f32.mrf.mxu0
    %v298 = vadd.f32 %v80, %v297
    %299 = vmatmul.f32.gmra.mxu0 %v96
    %v300 = vpop.f32.mrf.mxu0
    %v301 = vadd.f32 %v80, %v300
    %302 = vmatmul.f32.gmra.mxu0 %v99
    %v303 = vpop.f32.mrf.mxu0
    %v304 = vadd.f32 %v80, %v303
    %305 = vmatmul.f32.gmra.mxu0 %v102
    %v306 = vpop.f32.mrf.mxu0
    %v307 = vadd.f32 %v80, %v306
    %308 = vmatmul.f32.gmra.mxu0 %v105
    %v309 = vpop.f32.mrf.mxu0
    %v310 = vadd.f32 %v80, %v309
    %311 = vmatmul.f32.gmra.mxu0 %v108
    %v312 = vpop.f32.mrf.mxu0
    %v313 = vadd.f32 %v80, %v312
    %314 = vmatmul.f32.gmra.mxu0 %v111
    %v315 = vpop.f32.mrf.mxu0
    %v316 = vadd.f32 %v80, %v315
    %317 = vdwg.mxu0
    %318 = vmatpush.msra.mxu0 0.0
    %319 = vmatpush.msra.mxu0 0.0
    %320 = vmatpush.msra.mxu0 0.0
    %321 = vmatpush.msra.mxu0 0.0
    %322 = vmatpush.msra.mxu0 0.0
    %323 = vmatpush.msra.mxu0 0.0
    %324 = vmatpush.msra.mxu0 0.0
    %325 = vmatpush.msra.mxu0 0.0
    %326 = vmatpush.msra.mxu0 0.0
    %327 = vmatpush.msra.mxu0 0.0
    %328 = vmatpush.msra.mxu0 0.0
    %329 = vmatpush.msra.mxu0 0.0
    %330 = vmatpush.msra.mxu0 %v73
    %331 = vmatpush.msra.mxu0 %v67
    %332 = vmatpush.msra.mxu0 %v61
    %333 = vmatpush.msra.mxu0 %v55
    %334 = vmatmul.f32.gmra.mxu0 %v90
    %v335 = vpop.f32.mrf.mxu0
    %v336 = vadd.f32 %v81, %v335
    %337 = vmatmul.f32.gmra.mxu0 %v93
    %v338 = vpop.f32.mrf.mxu0
    %v339 = vadd.f32 %v81, %v338
    %340 = vmatmul.f32.gmra.mxu0 %v96
    %v341 = vpop.f32.mrf.mxu0
    %v342 = vadd.f32 %v81, %v341
    %343 = vmatmul.f32.gmra.mxu0 %v99
    %v344 = vpop.f32.mrf.mxu0
    %v345 = vadd.f32 %v81, %v344
    %346 = vmatmul.f32.gmra.mxu0 %v102
    %v347 = vpop.f32.mrf.mxu0
    %v348 = vadd.f32 %v81, %v347
    %349 = vmatmul.f32.gmra.mxu0 %v105
    %v350 = vpop.f32.mrf.mxu0
    %v351 = vadd.f32 %v81, %v350
    %352 = vmatmul.f32.gmra.mxu0 %v108
    %v353 = vpop.f32.mrf.mxu0
    %v354 = vadd.f32 %v81, %v353
    %355 = vmatmul.f32.gmra.mxu0 %v111
    %v356 = vpop.f32.mrf.mxu0
    %v357 = vadd.f32 %v81, %v356
    %358 = vdwg.mxu0
    %359 = vst [vmem:[#allocation2] sm:$0xff] %v131
    %360 = vst [vmem:[#allocation2 + $0x8] sm:$0xff] %v172
    %361 = vst [vmem:[#allocation2 + $0x10] sm:$0xff] %v213
    %362 = vst [vmem:[#allocation2 + $0x18] sm:$0xff] %v254
    %363 = vst [vmem:[#allocation2 + $0x20] sm:$0xff] %v295
    %364 = vst [vmem:[#allocation2 + $0x28] sm:$0xff] %v336
    %365 = vst [vmem:[#allocation2 + $0x30] sm:$0xff] %v134
    %366 = vst [vmem:[#allocation2 + $0x38] sm:$0xff] %v175
    %367 = vst [vmem:[#allocation2 + $0x40] sm:$0xff] %v216
    %368 = vst [vmem:[#allocation2 + $0x48] sm:$0xff] %v257
    %369 = vst [vmem:[#allocation2 + $0x50] sm:$0xff] %v298
    %370 = vst [vmem:[#allocation2 + $0x58] sm:$0xff] %v339
    %371 = vst [vmem:[#allocation2 + $0x60] sm:$0xff] %v137
    %372 = vst [vmem:[#allocation2 + $0x68] sm:$0xff] %v178
    %373 = vst [vmem:[#allocation2 + $0x70] sm:$0xff] %v219
    %374 = vst [vmem:[#allocation2 + $0x78] sm:$0xff] %v260
    %375 = vst [vmem:[#allocation2 + $0x80] sm:$0xff] %v301
    %376 = vst [vmem:[#allocation2 + $0x88] sm:$0xff] %v342
    %377 = vst [vmem:[#allocation2 + $0x90] sm:$0xff] %v140
    %378 = vst [vmem:[#allocation2 + $0x98] sm:$0xff] %v181
    %379 = vst [vmem:[#allocation2 + $0xa0] sm:$0xff] %v222
    %380 = vst [vmem:[#allocation2 + $0xa8] sm:$0xff] %v263
    %381 = vst [vmem:[#allocation2 + $0xb0] sm:$0xff] %v304
    %382 = vst [vmem:[#allocation2 + $0xb8] sm:$0xff] %v345
    %383 = vst [vmem:[#allocation2 + $0xc0] sm:$0xff] %v143
    %384 = vst [vmem:[#allocation2 + $0xc8] sm:$0xff] %v184
    %385 = vst [vmem:[#allocation2 + $0xd0] sm:$0xff] %v225
    %386 = vst [vmem:[#allocation2 + $0xd8] sm:$0xff] %v266
    %387 = vst [vmem:[#allocation2 + $0xe0] sm:$0xff] %v307
    %388 = vst [vmem:[#allocation2 + $0xe8] sm:$0xff] %v348
    %389 = vst [vmem:[#allocation2 + $0xf0] sm:$0xff] %v146
    %390 = vst [vmem:[#allocation2 + $0xf8] sm:$0xff] %v187
    %391 = vst [vmem:[#allocation2 + $0x100] sm:$0xff] %v228
    %392 = vst [vmem:[#allocation2 + $0x108] sm:$0xff] %v269
    %393 = vst [vmem:[#allocation2 + $0x110] sm:$0xff] %v310
    %394 = vst [vmem:[#allocation2 + $0x118] sm:$0xff] %v351
    %395 = vst [vmem:[#allocation2 + $0x120] sm:$0xff] %v149
    %396 = vst [vmem:[#allocation2 + $0x128] sm:$0xff] %v190
    %397 = vst [vmem:[#allocation2 + $0x130] sm:$0xff] %v231
    %398 = vst [vmem:[#allocation2 + $0x138] sm:$0xff] %v272
    %399 = vst [vmem:[#allocation2 + $0x140] sm:$0xff] %v313
    %400 = vst [vmem:[#allocation2 + $0x148] sm:$0xff] %v354
    %401 = vst [vmem:[#allocation2 + $0x150] sm:$0xff] %v152
    %402 = vst [vmem:[#allocation2 + $0x158] sm:$0xff] %v193
    %403 = vst [vmem:[#allocation2 + $0x160] sm:$0xff] %v234
    %404 = vst [vmem:[#allocation2 + $0x168] sm:$0xff] %v275
    %405 = vst [vmem:[#allocation2 + $0x170] sm:$0xff] %v316
    %406 = vst [vmem:[#allocation2 + $0x178] sm:$0xff] %v357
    %v407 = vld [vmem:[%s4] sm:$0x1]
    %v408 = vld [vmem:[%s5] sm:$0x1]
    %s409 = smul.u32 0, 6
    %s410 = smul.addr %s409, 8
    %s411 = scalar_lea.vmem [#allocation2], %s410
    %v412 = vld [vmem:[%s411] sm:$0xff]
    %v413 = vld [vmem:[%s411 + $0x8] sm:$0xff]
    %v414 = vld [vmem:[%s411 + $0x10] sm:$0xff]
    %s415 = smul.u32 7, 6
    %s416 = smul.addr %s415, 8
    %s417 = scalar_lea.vmem [#allocation2], %s416
    %v418 = vld [vmem:[%s417 + $0x18] sm:$0xff]
    %v419 = vld [vmem:[%s417 + $0x20] sm:$0xff]
    %v420 = vld [vmem:[%s417 + $0x28] sm:$0xff]
    %v421 = vld [vmem:[#allocation3] sm:$0xff]
    %v422 = vld [vmem:[#allocation3 + $0x8] sm:$0xff]
    %v423 = vld [vmem:[#allocation3 + $0x10] sm:$0xff]
    %v424 = vld [vmem:[#allocation3 + $0x18] sm:$0xff]
    %v425 = vld [vmem:[#allocation3 + $0x20] sm:$0xff]
    %v426 = vld [vmem:[#allocation3 + $0x28] sm:$0xff]
    %v427 = vld [vmem:[#allocation3 + $0x30] sm:$0xff]
    %v428 = vld [vmem:[#allocation3 + $0x38] sm:$0xff]
    %v429 = vld [vmem:[#allocation3 + $0x40] sm:$0xff]
    %v430 = vld [vmem:[#allocation3 + $0x48] sm:$0xff]
    %v431 = vld [vmem:[#allocation3 + $0x50] sm:$0xff]
    %v432 = vld [vmem:[#allocation3 + $0x58] sm:$0xff]
    %v433 = vld [vmem:[#allocation3 + $0x60] sm:$0xff]
    %v434 = vld [vmem:[#allocation3 + $0x68] sm:$0xff]
    %v435 = vld [vmem:[#allocation3 + $0x70] sm:$0xff]
    %v436 = vld [vmem:[#allocation3 + $0x78] sm:$0xff]
    %v437 = vld [vmem:[#allocation3 + $0x80] sm:$0xff]
    %v438 = vld [vmem:[#allocation3 + $0x88] sm:$0xff]
    %v439 = vld [vmem:[#allocation3 + $0x90] sm:$0xff]
    %v440 = vld [vmem:[#allocation3 + $0x98] sm:$0xff]
    %v441 = vld [vmem:[#allocation3 + $0xa0] sm:$0xff]
    %v442 = vld [vmem:[#allocation3 + $0xa8] sm:$0xff]
    %v443 = vld [vmem:[#allocation3 + $0xb0] sm:$0xff]
    %v444 = vld [vmem:[#allocation3 + $0xb8] sm:$0xff]
    %v445 = vld [vmem:[#allocation3 + $0xc0] sm:$0xff]
    %v446 = vld [vmem:[#allocation3 + $0xc8] sm:$0xff]
    %v447 = vld [vmem:[#allocation3 + $0xd0] sm:$0xff]
    %v448 = vld [vmem:[#allocation3 + $0xd8] sm:$0xff]
    %v449 = vld [vmem:[#allocation3 + $0xe0] sm:$0xff]
    %v450 = vld [vmem:[#allocation3 + $0xe8] sm:$0xff]
    %v451 = vld [vmem:[#allocation3 + $0xf0] sm:$0xff]
    %v452 = vld [vmem:[#allocation3 + $0xf8] sm:$0xff]
    %v453 = vld [vmem:[#allocation3 + $0x100] sm:$0xff]
    %v454 = vld [vmem:[#allocation3 + $0x108] sm:$0xff]
    %v455 = vld [vmem:[#allocation3 + $0x110] sm:$0xff]
    %v456 = vld [vmem:[#allocation3 + $0x118] sm:$0xff]
    %v457 = vld [vmem:[#allocation3 + $0x120] sm:$0xff]
    %v458 = vld [vmem:[#allocation3 + $0x128] sm:$0xff]
    %v459 = vld [vmem:[#allocation3 + $0x130] sm:$0xff]
    %v460 = vld [vmem:[#allocation3 + $0x138] sm:$0xff]
    %v461 = vld [vmem:[#allocation3 + $0x140] sm:$0xff]
    %v462 = vld [vmem:[#allocation3 + $0x148] sm:$0xff]
    %v463 = vld [vmem:[#allocation3 + $0x150] sm:$0xff]
    %v464 = vld [vmem:[#allocation3 + $0x158] sm:$0xff]
    %v465 = vld [vmem:[#allocation3 + $0x160] sm:$0xff]
    %v466 = vld [vmem:[#allocation3 + $0x168] sm:$0xff]
    %v467 = vld [vmem:[#allocation3 + $0x170] sm:$0xff]
    %v468 = vld [vmem:[#allocation3 + $0x178] sm:$0xff]
    %v469 = vld [vmem:[#allocation3 + $0x180] sm:$0xff]
    %v470 = vld [vmem:[#allocation3 + $0x188] sm:$0xff]
    %v471 = vld [vmem:[#allocation3 + $0x190] sm:$0xff]
    %v472 = vld [vmem:[#allocation3 + $0x198] sm:$0xff]
    %v473 = vld [vmem:[#allocation3 + $0x1a0] sm:$0xff]
    %v474 = vld [vmem:[#allocation3 + $0x1a8] sm:$0xff]
    %v475 = vld [vmem:[#allocation3 + $0x1b0] sm:$0xff]
    %v476 = vld [vmem:[#allocation3 + $0x1b8] sm:$0xff]
    %v477 = vld [vmem:[#allocation3 + $0x1c0] sm:$0xff]
    %v478 = vld [vmem:[#allocation3 + $0x1c8] sm:$0xff]
    %v479 = vld [vmem:[#allocation3 + $0x1d0] sm:$0xff]
    %v480 = vld [vmem:[#allocation3 + $0x1d8] sm:$0xff]
    %v481 = vld [vmem:[#allocation3 + $0x1e0] sm:$0xff]
    %v482 = vld [vmem:[#allocation3 + $0x1e8] sm:$0xff]
    %v483 = vld [vmem:[#allocation3 + $0x1f0] sm:$0xff]
    %v484 = vld [vmem:[#allocation3 + $0x1f8] sm:$0xff]
    %v485 = vld [vmem:[#allocation3 + $0x200] sm:$0xff]
    %v486 = vld [vmem:[#allocation3 + $0x208] sm:$0xff]
    %v487 = vld [vmem:[#allocation3 + $0x210] sm:$0xff]
    %v488 = vld [vmem:[#allocation3 + $0x218] sm:$0xff]
    %v489 = vld [vmem:[#allocation3 + $0x220] sm:$0xff]
    %v490 = vld [vmem:[#allocation3 + $0x228] sm:$0xff]
    %v491 = vld [vmem:[#allocation3 + $0x230] sm:$0xff]
    %v492 = vld [vmem:[#allocation3 + $0x238] sm:$0xff]
    %v493 = vld [vmem:[#allocation3 + $0x240] sm:$0xff]
    %v494 = vld [vmem:[#allocation3 + $0x248] sm:$0xff]
    %v495 = vld [vmem:[#allocation3 + $0x250] sm:$0xff]
    %v496 = vld [vmem:[#allocation3 + $0x258] sm:$0xff]
    %v497 = vld [vmem:[#allocation3 + $0x260] sm:$0xff]
    %v498 = vld [vmem:[#allocation3 + $0x268] sm:$0xff]
    %v499 = vld [vmem:[#allocation3 + $0x270] sm:$0xff]
    %v500 = vld [vmem:[#allocation3 + $0x278] sm:$0xff]
    %v501 = vld [vmem:[#allocation3 + $0x280] sm:$0xff]
    %v502 = vld [vmem:[#allocation3 + $0x288] sm:$0xff]
    %v503 = vld [vmem:[#allocation3 + $0x290] sm:$0xff]
    %v504 = vld [vmem:[#allocation3 + $0x298] sm:$0xff]
    %v505 = vld [vmem:[#allocation3 + $0x2a0] sm:$0xff]
    %v506 = vld [vmem:[#allocation3 + $0x2a8] sm:$0xff]
    %v507 = vld [vmem:[#allocation3 + $0x2b0] sm:$0xff]
    %v508 = vld [vmem:[#allocation3 + $0x2b8] sm:$0xff]
    %v509 = vld [vmem:[#allocation3 + $0x2c0] sm:$0xff]
    %v510 = vld [vmem:[#allocation3 + $0x2c8] sm:$0xff]
    %v511 = vld [vmem:[#allocation3 + $0x2d0] sm:$0xff]
    %v512 = vld [vmem:[#allocation3 + $0x2d8] sm:$0xff]
    %v513 = vld [vmem:[#allocation3 + $0x2e0] sm:$0xff]
    %v514 = vld [vmem:[#allocation3 + $0x2e8] sm:$0xff]
    %v515 = vld [vmem:[#allocation3 + $0x2f0] sm:$0xff]
    %v516 = vld [vmem:[#allocation3 + $0x2f8] sm:$0xff]
    %v517 = vld [vmem:[#allocation3 + $0x300] sm:$0xff]
    %v518 = vld [vmem:[#allocation3 + $0x308] sm:$0xff]
    %v519 = vld [vmem:[#allocation3 + $0x310] sm:$0xff]
    %v520 = vld [vmem:[#allocation3 + $0x318] sm:$0xff]
    %v521 = vld [vmem:[#allocation3 + $0x320] sm:$0xff]
    %v522 = vld [vmem:[#allocation3 + $0x328] sm:$0xff]
    %v523 = vld [vmem:[#allocation3 + $0x330] sm:$0xff]
    %v524 = vld [vmem:[#allocation3 + $0x338] sm:$0xff]
    %v525 = vld [vmem:[#allocation3 + $0x340] sm:$0xff]
    %v526 = vld [vmem:[#allocation3 + $0x348] sm:$0xff]
    %v527 = vld [vmem:[#allocation3 + $0x350] sm:$0xff]
    %v528 = vld [vmem:[#allocation3 + $0x358] sm:$0xff]
    %v529 = vld [vmem:[#allocation3 + $0x360] sm:$0xff]
    %v530 = vld [vmem:[#allocation3 + $0x368] sm:$0xff]
    %v531 = vld [vmem:[#allocation3 + $0x370] sm:$0xff]
    %v532 = vld [vmem:[#allocation3 + $0x378] sm:$0xff]
    %v533 = vld [vmem:[#allocation3 + $0x380] sm:$0xff]
    %v534 = vld [vmem:[#allocation3 + $0x388] sm:$0xff]
    %v535 = vld [vmem:[#allocation3 + $0x390] sm:$0xff]
    %v536 = vld [vmem:[#allocation3 + $0x398] sm:$0xff]
    %v537 = vld [vmem:[#allocation3 + $0x3a0] sm:$0xff]
    %v538 = vld [vmem:[#allocation3 + $0x3a8] sm:$0xff]
    %v539 = vld [vmem:[#allocation3 + $0x3b0] sm:$0xff]
    %v540 = vld [vmem:[#allocation3 + $0x3b8] sm:$0xff]
    %v541 = vld [vmem:[#allocation3 + $0x3c0] sm:$0xff]
    %v542 = vld [vmem:[#allocation3 + $0x3c8] sm:$0xff]
    %v543 = vld [vmem:[#allocation3 + $0x3d0] sm:$0xff]
    %v544 = vld [vmem:[#allocation3 + $0x3d8] sm:$0xff]
    %v545 = vld [vmem:[#allocation3 + $0x3e0] sm:$0xff]
    %v546 = vld [vmem:[#allocation3 + $0x3e8] sm:$0xff]
    %v547 = vld [vmem:[#allocation3 + $0x3f0] sm:$0xff]
    %v548 = vld [vmem:[#allocation3 + $0x3f8] sm:$0xff]
    %v549 = vld [vmem:[#allocation3 + $0x400] sm:$0xff]
    %v550 = vld [vmem:[#allocation3 + $0x408] sm:$0xff]
    %v551 = vld [vmem:[#allocation3 + $0x410] sm:$0xff]
    %v552 = vld [vmem:[#allocation3 + $0x418] sm:$0xff]
    %v553 = vld [vmem:[#allocation3 + $0x420] sm:$0xff]
    %v554 = vld [vmem:[#allocation3 + $0x428] sm:$0xff]
    %v555 = vld [vmem:[#allocation3 + $0x430] sm:$0xff]
    %v556 = vld [vmem:[#allocation3 + $0x438] sm:$0xff]
    %v557 = vld [vmem:[#allocation3 + $0x440] sm:$0xff]
    %v558 = vld [vmem:[#allocation3 + $0x448] sm:$0xff]
    %v559 = vld [vmem:[#allocation3 + $0x450] sm:$0xff]
    %v560 = vld [vmem:[#allocation3 + $0x458] sm:$0xff]
    %v561 = vld [vmem:[#allocation3 + $0x460] sm:$0xff]
    %v562 = vld [vmem:[#allocation3 + $0x468] sm:$0xff]
    %v563 = vld [vmem:[#allocation3 + $0x470] sm:$0xff]
    %v564 = vld [vmem:[#allocation3 + $0x478] sm:$0xff]
    %v565 = vld [vmem:[#allocation3 + $0x480] sm:$0xff]
    %v566 = vld [vmem:[#allocation3 + $0x488] sm:$0xff]
    %v567 = vld [vmem:[#allocation3 + $0x490] sm:$0xff]
    %v568 = vld [vmem:[#allocation3 + $0x498] sm:$0xff]
    %v569 = vld [vmem:[#allocation3 + $0x4a0] sm:$0xff]
    %v570 = vld [vmem:[#allocation3 + $0x4a8] sm:$0xff]
    %v571 = vld [vmem:[#allocation3 + $0x4b0] sm:$0xff]
    %v572 = vld [vmem:[#allocation3 + $0x4b8] sm:$0xff]
    %v573 = vld [vmem:[#allocation3 + $0x4c0] sm:$0xff]
    %v574 = vld [vmem:[#allocation3 + $0x4c8] sm:$0xff]
    %v575 = vld [vmem:[#allocation3 + $0x4d0] sm:$0xff]
    %v576 = vld [vmem:[#allocation3 + $0x4d8] sm:$0xff]
    %v577 = vld [vmem:[#allocation3 + $0x4e0] sm:$0xff]
    %v578 = vld [vmem:[#allocation3 + $0x4e8] sm:$0xff]
    %v579 = vld [vmem:[#allocation3 + $0x4f0] sm:$0xff]
    %v580 = vld [vmem:[#allocation3 + $0x4f8] sm:$0xff]
    %v581 = vld [vmem:[#allocation3 + $0x500] sm:$0xff]
    %v582 = vld [vmem:[#allocation3 + $0x508] sm:$0xff]
    %v583 = vld [vmem:[#allocation3 + $0x510] sm:$0xff]
    %v584 = vld [vmem:[#allocation3 + $0x518] sm:$0xff]
    %v585 = vld [vmem:[#allocation3 + $0x520] sm:$0xff]
    %v586 = vld [vmem:[#allocation3 + $0x528] sm:$0xff]
    %v587 = vld [vmem:[#allocation3 + $0x530] sm:$0xff]
    %v588 = vld [vmem:[#allocation3 + $0x538] sm:$0xff]
    %v589 = vld [vmem:[#allocation3 + $0x540] sm:$0xff]
    %v590 = vld [vmem:[#allocation3 + $0x548] sm:$0xff]
    %v591 = vld [vmem:[#allocation3 + $0x550] sm:$0xff]
    %v592 = vld [vmem:[#allocation3 + $0x558] sm:$0xff]
    %v593 = vld [vmem:[#allocation3 + $0x560] sm:$0xff]
    %v594 = vld [vmem:[#allocation3 + $0x568] sm:$0xff]
    %v595 = vld [vmem:[#allocation3 + $0x570] sm:$0xff]
    %v596 = vld [vmem:[#allocation3 + $0x578] sm:$0xff]
    %v597 = vld [vmem:[#allocation3 + $0x580] sm:$0xff]
    %v598 = vld [vmem:[#allocation3 + $0x588] sm:$0xff]
    %v599 = vld [vmem:[#allocation3 + $0x590] sm:$0xff]
    %v600 = vld [vmem:[#allocation3 + $0x598] sm:$0xff]
    %v601 = vld [vmem:[#allocation3 + $0x5a0] sm:$0xff]
    %v602 = vld [vmem:[#allocation3 + $0x5a8] sm:$0xff]
    %v603 = vld [vmem:[#allocation3 + $0x5b0] sm:$0xff]
    %v604 = vld [vmem:[#allocation3 + $0x5b8] sm:$0xff]
    %v605 = vld [vmem:[#allocation3 + $0x5c0] sm:$0xff]
    %v606 = vld [vmem:[#allocation3 + $0x5c8] sm:$0xff]
    %v607 = vld [vmem:[#allocation3 + $0x5d0] sm:$0xff]
    %v608 = vld [vmem:[#allocation3 + $0x5d8] sm:$0xff]
    %v609 = vld [vmem:[#allocation3 + $0x5e0] sm:$0xff]
    %v610 = vld [vmem:[#allocation3 + $0x5e8] sm:$0xff]
    %v611 = vld [vmem:[#allocation3 + $0x5f0] sm:$0xff]
    %v612 = vld [vmem:[#allocation3 + $0x5f8] sm:$0xff]
    %613 = vmatpush.msra.mxu0 %v511
    %614 = vmatpush.msra.mxu0 %v505
    %615 = vmatpush.msra.mxu0 %v499
    %616 = vmatpush.msra.mxu0 %v493
    %617 = vmatpush.msra.mxu0 %v487
    %618 = vmatpush.msra.mxu0 %v481
    %619 = vmatpush.msra.mxu0 %v475
    %620 = vmatpush.msra.mxu0 %v469
    %621 = vmatpush.msra.mxu0 %v463
    %622 = vmatpush.msra.mxu0 %v457
    %623 = vmatpush.msra.mxu0 %v451
    %624 = vmatpush.msra.mxu0 %v445
    %625 = vmatpush.msra.mxu0 %v439
    %626 = vmatpush.msra.mxu0 %v433
    %627 = vmatpush.msra.mxu0 %v427
    %628 = vmatpush.msra.mxu0 %v421
    %629 = vmatmul.f32.gmra.mxu0 0.0
    %v630 = vpop.f32.mrf.mxu0
    %v631 = vadd.f32 0.0, %v630
    %632 = vdwg.mxu0
    %633 = vmatpush.msra.mxu0 %v607
    %634 = vmatpush.msra.mxu0 %v601
    %635 = vmatpush.msra.mxu0 %v595
    %636 = vmatpush.msra.mxu0 %v589
    %637 = vmatpush.msra.mxu0 %v583
    %638 = vmatpush.msra.mxu0 %v577
    %639 = vmatpush.msra.mxu0 %v571
    %640 = vmatpush.msra.mxu0 %v565
    %641 = vmatpush.msra.mxu0 %v559
    %642 = vmatpush.msra.mxu0 %v553
    %643 = vmatpush.msra.mxu0 %v547
    %644 = vmatpush.msra.mxu0 %v541
    %645 = vmatpush.msra.mxu0 %v535
    %646 = vmatpush.msra.mxu0 %v529
    %647 = vmatpush.msra.mxu0 %v523
    %648 = vmatpush.msra.mxu0 %v517
    %649 = vmatmul.f32.gmra.mxu0 0.0
    %v650 = vpop.f32.mrf.mxu0
    %v651 = vadd.f32 %v631, %v650
    %652 = vdwg.mxu0
    %653 = vmatpush.msra.mxu0 %v512
    %654 = vmatpush.msra.mxu0 %v506
    %655 = vmatpush.msra.mxu0 %v500
    %656 = vmatpush.msra.mxu0 %v494
    %657 = vmatpush.msra.mxu0 %v488
    %658 = vmatpush.msra.mxu0 %v482
    %659 = vmatpush.msra.mxu0 %v476
    %660 = vmatpush.msra.mxu0 %v470
    %661 = vmatpush.msra.mxu0 %v464
    %662 = vmatpush.msra.mxu0 %v458
    %663 = vmatpush.msra.mxu0 %v452
    %664 = vmatpush.msra.mxu0 %v446
    %665 = vmatpush.msra.mxu0 %v440
    %666 = vmatpush.msra.mxu0 %v434
    %667 = vmatpush.msra.mxu0 %v428
    %668 = vmatpush.msra.mxu0 %v422
    %669 = vmatmul.f32.gmra.mxu0 0.0
    %v670 = vpop.f32.mrf.mxu0
    %v671 = vadd.f32 0.0, %v670
    %672 = vdwg.mxu0
    %673 = vmatpush.msra.mxu0 %v608
    %674 = vmatpush.msra.mxu0 %v602
    %675 = vmatpush.msra.mxu0 %v596
    %676 = vmatpush.msra.mxu0 %v590
    %677 = vmatpush.msra.mxu0 %v584
    %678 = vmatpush.msra.mxu0 %v578
    %679 = vmatpush.msra.mxu0 %v572
    %680 = vmatpush.msra.mxu0 %v566
    %681 = vmatpush.msra.mxu0 %v560
    %682 = vmatpush.msra.mxu0 %v554
    %683 = vmatpush.msra.mxu0 %v548
    %684 = vmatpush.msra.mxu0 %v542
    %685 = vmatpush.msra.mxu0 %v536
    %686 = vmatpush.msra.mxu0 %v530
    %687 = vmatpush.msra.mxu0 %v524
    %688 = vmatpush.msra.mxu0 %v518
    %689 = vmatmul.f32.gmra.mxu0 0.0
    %v690 = vpop.f32.mrf.mxu0
    %v691 = vadd.f32 %v671, %v690
    %692 = vdwg.mxu0
    %693 = vmatpush.msra.mxu0 %v513
    %694 = vmatpush.msra.mxu0 %v507
    %695 = vmatpush.msra.mxu0 %v501
    %696 = vmatpush.msra.mxu0 %v495
    %697 = vmatpush.msra.mxu0 %v489
    %698 = vmatpush.msra.mxu0 %v483
    %699 = vmatpush.msra.mxu0 %v477
    %700 = vmatpush.msra.mxu0 %v471
    %701 = vmatpush.msra.mxu0 %v465
    %702 = vmatpush.msra.mxu0 %v459
    %703 = vmatpush.msra.mxu0 %v453
    %704 = vmatpush.msra.mxu0 %v447
    %705 = vmatpush.msra.mxu0 %v441
    %706 = vmatpush.msra.mxu0 %v435
    %707 = vmatpush.msra.mxu0 %v429
    %708 = vmatpush.msra.mxu0 %v423
    %709 = vmatmul.f32.gmra.mxu0 0.0
    %v710 = vpop.f32.mrf.mxu0
    %v711 = vadd.f32 0.0, %v710
    %712 = vdwg.mxu0
    %713 = vmatpush.msra.mxu0 %v609
    %714 = vmatpush.msra.mxu0 %v603
    %715 = vmatpush.msra.mxu0 %v597
    %716 = vmatpush.msra.mxu0 %v591
    %717 = vmatpush.msra.mxu0 %v585
    %718 = vmatpush.msra.mxu0 %v579
    %719 = vmatpush.msra.mxu0 %v573
    %720 = vmatpush.msra.mxu0 %v567
    %721 = vmatpush.msra.mxu0 %v561
    %722 = vmatpush.msra.mxu0 %v555
    %723 = vmatpush.msra.mxu0 %v549
    %724 = vmatpush.msra.mxu0 %v543
    %725 = vmatpush.msra.mxu0 %v537
    %726 = vmatpush.msra.mxu0 %v531
    %727 = vmatpush.msra.mxu0 %v525
    %728 = vmatpush.msra.mxu0 %v519
    %729 = vmatmul.f32.gmra.mxu0 0.0
    %v730 = vpop.f32.mrf.mxu0
    %v731 = vadd.f32 %v711, %v730
    %732 = vdwg.mxu0
    %733 = vmatpush.msra.mxu0 %v514
    %734 = vmatpush.msra.mxu0 %v508
    %735 = vmatpush.msra.mxu0 %v502
    %736 = vmatpush.msra.mxu0 %v496
    %737 = vmatpush.msra.mxu0 %v490
    %738 = vmatpush.msra.mxu0 %v484
    %739 = vmatpush.msra.mxu0 %v478
    %740 = vmatpush.msra.mxu0 %v472
    %741 = vmatpush.msra.mxu0 %v466
    %742 = vmatpush.msra.mxu0 %v460
    %743 = vmatpush.msra.mxu0 %v454
    %744 = vmatpush.msra.mxu0 %v448
    %745 = vmatpush.msra.mxu0 %v442
    %746 = vmatpush.msra.mxu0 %v436
    %747 = vmatpush.msra.mxu0 %v430
    %748 = vmatpush.msra.mxu0 %v424
    %749 = vmatmul.f32.gmra.mxu0 0.0
    %v750 = vpop.f32.mrf.mxu0
    %v751 = vadd.f32 0.0, %v750
    %752 = vdwg.mxu0
    %753 = vmatpush.msra.mxu0 %v610
    %754 = vmatpush.msra.mxu0 %v604
    %755 = vmatpush.msra.mxu0 %v598
    %756 = vmatpush.msra.mxu0 %v592
    %757 = vmatpush.msra.mxu0 %v586
    %758 = vmatpush.msra.mxu0 %v580
    %759 = vmatpush.msra.mxu0 %v574
    %760 = vmatpush.msra.mxu0 %v568
    %761 = vmatpush.msra.mxu0 %v562
    %762 = vmatpush.msra.mxu0 %v556
    %763 = vmatpush.msra.mxu0 %v550
    %764 = vmatpush.msra.mxu0 %v544
    %765 = vmatpush.msra.mxu0 %v538
    %766 = vmatpush.msra.mxu0 %v532
    %767 = vmatpush.msra.mxu0 %v526
    %768 = vmatpush.msra.mxu0 %v520
    %769 = vmatmul.f32.gmra.mxu0 0.0
    %v770 = vpop.f32.mrf.mxu0
    %v771 = vadd.f32 %v751, %v770
    %772 = vdwg.mxu0
    %773 = vmatpush.msra.mxu0 %v515
    %774 = vmatpush.msra.mxu0 %v509
    %775 = vmatpush.msra.mxu0 %v503
    %776 = vmatpush.msra.mxu0 %v497
    %777 = vmatpush.msra.mxu0 %v491
    %778 = vmatpush.msra.mxu0 %v485
    %779 = vmatpush.msra.mxu0 %v479
    %780 = vmatpush.msra.mxu0 %v473
    %781 = vmatpush.msra.mxu0 %v467
    %782 = vmatpush.msra.mxu0 %v461
    %783 = vmatpush.msra.mxu0 %v455
    %784 = vmatpush.msra.mxu0 %v449
    %785 = vmatpush.msra.mxu0 %v443
    %786 = vmatpush.msra.mxu0 %v437
    %787 = vmatpush.msra.mxu0 %v431
    %788 = vmatpush.msra.mxu0 %v425
    %789 = vmatmul.f32.gmra.mxu0 0.0
    %v790 = vpop.f32.mrf.mxu0
    %v791 = vadd.f32 0.0, %v790
    %792 = vdwg.mxu0
    %793 = vmatpush.msra.mxu0 %v611
    %794 = vmatpush.msra.mxu0 %v605
    %795 = vmatpush.msra.mxu0 %v599
    %796 = vmatpush.msra.mxu0 %v593
    %797 = vmatpush.msra.mxu0 %v587
    %798 = vmatpush.msra.mxu0 %v581
    %799 = vmatpush.msra.mxu0 %v575
    %800 = vmatpush.msra.mxu0 %v569
    %801 = vmatpush.msra.mxu0 %v563
    %802 = vmatpush.msra.mxu0 %v557
    %803 = vmatpush.msra.mxu0 %v551
    %804 = vmatpush.msra.mxu0 %v545
    %805 = vmatpush.msra.mxu0 %v539
    %806 = vmatpush.msra.mxu0 %v533
    %807 = vmatpush.msra.mxu0 %v527
    %808 = vmatpush.msra.mxu0 %v521
    %809 = vmatmul.f32.gmra.mxu0 0.0
    %v810 = vpop.f32.mrf.mxu0
    %v811 = vadd.f32 %v791, %v810
    %812 = vdwg.mxu0
    %813 = vmatpush.msra.mxu0 %v516
    %814 = vmatpush.msra.mxu0 %v510
    %815 = vmatpush.msra.mxu0 %v504
    %816 = vmatpush.msra.mxu0 %v498
    %817 = vmatpush.msra.mxu0 %v492
    %818 = vmatpush.msra.mxu0 %v486
    %819 = vmatpush.msra.mxu0 %v480
    %820 = vmatpush.msra.mxu0 %v474
    %821 = vmatpush.msra.mxu0 %v468
    %822 = vmatpush.msra.mxu0 %v462
    %823 = vmatpush.msra.mxu0 %v456
    %824 = vmatpush.msra.mxu0 %v450
    %825 = vmatpush.msra.mxu0 %v444
    %826 = vmatpush.msra.mxu0 %v438
    %827 = vmatpush.msra.mxu0 %v432
    %828 = vmatpush.msra.mxu0 %v426
    %829 = vmatmul.f32.gmra.mxu0 0.0
    %v830 = vpop.f32.mrf.mxu0
    %v831 = vadd.f32 0.0, %v830
    %832 = vdwg.mxu0
    %833 = vmatpush.msra.mxu0 %v612
    %834 = vmatpush.msra.mxu0 %v606
    %835 = vmatpush.msra.mxu0 %v600
    %836 = vmatpush.msra.mxu0 %v594
    %837 = vmatpush.msra.mxu0 %v588
    %838 = vmatpush.msra.mxu0 %v582
    %839 = vmatpush.msra.mxu0 %v576
    %840 = vmatpush.msra.mxu0 %v570
    %841 = vmatpush.msra.mxu0 %v564
    %842 = vmatpush.msra.mxu0 %v558
    %843 = vmatpush.msra.mxu0 %v552
    %844 = vmatpush.msra.mxu0 %v546
    %845 = vmatpush.msra.mxu0 %v540
    %846 = vmatpush.msra.mxu0 %v534
    %847 = vmatpush.msra.mxu0 %v528
    %848 = vmatpush.msra.mxu0 %v522
    %849 = vmatmul.f32.gmra.mxu0 0.0
    %v850 = vpop.f32.mrf.mxu0
    %v851 = vadd.f32 %v831, %v850
    %852 = vdwg.mxu0
    %v853 = vadd.f32 %v412, %v651
    %v854 = vxor.u32 %v853, 2147483648
    %v855 = vmul.f32 %v854, 1.442695
    %v856 = vpow.pop %v855
    %v857 = vadd.f32 %v856, 1.0
    %v858 = vrcp.pop %v857
    %v859 = vmul.f32 %v857, %v858
    %v860 = vsub.f32 1.0, %v859
    %v861 = vmul.f32 %v858, %v860
    %v862 = vadd.f32 %v858, %v861
    %vm863 = vweird.f32 %v857
    %vm864 = vweird.f32 %v858
    %vm865 = vmor %vm863, %vm864
    %v866 = vsel %vm865, %v858, %v862
    %v867 = vand.u32 2147483647, %v857
    %vm868 = vcmp.eq.f32.partialorder %v867, 8.507059e+37
    %v869 = vand.u32 %v857, 2147483648
    %v870 = vor.u32 1.1754944e-38, %v869
    %v871 = vsel %vm868, %v870, %v866
    %v872 = vmul.f32 1.0, %v871
    %v873 = vadd.f32 %v413, %v691
    %v874 = vxor.u32 %v873, 2147483648
    %v875 = vmul.f32 %v874, 1.442695
    %v876 = vpow.pop %v875
    %v877 = vadd.f32 %v876, 1.0
    %v878 = vrcp.pop %v877
    %v879 = vmul.f32 %v877, %v878
    %v880 = vsub.f32 1.0, %v879
    %v881 = vmul.f32 %v878, %v880
    %v882 = vadd.f32 %v878, %v881
    %vm883 = vweird.f32 %v877
    %vm884 = vweird.f32 %v878
    %vm885 = vmor %vm883, %vm884
    %v886 = vsel %vm885, %v878, %v882
    %v887 = vand.u32 2147483647, %v877
    %vm888 = vcmp.eq.f32.partialorder %v887, 8.507059e+37
    %v889 = vand.u32 %v877, 2147483648
    %v890 = vor.u32 1.1754944e-38, %v889
    %v891 = vsel %vm888, %v890, %v886
    %v892 = vmul.f32 1.0, %v891
    %v894 = vperm.slane %v407, 0
    %v896 = vadd.f32 %v731, %v894
    %v897 = vmul.f32 %v872, %v896
    %v898 = vadd.f32 %v414, %v897
    %v899 = vtanh.pop %v898
    %v900 = vsub.f32 0.0, %v899
    %v901 = vmul.f32 %v892, %v900
    %v902 = vadd.f32 %v899, %v901
    %v903 = vadd.f32 %v418, %v771
    %v904 = vxor.u32 %v903, 2147483648
    %v905 = vmul.f32 %v904, 1.442695
    %v906 = vpow.pop %v905
    %v907 = vadd.f32 %v906, 1.0
    %v908 = vrcp.pop %v907
    %v909 = vmul.f32 %v907, %v908
    %v910 = vsub.f32 1.0, %v909
    %v911 = vmul.f32 %v908, %v910
    %v912 = vadd.f32 %v908, %v911
    %vm913 = vweird.f32 %v907
    %vm914 = vweird.f32 %v908
    %vm915 = vmor %vm913, %vm914
    %v916 = vsel %vm915, %v908, %v912
    %v917 = vand.u32 2147483647, %v907
    %vm918 = vcmp.eq.f32.partialorder %v917, 8.507059e+37
    %v919 = vand.u32 %v907, 2147483648
    %v920 = vor.u32 1.1754944e-38, %v919
    %v921 = vsel %vm918, %v920, %v916
    %v922 = vmul.f32 1.0, %v921
    %v923 = vadd.f32 %v419, %v811
    %v924 = vxor.u32 %v923, 2147483648
    %v925 = vmul.f32 %v924, 1.442695
    %v926 = vpow.pop %v925
    %v927 = vadd.f32 %v926, 1.0
    %v928 = vrcp.pop %v927
    %v929 = vmul.f32 %v927, %v928
    %v930 = vsub.f32 1.0, %v929
    %v931 = vmul.f32 %v928, %v930
    %v932 = vadd.f32 %v928, %v931
    %vm933 = vweird.f32 %v927
    %vm934 = vweird.f32 %v928
    %vm935 = vmor %vm933, %vm934
    %v936 = vsel %vm935, %v928, %v932
    %v937 = vand.u32 2147483647, %v927
    %vm938 = vcmp.eq.f32.partialorder %v937, 8.507059e+37
    %v939 = vand.u32 %v927, 2147483648
    %v940 = vor.u32 1.1754944e-38, %v939
    %v941 = vsel %vm938, %v940, %v936
    %v942 = vmul.f32 1.0, %v941
    %v944 = vperm.slane %v408, 0
    %v946 = vadd.f32 %v851, %v944
    %v947 = vmul.f32 %v922, %v946
    %v948 = vadd.f32 %v420, %v947
    %v949 = vtanh.pop %v948
    %v950 = vsub.f32 0.0, %v949
    %v951 = vmul.f32 %v942, %v950
    %v952 = vadd.f32 %v949, %v951
    %953 = vst [vmem:[%s6] sm:$0xff] %v902
    %s954 = scalar_lea.vmem %s6, 112
    %955 = vst [vmem:[%s954 + $0x8] sm:$0xff] %v952
    %s956 = smul.u32 1, 6
    %s957 = smul.addr %s956, 8
    %s958 = scalar_lea.vmem [#allocation2], %s957
    %v959 = vld [vmem:[%s958] sm:$0xff]
    %v960 = vld [vmem:[%s958 + $0x8] sm:$0xff]
    %v961 = vld [vmem:[%s958 + $0x10] sm:$0xff]
    %s962 = smul.u32 6, 6
    %s963 = smul.addr %s962, 8
    %s964 = scalar_lea.vmem [#allocation2], %s963
    %v965 = vld [vmem:[%s964 + $0x18] sm:$0xff]
    %v966 = vld [vmem:[%s964 + $0x20] sm:$0xff]
    %v967 = vld [vmem:[%s964 + $0x28] sm:$0xff]
    %v968 = vld [vmem:[#allocation3] sm:$0xff]
    %v969 = vld [vmem:[#allocation3 + $0x8] sm:$0xff]
    %v970 = vld [vmem:[#allocation3 + $0x10] sm:$0xff]
    %v971 = vld [vmem:[#allocation3 + $0x18] sm:$0xff]
    %v972 = vld [vmem:[#allocation3 + $0x20] sm:$0xff]
    %v973 = vld [vmem:[#allocation3 + $0x28] sm:$0xff]
    %v974 = vld [vmem:[#allocation3 + $0x30] sm:$0xff]
    %v975 = vld [vmem:[#allocation3 + $0x38] sm:$0xff]
    %v976 = vld [vmem:[#allocation3 + $0x40] sm:$0xff]
    %v977 = vld [vmem:[#allocation3 + $0x48] sm:$0xff]
    %v978 = vld [vmem:[#allocation3 + $0x50] sm:$0xff]
    %v979 = vld [vmem:[#allocation3 + $0x58] sm:$0xff]
    %v980 = vld [vmem:[#allocation3 + $0x60] sm:$0xff]
    %v981 = vld [vmem:[#allocation3 + $0x68] sm:$0xff]
    %v982 = vld [vmem:[#allocation3 + $0x70] sm:$0xff]
    %v983 = vld [vmem:[#allocation3 + $0x78] sm:$0xff]
    %v984 = vld [vmem:[#allocation3 + $0x80] sm:$0xff]
    %v985 = vld [vmem:[#allocation3 + $0x88] sm:$0xff]
    %v986 = vld [vmem:[#allocation3 + $0x90] sm:$0xff]
    %v987 = vld [vmem:[#allocation3 + $0x98] sm:$0xff]
    %v988 = vld [vmem:[#allocation3 + $0xa0] sm:$0xff]
    %v989 = vld [vmem:[#allocation3 + $0xa8] sm:$0xff]
    %v990 = vld [vmem:[#allocation3 + $0xb0] sm:$0xff]
    %v991 = vld [vmem:[#allocation3 + $0xb8] sm:$0xff]
    %v992 = vld [vmem:[#allocation3 + $0xc0] sm:$0xff]
    %v993 = vld [vmem:[#allocation3 + $0xc8] sm:$0xff]
    %v994 = vld [vmem:[#allocation3 + $0xd0] sm:$0xff]
    %v995 = vld [vmem:[#allocation3 + $0xd8] sm:$0xff]
    %v996 = vld [vmem:[#allocation3 + $0xe0] sm:$0xff]
    %v997 = vld [vmem:[#allocation3 + $0xe8] sm:$0xff]
    %v998 = vld [vmem:[#allocation3 + $0xf0] sm:$0xff]
    %v999 = vld [vmem:[#allocation3 + $0xf8] sm:$0xff]
    %v1000 = vld [vmem:[#allocation3 + $0x100] sm:$0xff]
    %v1001 = vld [vmem:[#allocation3 + $0x108] sm:$0xff]
    %v1002 = vld [vmem:[#allocation3 + $0x110] sm:$0xff]
    %v1003 = vld [vmem:[#allocation3 + $0x118] sm:$0xff]
    %v1004 = vld [vmem:[#allocation3 + $0x120] sm:$0xff]
    %v1005 = vld [vmem:[#allocation3 + $0x128] sm:$0xff]
    %v1006 = vld [vmem:[#allocation3 + $0x130] sm:$0xff]
    %v1007 = vld [vmem:[#allocation3 + $0x138] sm:$0xff]
    %v1008 = vld [vmem:[#allocation3 + $0x140] sm:$0xff]
    %v1009 = vld [vmem:[#allocation3 + $0x148] sm:$0xff]
    %v1010 = vld [vmem:[#allocation3 + $0x150] sm:$0xff]
    %v1011 = vld [vmem:[#allocation3 + $0x158] sm:$0xff]
    %v1012 = vld [vmem:[#allocation3 + $0x160] sm:$0xff]
    %v1013 = vld [vmem:[#allocation3 + $0x168] sm:$0xff]
    %v1014 = vld [vmem:[#allocation3 + $0x170] sm:$0xff]
    %v1015 = vld [vmem:[#allocation3 + $0x178] sm:$0xff]
    %v1016 = vld [vmem:[#allocation3 + $0x180] sm:$0xff]
    %v1017 = vld [vmem:[#allocation3 + $0x188] sm:$0xff]
    %v1018 = vld [vmem:[#allocation3 + $0x190] sm:$0xff]
    %v1019 = vld [vmem:[#allocation3 + $0x198] sm:$0xff]
    %v1020 = vld [vmem:[#allocation3 + $0x1a0] sm:$0xff]
    %v1021 = vld [vmem:[#allocation3 + $0x1a8] sm:$0xff]
    %v1022 = vld [vmem:[#allocation3 + $0x1b0] sm:$0xff]
    %v1023 = vld [vmem:[#allocation3 + $0x1b8] sm:$0xff]
    %v1024 = vld [vmem:[#allocation3 + $0x1c0] sm:$0xff]
    %v1025 = vld [vmem:[#allocation3 + $0x1c8] sm:$0xff]
    %v1026 = vld [vmem:[#allocation3 + $0x1d0] sm:$0xff]
    %v1027 = vld [vmem:[#allocation3 + $0x1d8] sm:$0xff]
    %v1028 = vld [vmem:[#allocation3 + $0x1e0] sm:$0xff]
    %v1029 = vld [vmem:[#allocation3 + $0x1e8] sm:$0xff]
    %v1030 = vld [vmem:[#allocation3 + $0x1f0] sm:$0xff]
    %v1031 = vld [vmem:[#allocation3 + $0x1f8] sm:$0xff]
    %v1032 = vld [vmem:[#allocation3 + $0x200] sm:$0xff]
    %v1033 = vld [vmem:[#allocation3 + $0x208] sm:$0xff]
    %v1034 = vld [vmem:[#allocation3 + $0x210] sm:$0xff]
    %v1035 = vld [vmem:[#allocation3 + $0x218] sm:$0xff]
    %v1036 = vld [vmem:[#allocation3 + $0x220] sm:$0xff]
    %v1037 = vld [vmem:[#allocation3 + $0x228] sm:$0xff]
    %v1038 = vld [vmem:[#allocation3 + $0x230] sm:$0xff]
    %v1039 = vld [vmem:[#allocation3 + $0x238] sm:$0xff]
    %v1040 = vld [vmem:[#allocation3 + $0x240] sm:$0xff]
    %v1041 = vld [vmem:[#allocation3 + $0x248] sm:$0xff]
    %v1042 = vld [vmem:[#allocation3 + $0x250] sm:$0xff]
    %v1043 = vld [vmem:[#allocation3 + $0x258] sm:$0xff]
    %v1044 = vld [vmem:[#allocation3 + $0x260] sm:$0xff]
    %v1045 = vld [vmem:[#allocation3 + $0x268] sm:$0xff]
    %v1046 = vld [vmem:[#allocation3 + $0x270] sm:$0xff]
    %v1047 = vld [vmem:[#allocation3 + $0x278] sm:$0xff]
    %v1048 = vld [vmem:[#allocation3 + $0x280] sm:$0xff]
    %v1049 = vld [vmem:[#allocation3 + $0x288] sm:$0xff]
    %v1050 = vld [vmem:[#allocation3 + $0x290] sm:$0xff]
    %v1051 = vld [vmem:[#allocation3 + $0x298] sm:$0xff]
    %v1052 = vld [vmem:[#allocation3 + $0x2a0] sm:$0xff]
    %v1053 = vld [vmem:[#allocation3 + $0x2a8] sm:$0xff]
    %v1054 = vld [vmem:[#allocation3 + $0x2b0] sm:$0xff]
    %v1055 = vld [vmem:[#allocation3 + $0x2b8] sm:$0xff]
    %v1056 = vld [vmem:[#allocation3 + $0x2c0] sm:$0xff]
    %v1057 = vld [vmem:[#allocation3 + $0x2c8] sm:$0xff]
    %v1058 = vld [vmem:[#allocation3 + $0x2d0] sm:$0xff]
    %v1059 = vld [vmem:[#allocation3 + $0x2d8] sm:$0xff]
    %v1060 = vld [vmem:[#allocation3 + $0x2e0] sm:$0xff]
    %v1061 = vld [vmem:[#allocation3 + $0x2e8] sm:$0xff]
    %v1062 = vld [vmem:[#allocation3 + $0x2f0] sm:$0xff]
    %v1063 = vld [vmem:[#allocation3 + $0x2f8] sm:$0xff]
    %v1064 = vld [vmem:[#allocation3 + $0x300] sm:$0xff]
    %v1065 = vld [vmem:[#allocation3 + $0x308] sm:$0xff]
    %v1066 = vld [vmem:[#allocation3 + $0x310] sm:$0xff]
    %v1067 = vld [vmem:[#allocation3 + $0x318] sm:$0xff]
    %v1068 = vld [vmem:[#allocation3 + $0x320] sm:$0xff]
    %v1069 = vld [vmem:[#allocation3 + $0x328] sm:$0xff]
    %v1070 = vld [vmem:[#allocation3 + $0x330] sm:$0xff]
    %v1071 = vld [vmem:[#allocation3 + $0x338] sm:$0xff]
    %v1072 = vld [vmem:[#allocation3 + $0x340] sm:$0xff]
    %v1073 = vld [vmem:[#allocation3 + $0x348] sm:$0xff]
    %v1074 = vld [vmem:[#allocation3 + $0x350] sm:$0xff]
    %v1075 = vld [vmem:[#allocation3 + $0x358] sm:$0xff]
    %v1076 = vld [vmem:[#allocation3 + $0x360] sm:$0xff]
    %v1077 = vld [vmem:[#allocation3 + $0x368] sm:$0xff]
    %v1078 = vld [vmem:[#allocation3 + $0x370] sm:$0xff]
    %v1079 = vld [vmem:[#allocation3 + $0x378] sm:$0xff]
    %v1080 = vld [vmem:[#allocation3 + $0x380] sm:$0xff]
    %v1081 = vld [vmem:[#allocation3 + $0x388] sm:$0xff]
    %v1082 = vld [vmem:[#allocation3 + $0x390] sm:$0xff]
    %v1083 = vld [vmem:[#allocation3 + $0x398] sm:$0xff]
    %v1084 = vld [vmem:[#allocation3 + $0x3a0] sm:$0xff]
    %v1085 = vld [vmem:[#allocation3 + $0x3a8] sm:$0xff]
    %v1086 = vld [vmem:[#allocation3 + $0x3b0] sm:$0xff]
    %v1087 = vld [vmem:[#allocation3 + $0x3b8] sm:$0xff]
    %v1088 = vld [vmem:[#allocation3 + $0x3c0] sm:$0xff]
    %v1089 = vld [vmem:[#allocation3 + $0x3c8] sm:$0xff]
    %v1090 = vld [vmem:[#allocation3 + $0x3d0] sm:$0xff]
    %v1091 = vld [vmem:[#allocation3 + $0x3d8] sm:$0xff]
    %v1092 = vld [vmem:[#allocation3 + $0x3e0] sm:$0xff]
    %v1093 = vld [vmem:[#allocation3 + $0x3e8] sm:$0xff]
    %v1094 = vld [vmem:[#allocation3 + $0x3f0] sm:$0xff]
    %v1095 = vld [vmem:[#allocation3 + $0x3f8] sm:$0xff]
    %v1096 = vld [vmem:[#allocation3 + $0x400] sm:$0xff]
    %v1097 = vld [vmem:[#allocation3 + $0x408] sm:$0xff]
    %v1098 = vld [vmem:[#allocation3 + $0x410] sm:$0xff]
    %v1099 = vld [vmem:[#allocation3 + $0x418] sm:$0xff]
    %v1100 = vld [vmem:[#allocation3 + $0x420] sm:$0xff]
    %v1101 = vld [vmem:[#allocation3 + $0x428] sm:$0xff]
    %v1102 = vld [vmem:[#allocation3 + $0x430] sm:$0xff]
    %v1103 = vld [vmem:[#allocation3 + $0x438] sm:$0xff]
    %v1104 = vld [vmem:[#allocation3 + $0x440] sm:$0xff]
    %v1105 = vld [vmem:[#allocation3 + $0x448] sm:$0xff]
    %v1106 = vld [vmem:[#allocation3 + $0x450] sm:$0xff]
    %v1107 = vld [vmem:[#allocation3 + $0x458] sm:$0xff]
    %v1108 = vld [vmem:[#allocation3 + $0x460] sm:$0xff]
    %v1109 = vld [vmem:[#allocation3 + $0x468] sm:$0xff]
    %v1110 = vld [vmem:[#allocation3 + $0x470] sm:$0xff]
    %v1111 = vld [vmem:[#allocation3 + $0x478] sm:$0xff]
    %v1112 = vld [vmem:[#allocation3 + $0x480] sm:$0xff]
    %v1113 = vld [vmem:[#allocation3 + $0x488] sm:$0xff]
    %v1114 = vld [vmem:[#allocation3 + $0x490] sm:$0xff]
    %v1115 = vld [vmem:[#allocation3 + $0x498] sm:$0xff]
    %v1116 = vld [vmem:[#allocation3 + $0x4a0] sm:$0xff]
    %v1117 = vld [vmem:[#allocation3 + $0x4a8] sm:$0xff]
    %v1118 = vld [vmem:[#allocation3 + $0x4b0] sm:$0xff]
    %v1119 = vld [vmem:[#allocation3 + $0x4b8] sm:$0xff]
    %v1120 = vld [vmem:[#allocation3 + $0x4c0] sm:$0xff]
    %v1121 = vld [vmem:[#allocation3 + $0x4c8] sm:$0xff]
    %v1122 = vld [vmem:[#allocation3 + $0x4d0] sm:$0xff]
    %v1123 = vld [vmem:[#allocation3 + $0x4d8] sm:$0xff]
    %v1124 = vld [vmem:[#allocation3 + $0x4e0] sm:$0xff]
    %v1125 = vld [vmem:[#allocation3 + $0x4e8] sm:$0xff]
    %v1126 = vld [vmem:[#allocation3 + $0x4f0] sm:$0xff]
    %v1127 = vld [vmem:[#allocation3 + $0x4f8] sm:$0xff]
    %v1128 = vld [vmem:[#allocation3 + $0x500] sm:$0xff]
    %v1129 = vld [vmem:[#allocation3 + $0x508] sm:$0xff]
    %v1130 = vld [vmem:[#allocation3 + $0x510] sm:$0xff]
    %v1131 = vld [vmem:[#allocation3 + $0x518] sm:$0xff]
    %v1132 = vld [vmem:[#allocation3 + $0x520] sm:$0xff]
    %v1133 = vld [vmem:[#allocation3 + $0x528] sm:$0xff]
    %v1134 = vld [vmem:[#allocation3 + $0x530] sm:$0xff]
    %v1135 = vld [vmem:[#allocation3 + $0x538] sm:$0xff]
    %v1136 = vld [vmem:[#allocation3 + $0x540] sm:$0xff]
    %v1137 = vld [vmem:[#allocation3 + $0x548] sm:$0xff]
    %v1138 = vld [vmem:[#allocation3 + $0x550] sm:$0xff]
    %v1139 = vld [vmem:[#allocation3 + $0x558] sm:$0xff]
    %v1140 = vld [vmem:[#allocation3 + $0x560] sm:$0xff]
    %v1141 = vld [vmem:[#allocation3 + $0x568] sm:$0xff]
    %v1142 = vld [vmem:[#allocation3 + $0x570] sm:$0xff]
    %v1143 = vld [vmem:[#allocation3 + $0x578] sm:$0xff]
    %v1144 = vld [vmem:[#allocation3 + $0x580] sm:$0xff]
    %v1145 = vld [vmem:[#allocation3 + $0x588] sm:$0xff]
    %v1146 = vld [vmem:[#allocation3 + $0x590] sm:$0xff]
    %v1147 = vld [vmem:[#allocation3 + $0x598] sm:$0xff]
    %v1148 = vld [vmem:[#allocation3 + $0x5a0] sm:$0xff]
    %v1149 = vld [vmem:[#allocation3 + $0x5a8] sm:$0xff]
    %v1150 = vld [vmem:[#allocation3 + $0x5b0] sm:$0xff]
    %v1151 = vld [vmem:[#allocation3 + $0x5b8] sm:$0xff]
    %v1152 = vld [vmem:[#allocation3 + $0x5c0] sm:$0xff]
    %v1153 = vld [vmem:[#allocation3 + $0x5c8] sm:$0xff]
    %v1154 = vld [vmem:[#allocation3 + $0x5d0] sm:$0xff]
    %v1155 = vld [vmem:[#allocation3 + $0x5d8] sm:$0xff]
    %v1156 = vld [vmem:[#allocation3 + $0x5e0] sm:$0xff]
    %v1157 = vld [vmem:[#allocation3 + $0x5e8] sm:$0xff]
    %v1158 = vld [vmem:[#allocation3 + $0x5f0] sm:$0xff]
    %v1159 = vld [vmem:[#allocation3 + $0x5f8] sm:$0xff]
    %1160 = vmatpush.msra.mxu0 %v1058
    %1161 = vmatpush.msra.mxu0 %v1052
    %1162 = vmatpush.msra.mxu0 %v1046
    %1163 = vmatpush.msra.mxu0 %v1040
    %1164 = vmatpush.msra.mxu0 %v1034
    %1165 = vmatpush.msra.mxu0 %v1028
    %1166 = vmatpush.msra.mxu0 %v1022
    %1167 = vmatpush.msra.mxu0 %v1016
    %1168 = vmatpush.msra.mxu0 %v1010
    %1169 = vmatpush.msra.mxu0 %v1004
    %1170 = vmatpush.msra.mxu0 %v998
    %1171 = vmatpush.msra.mxu0 %v992
    %1172 = vmatpush.msra.mxu0 %v986
    %1173 = vmatpush.msra.mxu0 %v980
    %1174 = vmatpush.msra.mxu0 %v974
    %1175 = vmatpush.msra.mxu0 %v968
    %1176 = vmatmul.f32.gmra.mxu0 %v902
    %v1177 = vpop.f32.mrf.mxu0
    %v1178 = vadd.f32 0.0, %v1177
    %1179 = vdwg.mxu0
    %1180 = vmatpush.msra.mxu0 %v1154
    %1181 = vmatpush.msra.mxu0 %v1148
    %1182 = vmatpush.msra.mxu0 %v1142
    %1183 = vmatpush.msra.mxu0 %v1136
    %1184 = vmatpush.msra.mxu0 %v1130
    %1185 = vmatpush.msra.mxu0 %v1124
    %1186 = vmatpush.msra.mxu0 %v1118
    %1187 = vmatpush.msra.mxu0 %v1112
    %1188 = vmatpush.msra.mxu0 %v1106
    %1189 = vmatpush.msra.mxu0 %v1100
    %1190 = vmatpush.msra.mxu0 %v1094
    %1191 = vmatpush.msra.mxu0 %v1088
    %1192 = vmatpush.msra.mxu0 %v1082
    %1193 = vmatpush.msra.mxu0 %v1076
    %1194 = vmatpush.msra.mxu0 %v1070
    %1195 = vmatpush.msra.mxu0 %v1064
    %1196 = vmatmul.f32.gmra.mxu0 %v952
    %v1197 = vpop.f32.mrf.mxu0
    %v1198 = vadd.f32 %v1178, %v1197
    %1199 = vdwg.mxu0
    %1200 = vmatpush.msra.mxu0 %v1059
    %1201 = vmatpush.msra.mxu0 %v1053
    %1202 = vmatpush.msra.mxu0 %v1047
    %1203 = vmatpush.msra.mxu0 %v1041
    %1204 = vmatpush.msra.mxu0 %v1035
    %1205 = vmatpush.msra.mxu0 %v1029
    %1206 = vmatpush.msra.mxu0 %v1023
    %1207 = vmatpush.msra.mxu0 %v1017
    %1208 = vmatpush.msra.mxu0 %v1011
    %1209 = vmatpush.msra.mxu0 %v1005
    %1210 = vmatpush.msra.mxu0 %v999
    %1211 = vmatpush.msra.mxu0 %v993
    %1212 = vmatpush.msra.mxu0 %v987
    %1213 = vmatpush.msra.mxu0 %v981
    %1214 = vmatpush.msra.mxu0 %v975
    %1215 = vmatpush.msra.mxu0 %v969
    %1216 = vmatmul.f32.gmra.mxu0 %v902
    %v1217 = vpop.f32.mrf.mxu0
    %v1218 = vadd.f32 0.0, %v1217
    %1219 = vdwg.mxu0
    %1220 = vmatpush.msra.mxu0 %v1155
    %1221 = vmatpush.msra.mxu0 %v1149
    %1222 = vmatpush.msra.mxu0 %v1143
    %1223 = vmatpush.msra.mxu0 %v1137
    %1224 = vmatpush.msra.mxu0 %v1131
    %1225 = vmatpush.msra.mxu0 %v1125
    %1226 = vmatpush.msra.mxu0 %v1119
    %1227 = vmatpush.msra.mxu0 %v1113
    %1228 = vmatpush.msra.mxu0 %v1107
    %1229 = vmatpush.msra.mxu0 %v1101
    %1230 = vmatpush.msra.mxu0 %v1095
    %1231 = vmatpush.msra.mxu0 %v1089
    %1232 = vmatpush.msra.mxu0 %v1083
    %1233 = vmatpush.msra.mxu0 %v1077
    %1234 = vmatpush.msra.mxu0 %v1071
    %1235 = vmatpush.msra.mxu0 %v1065
    %1236 = vmatmul.f32.gmra.mxu0 %v952
    %v1237 = vpop.f32.mrf.mxu0
    %v1238 = vadd.f32 %v1218, %v1237
    %1239 = vdwg.mxu0
    %1240 = vmatpush.msra.mxu0 %v1060
    %1241 = vmatpush.msra.mxu0 %v1054
    %1242 = vmatpush.msra.mxu0 %v1048
    %1243 = vmatpush.msra.mxu0 %v1042
    %1244 = vmatpush.msra.mxu0 %v1036
    %1245 = vmatpush.msra.mxu0 %v1030
    %1246 = vmatpush.msra.mxu0 %v1024
    %1247 = vmatpush.msra.mxu0 %v1018
    %1248 = vmatpush.msra.mxu0 %v1012
    %1249 = vmatpush.msra.mxu0 %v1006
    %1250 = vmatpush.msra.mxu0 %v1000
    %1251 = vmatpush.msra.mxu0 %v994
    %1252 = vmatpush.msra.mxu0 %v988
    %1253 = vmatpush.msra.mxu0 %v982
    %1254 = vmatpush.msra.mxu0 %v976
    %1255 = vmatpush.msra.mxu0 %v970
    %1256 = vmatmul.f32.gmra.mxu0 %v902
    %v1257 = vpop.f32.mrf.mxu0
    %v1258 = vadd.f32 0.0, %v1257
    %1259 = vdwg.mxu0
    %1260 = vmatpush.msra.mxu0 %v1156
    %1261 = vmatpush.msra.mxu0 %v1150
    %1262 = vmatpush.msra.mxu0 %v1144
    %1263 = vmatpush.msra.mxu0 %v1138
    %1264 = vmatpush.msra.mxu0 %v1132
    %1265 = vmatpush.msra.mxu0 %v1126
    %1266 = vmatpush.msra.mxu0 %v1120
    %1267 = vmatpush.msra.mxu0 %v1114
    %1268 = vmatpush.msra.mxu0 %v1108
    %1269 = vmatpush.msra.mxu0 %v1102
    %1270 = vmatpush.msra.mxu0 %v1096
    %1271 = vmatpush.msra.mxu0 %v1090
    %1272 = vmatpush.msra.mxu0 %v1084
    %1273 = vmatpush.msra.mxu0 %v1078
    %1274 = vmatpush.msra.mxu0 %v1072
    %1275 = vmatpush.msra.mxu0 %v1066
    %1276 = vmatmul.f32.gmra.mxu0 %v952
    %v1277 = vpop.f32.mrf.mxu0
    %v1278 = vadd.f32 %v1258, %v1277
    %1279 = vdwg.mxu0
    %1280 = vmatpush.msra.mxu0 %v1061
    %1281 = vmatpush.msra.mxu0 %v1055
    %1282 = vmatpush.msra.mxu0 %v1049
    %1283 = vmatpush.msra.mxu0 %v1043
    %1284 = vmatpush.msra.mxu0 %v1037
    %1285 = vmatpush.msra.mxu0 %v1031
    %1286 = vmatpush.msra.mxu0 %v1025
    %1287 = vmatpush.msra.mxu0 %v1019
    %1288 = vmatpush.msra.mxu0 %v1013
    %1289 = vmatpush.msra.mxu0 %v1007
    %1290 = vmatpush.msra.mxu0 %v1001
    %1291 = vmatpush.msra.mxu0 %v995
    %1292 = vmatpush.msra.mxu0 %v989
    %1293 = vmatpush.msra.mxu0 %v983
    %1294 = vmatpush.msra.mxu0 %v977
    %1295 = vmatpush.msra.mxu0 %v971
    %1296 = vmatmul.f32.gmra.mxu0 %v902
    %v1297 = vpop.f32.mrf.mxu0
    %v1298 = vadd.f32 0.0, %v1297
    %1299 = vdwg.mxu0
    %1300 = vmatpush.msra.mxu0 %v1157
    %1301 = vmatpush.msra.mxu0 %v1151
    %1302 = vmatpush.msra.mxu0 %v1145
    %1303 = vmatpush.msra.mxu0 %v1139
    %1304 = vmatpush.msra.mxu0 %v1133
    %1305 = vmatpush.msra.mxu0 %v1127
    %1306 = vmatpush.msra.mxu0 %v1121
    %1307 = vmatpush.msra.mxu0 %v1115
    %1308 = vmatpush.msra.mxu0 %v1109
    %1309 = vmatpush.msra.mxu0 %v1103
    %1310 = vmatpush.msra.mxu0 %v1097
    %1311 = vmatpush.msra.mxu0 %v1091
    %1312 = vmatpush.msra.mxu0 %v1085
    %1313 = vmatpush.msra.mxu0 %v1079
    %1314 = vmatpush.msra.mxu0 %v1073
    %1315 = vmatpush.msra.mxu0 %v1067
    %1316 = vmatmul.f32.gmra.mxu0 %v952
    %v1317 = vpop.f32.mrf.mxu0
    %v1318 = vadd.f32 %v1298, %v1317
    %1319 = vdwg.mxu0
    %1320 = vmatpush.msra.mxu0 %v1062
    %1321 = vmatpush.msra.mxu0 %v1056
    %1322 = vmatpush.msra.mxu0 %v1050
    %1323 = vmatpush.msra.mxu0 %v1044
    %1324 = vmatpush.msra.mxu0 %v1038
    %1325 = vmatpush.msra.mxu0 %v1032
    %1326 = vmatpush.msra.mxu0 %v1026
    %1327 = vmatpush.msra.mxu0 %v1020
    %1328 = vmatpush.msra.mxu0 %v1014
    %1329 = vmatpush.msra.mxu0 %v1008
    %1330 = vmatpush.msra.mxu0 %v1002
    %1331 = vmatpush.msra.mxu0 %v996
    %1332 = vmatpush.msra.mxu0 %v990
    %1333 = vmatpush.msra.mxu0 %v984
    %1334 = vmatpush.msra.mxu0 %v978
    %1335 = vmatpush.msra.mxu0 %v972
    %1336 = vmatmul.f32.gmra.mxu0 %v902
    %v1337 = vpop.f32.mrf.mxu0
    %v1338 = vadd.f32 0.0, %v1337
    %1339 = vdwg.mxu0
    %1340 = vmatpush.msra.mxu0 %v1158
    %1341 = vmatpush.msra.mxu0 %v1152
    %1342 = vmatpush.msra.mxu0 %v1146
    %1343 = vmatpush.msra.mxu0 %v1140
    %1344 = vmatpush.msra.mxu0 %v1134
    %1345 = vmatpush.msra.mxu0 %v1128
    %1346 = vmatpush.msra.mxu0 %v1122
    %1347 = vmatpush.msra.mxu0 %v1116
    %1348 = vmatpush.msra.mxu0 %v1110
    %1349 = vmatpush.msra.mxu0 %v1104
    %1350 = vmatpush.msra.mxu0 %v1098
    %1351 = vmatpush.msra.mxu0 %v1092
    %1352 = vmatpush.msra.mxu0 %v1086
    %1353 = vmatpush.msra.mxu0 %v1080
    %1354 = vmatpush.msra.mxu0 %v1074
    %1355 = vmatpush.msra.mxu0 %v1068
    %1356 = vmatmul.f32.gmra.mxu0 %v952
    %v1357 = vpop.f32.mrf.mxu0
    %v1358 = vadd.f32 %v1338, %v1357
    %1359 = vdwg.mxu0
    %1360 = vmatpush.msra.mxu0 %v1063
    %1361 = vmatpush.msra.mxu0 %v1057
    %1362 = vmatpush.msra.mxu0 %v1051
    %1363 = vmatpush.msra.mxu0 %v1045
    %1364 = vmatpush.msra.mxu0 %v1039
    %1365 = vmatpush.msra.mxu0 %v1033
    %1366 = vmatpush.msra.mxu0 %v1027
    %1367 = vmatpush.msra.mxu0 %v1021
    %1368 = vmatpush.msra.mxu0 %v1015
    %1369 = vmatpush.msra.mxu0 %v1009
    %1370 = vmatpush.msra.mxu0 %v1003
    %1371 = vmatpush.msra.mxu0 %v997
    %1372 = vmatpush.msra.mxu0 %v991
    %1373 = vmatpush.msra.mxu0 %v985
    %1374 = vmatpush.msra.mxu0 %v979
    %1375 = vmatpush.msra.mxu0 %v973
    %1376 = vmatmul.f32.gmra.mxu0 %v902
    %v1377 = vpop.f32.mrf.mxu0
    %v1378 = vadd.f32 0.0, %v1377
    %1379 = vdwg.mxu0
    %1380 = vmatpush.msra.mxu0 %v1159
    %1381 = vmatpush.msra.mxu0 %v1153
    %1382 = vmatpush.msra.mxu0 %v1147
    %1383 = vmatpush.msra.mxu0 %v1141
    %1384 = vmatpush.msra.mxu0 %v1135
    %1385 = vmatpush.msra.mxu0 %v1129
    %1386 = vmatpush.msra.mxu0 %v1123
    %1387 = vmatpush.msra.mxu0 %v1117
    %1388 = vmatpush.msra.mxu0 %v1111
    %1389 = vmatpush.msra.mxu0 %v1105
    %1390 = vmatpush.msra.mxu0 %v1099
    %1391 = vmatpush.msra.mxu0 %v1093
    %1392 = vmatpush.msra.mxu0 %v1087
    %1393 = vmatpush.msra.mxu0 %v1081
    %1394 = vmatpush.msra.mxu0 %v1075
    %1395 = vmatpush.msra.mxu0 %v1069
    %1396 = vmatmul.f32.gmra.mxu0 %v952
    %v1397 = vpop.f32.mrf.mxu0
    %v1398 = vadd.f32 %v1378, %v1397
    %1399 = vdwg.mxu0
    %v1400 = vadd.f32 %v959, %v1198
    %v1401 = vxor.u32 %v1400, 2147483648
    %v1402 = vmul.f32 %v1401, 1.442695
    %v1403 = vpow.pop %v1402
    %v1404 = vadd.f32 %v1403, 1.0
    %v1405 = vrcp.pop %v1404
    %v1406 = vmul.f32 %v1404, %v1405
    %v1407 = vsub.f32 1.0, %v1406
    %v1408 = vmul.f32 %v1405, %v1407
    %v1409 = vadd.f32 %v1405, %v1408
    %vm1410 = vweird.f32 %v1404
    %vm1411 = vweird.f32 %v1405
    %vm1412 = vmor %vm1410, %vm1411
    %v1413 = vsel %vm1412, %v1405, %v1409
    %v1414 = vand.u32 2147483647, %v1404
    %vm1415 = vcmp.eq.f32.partialorder %v1414, 8.507059e+37
    %v1416 = vand.u32 %v1404, 2147483648
    %v1417 = vor.u32 1.1754944e-38, %v1416
    %v1418 = vsel %vm1415, %v1417, %v1413
    %v1419 = vmul.f32 1.0, %v1418
    %v1420 = vadd.f32 %v960, %v1238
    %v1421 = vxor.u32 %v1420, 2147483648
    %v1422 = vmul.f32 %v1421, 1.442695
    %v1423 = vpow.pop %v1422
    %v1424 = vadd.f32 %v1423, 1.0
    %v1425 = vrcp.pop %v1424
    %v1426 = vmul.f32 %v1424, %v1425
    %v1427 = vsub.f32 1.0, %v1426
    %v1428 = vmul.f32 %v1425, %v1427
    %v1429 = vadd.f32 %v1425, %v1428
    %vm1430 = vweird.f32 %v1424
    %vm1431 = vweird.f32 %v1425
    %vm1432 = vmor %vm1430, %vm1431
    %v1433 = vsel %vm1432, %v1425, %v1429
    %v1434 = vand.u32 2147483647, %v1424
    %vm1435 = vcmp.eq.f32.partialorder %v1434, 8.507059e+37
    %v1436 = vand.u32 %v1424, 2147483648
    %v1437 = vor.u32 1.1754944e-38, %v1436
    %v1438 = vsel %vm1435, %v1437, %v1433
    %v1439 = vmul.f32 1.0, %v1438
    %v1440 = vadd.f32 %v1278, %v894
    %v1441 = vmul.f32 %v1419, %v1440
    %v1442 = vadd.f32 %v961, %v1441
    %v1443 = vtanh.pop %v1442
    %v1444 = vsub.f32 %v902, %v1443
    %v1445 = vmul.f32 %v1439, %v1444
    %v1446 = vadd.f32 %v1443, %v1445
    %v1447 = vadd.f32 %v965, %v1318
    %v1448 = vxor.u32 %v1447, 2147483648
    %v1449 = vmul.f32 %v1448, 1.442695
    %v1450 = vpow.pop %v1449
    %v1451 = vadd.f32 %v1450, 1.0
    %v1452 = vrcp.pop %v1451
    %v1453 = vmul.f32 %v1451, %v1452
    %v1454 = vsub.f32 1.0, %v1453
    %v1455 = vmul.f32 %v1452, %v1454
    %v1456 = vadd.f32 %v1452, %v1455
    %vm1457 = vweird.f32 %v1451
    %vm1458 = vweird.f32 %v1452
    %vm1459 = vmor %vm1457, %vm1458
    %v1460 = vsel %vm1459, %v1452, %v1456
    %v1461 = vand.u32 2147483647, %v1451
    %vm1462 = vcmp.eq.f32.partialorder %v1461, 8.507059e+37
    %v1463 = vand.u32 %v1451, 2147483648
    %v1464 = vor.u32 1.1754944e-38, %v1463
    %v1465 = vsel %vm1462, %v1464, %v1460
    %v1466 = vmul.f32 1.0, %v1465
    %v1467 = vadd.f32 %v966, %v1358
    %v1468 = vxor.u32 %v1467, 2147483648
    %v1469 = vmul.f32 %v1468, 1.442695
    %v1470 = vpow.pop %v1469
    %v1471 = vadd.f32 %v1470, 1.0
    %v1472 = vrcp.pop %v1471
    %v1473 = vmul.f32 %v1471, %v1472
    %v1474 = vsub.f32 1.0, %v1473
    %v1475 = vmul.f32 %v1472, %v1474
    %v1476 = vadd.f32 %v1472, %v1475
    %vm1477 = vweird.f32 %v1471
    %vm1478 = vweird.f32 %v1472
    %vm1479 = vmor %vm1477, %vm1478
    %v1480 = vsel %vm1479, %v1472, %v1476
    %v1481 = vand.u32 2147483647, %v1471
    %vm1482 = vcmp.eq.f32.partialorder %v1481, 8.507059e+37
    %v1483 = vand.u32 %v1471, 2147483648
    %v1484 = vor.u32 1.1754944e-38, %v1483
    %v1485 = vsel %vm1482, %v1484, %v1480
    %v1486 = vmul.f32 1.0, %v1485
    %v1487 = vadd.f32 %v1398, %v944
    %v1488 = vmul.f32 %v1466, %v1487
    %v1489 = vadd.f32 %v967, %v1488
    %v1490 = vtanh.pop %v1489
    %v1491 = vsub.f32 %v952, %v1490
    %v1492 = vmul.f32 %v1486, %v1491
    %v1493 = vadd.f32 %v1490, %v1492
    %s1494 = scalar_lea.vmem %s6, 16
    %1495 = vst [vmem:[%s1494] sm:$0xff] %v1446
    %s1496 = scalar_lea.vmem %s6, 96
    %1497 = vst [vmem:[%s1496 + $0x8] sm:$0xff] %v1493
    %s1498 = smul.u32 2, 6
    %s1499 = smul.addr %s1498, 8
    %s1500 = scalar_lea.vmem [#allocation2], %s1499
    %v1501 = vld [vmem:[%s1500] sm:$0xff]
    %v1502 = vld [vmem:[%s1500 + $0x8] sm:$0xff]
    %v1503 = vld [vmem:[%s1500 + $0x10] sm:$0xff]
    %s1504 = smul.u32 5, 6
    %s1505 = smul.addr %s1504, 8
    %s1506 = scalar_lea.vmem [#allocation2], %s1505
    %v1507 = vld [vmem:[%s1506 + $0x18] sm:$0xff]
    %v1508 = vld [vmem:[%s1506 + $0x20] sm:$0xff]
    %v1509 = vld [vmem:[%s1506 + $0x28] sm:$0xff]
    %v1510 = vld [vmem:[#allocation3] sm:$0xff]
    %v1511 = vld [vmem:[#allocation3 + $0x8] sm:$0xff]
    %v1512 = vld [vmem:[#allocation3 + $0x10] sm:$0xff]
    %v1513 = vld [vmem:[#allocation3 + $0x18] sm:$0xff]
    %v1514 = vld [vmem:[#allocation3 + $0x20] sm:$0xff]
    %v1515 = vld [vmem:[#allocation3 + $0x28] sm:$0xff]
    %v1516 = vld [vmem:[#allocation3 + $0x30] sm:$0xff]
    %v1517 = vld [vmem:[#allocation3 + $0x38] sm:$0xff]
    %v1518 = vld [vmem:[#allocation3 + $0x40] sm:$0xff]
    %v1519 = vld [vmem:[#allocation3 + $0x48] sm:$0xff]
    %v1520 = vld [vmem:[#allocation3 + $0x50] sm:$0xff]
    %v1521 = vld [vmem:[#allocation3 + $0x58] sm:$0xff]
    %v1522 = vld [vmem:[#allocation3 + $0x60] sm:$0xff]
    %v1523 = vld [vmem:[#allocation3 + $0x68] sm:$0xff]
    %v1524 = vld [vmem:[#allocation3 + $0x70] sm:$0xff]
    %v1525 = vld [vmem:[#allocation3 + $0x78] sm:$0xff]
    %v1526 = vld [vmem:[#allocation3 + $0x80] sm:$0xff]
    %v1527 = vld [vmem:[#allocation3 + $0x88] sm:$0xff]
    %v1528 = vld [vmem:[#allocation3 + $0x90] sm:$0xff]
    %v1529 = vld [vmem:[#allocation3 + $0x98] sm:$0xff]
    %v1530 = vld [vmem:[#allocation3 + $0xa0] sm:$0xff]
    %v1531 = vld [vmem:[#allocation3 + $0xa8] sm:$0xff]
    %v1532 = vld [vmem:[#allocation3 + $0xb0] sm:$0xff]
    %v1533 = vld [vmem:[#allocation3 + $0xb8] sm:$0xff]
    %v1534 = vld [vmem:[#allocation3 + $0xc0] sm:$0xff]
    %v1535 = vld [vmem:[#allocation3 + $0xc8] sm:$0xff]
    %v1536 = vld [vmem:[#allocation3 + $0xd0] sm:$0xff]
    %v1537 = vld [vmem:[#allocation3 + $0xd8] sm:$0xff]
    %v1538 = vld [vmem:[#allocation3 + $0xe0] sm:$0xff]
    %v1539 = vld [vmem:[#allocation3 + $0xe8] sm:$0xff]
    %v1540 = vld [vmem:[#allocation3 + $0xf0] sm:$0xff]
    %v1541 = vld [vmem:[#allocation3 + $0xf8] sm:$0xff]
    %v1542 = vld [vmem:[#allocation3 + $0x100] sm:$0xff]
    %v1543 = vld [vmem:[#allocation3 + $0x108] sm:$0xff]
    %v1544 = vld [vmem:[#allocation3 + $0x110] sm:$0xff]
    %v1545 = vld [vmem:[#allocation3 + $0x118] sm:$0xff]
    %v1546 = vld [vmem:[#allocation3 + $0x120] sm:$0xff]
    %v1547 = vld [vmem:[#allocation3 + $0x128] sm:$0xff]
    %v1548 = vld [vmem:[#allocation3 + $0x130] sm:$0xff]
    %v1549 = vld [vmem:[#allocation3 + $0x138] sm:$0xff]
    %v1550 = vld [vmem:[#allocation3 + $0x140] sm:$0xff]
    %v1551 = vld [vmem:[#allocation3 + $0x148] sm:$0xff]
    %v1552 = vld [vmem:[#allocation3 + $0x150] sm:$0xff]
    %v1553 = vld [vmem:[#allocation3 + $0x158] sm:$0xff]
    %v1554 = vld [vmem:[#allocation3 + $0x160] sm:$0xff]
    %v1555 = vld [vmem:[#allocation3 + $0x168] sm:$0xff]
    %v1556 = vld [vmem:[#allocation3 + $0x170] sm:$0xff]
    %v1557 = vld [vmem:[#allocation3 + $0x178] sm:$0xff]
    %v1558 = vld [vmem:[#allocation3 + $0x180] sm:$0xff]
    %v1559 = vld [vmem:[#allocation3 + $0x188] sm:$0xff]
    %v1560 = vld [vmem:[#allocation3 + $0x190] sm:$0xff]
    %v1561 = vld [vmem:[#allocation3 + $0x198] sm:$0xff]
    %v1562 = vld [vmem:[#allocation3 + $0x1a0] sm:$0xff]
    %v1563 = vld [vmem:[#allocation3 + $0x1a8] sm:$0xff]
    %v1564 = vld [vmem:[#allocation3 + $0x1b0] sm:$0xff]
    %v1565 = vld [vmem:[#allocation3 + $0x1b8] sm:$0xff]
    %v1566 = vld [vmem:[#allocation3 + $0x1c0] sm:$0xff]
    %v1567 = vld [vmem:[#allocation3 + $0x1c8] sm:$0xff]
    %v1568 = vld [vmem:[#allocation3 + $0x1d0] sm:$0xff]
    %v1569 = vld [vmem:[#allocation3 + $0x1d8] sm:$0xff]
    %v1570 = vld [vmem:[#allocation3 + $0x1e0] sm:$0xff]
    %v1571 = vld [vmem:[#allocation3 + $0x1e8] sm:$0xff]
    %v1572 = vld [vmem:[#allocation3 + $0x1f0] sm:$0xff]
    %v1573 = vld [vmem:[#allocation3 + $0x1f8] sm:$0xff]
    %v1574 = vld [vmem:[#allocation3 + $0x200] sm:$0xff]
    %v1575 = vld [vmem:[#allocation3 + $0x208] sm:$0xff]
    %v1576 = vld [vmem:[#allocation3 + $0x210] sm:$0xff]
    %v1577 = vld [vmem:[#allocation3 + $0x218] sm:$0xff]
    %v1578 = vld [vmem:[#allocation3 + $0x220] sm:$0xff]
    %v1579 = vld [vmem:[#allocation3 + $0x228] sm:$0xff]
    %v1580 = vld [vmem:[#allocation3 + $0x230] sm:$0xff]
    %v1581 = vld [vmem:[#allocation3 + $0x238] sm:$0xff]
    %v1582 = vld [vmem:[#allocation3 + $0x240] sm:$0xff]
    %v1583 = vld [vmem:[#allocation3 + $0x248] sm:$0xff]
    %v1584 = vld [vmem:[#allocation3 + $0x250] sm:$0xff]
    %v1585 = vld [vmem:[#allocation3 + $0x258] sm:$0xff]
    %v1586 = vld [vmem:[#allocation3 + $0x260] sm:$0xff]
    %v1587 = vld [vmem:[#allocation3 + $0x268] sm:$0xff]
    %v1588 = vld [vmem:[#allocation3 + $0x270] sm:$0xff]
    %v1589 = vld [vmem:[#allocation3 + $0x278] sm:$0xff]
    %v1590 = vld [vmem:[#allocation3 + $0x280] sm:$0xff]
    %v1591 = vld [vmem:[#allocation3 + $0x288] sm:$0xff]
    %v1592 = vld [vmem:[#allocation3 + $0x290] sm:$0xff]
    %v1593 = vld [vmem:[#allocation3 + $0x298] sm:$0xff]
    %v1594 = vld [vmem:[#allocation3 + $0x2a0] sm:$0xff]
    %v1595 = vld [vmem:[#allocation3 + $0x2a8] sm:$0xff]
    %v1596 = vld [vmem:[#allocation3 + $0x2b0] sm:$0xff]
    %v1597 = vld [vmem:[#allocation3 + $0x2b8] sm:$0xff]
    %v1598 = vld [vmem:[#allocation3 + $0x2c0] sm:$0xff]
    %v1599 = vld [vmem:[#allocation3 + $0x2c8] sm:$0xff]
    %v1600 = vld [vmem:[#allocation3 + $0x2d0] sm:$0xff]
    %v1601 = vld [vmem:[#allocation3 + $0x2d8] sm:$0xff]
    %v1602 = vld [vmem:[#allocation3 + $0x2e0] sm:$0xff]
    %v1603 = vld [vmem:[#allocation3 + $0x2e8] sm:$0xff]
    %v1604 = vld [vmem:[#allocation3 + $0x2f0] sm:$0xff]
    %v1605 = vld [vmem:[#allocation3 + $0x2f8] sm:$0xff]
    %v1606 = vld [vmem:[#allocation3 + $0x300] sm:$0xff]
    %v1607 = vld [vmem:[#allocation3 + $0x308] sm:$0xff]
    %v1608 = vld [vmem:[#allocation3 + $0x310] sm:$0xff]
    %v1609 = vld [vmem:[#allocation3 + $0x318] sm:$0xff]
    %v1610 = vld [vmem:[#allocation3 + $0x320] sm:$0xff]
    %v1611 = vld [vmem:[#allocation3 + $0x328] sm:$0xff]
    %v1612 = vld [vmem:[#allocation3 + $0x330] sm:$0xff]
    %v1613 = vld [vmem:[#allocation3 + $0x338] sm:$0xff]
    %v1614 = vld [vmem:[#allocation3 + $0x340] sm:$0xff]
    %v1615 = vld [vmem:[#allocation3 + $0x348] sm:$0xff]
    %v1616 = vld [vmem:[#allocation3 + $0x350] sm:$0xff]
    %v1617 = vld [vmem:[#allocation3 + $0x358] sm:$0xff]
    %v1618 = vld [vmem:[#allocation3 + $0x360] sm:$0xff]
    %v1619 = vld [vmem:[#allocation3 + $0x368] sm:$0xff]
    %v1620 = vld [vmem:[#allocation3 + $0x370] sm:$0xff]
    %v1621 = vld [vmem:[#allocation3 + $0x378] sm:$0xff]
    %v1622 = vld [vmem:[#allocation3 + $0x380] sm:$0xff]
    %v1623 = vld [vmem:[#allocation3 + $0x388] sm:$0xff]
    %v1624 = vld [vmem:[#allocation3 + $0x390] sm:$0xff]
    %v1625 = vld [vmem:[#allocation3 + $0x398] sm:$0xff]
    %v1626 = vld [vmem:[#allocation3 + $0x3a0] sm:$0xff]
    %v1627 = vld [vmem:[#allocation3 + $0x3a8] sm:$0xff]
    %v1628 = vld [vmem:[#allocation3 + $0x3b0] sm:$0xff]
    %v1629 = vld [vmem:[#allocation3 + $0x3b8] sm:$0xff]
    %v1630 = vld [vmem:[#allocation3 + $0x3c0] sm:$0xff]
    %v1631 = vld [vmem:[#allocation3 + $0x3c8] sm:$0xff]
    %v1632 = vld [vmem:[#allocation3 + $0x3d0] sm:$0xff]
    %v1633 = vld [vmem:[#allocation3 + $0x3d8] sm:$0xff]
    %v1634 = vld [vmem:[#allocation3 + $0x3e0] sm:$0xff]
    %v1635 = vld [vmem:[#allocation3 + $0x3e8] sm:$0xff]
    %v1636 = vld [vmem:[#allocation3 + $0x3f0] sm:$0xff]
    %v1637 = vld [vmem:[#allocation3 + $0x3f8] sm:$0xff]
    %v1638 = vld [vmem:[#allocation3 + $0x400] sm:$0xff]
    %v1639 = vld [vmem:[#allocation3 + $0x408] sm:$0xff]
    %v1640 = vld [vmem:[#allocation3 + $0x410] sm:$0xff]
    %v1641 = vld [vmem:[#allocation3 + $0x418] sm:$0xff]
    %v1642 = vld [vmem:[#allocation3 + $0x420] sm:$0xff]
    %v1643 = vld [vmem:[#allocation3 + $0x428] sm:$0xff]
    %v1644 = vld [vmem:[#allocation3 + $0x430] sm:$0xff]
    %v1645 = vld [vmem:[#allocation3 + $0x438] sm:$0xff]
    %v1646 = vld [vmem:[#allocation3 + $0x440] sm:$0xff]
    %v1647 = vld [vmem:[#allocation3 + $0x448] sm:$0xff]
    %v1648 = vld [vmem:[#allocation3 + $0x450] sm:$0xff]
    %v1649 = vld [vmem:[#allocation3 + $0x458] sm:$0xff]
    %v1650 = vld [vmem:[#allocation3 + $0x460] sm:$0xff]
    %v1651 = vld [vmem:[#allocation3 + $0x468] sm:$0xff]
    %v1652 = vld [vmem:[#allocation3 + $0x470] sm:$0xff]
    %v1653 = vld [vmem:[#allocation3 + $0x478] sm:$0xff]
    %v1654 = vld [vmem:[#allocation3 + $0x480] sm:$0xff]
    %v1655 = vld [vmem:[#allocation3 + $0x488] sm:$0xff]
    %v1656 = vld [vmem:[#allocation3 + $0x490] sm:$0xff]
    %v1657 = vld [vmem:[#allocation3 + $0x498] sm:$0xff]
    %v1658 = vld [vmem:[#allocation3 + $0x4a0] sm:$0xff]
    %v1659 = vld [vmem:[#allocation3 + $0x4a8] sm:$0xff]
    %v1660 = vld [vmem:[#allocation3 + $0x4b0] sm:$0xff]
    %v1661 = vld [vmem:[#allocation3 + $0x4b8] sm:$0xff]
    %v1662 = vld [vmem:[#allocation3 + $0x4c0] sm:$0xff]
    %v1663 = vld [vmem:[#allocation3 + $0x4c8] sm:$0xff]
    %v1664 = vld [vmem:[#allocation3 + $0x4d0] sm:$0xff]
    %v1665 = vld [vmem:[#allocation3 + $0x4d8] sm:$0xff]
    %v1666 = vld [vmem:[#allocation3 + $0x4e0] sm:$0xff]
    %v1667 = vld [vmem:[#allocation3 + $0x4e8] sm:$0xff]
    %v1668 = vld [vmem:[#allocation3 + $0x4f0] sm:$0xff]
    %v1669 = vld [vmem:[#allocation3 + $0x4f8] sm:$0xff]
    %v1670 = vld [vmem:[#allocation3 + $0x500] sm:$0xff]
    %v1671 = vld [vmem:[#allocation3 + $0x508] sm:$0xff]
    %v1672 = vld [vmem:[#allocation3 + $0x510] sm:$0xff]
    %v1673 = vld [vmem:[#allocation3 + $0x518] sm:$0xff]
    %v1674 = vld [vmem:[#allocation3 + $0x520] sm:$0xff]
    %v1675 = vld [vmem:[#allocation3 + $0x528] sm:$0xff]
    %v1676 = vld [vmem:[#allocation3 + $0x530] sm:$0xff]
    %v1677 = vld [vmem:[#allocation3 + $0x538] sm:$0xff]
    %v1678 = vld [vmem:[#allocation3 + $0x540] sm:$0xff]
    %v1679 = vld [vmem:[#allocation3 + $0x548] sm:$0xff]
    %v1680 = vld [vmem:[#allocation3 + $0x550] sm:$0xff]
    %v1681 = vld [vmem:[#allocation3 + $0x558] sm:$0xff]
    %v1682 = vld [vmem:[#allocation3 + $0x560] sm:$0xff]
    %v1683 = vld [vmem:[#allocation3 + $0x568] sm:$0xff]
    %v1684 = vld [vmem:[#allocation3 + $0x570] sm:$0xff]
    %v1685 = vld [vmem:[#allocation3 + $0x578] sm:$0xff]
    %v1686 = vld [vmem:[#allocation3 + $0x580] sm:$0xff]
    %v1687 = vld [vmem:[#allocation3 + $0x588] sm:$0xff]
    %v1688 = vld [vmem:[#allocation3 + $0x590] sm:$0xff]
    %v1689 = vld [vmem:[#allocation3 + $0x598] sm:$0xff]
    %v1690 = vld [vmem:[#allocation3 + $0x5a0] sm:$0xff]
    %v1691 = vld [vmem:[#allocation3 + $0x5a8] sm:$0xff]
    %v1692 = vld [vmem:[#allocation3 + $0x5b0] sm:$0xff]
    %v1693 = vld [vmem:[#allocation3 + $0x5b8] sm:$0xff]
    %v1694 = vld [vmem:[#allocation3 + $0x5c0] sm:$0xff]
    %v1695 = vld [vmem:[#allocation3 + $0x5c8] sm:$0xff]
    %v1696 = vld [vmem:[#allocation3 + $0x5d0] sm:$0xff]
    %v1697 = vld [vmem:[#allocation3 + $0x5d8] sm:$0xff]
    %v1698 = vld [vmem:[#allocation3 + $0x5e0] sm:$0xff]
    %v1699 = vld [vmem:[#allocation3 + $0x5e8] sm:$0xff]
    %v1700 = vld [vmem:[#allocation3 + $0x5f0] sm:$0xff]
    %v1701 = vld [vmem:[#allocation3 + $0x5f8] sm:$0xff]
    %1702 = vmatpush.msra.mxu0 %v1600
    %1703 = vmatpush.msra.mxu0 %v1594
    %1704 = vmatpush.msra.mxu0 %v1588
    %1705 = vmatpush.msra.mxu0 %v1582
    %1706 = vmatpush.msra.mxu0 %v1576
    %1707 = vmatpush.msra.mxu0 %v1570
    %1708 = vmatpush.msra.mxu0 %v1564
    %1709 = vmatpush.msra.mxu0 %v1558
    %1710 = vmatpush.msra.mxu0 %v1552
    %1711 = vmatpush.msra.mxu0 %v1546
    %1712 = vmatpush.msra.mxu0 %v1540
    %1713 = vmatpush.msra.mxu0 %v1534
    %1714 = vmatpush.msra.mxu0 %v1528
    %1715 = vmatpush.msra.mxu0 %v1522
    %1716 = vmatpush.msra.mxu0 %v1516
    %1717 = vmatpush.msra.mxu0 %v1510
    %1718 = vmatmul.f32.gmra.mxu0 %v1446
    %v1719 = vpop.f32.mrf.mxu0
    %v1720 = vadd.f32 0.0, %v1719
    %1721 = vdwg.mxu0
    %1722 = vmatpush.msra.mxu0 %v1696
    %1723 = vmatpush.msra.mxu0 %v1690
    %1724 = vmatpush.msra.mxu0 %v1684
    %1725 = vmatpush.msra.mxu0 %v1678
    %1726 = vmatpush.msra.mxu0 %v1672
    %1727 = vmatpush.msra.mxu0 %v1666
    %1728 = vmatpush.msra.mxu0 %v1660
    %1729 = vmatpush.msra.mxu0 %v1654
    %1730 = vmatpush.msra.mxu0 %v1648
    %1731 = vmatpush.msra.mxu0 %v1642
    %1732 = vmatpush.msra.mxu0 %v1636
    %1733 = vmatpush.msra.mxu0 %v1630
    %1734 = vmatpush.msra.mxu0 %v1624
    %1735 = vmatpush.msra.mxu0 %v1618
    %1736 = vmatpush.msra.mxu0 %v1612
    %1737 = vmatpush.msra.mxu0 %v1606
    %1738 = vmatmul.f32.gmra.mxu0 %v1493
    %v1739 = vpop.f32.mrf.mxu0
    %v1740 = vadd.f32 %v1720, %v1739
    %1741 = vdwg.mxu0
    %1742 = vmatpush.msra.mxu0 %v1601
    %1743 = vmatpush.msra.mxu0 %v1595
    %1744 = vmatpush.msra.mxu0 %v1589
    %1745 = vmatpush.msra.mxu0 %v1583
    %1746 = vmatpush.msra.mxu0 %v1577
    %1747 = vmatpush.msra.mxu0 %v1571
    %1748 = vmatpush.msra.mxu0 %v1565
    %1749 = vmatpush.msra.mxu0 %v1559
    %1750 = vmatpush.msra.mxu0 %v1553
    %1751 = vmatpush.msra.mxu0 %v1547
    %1752 = vmatpush.msra.mxu0 %v1541
    %1753 = vmatpush.msra.mxu0 %v1535
    %1754 = vmatpush.msra.mxu0 %v1529
    %1755 = vmatpush.msra.mxu0 %v1523
    %1756 = vmatpush.msra.mxu0 %v1517
    %1757 = vmatpush.msra.mxu0 %v1511
    %1758 = vmatmul.f32.gmra.mxu0 %v1446
    %v1759 = vpop.f32.mrf.mxu0
    %v1760 = vadd.f32 0.0, %v1759
    %1761 = vdwg.mxu0
    %1762 = vmatpush.msra.mxu0 %v1697
    %1763 = vmatpush.msra.mxu0 %v1691
    %1764 = vmatpush.msra.mxu0 %v1685
    %1765 = vmatpush.msra.mxu0 %v1679
    %1766 = vmatpush.msra.mxu0 %v1673
    %1767 = vmatpush.msra.mxu0 %v1667
    %1768 = vmatpush.msra.mxu0 %v1661
    %1769 = vmatpush.msra.mxu0 %v1655
    %1770 = vmatpush.msra.mxu0 %v1649
    %1771 = vmatpush.msra.mxu0 %v1643
    %1772 = vmatpush.msra.mxu0 %v1637
    %1773 = vmatpush.msra.mxu0 %v1631
    %1774 = vmatpush.msra.mxu0 %v1625
    %1775 = vmatpush.msra.mxu0 %v1619
    %1776 = vmatpush.msra.mxu0 %v1613
    %1777 = vmatpush.msra.mxu0 %v1607
    %1778 = vmatmul.f32.gmra.mxu0 %v1493
    %v1779 = vpop.f32.mrf.mxu0
    %v1780 = vadd.f32 %v1760, %v1779
    %1781 = vdwg.mxu0
    %1782 = vmatpush.msra.mxu0 %v1602
    %1783 = vmatpush.msra.mxu0 %v1596
    %1784 = vmatpush.msra.mxu0 %v1590
    %1785 = vmatpush.msra.mxu0 %v1584
    %1786 = vmatpush.msra.mxu0 %v1578
    %1787 = vmatpush.msra.mxu0 %v1572
    %1788 = vmatpush.msra.mxu0 %v1566
    %1789 = vmatpush.msra.mxu0 %v1560
    %1790 = vmatpush.msra.mxu0 %v1554
    %1791 = vmatpush.msra.mxu0 %v1548
    %1792 = vmatpush.msra.mxu0 %v1542
    %1793 = vmatpush.msra.mxu0 %v1536
    %1794 = vmatpush.msra.mxu0 %v1530
    %1795 = vmatpush.msra.mxu0 %v1524
    %1796 = vmatpush.msra.mxu0 %v1518
    %1797 = vmatpush.msra.mxu0 %v1512
    %1798 = vmatmul.f32.gmra.mxu0 %v1446
    %v1799 = vpop.f32.mrf.mxu0
    %v1800 = vadd.f32 0.0, %v1799
    %1801 = vdwg.mxu0
    %1802 = vmatpush.msra.mxu0 %v1698
    %1803 = vmatpush.msra.mxu0 %v1692
    %1804 = vmatpush.msra.mxu0 %v1686
    %1805 = vmatpush.msra.mxu0 %v1680
    %1806 = vmatpush.msra.mxu0 %v1674
    %1807 = vmatpush.msra.mxu0 %v1668
    %1808 = vmatpush.msra.mxu0 %v1662
    %1809 = vmatpush.msra.mxu0 %v1656
    %1810 = vmatpush.msra.mxu0 %v1650
    %1811 = vmatpush.msra.mxu0 %v1644
    %1812 = vmatpush.msra.mxu0 %v1638
    %1813 = vmatpush.msra.mxu0 %v1632
    %1814 = vmatpush.msra.mxu0 %v1626
    %1815 = vmatpush.msra.mxu0 %v1620
    %1816 = vmatpush.msra.mxu0 %v1614
    %1817 = vmatpush.msra.mxu0 %v1608
    %1818 = vmatmul.f32.gmra.mxu0 %v1493
    %v1819 = vpop.f32.mrf.mxu0
    %v1820 = vadd.f32 %v1800, %v1819
    %1821 = vdwg.mxu0
    %1822 = vmatpush.msra.mxu0 %v1603
    %1823 = vmatpush.msra.mxu0 %v1597
    %1824 = vmatpush.msra.mxu0 %v1591
    %1825 = vmatpush.msra.mxu0 %v1585
    %1826 = vmatpush.msra.mxu0 %v1579
    %1827 = vmatpush.msra.mxu0 %v1573
    %1828 = vmatpush.msra.mxu0 %v1567
    %1829 = vmatpush.msra.mxu0 %v1561
    %1830 = vmatpush.msra.mxu0 %v1555
    %1831 = vmatpush.msra.mxu0 %v1549
    %1832 = vmatpush.msra.mxu0 %v1543
    %1833 = vmatpush.msra.mxu0 %v1537
    %1834 = vmatpush.msra.mxu0 %v1531
    %1835 = vmatpush.msra.mxu0 %v1525
    %1836 = vmatpush.msra.mxu0 %v1519
    %1837 = vmatpush.msra.mxu0 %v1513
    %1838 = vmatmul.f32.gmra.mxu0 %v1446
    %v1839 = vpop.f32.mrf.mxu0
    %v1840 = vadd.f32 0.0, %v1839
    %1841 = vdwg.mxu0
    %1842 = vmatpush.msra.mxu0 %v1699
    %1843 = vmatpush.msra.mxu0 %v1693
    %1844 = vmatpush.msra.mxu0 %v1687
    %1845 = vmatpush.msra.mxu0 %v1681
    %1846 = vmatpush.msra.mxu0 %v1675
    %1847 = vmatpush.msra.mxu0 %v1669
    %1848 = vmatpush.msra.mxu0 %v1663
    %1849 = vmatpush.msra.mxu0 %v1657
    %1850 = vmatpush.msra.mxu0 %v1651
    %1851 = vmatpush.msra.mxu0 %v1645
    %1852 = vmatpush.msra.mxu0 %v1639
    %1853 = vmatpush.msra.mxu0 %v1633
    %1854 = vmatpush.msra.mxu0 %v1627
    %1855 = vmatpush.msra.mxu0 %v1621
    %1856 = vmatpush.msra.mxu0 %v1615
    %1857 = vmatpush.msra.mxu0 %v1609
    %1858 = vmatmul.f32.gmra.mxu0 %v1493
    %v1859 = vpop.f32.mrf.mxu0
    %v1860 = vadd.f32 %v1840, %v1859
    %1861 = vdwg.mxu0
    %1862 = vmatpush.msra.mxu0 %v1604
    %1863 = vmatpush.msra.mxu0 %v1598
    %1864 = vmatpush.msra.mxu0 %v1592
    %1865 = vmatpush.msra.mxu0 %v1586
    %1866 = vmatpush.msra.mxu0 %v1580
    %1867 = vmatpush.msra.mxu0 %v1574
    %1868 = vmatpush.msra.mxu0 %v1568
    %1869 = vmatpush.msra.mxu0 %v1562
    %1870 = vmatpush.msra.mxu0 %v1556
    %1871 = vmatpush.msra.mxu0 %v1550
    %1872 = vmatpush.msra.mxu0 %v1544
    %1873 = vmatpush.msra.mxu0 %v1538
    %1874 = vmatpush.msra.mxu0 %v1532
    %1875 = vmatpush.msra.mxu0 %v1526
    %1876 = vmatpush.msra.mxu0 %v1520
    %1877 = vmatpush.msra.mxu0 %v1514
    %1878 = vmatmul.f32.gmra.mxu0 %v1446
    %v1879 = vpop.f32.mrf.mxu0
    %v1880 = vadd.f32 0.0, %v1879
    %1881 = vdwg.mxu0
    %1882 = vmatpush.msra.mxu0 %v1700
    %1883 = vmatpush.msra.mxu0 %v1694
    %1884 = vmatpush.msra.mxu0 %v1688
    %1885 = vmatpush.msra.mxu0 %v1682
    %1886 = vmatpush.msra.mxu0 %v1676
    %1887 = vmatpush.msra.mxu0 %v1670
    %1888 = vmatpush.msra.mxu0 %v1664
    %1889 = vmatpush.msra.mxu0 %v1658
    %1890 = vmatpush.msra.mxu0 %v1652
    %1891 = vmatpush.msra.mxu0 %v1646
    %1892 = vmatpush.msra.mxu0 %v1640
    %1893 = vmatpush.msra.mxu0 %v1634
    %1894 = vmatpush.msra.mxu0 %v1628
    %1895 = vmatpush.msra.mxu0 %v1622
    %1896 = vmatpush.msra.mxu0 %v1616
    %1897 = vmatpush.msra.mxu0 %v1610
    %1898 = vmatmul.f32.gmra.mxu0 %v1493
    %v1899 = vpop.f32.mrf.mxu0
    %v1900 = vadd.f32 %v1880, %v1899
    %1901 = vdwg.mxu0
    %1902 = vmatpush.msra.mxu0 %v1605
    %1903 = vmatpush.msra.mxu0 %v1599
    %1904 = vmatpush.msra.mxu0 %v1593
    %1905 = vmatpush.msra.mxu0 %v1587
    %1906 = vmatpush.msra.mxu0 %v1581
    %1907 = vmatpush.msra.mxu0 %v1575
    %1908 = vmatpush.msra.mxu0 %v1569
    %1909 = vmatpush.msra.mxu0 %v1563
    %1910 = vmatpush.msra.mxu0 %v1557
    %1911 = vmatpush.msra.mxu0 %v1551
    %1912 = vmatpush.msra.mxu0 %v1545
    %1913 = vmatpush.msra.mxu0 %v1539
    %1914 = vmatpush.msra.mxu0 %v1533
    %1915 = vmatpush.msra.mxu0 %v1527
    %1916 = vmatpush.msra.mxu0 %v1521
    %1917 = vmatpush.msra.mxu0 %v1515
    %1918 = vmatmul.f32.gmra.mxu0 %v1446
    %v1919 = vpop.f32.mrf.mxu0
    %v1920 = vadd.f32 0.0, %v1919
    %1921 = vdwg.mxu0
    %1922 = vmatpush.msra.mxu0 %v1701
    %1923 = vmatpush.msra.mxu0 %v1695
    %1924 = vmatpush.msra.mxu0 %v1689
    %1925 = vmatpush.msra.mxu0 %v1683
    %1926 = vmatpush.msra.mxu0 %v1677
    %1927 = vmatpush.msra.mxu0 %v1671
    %1928 = vmatpush.msra.mxu0 %v1665
    %1929 = vmatpush.msra.mxu0 %v1659
    %1930 = vmatpush.msra.mxu0 %v1653
    %1931 = vmatpush.msra.mxu0 %v1647
    %1932 = vmatpush.msra.mxu0 %v1641
    %1933 = vmatpush.msra.mxu0 %v1635
    %1934 = vmatpush.msra.mxu0 %v1629
    %1935 = vmatpush.msra.mxu0 %v1623
    %1936 = vmatpush.msra.mxu0 %v1617
    %1937 = vmatpush.msra.mxu0 %v1611
    %1938 = vmatmul.f32.gmra.mxu0 %v1493
    %v1939 = vpop.f32.mrf.mxu0
    %v1940 = vadd.f32 %v1920, %v1939
    %1941 = vdwg.mxu0
    %v1942 = vadd.f32 %v1501, %v1740
    %v1943 = vxor.u32 %v1942, 2147483648
    %v1944 = vmul.f32 %v1943, 1.442695
    %v1945 = vpow.pop %v1944
    %v1946 = vadd.f32 %v1945, 1.0
    %v1947 = vrcp.pop %v1946
    %v1948 = vmul.f32 %v1946, %v1947
    %v1949 = vsub.f32 1.0, %v1948
    %v1950 = vmul.f32 %v1947, %v1949
    %v1951 = vadd.f32 %v1947, %v1950
    %vm1952 = vweird.f32 %v1946
    %vm1953 = vweird.f32 %v1947
    %vm1954 = vmor %vm1952, %vm1953
    %v1955 = vsel %vm1954, %v1947, %v1951
    %v1956 = vand.u32 2147483647, %v1946
    %vm1957 = vcmp.eq.f32.partialorder %v1956, 8.507059e+37
    %v1958 = vand.u32 %v1946, 2147483648
    %v1959 = vor.u32 1.1754944e-38, %v1958
    %v1960 = vsel %vm1957, %v1959, %v1955
    %v1961 = vmul.f32 1.0, %v1960
    %v1962 = vadd.f32 %v1502, %v1780
    %v1963 = vxor.u32 %v1962, 2147483648
    %v1964 = vmul.f32 %v1963, 1.442695
    %v1965 = vpow.pop %v1964
    %v1966 = vadd.f32 %v1965, 1.0
    %v1967 = vrcp.pop %v1966
    %v1968 = vmul.f32 %v1966, %v1967
    %v1969 = vsub.f32 1.0, %v1968
    %v1970 = vmul.f32 %v1967, %v1969
    %v1971 = vadd.f32 %v1967, %v1970
    %vm1972 = vweird.f32 %v1966
    %vm1973 = vweird.f32 %v1967
    %vm1974 = vmor %vm1972, %vm1973
    %v1975 = vsel %vm1974, %v1967, %v1971
    %v1976 = vand.u32 2147483647, %v1966
    %vm1977 = vcmp.eq.f32.partialorder %v1976, 8.507059e+37
    %v1978 = vand.u32 %v1966, 2147483648
    %v1979 = vor.u32 1.1754944e-38, %v1978
    %v1980 = vsel %vm1977, %v1979, %v1975
    %v1981 = vmul.f32 1.0, %v1980
    %v1982 = vadd.f32 %v1820, %v894
    %v1983 = vmul.f32 %v1961, %v1982
    %v1984 = vadd.f32 %v1503, %v1983
    %v1985 = vtanh.pop %v1984
    %v1986 = vsub.f32 %v1446, %v1985
    %v1987 = vmul.f32 %v1981, %v1986
    %v1988 = vadd.f32 %v1985, %v1987
    %v1989 = vadd.f32 %v1507, %v1860
    %v1990 = vxor.u32 %v1989, 2147483648
    %v1991 = vmul.f32 %v1990, 1.442695
    %v1992 = vpow.pop %v1991
    %v1993 = vadd.f32 %v1992, 1.0
    %v1994 = vrcp.pop %v1993
    %v1995 = vmul.f32 %v1993, %v1994
    %v1996 = vsub.f32 1.0, %v1995
    %v1997 = vmul.f32 %v1994, %v1996
    %v1998 = vadd.f32 %v1994, %v1997
    %vm1999 = vweird.f32 %v1993
    %vm2000 = vweird.f32 %v1994
    %vm2001 = vmor %vm1999, %vm2000
    %v2002 = vsel %vm2001, %v1994, %v1998
    %v2003 = vand.u32 2147483647, %v1993
    %vm2004 = vcmp.eq.f32.partialorder %v2003, 8.507059e+37
    %v2005 = vand.u32 %v1993, 2147483648
    %v2006 = vor.u32 1.1754944e-38, %v2005
    %v2007 = vsel %vm2004, %v2006, %v2002
    %v2008 = vmul.f32 1.0, %v2007
    %v2009 = vadd.f32 %v1508, %v1900
    %v2010 = vxor.u32 %v2009, 2147483648
    %v2011 = vmul.f32 %v2010, 1.442695
    %v2012 = vpow.pop %v2011
    %v2013 = vadd.f32 %v2012, 1.0
    %v2014 = vrcp.pop %v2013
    %v2015 = vmul.f32 %v2013, %v2014
    %v2016 = vsub.f32 1.0, %v2015
    %v2017 = vmul.f32 %v2014, %v2016
    %v2018 = vadd.f32 %v2014, %v2017
    %vm2019 = vweird.f32 %v2013
    %vm2020 = vweird.f32 %v2014
    %vm2021 = vmor %vm2019, %vm2020
    %v2022 = vsel %vm2021, %v2014, %v2018
    %v2023 = vand.u32 2147483647, %v2013
    %vm2024 = vcmp.eq.f32.partialorder %v2023, 8.507059e+37
    %v2025 = vand.u32 %v2013, 2147483648
    %v2026 = vor.u32 1.1754944e-38, %v2025
    %v2027 = vsel %vm2024, %v2026, %v2022
    %v2028 = vmul.f32 1.0, %v2027
    %v2029 = vadd.f32 %v1940, %v944
    %v2030 = vmul.f32 %v2008, %v2029
    %v2031 = vadd.f32 %v1509, %v2030
    %v2032 = vtanh.pop %v2031
    %v2033 = vsub.f32 %v1493, %v2032
    %v2034 = vmul.f32 %v2028, %v2033
    %v2035 = vadd.f32 %v2032, %v2034
    %s2036 = scalar_lea.vmem %s6, 32
    %2037 = vst [vmem:[%s2036] sm:$0xff] %v1988
    %s2038 = scalar_lea.vmem %s6, 80
    %2039 = vst [vmem:[%s2038 + $0x8] sm:$0xff] %v2035
    %s2040 = smul.u32 3, 6
    %s2041 = smul.addr %s2040, 8
    %s2042 = scalar_lea.vmem [#allocation2], %s2041
    %v2043 = vld [vmem:[%s2042] sm:$0xff]
    %v2044 = vld [vmem:[%s2042 + $0x8] sm:$0xff]
    %v2045 = vld [vmem:[%s2042 + $0x10] sm:$0xff]
    %s2046 = smul.u32 4, 6
    %s2047 = smul.addr %s2046, 8
    %s2048 = scalar_lea.vmem [#allocation2], %s2047
    %v2049 = vld [vmem:[%s2048 + $0x18] sm:$0xff]
    %v2050 = vld [vmem:[%s2048 + $0x20] sm:$0xff]
    %v2051 = vld [vmem:[%s2048 + $0x28] sm:$0xff]
    %v2052 = vld [vmem:[#allocation3] sm:$0xff]
    %v2053 = vld [vmem:[#allocation3 + $0x8] sm:$0xff]
    %v2054 = vld [vmem:[#allocation3 + $0x10] sm:$0xff]
    %v2055 = vld [vmem:[#allocation3 + $0x18] sm:$0xff]
    %v2056 = vld [vmem:[#allocation3 + $0x20] sm:$0xff]
    %v2057 = vld [vmem:[#allocation3 + $0x28] sm:$0xff]
    %v2058 = vld [vmem:[#allocation3 + $0x30] sm:$0xff]
    %v2059 = vld [vmem:[#allocation3 + $0x38] sm:$0xff]
    %v2060 = vld [vmem:[#allocation3 + $0x40] sm:$0xff]
    %v2061 = vld [vmem:[#allocation3 + $0x48] sm:$0xff]
    %v2062 = vld [vmem:[#allocation3 + $0x50] sm:$0xff]
    %v2063 = vld [vmem:[#allocation3 + $0x58] sm:$0xff]
    %v2064 = vld [vmem:[#allocation3 + $0x60] sm:$0xff]
    %v2065 = vld [vmem:[#allocation3 + $0x68] sm:$0xff]
    %v2066 = vld [vmem:[#allocation3 + $0x70] sm:$0xff]
    %v2067 = vld [vmem:[#allocation3 + $0x78] sm:$0xff]
    %v2068 = vld [vmem:[#allocation3 + $0x80] sm:$0xff]
    %v2069 = vld [vmem:[#allocation3 + $0x88] sm:$0xff]
    %v2070 = vld [vmem:[#allocation3 + $0x90] sm:$0xff]
    %v2071 = vld [vmem:[#allocation3 + $0x98] sm:$0xff]
    %v2072 = vld [vmem:[#allocation3 + $0xa0] sm:$0xff]
    %v2073 = vld [vmem:[#allocation3 + $0xa8] sm:$0xff]
    %v2074 = vld [vmem:[#allocation3 + $0xb0] sm:$0xff]
    %v2075 = vld [vmem:[#allocation3 + $0xb8] sm:$0xff]
    %v2076 = vld [vmem:[#allocation3 + $0xc0] sm:$0xff]
    %v2077 = vld [vmem:[#allocation3 + $0xc8] sm:$0xff]
    %v2078 = vld [vmem:[#allocation3 + $0xd0] sm:$0xff]
    %v2079 = vld [vmem:[#allocation3 + $0xd8] sm:$0xff]
    %v2080 = vld [vmem:[#allocation3 + $0xe0] sm:$0xff]
    %v2081 = vld [vmem:[#allocation3 + $0xe8] sm:$0xff]
    %v2082 = vld [vmem:[#allocation3 + $0xf0] sm:$0xff]
    %v2083 = vld [vmem:[#allocation3 + $0xf8] sm:$0xff]
    %v2084 = vld [vmem:[#allocation3 + $0x100] sm:$0xff]
    %v2085 = vld [vmem:[#allocation3 + $0x108] sm:$0xff]
    %v2086 = vld [vmem:[#allocation3 + $0x110] sm:$0xff]
    %v2087 = vld [vmem:[#allocation3 + $0x118] sm:$0xff]
    %v2088 = vld [vmem:[#allocation3 + $0x120] sm:$0xff]
    %v2089 = vld [vmem:[#allocation3 + $0x128] sm:$0xff]
    %v2090 = vld [vmem:[#allocation3 + $0x130] sm:$0xff]
    %v2091 = vld [vmem:[#allocation3 + $0x138] sm:$0xff]
    %v2092 = vld [vmem:[#allocation3 + $0x140] sm:$0xff]
    %v2093 = vld [vmem:[#allocation3 + $0x148] sm:$0xff]
    %v2094 = vld [vmem:[#allocation3 + $0x150] sm:$0xff]
    %v2095 = vld [vmem:[#allocation3 + $0x158] sm:$0xff]
    %v2096 = vld [vmem:[#allocation3 + $0x160] sm:$0xff]
    %v2097 = vld [vmem:[#allocation3 + $0x168] sm:$0xff]
    %v2098 = vld [vmem:[#allocation3 + $0x170] sm:$0xff]
    %v2099 = vld [vmem:[#allocation3 + $0x178] sm:$0xff]
    %v2100 = vld [vmem:[#allocation3 + $0x180] sm:$0xff]
    %v2101 = vld [vmem:[#allocation3 + $0x188] sm:$0xff]
    %v2102 = vld [vmem:[#allocation3 + $0x190] sm:$0xff]
    %v2103 = vld [vmem:[#allocation3 + $0x198] sm:$0xff]
    %v2104 = vld [vmem:[#allocation3 + $0x1a0] sm:$0xff]
    %v2105 = vld [vmem:[#allocation3 + $0x1a8] sm:$0xff]
    %v2106 = vld [vmem:[#allocation3 + $0x1b0] sm:$0xff]
    %v2107 = vld [vmem:[#allocation3 + $0x1b8] sm:$0xff]
    %v2108 = vld [vmem:[#allocation3 + $0x1c0] sm:$0xff]
    %v2109 = vld [vmem:[#allocation3 + $0x1c8] sm:$0xff]
    %v2110 = vld [vmem:[#allocation3 + $0x1d0] sm:$0xff]
    %v2111 = vld [vmem:[#allocation3 + $0x1d8] sm:$0xff]
    %v2112 = vld [vmem:[#allocation3 + $0x1e0] sm:$0xff]
    %v2113 = vld [vmem:[#allocation3 + $0x1e8] sm:$0xff]
    %v2114 = vld [vmem:[#allocation3 + $0x1f0] sm:$0xff]
    %v2115 = vld [vmem:[#allocation3 + $0x1f8] sm:$0xff]
    %v2116 = vld [vmem:[#allocation3 + $0x200] sm:$0xff]
    %v2117 = vld [vmem:[#allocation3 + $0x208] sm:$0xff]
    %v2118 = vld [vmem:[#allocation3 + $0x210] sm:$0xff]
    %v2119 = vld [vmem:[#allocation3 + $0x218] sm:$0xff]
    %v2120 = vld [vmem:[#allocation3 + $0x220] sm:$0xff]
    %v2121 = vld [vmem:[#allocation3 + $0x228] sm:$0xff]
    %v2122 = vld [vmem:[#allocation3 + $0x230] sm:$0xff]
    %v2123 = vld [vmem:[#allocation3 + $0x238] sm:$0xff]
    %v2124 = vld [vmem:[#allocation3 + $0x240] sm:$0xff]
    %v2125 = vld [vmem:[#allocation3 + $0x248] sm:$0xff]
    %v2126 = vld [vmem:[#allocation3 + $0x250] sm:$0xff]
    %v2127 = vld [vmem:[#allocation3 + $0x258] sm:$0xff]
    %v2128 = vld [vmem:[#allocation3 + $0x260] sm:$0xff]
    %v2129 = vld [vmem:[#allocation3 + $0x268] sm:$0xff]
    %v2130 = vld [vmem:[#allocation3 + $0x270] sm:$0xff]
    %v2131 = vld [vmem:[#allocation3 + $0x278] sm:$0xff]
    %v2132 = vld [vmem:[#allocation3 + $0x280] sm:$0xff]
    %v2133 = vld [vmem:[#allocation3 + $0x288] sm:$0xff]
    %v2134 = vld [vmem:[#allocation3 + $0x290] sm:$0xff]
    %v2135 = vld [vmem:[#allocation3 + $0x298] sm:$0xff]
    %v2136 = vld [vmem:[#allocation3 + $0x2a0] sm:$0xff]
    %v2137 = vld [vmem:[#allocation3 + $0x2a8] sm:$0xff]
    %v2138 = vld [vmem:[#allocation3 + $0x2b0] sm:$0xff]
    %v2139 = vld [vmem:[#allocation3 + $0x2b8] sm:$0xff]
    %v2140 = vld [vmem:[#allocation3 + $0x2c0] sm:$0xff]
    %v2141 = vld [vmem:[#allocation3 + $0x2c8] sm:$0xff]
    %v2142 = vld [vmem:[#allocation3 + $0x2d0] sm:$0xff]
    %v2143 = vld [vmem:[#allocation3 + $0x2d8] sm:$0xff]
    %v2144 = vld [vmem:[#allocation3 + $0x2e0] sm:$0xff]
    %v2145 = vld [vmem:[#allocation3 + $0x2e8] sm:$0xff]
    %v2146 = vld [vmem:[#allocation3 + $0x2f0] sm:$0xff]
    %v2147 = vld [vmem:[#allocation3 + $0x2f8] sm:$0xff]
    %v2148 = vld [vmem:[#allocation3 + $0x300] sm:$0xff]
    %v2149 = vld [vmem:[#allocation3 + $0x308] sm:$0xff]
    %v2150 = vld [vmem:[#allocation3 + $0x310] sm:$0xff]
    %v2151 = vld [vmem:[#allocation3 + $0x318] sm:$0xff]
    %v2152 = vld [vmem:[#allocation3 + $0x320] sm:$0xff]
    %v2153 = vld [vmem:[#allocation3 + $0x328] sm:$0xff]
    %v2154 = vld [vmem:[#allocation3 + $0x330] sm:$0xff]
    %v2155 = vld [vmem:[#allocation3 + $0x338] sm:$0xff]
    %v2156 = vld [vmem:[#allocation3 + $0x340] sm:$0xff]
    %v2157 = vld [vmem:[#allocation3 + $0x348] sm:$0xff]
    %v2158 = vld [vmem:[#allocation3 + $0x350] sm:$0xff]
    %v2159 = vld [vmem:[#allocation3 + $0x358] sm:$0xff]
    %v2160 = vld [vmem:[#allocation3 + $0x360] sm:$0xff]
    %v2161 = vld [vmem:[#allocation3 + $0x368] sm:$0xff]
    %v2162 = vld [vmem:[#allocation3 + $0x370] sm:$0xff]
    %v2163 = vld [vmem:[#allocation3 + $0x378] sm:$0xff]
    %v2164 = vld [vmem:[#allocation3 + $0x380] sm:$0xff]
    %v2165 = vld [vmem:[#allocation3 + $0x388] sm:$0xff]
    %v2166 = vld [vmem:[#allocation3 + $0x390] sm:$0xff]
    %v2167 = vld [vmem:[#allocation3 + $0x398] sm:$0xff]
    %v2168 = vld [vmem:[#allocation3 + $0x3a0] sm:$0xff]
    %v2169 = vld [vmem:[#allocation3 + $0x3a8] sm:$0xff]
    %v2170 = vld [vmem:[#allocation3 + $0x3b0] sm:$0xff]
    %v2171 = vld [vmem:[#allocation3 + $0x3b8] sm:$0xff]
    %v2172 = vld [vmem:[#allocation3 + $0x3c0] sm:$0xff]
    %v2173 = vld [vmem:[#allocation3 + $0x3c8] sm:$0xff]
    %v2174 = vld [vmem:[#allocation3 + $0x3d0] sm:$0xff]
    %v2175 = vld [vmem:[#allocation3 + $0x3d8] sm:$0xff]
    %v2176 = vld [vmem:[#allocation3 + $0x3e0] sm:$0xff]
    %v2177 = vld [vmem:[#allocation3 + $0x3e8] sm:$0xff]
    %v2178 = vld [vmem:[#allocation3 + $0x3f0] sm:$0xff]
    %v2179 = vld [vmem:[#allocation3 + $0x3f8] sm:$0xff]
    %v2180 = vld [vmem:[#allocation3 + $0x400] sm:$0xff]
    %v2181 = vld [vmem:[#allocation3 + $0x408] sm:$0xff]
    %v2182 = vld [vmem:[#allocation3 + $0x410] sm:$0xff]
    %v2183 = vld [vmem:[#allocation3 + $0x418] sm:$0xff]
    %v2184 = vld [vmem:[#allocation3 + $0x420] sm:$0xff]
    %v2185 = vld [vmem:[#allocation3 + $0x428] sm:$0xff]
    %v2186 = vld [vmem:[#allocation3 + $0x430] sm:$0xff]
    %v2187 = vld [vmem:[#allocation3 + $0x438] sm:$0xff]
    %v2188 = vld [vmem:[#allocation3 + $0x440] sm:$0xff]
    %v2189 = vld [vmem:[#allocation3 + $0x448] sm:$0xff]
    %v2190 = vld [vmem:[#allocation3 + $0x450] sm:$0xff]
    %v2191 = vld [vmem:[#allocation3 + $0x458] sm:$0xff]
    %v2192 = vld [vmem:[#allocation3 + $0x460] sm:$0xff]
    %v2193 = vld [vmem:[#allocation3 + $0x468] sm:$0xff]
    %v2194 = vld [vmem:[#allocation3 + $0x470] sm:$0xff]
    %v2195 = vld [vmem:[#allocation3 + $0x478] sm:$0xff]
    %v2196 = vld [vmem:[#allocation3 + $0x480] sm:$0xff]
    %v2197 = vld [vmem:[#allocation3 + $0x488] sm:$0xff]
    %v2198 = vld [vmem:[#allocation3 + $0x490] sm:$0xff]
    %v2199 = vld [vmem:[#allocation3 + $0x498] sm:$0xff]
    %v2200 = vld [vmem:[#allocation3 + $0x4a0] sm:$0xff]
    %v2201 = vld [vmem:[#allocation3 + $0x4a8] sm:$0xff]
    %v2202 = vld [vmem:[#allocation3 + $0x4b0] sm:$0xff]
    %v2203 = vld [vmem:[#allocation3 + $0x4b8] sm:$0xff]
    %v2204 = vld [vmem:[#allocation3 + $0x4c0] sm:$0xff]
    %v2205 = vld [vmem:[#allocation3 + $0x4c8] sm:$0xff]
    %v2206 = vld [vmem:[#allocation3 + $0x4d0] sm:$0xff]
    %v2207 = vld [vmem:[#allocation3 + $0x4d8] sm:$0xff]
    %v2208 = vld [vmem:[#allocation3 + $0x4e0] sm:$0xff]
    %v2209 = vld [vmem:[#allocation3 + $0x4e8] sm:$0xff]
    %v2210 = vld [vmem:[#allocation3 + $0x4f0] sm:$0xff]
    %v2211 = vld [vmem:[#allocation3 + $0x4f8] sm:$0xff]
    %v2212 = vld [vmem:[#allocation3 + $0x500] sm:$0xff]
    %v2213 = vld [vmem:[#allocation3 + $0x508] sm:$0xff]
    %v2214 = vld [vmem:[#allocation3 + $0x510] sm:$0xff]
    %v2215 = vld [vmem:[#allocation3 + $0x518] sm:$0xff]
    %v2216 = vld [vmem:[#allocation3 + $0x520] sm:$0xff]
    %v2217 = vld [vmem:[#allocation3 + $0x528] sm:$0xff]
    %v2218 = vld [vmem:[#allocation3 + $0x530] sm:$0xff]
    %v2219 = vld [vmem:[#allocation3 + $0x538] sm:$0xff]
    %v2220 = vld [vmem:[#allocation3 + $0x540] sm:$0xff]
    %v2221 = vld [vmem:[#allocation3 + $0x548] sm:$0xff]
    %v2222 = vld [vmem:[#allocation3 + $0x550] sm:$0xff]
    %v2223 = vld [vmem:[#allocation3 + $0x558] sm:$0xff]
    %v2224 = vld [vmem:[#allocation3 + $0x560] sm:$0xff]
    %v2225 = vld [vmem:[#allocation3 + $0x568] sm:$0xff]
    %v2226 = vld [vmem:[#allocation3 + $0x570] sm:$0xff]
    %v2227 = vld [vmem:[#allocation3 + $0x578] sm:$0xff]
    %v2228 = vld [vmem:[#allocation3 + $0x580] sm:$0xff]
    %v2229 = vld [vmem:[#allocation3 + $0x588] sm:$0xff]
    %v2230 = vld [vmem:[#allocation3 + $0x590] sm:$0xff]
    %v2231 = vld [vmem:[#allocation3 + $0x598] sm:$0xff]
    %v2232 = vld [vmem:[#allocation3 + $0x5a0] sm:$0xff]
    %v2233 = vld [vmem:[#allocation3 + $0x5a8] sm:$0xff]
    %v2234 = vld [vmem:[#allocation3 + $0x5b0] sm:$0xff]
    %v2235 = vld [vmem:[#allocation3 + $0x5b8] sm:$0xff]
    %v2236 = vld [vmem:[#allocation3 + $0x5c0] sm:$0xff]
    %v2237 = vld [vmem:[#allocation3 + $0x5c8] sm:$0xff]
    %v2238 = vld [vmem:[#allocation3 + $0x5d0] sm:$0xff]
    %v2239 = vld [vmem:[#allocation3 + $0x5d8] sm:$0xff]
    %v2240 = vld [vmem:[#allocation3 + $0x5e0] sm:$0xff]
    %v2241 = vld [vmem:[#allocation3 + $0x5e8] sm:$0xff]
    %v2242 = vld [vmem:[#allocation3 + $0x5f0] sm:$0xff]
    %v2243 = vld [vmem:[#allocation3 + $0x5f8] sm:$0xff]
    %2244 = vmatpush.msra.mxu0 %v2142
    %2245 = vmatpush.msra.mxu0 %v2136
    %2246 = vmatpush.msra.mxu0 %v2130
    %2247 = vmatpush.msra.mxu0 %v2124
    %2248 = vmatpush.msra.mxu0 %v2118
    %2249 = vmatpush.msra.mxu0 %v2112
    %2250 = vmatpush.msra.mxu0 %v2106
    %2251 = vmatpush.msra.mxu0 %v2100
    %2252 = vmatpush.msra.mxu0 %v2094
    %2253 = vmatpush.msra.mxu0 %v2088
    %2254 = vmatpush.msra.mxu0 %v2082
    %2255 = vmatpush.msra.mxu0 %v2076
    %2256 = vmatpush.msra.mxu0 %v2070
    %2257 = vmatpush.msra.mxu0 %v2064
    %2258 = vmatpush.msra.mxu0 %v2058
    %2259 = vmatpush.msra.mxu0 %v2052
    %2260 = vmatmul.f32.gmra.mxu0 %v1988
    %v2261 = vpop.f32.mrf.mxu0
    %v2262 = vadd.f32 0.0, %v2261
    %2263 = vdwg.mxu0
    %2264 = vmatpush.msra.mxu0 %v2238
    %2265 = vmatpush.msra.mxu0 %v2232
    %2266 = vmatpush.msra.mxu0 %v2226
    %2267 = vmatpush.msra.mxu0 %v2220
    %2268 = vmatpush.msra.mxu0 %v2214
    %2269 = vmatpush.msra.mxu0 %v2208
    %2270 = vmatpush.msra.mxu0 %v2202
    %2271 = vmatpush.msra.mxu0 %v2196
    %2272 = vmatpush.msra.mxu0 %v2190
    %2273 = vmatpush.msra.mxu0 %v2184
    %2274 = vmatpush.msra.mxu0 %v2178
    %2275 = vmatpush.msra.mxu0 %v2172
    %2276 = vmatpush.msra.mxu0 %v2166
    %2277 = vmatpush.msra.mxu0 %v2160
    %2278 = vmatpush.msra.mxu0 %v2154
    %2279 = vmatpush.msra.mxu0 %v2148
    %2280 = vmatmul.f32.gmra.mxu0 %v2035
    %v2281 = vpop.f32.mrf.mxu0
    %v2282 = vadd.f32 %v2262, %v2281
    %2283 = vdwg.mxu0
    %2284 = vmatpush.msra.mxu0 %v2143
    %2285 = vmatpush.msra.mxu0 %v2137
    %2286 = vmatpush.msra.mxu0 %v2131
    %2287 = vmatpush.msra.mxu0 %v2125
    %2288 = vmatpush.msra.mxu0 %v2119
    %2289 = vmatpush.msra.mxu0 %v2113
    %2290 = vmatpush.msra.mxu0 %v2107
    %2291 = vmatpush.msra.mxu0 %v2101
    %2292 = vmatpush.msra.mxu0 %v2095
    %2293 = vmatpush.msra.mxu0 %v2089
    %2294 = vmatpush.msra.mxu0 %v2083
    %2295 = vmatpush.msra.mxu0 %v2077
    %2296 = vmatpush.msra.mxu0 %v2071
    %2297 = vmatpush.msra.mxu0 %v2065
    %2298 = vmatpush.msra.mxu0 %v2059
    %2299 = vmatpush.msra.mxu0 %v2053
    %2300 = vmatmul.f32.gmra.mxu0 %v1988
    %v2301 = vpop.f32.mrf.mxu0
    %v2302 = vadd.f32 0.0, %v2301
    %2303 = vdwg.mxu0
    %2304 = vmatpush.msra.mxu0 %v2239
    %2305 = vmatpush.msra.mxu0 %v2233
    %2306 = vmatpush.msra.mxu0 %v2227
    %2307 = vmatpush.msra.mxu0 %v2221
    %2308 = vmatpush.msra.mxu0 %v2215
    %2309 = vmatpush.msra.mxu0 %v2209
    %2310 = vmatpush.msra.mxu0 %v2203
    %2311 = vmatpush.msra.mxu0 %v2197
    %2312 = vmatpush.msra.mxu0 %v2191
    %2313 = vmatpush.msra.mxu0 %v2185
    %2314 = vmatpush.msra.mxu0 %v2179
    %2315 = vmatpush.msra.mxu0 %v2173
    %2316 = vmatpush.msra.mxu0 %v2167
    %2317 = vmatpush.msra.mxu0 %v2161
    %2318 = vmatpush.msra.mxu0 %v2155
    %2319 = vmatpush.msra.mxu0 %v2149
    %2320 = vmatmul.f32.gmra.mxu0 %v2035
    %v2321 = vpop.f32.mrf.mxu0
    %v2322 = vadd.f32 %v2302, %v2321
    %2323 = vdwg.mxu0
    %2324 = vmatpush.msra.mxu0 %v2144
    %2325 = vmatpush.msra.mxu0 %v2138
    %2326 = vmatpush.msra.mxu0 %v2132
    %2327 = vmatpush.msra.mxu0 %v2126
    %2328 = vmatpush.msra.mxu0 %v2120
    %2329 = vmatpush.msra.mxu0 %v2114
    %2330 = vmatpush.msra.mxu0 %v2108
    %2331 = vmatpush.msra.mxu0 %v2102
    %2332 = vmatpush.msra.mxu0 %v2096
    %2333 = vmatpush.msra.mxu0 %v2090
    %2334 = vmatpush.msra.mxu0 %v2084
    %2335 = vmatpush.msra.mxu0 %v2078
    %2336 = vmatpush.msra.mxu0 %v2072
    %2337 = vmatpush.msra.mxu0 %v2066
    %2338 = vmatpush.msra.mxu0 %v2060
    %2339 = vmatpush.msra.mxu0 %v2054
    %2340 = vmatmul.f32.gmra.mxu0 %v1988
    %v2341 = vpop.f32.mrf.mxu0
    %v2342 = vadd.f32 0.0, %v2341
    %2343 = vdwg.mxu0
    %2344 = vmatpush.msra.mxu0 %v2240
    %2345 = vmatpush.msra.mxu0 %v2234
    %2346 = vmatpush.msra.mxu0 %v2228
    %2347 = vmatpush.msra.mxu0 %v2222
    %2348 = vmatpush.msra.mxu0 %v2216
    %2349 = vmatpush.msra.mxu0 %v2210
    %2350 = vmatpush.msra.mxu0 %v2204
    %2351 = vmatpush.msra.mxu0 %v2198
    %2352 = vmatpush.msra.mxu0 %v2192
    %2353 = vmatpush.msra.mxu0 %v2186
    %2354 = vmatpush.msra.mxu0 %v2180
    %2355 = vmatpush.msra.mxu0 %v2174
    %2356 = vmatpush.msra.mxu0 %v2168
    %2357 = vmatpush.msra.mxu0 %v2162
    %2358 = vmatpush.msra.mxu0 %v2156
    %2359 = vmatpush.msra.mxu0 %v2150
    %2360 = vmatmul.f32.gmra.mxu0 %v2035
    %v2361 = vpop.f32.mrf.mxu0
    %v2362 = vadd.f32 %v2342, %v2361
    %2363 = vdwg.mxu0
    %2364 = vmatpush.msra.mxu0 %v2145
    %2365 = vmatpush.msra.mxu0 %v2139
    %2366 = vmatpush.msra.mxu0 %v2133
    %2367 = vmatpush.msra.mxu0 %v2127
    %2368 = vmatpush.msra.mxu0 %v2121
    %2369 = vmatpush.msra.mxu0 %v2115
    %2370 = vmatpush.msra.mxu0 %v2109
    %2371 = vmatpush.msra.mxu0 %v2103
    %2372 = vmatpush.msra.mxu0 %v2097
    %2373 = vmatpush.msra.mxu0 %v2091
    %2374 = vmatpush.msra.mxu0 %v2085
    %2375 = vmatpush.msra.mxu0 %v2079
    %2376 = vmatpush.msra.mxu0 %v2073
    %2377 = vmatpush.msra.mxu0 %v2067
    %2378 = vmatpush.msra.mxu0 %v2061
    %2379 = vmatpush.msra.mxu0 %v2055
    %2380 = vmatmul.f32.gmra.mxu0 %v1988
    %v2381 = vpop.f32.mrf.mxu0
    %v2382 = vadd.f32 0.0, %v2381
    %2383 = vdwg.mxu0
    %2384 = vmatpush.msra.mxu0 %v2241
    %2385 = vmatpush.msra.mxu0 %v2235
    %2386 = vmatpush.msra.mxu0 %v2229
    %2387 = vmatpush.msra.mxu0 %v2223
    %2388 = vmatpush.msra.mxu0 %v2217
    %2389 = vmatpush.msra.mxu0 %v2211
    %2390 = vmatpush.msra.mxu0 %v2205
    %2391 = vmatpush.msra.mxu0 %v2199
    %2392 = vmatpush.msra.mxu0 %v2193
    %2393 = vmatpush.msra.mxu0 %v2187
    %2394 = vmatpush.msra.mxu0 %v2181
    %2395 = vmatpush.msra.mxu0 %v2175
    %2396 = vmatpush.msra.mxu0 %v2169
    %2397 = vmatpush.msra.mxu0 %v2163
    %2398 = vmatpush.msra.mxu0 %v2157
    %2399 = vmatpush.msra.mxu0 %v2151
    %2400 = vmatmul.f32.gmra.mxu0 %v2035
    %v2401 = vpop.f32.mrf.mxu0
    %v2402 = vadd.f32 %v2382, %v2401
    %2403 = vdwg.mxu0
    %2404 = vmatpush.msra.mxu0 %v2146
    %2405 = vmatpush.msra.mxu0 %v2140
    %2406 = vmatpush.msra.mxu0 %v2134
    %2407 = vmatpush.msra.mxu0 %v2128
    %2408 = vmatpush.msra.mxu0 %v2122
    %2409 = vmatpush.msra.mxu0 %v2116
    %2410 = vmatpush.msra.mxu0 %v2110
    %2411 = vmatpush.msra.mxu0 %v2104
    %2412 = vmatpush.msra.mxu0 %v2098
    %2413 = vmatpush.msra.mxu0 %v2092
    %2414 = vmatpush.msra.mxu0 %v2086
    %2415 = vmatpush.msra.mxu0 %v2080
    %2416 = vmatpush.msra.mxu0 %v2074
    %2417 = vmatpush.msra.mxu0 %v2068
    %2418 = vmatpush.msra.mxu0 %v2062
    %2419 = vmatpush.msra.mxu0 %v2056
    %2420 = vmatmul.f32.gmra.mxu0 %v1988
    %v2421 = vpop.f32.mrf.mxu0
    %v2422 = vadd.f32 0.0, %v2421
    %2423 = vdwg.mxu0
    %2424 = vmatpush.msra.mxu0 %v2242
    %2425 = vmatpush.msra.mxu0 %v2236
    %2426 = vmatpush.msra.mxu0 %v2230
    %2427 = vmatpush.msra.mxu0 %v2224
    %2428 = vmatpush.msra.mxu0 %v2218
    %2429 = vmatpush.msra.mxu0 %v2212
    %2430 = vmatpush.msra.mxu0 %v2206
    %2431 = vmatpush.msra.mxu0 %v2200
    %2432 = vmatpush.msra.mxu0 %v2194
    %2433 = vmatpush.msra.mxu0 %v2188
    %2434 = vmatpush.msra.mxu0 %v2182
    %2435 = vmatpush.msra.mxu0 %v2176
    %2436 = vmatpush.msra.mxu0 %v2170
    %2437 = vmatpush.msra.mxu0 %v2164
    %2438 = vmatpush.msra.mxu0 %v2158
    %2439 = vmatpush.msra.mxu0 %v2152
    %2440 = vmatmul.f32.gmra.mxu0 %v2035
    %v2441 = vpop.f32.mrf.mxu0
    %v2442 = vadd.f32 %v2422, %v2441
    %2443 = vdwg.mxu0
    %2444 = vmatpush.msra.mxu0 %v2147
    %2445 = vmatpush.msra.mxu0 %v2141
    %2446 = vmatpush.msra.mxu0 %v2135
    %2447 = vmatpush.msra.mxu0 %v2129
    %2448 = vmatpush.msra.mxu0 %v2123
    %2449 = vmatpush.msra.mxu0 %v2117
    %2450 = vmatpush.msra.mxu0 %v2111
    %2451 = vmatpush.msra.mxu0 %v2105
    %2452 = vmatpush.msra.mxu0 %v2099
    %2453 = vmatpush.msra.mxu0 %v2093
    %2454 = vmatpush.msra.mxu0 %v2087
    %2455 = vmatpush.msra.mxu0 %v2081
    %2456 = vmatpush.msra.mxu0 %v2075
    %2457 = vmatpush.msra.mxu0 %v2069
    %2458 = vmatpush.msra.mxu0 %v2063
    %2459 = vmatpush.msra.mxu0 %v2057
    %2460 = vmatmul.f32.gmra.mxu0 %v1988
    %v2461 = vpop.f32.mrf.mxu0
    %v2462 = vadd.f32 0.0, %v2461
    %2463 = vdwg.mxu0
    %2464 = vmatpush.msra.mxu0 %v2243
    %2465 = vmatpush.msra.mxu0 %v2237
    %2466 = vmatpush.msra.mxu0 %v2231
    %2467 = vmatpush.msra.mxu0 %v2225
    %2468 = vmatpush.msra.mxu0 %v2219
    %2469 = vmatpush.msra.mxu0 %v2213
    %2470 = vmatpush.msra.mxu0 %v2207
    %2471 = vmatpush.msra.mxu0 %v2201
    %2472 = vmatpush.msra.mxu0 %v2195
    %2473 = vmatpush.msra.mxu0 %v2189
    %2474 = vmatpush.msra.mxu0 %v2183
    %2475 = vmatpush.msra.mxu0 %v2177
    %2476 = vmatpush.msra.mxu0 %v2171
    %2477 = vmatpush.msra.mxu0 %v2165
    %2478 = vmatpush.msra.mxu0 %v2159
    %2479 = vmatpush.msra.mxu0 %v2153
    %2480 = vmatmul.f32.gmra.mxu0 %v2035
    %v2481 = vpop.f32.mrf.mxu0
    %v2482 = vadd.f32 %v2462, %v2481
    %2483 = vdwg.mxu0
    %v2484 = vadd.f32 %v2043, %v2282
    %v2485 = vxor.u32 %v2484, 2147483648
    %v2486 = vmul.f32 %v2485, 1.442695
    %v2487 = vpow.pop %v2486
    %v2488 = vadd.f32 %v2487, 1.0
    %v2489 = vrcp.pop %v2488
    %v2490 = vmul.f32 %v2488, %v2489
    %v2491 = vsub.f32 1.0, %v2490
    %v2492 = vmul.f32 %v2489, %v2491
    %v2493 = vadd.f32 %v2489, %v2492
    %vm2494 = vweird.f32 %v2488
    %vm2495 = vweird.f32 %v2489
    %vm2496 = vmor %vm2494, %vm2495
    %v2497 = vsel %vm2496, %v2489, %v2493
    %v2498 = vand.u32 2147483647, %v2488
    %vm2499 = vcmp.eq.f32.partialorder %v2498, 8.507059e+37
    %v2500 = vand.u32 %v2488, 2147483648
    %v2501 = vor.u32 1.1754944e-38, %v2500
    %v2502 = vsel %vm2499, %v2501, %v2497
    %v2503 = vmul.f32 1.0, %v2502
    %v2504 = vadd.f32 %v2044, %v2322
    %v2505 = vxor.u32 %v2504, 2147483648
    %v2506 = vmul.f32 %v2505, 1.442695
    %v2507 = vpow.pop %v2506
    %v2508 = vadd.f32 %v2507, 1.0
    %v2509 = vrcp.pop %v2508
    %v2510 = vmul.f32 %v2508, %v2509
    %v2511 = vsub.f32 1.0, %v2510
    %v2512 = vmul.f32 %v2509, %v2511
    %v2513 = vadd.f32 %v2509, %v2512
    %vm2514 = vweird.f32 %v2508
    %vm2515 = vweird.f32 %v2509
    %vm2516 = vmor %vm2514, %vm2515
    %v2517 = vsel %vm2516, %v2509, %v2513
    %v2518 = vand.u32 2147483647, %v2508
    %vm2519 = vcmp.eq.f32.partialorder %v2518, 8.507059e+37
    %v2520 = vand.u32 %v2508, 2147483648
    %v2521 = vor.u32 1.1754944e-38, %v2520
    %v2522 = vsel %vm2519, %v2521, %v2517
    %v2523 = vmul.f32 1.0, %v2522
    %v2524 = vadd.f32 %v2362, %v894
    %v2525 = vmul.f32 %v2503, %v2524
    %v2526 = vadd.f32 %v2045, %v2525
    %v2527 = vtanh.pop %v2526
    %v2528 = vsub.f32 %v1988, %v2527
    %v2529 = vmul.f32 %v2523, %v2528
    %v2530 = vadd.f32 %v2527, %v2529
    %v2531 = vadd.f32 %v2049, %v2402
    %v2532 = vxor.u32 %v2531, 2147483648
    %v2533 = vmul.f32 %v2532, 1.442695
    %v2534 = vpow.pop %v2533
    %v2535 = vadd.f32 %v2534, 1.0
    %v2536 = vrcp.pop %v2535
    %v2537 = vmul.f32 %v2535, %v2536
    %v2538 = vsub.f32 1.0, %v2537
    %v2539 = vmul.f32 %v2536, %v2538
    %v2540 = vadd.f32 %v2536, %v2539
    %vm2541 = vweird.f32 %v2535
    %vm2542 = vweird.f32 %v2536
    %vm2543 = vmor %vm2541, %vm2542
    %v2544 = vsel %vm2543, %v2536, %v2540
    %v2545 = vand.u32 2147483647, %v2535
    %vm2546 = vcmp.eq.f32.partialorder %v2545, 8.507059e+37
    %v2547 = vand.u32 %v2535, 2147483648
    %v2548 = vor.u32 1.1754944e-38, %v2547
    %v2549 = vsel %vm2546, %v2548, %v2544
    %v2550 = vmul.f32 1.0, %v2549
    %v2551 = vadd.f32 %v2050, %v2442
    %v2552 = vxor.u32 %v2551, 2147483648
    %v2553 = vmul.f32 %v2552, 1.442695
    %v2554 = vpow.pop %v2553
    %v2555 = vadd.f32 %v2554, 1.0
    %v2556 = vrcp.pop %v2555
    %v2557 = vmul.f32 %v2555, %v2556
    %v2558 = vsub.f32 1.0, %v2557
    %v2559 = vmul.f32 %v2556, %v2558
    %v2560 = vadd.f32 %v2556, %v2559
    %vm2561 = vweird.f32 %v2555
    %vm2562 = vweird.f32 %v2556
    %vm2563 = vmor %vm2561, %vm2562
    %v2564 = vsel %vm2563, %v2556, %v2560
    %v2565 = vand.u32 2147483647, %v2555
    %vm2566 = vcmp.eq.f32.partialorder %v2565, 8.507059e+37
    %v2567 = vand.u32 %v2555, 2147483648
    %v2568 = vor.u32 1.1754944e-38, %v2567
    %v2569 = vsel %vm2566, %v2568, %v2564
    %v2570 = vmul.f32 1.0, %v2569
    %v2571 = vadd.f32 %v2482, %v944
    %v2572 = vmul.f32 %v2550, %v2571
    %v2573 = vadd.f32 %v2051, %v2572
    %v2574 = vtanh.pop %v2573
    %v2575 = vsub.f32 %v2035, %v2574
    %v2576 = vmul.f32 %v2570, %v2575
    %v2577 = vadd.f32 %v2574, %v2576
    %s2578 = scalar_lea.vmem %s6, 48
    %2579 = vst [vmem:[%s2578] sm:$0xff] %v2530
    %s2580 = scalar_lea.vmem %s6, 64
    %2581 = vst [vmem:[%s2580 + $0x8] sm:$0xff] %v2577
    %v2582 = vld [vmem:[%s2048] sm:$0xff]
    %v2583 = vld [vmem:[%s2048 + $0x8] sm:$0xff]
    %v2584 = vld [vmem:[%s2048 + $0x10] sm:$0xff]
    %v2585 = vld [vmem:[%s2042 + $0x18] sm:$0xff]
    %v2586 = vld [vmem:[%s2042 + $0x20] sm:$0xff]
    %v2587 = vld [vmem:[%s2042 + $0x28] sm:$0xff]
    %v2588 = vld [vmem:[#allocation3] sm:$0xff]
    %v2589 = vld [vmem:[#allocation3 + $0x8] sm:$0xff]
    %v2590 = vld [vmem:[#allocation3 + $0x10] sm:$0xff]
    %v2591 = vld [vmem:[#allocation3 + $0x18] sm:$0xff]
    %v2592 = vld [vmem:[#allocation3 + $0x20] sm:$0xff]
    %v2593 = vld [vmem:[#allocation3 + $0x28] sm:$0xff]
    %v2594 = vld [vmem:[#allocation3 + $0x30] sm:$0xff]
    %v2595 = vld [vmem:[#allocation3 + $0x38] sm:$0xff]
    %v2596 = vld [vmem:[#allocation3 + $0x40] sm:$0xff]
    %v2597 = vld [vmem:[#allocation3 + $0x48] sm:$0xff]
    %v2598 = vld [vmem:[#allocation3 + $0x50] sm:$0xff]
    %v2599 = vld [vmem:[#allocation3 + $0x58] sm:$0xff]
    %v2600 = vld [vmem:[#allocation3 + $0x60] sm:$0xff]
    %v2601 = vld [vmem:[#allocation3 + $0x68] sm:$0xff]
    %v2602 = vld [vmem:[#allocation3 + $0x70] sm:$0xff]
    %v2603 = vld [vmem:[#allocation3 + $0x78] sm:$0xff]
    %v2604 = vld [vmem:[#allocation3 + $0x80] sm:$0xff]
    %v2605 = vld [vmem:[#allocation3 + $0x88] sm:$0xff]
    %v2606 = vld [vmem:[#allocation3 + $0x90] sm:$0xff]
    %v2607 = vld [vmem:[#allocation3 + $0x98] sm:$0xff]
    %v2608 = vld [vmem:[#allocation3 + $0xa0] sm:$0xff]
    %v2609 = vld [vmem:[#allocation3 + $0xa8] sm:$0xff]
    %v2610 = vld [vmem:[#allocation3 + $0xb0] sm:$0xff]
    %v2611 = vld [vmem:[#allocation3 + $0xb8] sm:$0xff]
    %v2612 = vld [vmem:[#allocation3 + $0xc0] sm:$0xff]
    %v2613 = vld [vmem:[#allocation3 + $0xc8] sm:$0xff]
    %v2614 = vld [vmem:[#allocation3 + $0xd0] sm:$0xff]
    %v2615 = vld [vmem:[#allocation3 + $0xd8] sm:$0xff]
    %v2616 = vld [vmem:[#allocation3 + $0xe0] sm:$0xff]
    %v2617 = vld [vmem:[#allocation3 + $0xe8] sm:$0xff]
    %v2618 = vld [vmem:[#allocation3 + $0xf0] sm:$0xff]
    %v2619 = vld [vmem:[#allocation3 + $0xf8] sm:$0xff]
    %v2620 = vld [vmem:[#allocation3 + $0x100] sm:$0xff]
    %v2621 = vld [vmem:[#allocation3 + $0x108] sm:$0xff]
    %v2622 = vld [vmem:[#allocation3 + $0x110] sm:$0xff]
    %v2623 = vld [vmem:[#allocation3 + $0x118] sm:$0xff]
    %v2624 = vld [vmem:[#allocation3 + $0x120] sm:$0xff]
    %v2625 = vld [vmem:[#allocation3 + $0x128] sm:$0xff]
    %v2626 = vld [vmem:[#allocation3 + $0x130] sm:$0xff]
    %v2627 = vld [vmem:[#allocation3 + $0x138] sm:$0xff]
    %v2628 = vld [vmem:[#allocation3 + $0x140] sm:$0xff]
    %v2629 = vld [vmem:[#allocation3 + $0x148] sm:$0xff]
    %v2630 = vld [vmem:[#allocation3 + $0x150] sm:$0xff]
    %v2631 = vld [vmem:[#allocation3 + $0x158] sm:$0xff]
    %v2632 = vld [vmem:[#allocation3 + $0x160] sm:$0xff]
    %v2633 = vld [vmem:[#allocation3 + $0x168] sm:$0xff]
    %v2634 = vld [vmem:[#allocation3 + $0x170] sm:$0xff]
    %v2635 = vld [vmem:[#allocation3 + $0x178] sm:$0xff]
    %v2636 = vld [vmem:[#allocation3 + $0x180] sm:$0xff]
    %v2637 = vld [vmem:[#allocation3 + $0x188] sm:$0xff]
    %v2638 = vld [vmem:[#allocation3 + $0x190] sm:$0xff]
    %v2639 = vld [vmem:[#allocation3 + $0x198] sm:$0xff]
    %v2640 = vld [vmem:[#allocation3 + $0x1a0] sm:$0xff]
    %v2641 = vld [vmem:[#allocation3 + $0x1a8] sm:$0xff]
    %v2642 = vld [vmem:[#allocation3 + $0x1b0] sm:$0xff]
    %v2643 = vld [vmem:[#allocation3 + $0x1b8] sm:$0xff]
    %v2644 = vld [vmem:[#allocation3 + $0x1c0] sm:$0xff]
    %v2645 = vld [vmem:[#allocation3 + $0x1c8] sm:$0xff]
    %v2646 = vld [vmem:[#allocation3 + $0x1d0] sm:$0xff]
    %v2647 = vld [vmem:[#allocation3 + $0x1d8] sm:$0xff]
    %v2648 = vld [vmem:[#allocation3 + $0x1e0] sm:$0xff]
    %v2649 = vld [vmem:[#allocation3 + $0x1e8] sm:$0xff]
    %v2650 = vld [vmem:[#allocation3 + $0x1f0] sm:$0xff]
    %v2651 = vld [vmem:[#allocation3 + $0x1f8] sm:$0xff]
    %v2652 = vld [vmem:[#allocation3 + $0x200] sm:$0xff]
    %v2653 = vld [vmem:[#allocation3 + $0x208] sm:$0xff]
    %v2654 = vld [vmem:[#allocation3 + $0x210] sm:$0xff]
    %v2655 = vld [vmem:[#allocation3 + $0x218] sm:$0xff]
    %v2656 = vld [vmem:[#allocation3 + $0x220] sm:$0xff]
    %v2657 = vld [vmem:[#allocation3 + $0x228] sm:$0xff]
    %v2658 = vld [vmem:[#allocation3 + $0x230] sm:$0xff]
    %v2659 = vld [vmem:[#allocation3 + $0x238] sm:$0xff]
    %v2660 = vld [vmem:[#allocation3 + $0x240] sm:$0xff]
    %v2661 = vld [vmem:[#allocation3 + $0x248] sm:$0xff]
    %v2662 = vld [vmem:[#allocation3 + $0x250] sm:$0xff]
    %v2663 = vld [vmem:[#allocation3 + $0x258] sm:$0xff]
    %v2664 = vld [vmem:[#allocation3 + $0x260] sm:$0xff]
    %v2665 = vld [vmem:[#allocation3 + $0x268] sm:$0xff]
    %v2666 = vld [vmem:[#allocation3 + $0x270] sm:$0xff]
    %v2667 = vld [vmem:[#allocation3 + $0x278] sm:$0xff]
    %v2668 = vld [vmem:[#allocation3 + $0x280] sm:$0xff]
    %v2669 = vld [vmem:[#allocation3 + $0x288] sm:$0xff]
    %v2670 = vld [vmem:[#allocation3 + $0x290] sm:$0xff]
    %v2671 = vld [vmem:[#allocation3 + $0x298] sm:$0xff]
    %v2672 = vld [vmem:[#allocation3 + $0x2a0] sm:$0xff]
    %v2673 = vld [vmem:[#allocation3 + $0x2a8] sm:$0xff]
    %v2674 = vld [vmem:[#allocation3 + $0x2b0] sm:$0xff]
    %v2675 = vld [vmem:[#allocation3 + $0x2b8] sm:$0xff]
    %v2676 = vld [vmem:[#allocation3 + $0x2c0] sm:$0xff]
    %v2677 = vld [vmem:[#allocation3 + $0x2c8] sm:$0xff]
    %v2678 = vld [vmem:[#allocation3 + $0x2d0] sm:$0xff]
    %v2679 = vld [vmem:[#allocation3 + $0x2d8] sm:$0xff]
    %v2680 = vld [vmem:[#allocation3 + $0x2e0] sm:$0xff]
    %v2681 = vld [vmem:[#allocation3 + $0x2e8] sm:$0xff]
    %v2682 = vld [vmem:[#allocation3 + $0x2f0] sm:$0xff]
    %v2683 = vld [vmem:[#allocation3 + $0x2f8] sm:$0xff]
    %v2684 = vld [vmem:[#allocation3 + $0x300] sm:$0xff]
    %v2685 = vld [vmem:[#allocation3 + $0x308] sm:$0xff]
    %v2686 = vld [vmem:[#allocation3 + $0x310] sm:$0xff]
    %v2687 = vld [vmem:[#allocation3 + $0x318] sm:$0xff]
    %v2688 = vld [vmem:[#allocation3 + $0x320] sm:$0xff]
    %v2689 = vld [vmem:[#allocation3 + $0x328] sm:$0xff]
    %v2690 = vld [vmem:[#allocation3 + $0x330] sm:$0xff]
    %v2691 = vld [vmem:[#allocation3 + $0x338] sm:$0xff]
    %v2692 = vld [vmem:[#allocation3 + $0x340] sm:$0xff]
    %v2693 = vld [vmem:[#allocation3 + $0x348] sm:$0xff]
    %v2694 = vld [vmem:[#allocation3 + $0x350] sm:$0xff]
    %v2695 = vld [vmem:[#allocation3 + $0x358] sm:$0xff]
    %v2696 = vld [vmem:[#allocation3 + $0x360] sm:$0xff]
    %v2697 = vld [vmem:[#allocation3 + $0x368] sm:$0xff]
    %v2698 = vld [vmem:[#allocation3 + $0x370] sm:$0xff]
    %v2699 = vld [vmem:[#allocation3 + $0x378] sm:$0xff]
    %v2700 = vld [vmem:[#allocation3 + $0x380] sm:$0xff]
    %v2701 = vld [vmem:[#allocation3 + $0x388] sm:$0xff]
    %v2702 = vld [vmem:[#allocation3 + $0x390] sm:$0xff]
    %v2703 = vld [vmem:[#allocation3 + $0x398] sm:$0xff]
    %v2704 = vld [vmem:[#allocation3 + $0x3a0] sm:$0xff]
    %v2705 = vld [vmem:[#allocation3 + $0x3a8] sm:$0xff]
    %v2706 = vld [vmem:[#allocation3 + $0x3b0] sm:$0xff]
    %v2707 = vld [vmem:[#allocation3 + $0x3b8] sm:$0xff]
    %v2708 = vld [vmem:[#allocation3 + $0x3c0] sm:$0xff]
    %v2709 = vld [vmem:[#allocation3 + $0x3c8] sm:$0xff]
    %v2710 = vld [vmem:[#allocation3 + $0x3d0] sm:$0xff]
    %v2711 = vld [vmem:[#allocation3 + $0x3d8] sm:$0xff]
    %v2712 = vld [vmem:[#allocation3 + $0x3e0] sm:$0xff]
    %v2713 = vld [vmem:[#allocation3 + $0x3e8] sm:$0xff]
    %v2714 = vld [vmem:[#allocation3 + $0x3f0] sm:$0xff]
    %v2715 = vld [vmem:[#allocation3 + $0x3f8] sm:$0xff]
    %v2716 = vld [vmem:[#allocation3 + $0x400] sm:$0xff]
    %v2717 = vld [vmem:[#allocation3 + $0x408] sm:$0xff]
    %v2718 = vld [vmem:[#allocation3 + $0x410] sm:$0xff]
    %v2719 = vld [vmem:[#allocation3 + $0x418] sm:$0xff]
    %v2720 = vld [vmem:[#allocation3 + $0x420] sm:$0xff]
    %v2721 = vld [vmem:[#allocation3 + $0x428] sm:$0xff]
    %v2722 = vld [vmem:[#allocation3 + $0x430] sm:$0xff]
    %v2723 = vld [vmem:[#allocation3 + $0x438] sm:$0xff]
    %v2724 = vld [vmem:[#allocation3 + $0x440] sm:$0xff]
    %v2725 = vld [vmem:[#allocation3 + $0x448] sm:$0xff]
    %v2726 = vld [vmem:[#allocation3 + $0x450] sm:$0xff]
    %v2727 = vld [vmem:[#allocation3 + $0x458] sm:$0xff]
    %v2728 = vld [vmem:[#allocation3 + $0x460] sm:$0xff]
    %v2729 = vld [vmem:[#allocation3 + $0x468] sm:$0xff]
    %v2730 = vld [vmem:[#allocation3 + $0x470] sm:$0xff]
    %v2731 = vld [vmem:[#allocation3 + $0x478] sm:$0xff]
    %v2732 = vld [vmem:[#allocation3 + $0x480] sm:$0xff]
    %v2733 = vld [vmem:[#allocation3 + $0x488] sm:$0xff]
    %v2734 = vld [vmem:[#allocation3 + $0x490] sm:$0xff]
    %v2735 = vld [vmem:[#allocation3 + $0x498] sm:$0xff]
    %v2736 = vld [vmem:[#allocation3 + $0x4a0] sm:$0xff]
    %v2737 = vld [vmem:[#allocation3 + $0x4a8] sm:$0xff]
    %v2738 = vld [vmem:[#allocation3 + $0x4b0] sm:$0xff]
    %v2739 = vld [vmem:[#allocation3 + $0x4b8] sm:$0xff]
    %v2740 = vld [vmem:[#allocation3 + $0x4c0] sm:$0xff]
    %v2741 = vld [vmem:[#allocation3 + $0x4c8] sm:$0xff]
    %v2742 = vld [vmem:[#allocation3 + $0x4d0] sm:$0xff]
    %v2743 = vld [vmem:[#allocation3 + $0x4d8] sm:$0xff]
    %v2744 = vld [vmem:[#allocation3 + $0x4e0] sm:$0xff]
    %v2745 = vld [vmem:[#allocation3 + $0x4e8] sm:$0xff]
    %v2746 = vld [vmem:[#allocation3 + $0x4f0] sm:$0xff]
    %v2747 = vld [vmem:[#allocation3 + $0x4f8] sm:$0xff]
    %v2748 = vld [vmem:[#allocation3 + $0x500] sm:$0xff]
    %v2749 = vld [vmem:[#allocation3 + $0x508] sm:$0xff]
    %v2750 = vld [vmem:[#allocation3 + $0x510] sm:$0xff]
    %v2751 = vld [vmem:[#allocation3 + $0x518] sm:$0xff]
    %v2752 = vld [vmem:[#allocation3 + $0x520] sm:$0xff]
    %v2753 = vld [vmem:[#allocation3 + $0x528] sm:$0xff]
    %v2754 = vld [vmem:[#allocation3 + $0x530] sm:$0xff]
    %v2755 = vld [vmem:[#allocation3 + $0x538] sm:$0xff]
    %v2756 = vld [vmem:[#allocation3 + $0x540] sm:$0xff]
    %v2757 = vld [vmem:[#allocation3 + $0x548] sm:$0xff]
    %v2758 = vld [vmem:[#allocation3 + $0x550] sm:$0xff]
    %v2759 = vld [vmem:[#allocation3 + $0x558] sm:$0xff]
    %v2760 = vld [vmem:[#allocation3 + $0x560] sm:$0xff]
    %v2761 = vld [vmem:[#allocation3 + $0x568] sm:$0xff]
    %v2762 = vld [vmem:[#allocation3 + $0x570] sm:$0xff]
    %v2763 = vld [vmem:[#allocation3 + $0x578] sm:$0xff]
    %v2764 = vld [vmem:[#allocation3 + $0x580] sm:$0xff]
    %v2765 = vld [vmem:[#allocation3 + $0x588] sm:$0xff]
    %v2766 = vld [vmem:[#allocation3 + $0x590] sm:$0xff]
    %v2767 = vld [vmem:[#allocation3 + $0x598] sm:$0xff]
    %v2768 = vld [vmem:[#allocation3 + $0x5a0] sm:$0xff]
    %v2769 = vld [vmem:[#allocation3 + $0x5a8] sm:$0xff]
    %v2770 = vld [vmem:[#allocation3 + $0x5b0] sm:$0xff]
    %v2771 = vld [vmem:[#allocation3 + $0x5b8] sm:$0xff]
    %v2772 = vld [vmem:[#allocation3 + $0x5c0] sm:$0xff]
    %v2773 = vld [vmem:[#allocation3 + $0x5c8] sm:$0xff]
    %v2774 = vld [vmem:[#allocation3 + $0x5d0] sm:$0xff]
    %v2775 = vld [vmem:[#allocation3 + $0x5d8] sm:$0xff]
    %v2776 = vld [vmem:[#allocation3 + $0x5e0] sm:$0xff]
    %v2777 = vld [vmem:[#allocation3 + $0x5e8] sm:$0xff]
    %v2778 = vld [vmem:[#allocation3 + $0x5f0] sm:$0xff]
    %v2779 = vld [vmem:[#allocation3 + $0x5f8] sm:$0xff]
    %2780 = vmatpush.msra.mxu0 %v2678
    %2781 = vmatpush.msra.mxu0 %v2672
    %2782 = vmatpush.msra.mxu0 %v2666
    %2783 = vmatpush.msra.mxu0 %v2660
    %2784 = vmatpush.msra.mxu0 %v2654
    %2785 = vmatpush.msra.mxu0 %v2648
    %2786 = vmatpush.msra.mxu0 %v2642
    %2787 = vmatpush.msra.mxu0 %v2636
    %2788 = vmatpush.msra.mxu0 %v2630
    %2789 = vmatpush.msra.mxu0 %v2624
    %2790 = vmatpush.msra.mxu0 %v2618
    %2791 = vmatpush.msra.mxu0 %v2612
    %2792 = vmatpush.msra.mxu0 %v2606
    %2793 = vmatpush.msra.mxu0 %v2600
    %2794 = vmatpush.msra.mxu0 %v2594
    %2795 = vmatpush.msra.mxu0 %v2588
    %2796 = vmatmul.f32.gmra.mxu0 %v2530
    %v2797 = vpop.f32.mrf.mxu0
    %v2798 = vadd.f32 0.0, %v2797
    %2799 = vdwg.mxu0
    %2800 = vmatpush.msra.mxu0 %v2774
    %2801 = vmatpush.msra.mxu0 %v2768
    %2802 = vmatpush.msra.mxu0 %v2762
    %2803 = vmatpush.msra.mxu0 %v2756
    %2804 = vmatpush.msra.mxu0 %v2750
    %2805 = vmatpush.msra.mxu0 %v2744
    %2806 = vmatpush.msra.mxu0 %v2738
    %2807 = vmatpush.msra.mxu0 %v2732
    %2808 = vmatpush.msra.mxu0 %v2726
    %2809 = vmatpush.msra.mxu0 %v2720
    %2810 = vmatpush.msra.mxu0 %v2714
    %2811 = vmatpush.msra.mxu0 %v2708
    %2812 = vmatpush.msra.mxu0 %v2702
    %2813 = vmatpush.msra.mxu0 %v2696
    %2814 = vmatpush.msra.mxu0 %v2690
    %2815 = vmatpush.msra.mxu0 %v2684
    %2816 = vmatmul.f32.gmra.mxu0 %v2577
    %v2817 = vpop.f32.mrf.mxu0
    %v2818 = vadd.f32 %v2798, %v2817
    %2819 = vdwg.mxu0
    %2820 = vmatpush.msra.mxu0 %v2679
    %2821 = vmatpush.msra.mxu0 %v2673
    %2822 = vmatpush.msra.mxu0 %v2667
    %2823 = vmatpush.msra.mxu0 %v2661
    %2824 = vmatpush.msra.mxu0 %v2655
    %2825 = vmatpush.msra.mxu0 %v2649
    %2826 = vmatpush.msra.mxu0 %v2643
    %2827 = vmatpush.msra.mxu0 %v2637
    %2828 = vmatpush.msra.mxu0 %v2631
    %2829 = vmatpush.msra.mxu0 %v2625
    %2830 = vmatpush.msra.mxu0 %v2619
    %2831 = vmatpush.msra.mxu0 %v2613
    %2832 = vmatpush.msra.mxu0 %v2607
    %2833 = vmatpush.msra.mxu0 %v2601
    %2834 = vmatpush.msra.mxu0 %v2595
    %2835 = vmatpush.msra.mxu0 %v2589
    %2836 = vmatmul.f32.gmra.mxu0 %v2530
    %v2837 = vpop.f32.mrf.mxu0
    %v2838 = vadd.f32 0.0, %v2837
    %2839 = vdwg.mxu0
    %2840 = vmatpush.msra.mxu0 %v2775
    %2841 = vmatpush.msra.mxu0 %v2769
    %2842 = vmatpush.msra.mxu0 %v2763
    %2843 = vmatpush.msra.mxu0 %v2757
    %2844 = vmatpush.msra.mxu0 %v2751
    %2845 = vmatpush.msra.mxu0 %v2745
    %2846 = vmatpush.msra.mxu0 %v2739
    %2847 = vmatpush.msra.mxu0 %v2733
    %2848 = vmatpush.msra.mxu0 %v2727
    %2849 = vmatpush.msra.mxu0 %v2721
    %2850 = vmatpush.msra.mxu0 %v2715
    %2851 = vmatpush.msra.mxu0 %v2709
    %2852 = vmatpush.msra.mxu0 %v2703
    %2853 = vmatpush.msra.mxu0 %v2697
    %2854 = vmatpush.msra.mxu0 %v2691
    %2855 = vmatpush.msra.mxu0 %v2685
    %2856 = vmatmul.f32.gmra.mxu0 %v2577
    %v2857 = vpop.f32.mrf.mxu0
    %v2858 = vadd.f32 %v2838, %v2857
    %2859 = vdwg.mxu0
    %2860 = vmatpush.msra.mxu0 %v2680
    %2861 = vmatpush.msra.mxu0 %v2674
    %2862 = vmatpush.msra.mxu0 %v2668
    %2863 = vmatpush.msra.mxu0 %v2662
    %2864 = vmatpush.msra.mxu0 %v2656
    %2865 = vmatpush.msra.mxu0 %v2650
    %2866 = vmatpush.msra.mxu0 %v2644
    %2867 = vmatpush.msra.mxu0 %v2638
    %2868 = vmatpush.msra.mxu0 %v2632
    %2869 = vmatpush.msra.mxu0 %v2626
    %2870 = vmatpush.msra.mxu0 %v2620
    %2871 = vmatpush.msra.mxu0 %v2614
    %2872 = vmatpush.msra.mxu0 %v2608
    %2873 = vmatpush.msra.mxu0 %v2602
    %2874 = vmatpush.msra.mxu0 %v2596
    %2875 = vmatpush.msra.mxu0 %v2590
    %2876 = vmatmul.f32.gmra.mxu0 %v2530
    %v2877 = vpop.f32.mrf.mxu0
    %v2878 = vadd.f32 0.0, %v2877
    %2879 = vdwg.mxu0
    %2880 = vmatpush.msra.mxu0 %v2776
    %2881 = vmatpush.msra.mxu0 %v2770
    %2882 = vmatpush.msra.mxu0 %v2764
    %2883 = vmatpush.msra.mxu0 %v2758
    %2884 = vmatpush.msra.mxu0 %v2752
    %2885 = vmatpush.msra.mxu0 %v2746
    %2886 = vmatpush.msra.mxu0 %v2740
    %2887 = vmatpush.msra.mxu0 %v2734
    %2888 = vmatpush.msra.mxu0 %v2728
    %2889 = vmatpush.msra.mxu0 %v2722
    %2890 = vmatpush.msra.mxu0 %v2716
    %2891 = vmatpush.msra.mxu0 %v2710
    %2892 = vmatpush.msra.mxu0 %v2704
    %2893 = vmatpush.msra.mxu0 %v2698
    %2894 = vmatpush.msra.mxu0 %v2692
    %2895 = vmatpush.msra.mxu0 %v2686
    %2896 = vmatmul.f32.gmra.mxu0 %v2577
    %v2897 = vpop.f32.mrf.mxu0
    %v2898 = vadd.f32 %v2878, %v2897
    %2899 = vdwg.mxu0
    %2900 = vmatpush.msra.mxu0 %v2681
    %2901 = vmatpush.msra.mxu0 %v2675
    %2902 = vmatpush.msra.mxu0 %v2669
    %2903 = vmatpush.msra.mxu0 %v2663
    %2904 = vmatpush.msra.mxu0 %v2657
    %2905 = vmatpush.msra.mxu0 %v2651
    %2906 = vmatpush.msra.mxu0 %v2645
    %2907 = vmatpush.msra.mxu0 %v2639
    %2908 = vmatpush.msra.mxu0 %v2633
    %2909 = vmatpush.msra.mxu0 %v2627
    %2910 = vmatpush.msra.mxu0 %v2621
    %2911 = vmatpush.msra.mxu0 %v2615
    %2912 = vmatpush.msra.mxu0 %v2609
    %2913 = vmatpush.msra.mxu0 %v2603
    %2914 = vmatpush.msra.mxu0 %v2597
    %2915 = vmatpush.msra.mxu0 %v2591
    %2916 = vmatmul.f32.gmra.mxu0 %v2530
    %v2917 = vpop.f32.mrf.mxu0
    %v2918 = vadd.f32 0.0, %v2917
    %2919 = vdwg.mxu0
    %2920 = vmatpush.msra.mxu0 %v2777
    %2921 = vmatpush.msra.mxu0 %v2771
    %2922 = vmatpush.msra.mxu0 %v2765
    %2923 = vmatpush.msra.mxu0 %v2759
    %2924 = vmatpush.msra.mxu0 %v2753
    %2925 = vmatpush.msra.mxu0 %v2747
    %2926 = vmatpush.msra.mxu0 %v2741
    %2927 = vmatpush.msra.mxu0 %v2735
    %2928 = vmatpush.msra.mxu0 %v2729
    %2929 = vmatpush.msra.mxu0 %v2723
    %2930 = vmatpush.msra.mxu0 %v2717
    %2931 = vmatpush.msra.mxu0 %v2711
    %2932 = vmatpush.msra.mxu0 %v2705
    %2933 = vmatpush.msra.mxu0 %v2699
    %2934 = vmatpush.msra.mxu0 %v2693
    %2935 = vmatpush.msra.mxu0 %v2687
    %2936 = vmatmul.f32.gmra.mxu0 %v2577
    %v2937 = vpop.f32.mrf.mxu0
    %v2938 = vadd.f32 %v2918, %v2937
    %2939 = vdwg.mxu0
    %2940 = vmatpush.msra.mxu0 %v2682
    %2941 = vmatpush.msra.mxu0 %v2676
    %2942 = vmatpush.msra.mxu0 %v2670
    %2943 = vmatpush.msra.mxu0 %v2664
    %2944 = vmatpush.msra.mxu0 %v2658
    %2945 = vmatpush.msra.mxu0 %v2652
    %2946 = vmatpush.msra.mxu0 %v2646
    %2947 = vmatpush.msra.mxu0 %v2640
    %2948 = vmatpush.msra.mxu0 %v2634
    %2949 = vmatpush.msra.mxu0 %v2628
    %2950 = vmatpush.msra.mxu0 %v2622
    %2951 = vmatpush.msra.mxu0 %v2616
    %2952 = vmatpush.msra.mxu0 %v2610
    %2953 = vmatpush.msra.mxu0 %v2604
    %2954 = vmatpush.msra.mxu0 %v2598
    %2955 = vmatpush.msra.mxu0 %v2592
    %2956 = vmatmul.f32.gmra.mxu0 %v2530
    %v2957 = vpop.f32.mrf.mxu0
    %v2958 = vadd.f32 0.0, %v2957
    %2959 = vdwg.mxu0
    %2960 = vmatpush.msra.mxu0 %v2778
    %2961 = vmatpush.msra.mxu0 %v2772
    %2962 = vmatpush.msra.mxu0 %v2766
    %2963 = vmatpush.msra.mxu0 %v2760
    %2964 = vmatpush.msra.mxu0 %v2754
    %2965 = vmatpush.msra.mxu0 %v2748
    %2966 = vmatpush.msra.mxu0 %v2742
    %2967 = vmatpush.msra.mxu0 %v2736
    %2968 = vmatpush.msra.mxu0 %v2730
    %2969 = vmatpush.msra.mxu0 %v2724
    %2970 = vmatpush.msra.mxu0 %v2718
    %2971 = vmatpush.msra.mxu0 %v2712
    %2972 = vmatpush.msra.mxu0 %v2706
    %2973 = vmatpush.msra.mxu0 %v2700
    %2974 = vmatpush.msra.mxu0 %v2694
    %2975 = vmatpush.msra.mxu0 %v2688
    %2976 = vmatmul.f32.gmra.mxu0 %v2577
    %v2977 = vpop.f32.mrf.mxu0
    %v2978 = vadd.f32 %v2958, %v2977
    %2979 = vdwg.mxu0
    %2980 = vmatpush.msra.mxu0 %v2683
    %2981 = vmatpush.msra.mxu0 %v2677
    %2982 = vmatpush.msra.mxu0 %v2671
    %2983 = vmatpush.msra.mxu0 %v2665
    %2984 = vmatpush.msra.mxu0 %v2659
    %2985 = vmatpush.msra.mxu0 %v2653
    %2986 = vmatpush.msra.mxu0 %v2647
    %2987 = vmatpush.msra.mxu0 %v2641
    %2988 = vmatpush.msra.mxu0 %v2635
    %2989 = vmatpush.msra.mxu0 %v2629
    %2990 = vmatpush.msra.mxu0 %v2623
    %2991 = vmatpush.msra.mxu0 %v2617
    %2992 = vmatpush.msra.mxu0 %v2611
    %2993 = vmatpush.msra.mxu0 %v2605
    %2994 = vmatpush.msra.mxu0 %v2599
    %2995 = vmatpush.msra.mxu0 %v2593
    %2996 = vmatmul.f32.gmra.mxu0 %v2530
    %v2997 = vpop.f32.mrf.mxu0
    %v2998 = vadd.f32 0.0, %v2997
    %2999 = vdwg.mxu0
    %3000 = vmatpush.msra.mxu0 %v2779
    %3001 = vmatpush.msra.mxu0 %v2773
    %3002 = vmatpush.msra.mxu0 %v2767
    %3003 = vmatpush.msra.mxu0 %v2761
    %3004 = vmatpush.msra.mxu0 %v2755
    %3005 = vmatpush.msra.mxu0 %v2749
    %3006 = vmatpush.msra.mxu0 %v2743
    %3007 = vmatpush.msra.mxu0 %v2737
    %3008 = vmatpush.msra.mxu0 %v2731
    %3009 = vmatpush.msra.mxu0 %v2725
    %3010 = vmatpush.msra.mxu0 %v2719
    %3011 = vmatpush.msra.mxu0 %v2713
    %3012 = vmatpush.msra.mxu0 %v2707
    %3013 = vmatpush.msra.mxu0 %v2701
    %3014 = vmatpush.msra.mxu0 %v2695
    %3015 = vmatpush.msra.mxu0 %v2689
    %3016 = vmatmul.f32.gmra.mxu0 %v2577
    %v3017 = vpop.f32.mrf.mxu0
    %v3018 = vadd.f32 %v2998, %v3017
    %3019 = vdwg.mxu0
    %v3020 = vadd.f32 %v2582, %v2818
    %v3021 = vxor.u32 %v3020, 2147483648
    %v3022 = vmul.f32 %v3021, 1.442695
    %v3023 = vpow.pop %v3022
    %v3024 = vadd.f32 %v3023, 1.0
    %v3025 = vrcp.pop %v3024
    %v3026 = vmul.f32 %v3024, %v3025
    %v3027 = vsub.f32 1.0, %v3026
    %v3028 = vmul.f32 %v3025, %v3027
    %v3029 = vadd.f32 %v3025, %v3028
    %vm3030 = vweird.f32 %v3024
    %vm3031 = vweird.f32 %v3025
    %vm3032 = vmor %vm3030, %vm3031
    %v3033 = vsel %vm3032, %v3025, %v3029
    %v3034 = vand.u32 2147483647, %v3024
    %vm3035 = vcmp.eq.f32.partialorder %v3034, 8.507059e+37
    %v3036 = vand.u32 %v3024, 2147483648
    %v3037 = vor.u32 1.1754944e-38, %v3036
    %v3038 = vsel %vm3035, %v3037, %v3033
    %v3039 = vmul.f32 1.0, %v3038
    %v3040 = vadd.f32 %v2583, %v2858
    %v3041 = vxor.u32 %v3040, 2147483648
    %v3042 = vmul.f32 %v3041, 1.442695
    %v3043 = vpow.pop %v3042
    %v3044 = vadd.f32 %v3043, 1.0
    %v3045 = vrcp.pop %v3044
    %v3046 = vmul.f32 %v3044, %v3045
    %v3047 = vsub.f32 1.0, %v3046
    %v3048 = vmul.f32 %v3045, %v3047
    %v3049 = vadd.f32 %v3045, %v3048
    %vm3050 = vweird.f32 %v3044
    %vm3051 = vweird.f32 %v3045
    %vm3052 = vmor %vm3050, %vm3051
    %v3053 = vsel %vm3052, %v3045, %v3049
    %v3054 = vand.u32 2147483647, %v3044
    %vm3055 = vcmp.eq.f32.partialorder %v3054, 8.507059e+37
    %v3056 = vand.u32 %v3044, 2147483648
    %v3057 = vor.u32 1.1754944e-38, %v3056
    %v3058 = vsel %vm3055, %v3057, %v3053
    %v3059 = vmul.f32 1.0, %v3058
    %v3060 = vadd.f32 %v2898, %v894
    %v3061 = vmul.f32 %v3039, %v3060
    %v3062 = vadd.f32 %v2584, %v3061
    %v3063 = vtanh.pop %v3062
    %v3064 = vsub.f32 %v2530, %v3063
    %v3065 = vmul.f32 %v3059, %v3064
    %v3066 = vadd.f32 %v3063, %v3065
    %v3067 = vadd.f32 %v2585, %v2938
    %v3068 = vxor.u32 %v3067, 2147483648
    %v3069 = vmul.f32 %v3068, 1.442695
    %v3070 = vpow.pop %v3069
    %v3071 = vadd.f32 %v3070, 1.0
    %v3072 = vrcp.pop %v3071
    %v3073 = vmul.f32 %v3071, %v3072
    %v3074 = vsub.f32 1.0, %v3073
    %v3075 = vmul.f32 %v3072, %v3074
    %v3076 = vadd.f32 %v3072, %v3075
    %vm3077 = vweird.f32 %v3071
    %vm3078 = vweird.f32 %v3072
    %vm3079 = vmor %vm3077, %vm3078
    %v3080 = vsel %vm3079, %v3072, %v3076
    %v3081 = vand.u32 2147483647, %v3071
    %vm3082 = vcmp.eq.f32.partialorder %v3081, 8.507059e+37
    %v3083 = vand.u32 %v3071, 2147483648
    %v3084 = vor.u32 1.1754944e-38, %v3083
    %v3085 = vsel %vm3082, %v3084, %v3080
    %v3086 = vmul.f32 1.0, %v3085
    %v3087 = vadd.f32 %v2586, %v2978
    %v3088 = vxor.u32 %v3087, 2147483648
    %v3089 = vmul.f32 %v3088, 1.442695
    %v3090 = vpow.pop %v3089
    %v3091 = vadd.f32 %v3090, 1.0
    %v3092 = vrcp.pop %v3091
    %v3093 = vmul.f32 %v3091, %v3092
    %v3094 = vsub.f32 1.0, %v3093
    %v3095 = vmul.f32 %v3092, %v3094
    %v3096 = vadd.f32 %v3092, %v3095
    %vm3097 = vweird.f32 %v3091
    %vm3098 = vweird.f32 %v3092
    %vm3099 = vmor %vm3097, %vm3098
    %v3100 = vsel %vm3099, %v3092, %v3096
    %v3101 = vand.u32 2147483647, %v3091
    %vm3102 = vcmp.eq.f32.partialorder %v3101, 8.507059e+37
    %v3103 = vand.u32 %v3091, 2147483648
    %v3104 = vor.u32 1.1754944e-38, %v3103
    %v3105 = vsel %vm3102, %v3104, %v3100
    %v3106 = vmul.f32 1.0, %v3105
    %v3107 = vadd.f32 %v3018, %v944
    %v3108 = vmul.f32 %v3086, %v3107
    %v3109 = vadd.f32 %v2587, %v3108
    %v3110 = vtanh.pop %v3109
    %v3111 = vsub.f32 %v2577, %v3110
    %v3112 = vmul.f32 %v3106, %v3111
    %v3113 = vadd.f32 %v3110, %v3112
    %3114 = vst [vmem:[%s2580] sm:$0xff] %v3066
    %3115 = vst [vmem:[%s2578 + $0x8] sm:$0xff] %v3113
    %v3116 = vld [vmem:[%s1506] sm:$0xff]
    %v3117 = vld [vmem:[%s1506 + $0x8] sm:$0xff]
    %v3118 = vld [vmem:[%s1506 + $0x10] sm:$0xff]
    %v3119 = vld [vmem:[%s1500 + $0x18] sm:$0xff]
    %v3120 = vld [vmem:[%s1500 + $0x20] sm:$0xff]
    %v3121 = vld [vmem:[%s1500 + $0x28] sm:$0xff]
    %v3122 = vld [vmem:[#allocation3] sm:$0xff]
    %v3123 = vld [vmem:[#allocation3 + $0x8] sm:$0xff]
    %v3124 = vld [vmem:[#allocation3 + $0x10] sm:$0xff]
    %v3125 = vld [vmem:[#allocation3 + $0x18] sm:$0xff]
    %v3126 = vld [vmem:[#allocation3 + $0x20] sm:$0xff]
    %v3127 = vld [vmem:[#allocation3 + $0x28] sm:$0xff]
    %v3128 = vld [vmem:[#allocation3 + $0x30] sm:$0xff]
    %v3129 = vld [vmem:[#allocation3 + $0x38] sm:$0xff]
    %v3130 = vld [vmem:[#allocation3 + $0x40] sm:$0xff]
    %v3131 = vld [vmem:[#allocation3 + $0x48] sm:$0xff]
    %v3132 = vld [vmem:[#allocation3 + $0x50] sm:$0xff]
    %v3133 = vld [vmem:[#allocation3 + $0x58] sm:$0xff]
    %v3134 = vld [vmem:[#allocation3 + $0x60] sm:$0xff]
    %v3135 = vld [vmem:[#allocation3 + $0x68] sm:$0xff]
    %v3136 = vld [vmem:[#allocation3 + $0x70] sm:$0xff]
    %v3137 = vld [vmem:[#allocation3 + $0x78] sm:$0xff]
    %v3138 = vld [vmem:[#allocation3 + $0x80] sm:$0xff]
    %v3139 = vld [vmem:[#allocation3 + $0x88] sm:$0xff]
    %v3140 = vld [vmem:[#allocation3 + $0x90] sm:$0xff]
    %v3141 = vld [vmem:[#allocation3 + $0x98] sm:$0xff]
    %v3142 = vld [vmem:[#allocation3 + $0xa0] sm:$0xff]
    %v3143 = vld [vmem:[#allocation3 + $0xa8] sm:$0xff]
    %v3144 = vld [vmem:[#allocation3 + $0xb0] sm:$0xff]
    %v3145 = vld [vmem:[#allocation3 + $0xb8] sm:$0xff]
    %v3146 = vld [vmem:[#allocation3 + $0xc0] sm:$0xff]
    %v3147 = vld [vmem:[#allocation3 + $0xc8] sm:$0xff]
    %v3148 = vld [vmem:[#allocation3 + $0xd0] sm:$0xff]
    %v3149 = vld [vmem:[#allocation3 + $0xd8] sm:$0xff]
    %v3150 = vld [vmem:[#allocation3 + $0xe0] sm:$0xff]
    %v3151 = vld [vmem:[#allocation3 + $0xe8] sm:$0xff]
    %v3152 = vld [vmem:[#allocation3 + $0xf0] sm:$0xff]
    %v3153 = vld [vmem:[#allocation3 + $0xf8] sm:$0xff]
    %v3154 = vld [vmem:[#allocation3 + $0x100] sm:$0xff]
    %v3155 = vld [vmem:[#allocation3 + $0x108] sm:$0xff]
    %v3156 = vld [vmem:[#allocation3 + $0x110] sm:$0xff]
    %v3157 = vld [vmem:[#allocation3 + $0x118] sm:$0xff]
    %v3158 = vld [vmem:[#allocation3 + $0x120] sm:$0xff]
    %v3159 = vld [vmem:[#allocation3 + $0x128] sm:$0xff]
    %v3160 = vld [vmem:[#allocation3 + $0x130] sm:$0xff]
    %v3161 = vld [vmem:[#allocation3 + $0x138] sm:$0xff]
    %v3162 = vld [vmem:[#allocation3 + $0x140] sm:$0xff]
    %v3163 = vld [vmem:[#allocation3 + $0x148] sm:$0xff]
    %v3164 = vld [vmem:[#allocation3 + $0x150] sm:$0xff]
    %v3165 = vld [vmem:[#allocation3 + $0x158] sm:$0xff]
    %v3166 = vld [vmem:[#allocation3 + $0x160] sm:$0xff]
    %v3167 = vld [vmem:[#allocation3 + $0x168] sm:$0xff]
    %v3168 = vld [vmem:[#allocation3 + $0x170] sm:$0xff]
    %v3169 = vld [vmem:[#allocation3 + $0x178] sm:$0xff]
    %v3170 = vld [vmem:[#allocation3 + $0x180] sm:$0xff]
    %v3171 = vld [vmem:[#allocation3 + $0x188] sm:$0xff]
    %v3172 = vld [vmem:[#allocation3 + $0x190] sm:$0xff]
    %v3173 = vld [vmem:[#allocation3 + $0x198] sm:$0xff]
    %v3174 = vld [vmem:[#allocation3 + $0x1a0] sm:$0xff]
    %v3175 = vld [vmem:[#allocation3 + $0x1a8] sm:$0xff]
    %v3176 = vld [vmem:[#allocation3 + $0x1b0] sm:$0xff]
    %v3177 = vld [vmem:[#allocation3 + $0x1b8] sm:$0xff]
    %v3178 = vld [vmem:[#allocation3 + $0x1c0] sm:$0xff]
    %v3179 = vld [vmem:[#allocation3 + $0x1c8] sm:$0xff]
    %v3180 = vld [vmem:[#allocation3 + $0x1d0] sm:$0xff]
    %v3181 = vld [vmem:[#allocation3 + $0x1d8] sm:$0xff]
    %v3182 = vld [vmem:[#allocation3 + $0x1e0] sm:$0xff]
    %v3183 = vld [vmem:[#allocation3 + $0x1e8] sm:$0xff]
    %v3184 = vld [vmem:[#allocation3 + $0x1f0] sm:$0xff]
    %v3185 = vld [vmem:[#allocation3 + $0x1f8] sm:$0xff]
    %v3186 = vld [vmem:[#allocation3 + $0x200] sm:$0xff]
    %v3187 = vld [vmem:[#allocation3 + $0x208] sm:$0xff]
    %v3188 = vld [vmem:[#allocation3 + $0x210] sm:$0xff]
    %v3189 = vld [vmem:[#allocation3 + $0x218] sm:$0xff]
    %v3190 = vld [vmem:[#allocation3 + $0x220] sm:$0xff]
    %v3191 = vld [vmem:[#allocation3 + $0x228] sm:$0xff]
    %v3192 = vld [vmem:[#allocation3 + $0x230] sm:$0xff]
    %v3193 = vld [vmem:[#allocation3 + $0x238] sm:$0xff]
    %v3194 = vld [vmem:[#allocation3 + $0x240] sm:$0xff]
    %v3195 = vld [vmem:[#allocation3 + $0x248] sm:$0xff]
    %v3196 = vld [vmem:[#allocation3 + $0x250] sm:$0xff]
    %v3197 = vld [vmem:[#allocation3 + $0x258] sm:$0xff]
    %v3198 = vld [vmem:[#allocation3 + $0x260] sm:$0xff]
    %v3199 = vld [vmem:[#allocation3 + $0x268] sm:$0xff]
    %v3200 = vld [vmem:[#allocation3 + $0x270] sm:$0xff]
    %v3201 = vld [vmem:[#allocation3 + $0x278] sm:$0xff]
    %v3202 = vld [vmem:[#allocation3 + $0x280] sm:$0xff]
    %v3203 = vld [vmem:[#allocation3 + $0x288] sm:$0xff]
    %v3204 = vld [vmem:[#allocation3 + $0x290] sm:$0xff]
    %v3205 = vld [vmem:[#allocation3 + $0x298] sm:$0xff]
    %v3206 = vld [vmem:[#allocation3 + $0x2a0] sm:$0xff]
    %v3207 = vld [vmem:[#allocation3 + $0x2a8] sm:$0xff]
    %v3208 = vld [vmem:[#allocation3 + $0x2b0] sm:$0xff]
    %v3209 = vld [vmem:[#allocation3 + $0x2b8] sm:$0xff]
    %v3210 = vld [vmem:[#allocation3 + $0x2c0] sm:$0xff]
    %v3211 = vld [vmem:[#allocation3 + $0x2c8] sm:$0xff]
    %v3212 = vld [vmem:[#allocation3 + $0x2d0] sm:$0xff]
    %v3213 = vld [vmem:[#allocation3 + $0x2d8] sm:$0xff]
    %v3214 = vld [vmem:[#allocation3 + $0x2e0] sm:$0xff]
    %v3215 = vld [vmem:[#allocation3 + $0x2e8] sm:$0xff]
    %v3216 = vld [vmem:[#allocation3 + $0x2f0] sm:$0xff]
    %v3217 = vld [vmem:[#allocation3 + $0x2f8] sm:$0xff]
    %v3218 = vld [vmem:[#allocation3 + $0x300] sm:$0xff]
    %v3219 = vld [vmem:[#allocation3 + $0x308] sm:$0xff]
    %v3220 = vld [vmem:[#allocation3 + $0x310] sm:$0xff]
    %v3221 = vld [vmem:[#allocation3 + $0x318] sm:$0xff]
    %v3222 = vld [vmem:[#allocation3 + $0x320] sm:$0xff]
    %v3223 = vld [vmem:[#allocation3 + $0x328] sm:$0xff]
    %v3224 = vld [vmem:[#allocation3 + $0x330] sm:$0xff]
    %v3225 = vld [vmem:[#allocation3 + $0x338] sm:$0xff]
    %v3226 = vld [vmem:[#allocation3 + $0x340] sm:$0xff]
    %v3227 = vld [vmem:[#allocation3 + $0x348] sm:$0xff]
    %v3228 = vld [vmem:[#allocation3 + $0x350] sm:$0xff]
    %v3229 = vld [vmem:[#allocation3 + $0x358] sm:$0xff]
    %v3230 = vld [vmem:[#allocation3 + $0x360] sm:$0xff]
    %v3231 = vld [vmem:[#allocation3 + $0x368] sm:$0xff]
    %v3232 = vld [vmem:[#allocation3 + $0x370] sm:$0xff]
    %v3233 = vld [vmem:[#allocation3 + $0x378] sm:$0xff]
    %v3234 = vld [vmem:[#allocation3 + $0x380] sm:$0xff]
    %v3235 = vld [vmem:[#allocation3 + $0x388] sm:$0xff]
    %v3236 = vld [vmem:[#allocation3 + $0x390] sm:$0xff]
    %v3237 = vld [vmem:[#allocation3 + $0x398] sm:$0xff]
    %v3238 = vld [vmem:[#allocation3 + $0x3a0] sm:$0xff]
    %v3239 = vld [vmem:[#allocation3 + $0x3a8] sm:$0xff]
    %v3240 = vld [vmem:[#allocation3 + $0x3b0] sm:$0xff]
    %v3241 = vld [vmem:[#allocation3 + $0x3b8] sm:$0xff]
    %v3242 = vld [vmem:[#allocation3 + $0x3c0] sm:$0xff]
    %v3243 = vld [vmem:[#allocation3 + $0x3c8] sm:$0xff]
    %v3244 = vld [vmem:[#allocation3 + $0x3d0] sm:$0xff]
    %v3245 = vld [vmem:[#allocation3 + $0x3d8] sm:$0xff]
    %v3246 = vld [vmem:[#allocation3 + $0x3e0] sm:$0xff]
    %v3247 = vld [vmem:[#allocation3 + $0x3e8] sm:$0xff]
    %v3248 = vld [vmem:[#allocation3 + $0x3f0] sm:$0xff]
    %v3249 = vld [vmem:[#allocation3 + $0x3f8] sm:$0xff]
    %v3250 = vld [vmem:[#allocation3 + $0x400] sm:$0xff]
    %v3251 = vld [vmem:[#allocation3 + $0x408] sm:$0xff]
    %v3252 = vld [vmem:[#allocation3 + $0x410] sm:$0xff]
    %v3253 = vld [vmem:[#allocation3 + $0x418] sm:$0xff]
    %v3254 = vld [vmem:[#allocation3 + $0x420] sm:$0xff]
    %v3255 = vld [vmem:[#allocation3 + $0x428] sm:$0xff]
    %v3256 = vld [vmem:[#allocation3 + $0x430] sm:$0xff]
    %v3257 = vld [vmem:[#allocation3 + $0x438] sm:$0xff]
    %v3258 = vld [vmem:[#allocation3 + $0x440] sm:$0xff]
    %v3259 = vld [vmem:[#allocation3 + $0x448] sm:$0xff]
    %v3260 = vld [vmem:[#allocation3 + $0x450] sm:$0xff]
    %v3261 = vld [vmem:[#allocation3 + $0x458] sm:$0xff]
    %v3262 = vld [vmem:[#allocation3 + $0x460] sm:$0xff]
    %v3263 = vld [vmem:[#allocation3 + $0x468] sm:$0xff]
    %v3264 = vld [vmem:[#allocation3 + $0x470] sm:$0xff]
    %v3265 = vld [vmem:[#allocation3 + $0x478] sm:$0xff]
    %v3266 = vld [vmem:[#allocation3 + $0x480] sm:$0xff]
    %v3267 = vld [vmem:[#allocation3 + $0x488] sm:$0xff]
    %v3268 = vld [vmem:[#allocation3 + $0x490] sm:$0xff]
    %v3269 = vld [vmem:[#allocation3 + $0x498] sm:$0xff]
    %v3270 = vld [vmem:[#allocation3 + $0x4a0] sm:$0xff]
    %v3271 = vld [vmem:[#allocation3 + $0x4a8] sm:$0xff]
    %v3272 = vld [vmem:[#allocation3 + $0x4b0] sm:$0xff]
    %v3273 = vld [vmem:[#allocation3 + $0x4b8] sm:$0xff]
    %v3274 = vld [vmem:[#allocation3 + $0x4c0] sm:$0xff]
    %v3275 = vld [vmem:[#allocation3 + $0x4c8] sm:$0xff]
    %v3276 = vld [vmem:[#allocation3 + $0x4d0] sm:$0xff]
    %v3277 = vld [vmem:[#allocation3 + $0x4d8] sm:$0xff]
    %v3278 = vld [vmem:[#allocation3 + $0x4e0] sm:$0xff]
    %v3279 = vld [vmem:[#allocation3 + $0x4e8] sm:$0xff]
    %v3280 = vld [vmem:[#allocation3 + $0x4f0] sm:$0xff]
    %v3281 = vld [vmem:[#allocation3 + $0x4f8] sm:$0xff]
    %v3282 = vld [vmem:[#allocation3 + $0x500] sm:$0xff]
    %v3283 = vld [vmem:[#allocation3 + $0x508] sm:$0xff]
    %v3284 = vld [vmem:[#allocation3 + $0x510] sm:$0xff]
    %v3285 = vld [vmem:[#allocation3 + $0x518] sm:$0xff]
    %v3286 = vld [vmem:[#allocation3 + $0x520] sm:$0xff]
    %v3287 = vld [vmem:[#allocation3 + $0x528] sm:$0xff]
    %v3288 = vld [vmem:[#allocation3 + $0x530] sm:$0xff]
    %v3289 = vld [vmem:[#allocation3 + $0x538] sm:$0xff]
    %v3290 = vld [vmem:[#allocation3 + $0x540] sm:$0xff]
    %v3291 = vld [vmem:[#allocation3 + $0x548] sm:$0xff]
    %v3292 = vld [vmem:[#allocation3 + $0x550] sm:$0xff]
    %v3293 = vld [vmem:[#allocation3 + $0x558] sm:$0xff]
    %v3294 = vld [vmem:[#allocation3 + $0x560] sm:$0xff]
    %v3295 = vld [vmem:[#allocation3 + $0x568] sm:$0xff]
    %v3296 = vld [vmem:[#allocation3 + $0x570] sm:$0xff]
    %v3297 = vld [vmem:[#allocation3 + $0x578] sm:$0xff]
    %v3298 = vld [vmem:[#allocation3 + $0x580] sm:$0xff]
    %v3299 = vld [vmem:[#allocation3 + $0x588] sm:$0xff]
    %v3300 = vld [vmem:[#allocation3 + $0x590] sm:$0xff]
    %v3301 = vld [vmem:[#allocation3 + $0x598] sm:$0xff]
    %v3302 = vld [vmem:[#allocation3 + $0x5a0] sm:$0xff]
    %v3303 = vld [vmem:[#allocation3 + $0x5a8] sm:$0xff]
    %v3304 = vld [vmem:[#allocation3 + $0x5b0] sm:$0xff]
    %v3305 = vld [vmem:[#allocation3 + $0x5b8] sm:$0xff]
    %v3306 = vld [vmem:[#allocation3 + $0x5c0] sm:$0xff]
    %v3307 = vld [vmem:[#allocation3 + $0x5c8] sm:$0xff]
    %v3308 = vld [vmem:[#allocation3 + $0x5d0] sm:$0xff]
    %v3309 = vld [vmem:[#allocation3 + $0x5d8] sm:$0xff]
    %v3310 = vld [vmem:[#allocation3 + $0x5e0] sm:$0xff]
    %v3311 = vld [vmem:[#allocation3 + $0x5e8] sm:$0xff]
    %v3312 = vld [vmem:[#allocation3 + $0x5f0] sm:$0xff]
    %v3313 = vld [vmem:[#allocation3 + $0x5f8] sm:$0xff]
    %3314 = vmatpush.msra.mxu0 %v3212
    %3315 = vmatpush.msra.mxu0 %v3206
    %3316 = vmatpush.msra.mxu0 %v3200
    %3317 = vmatpush.msra.mxu0 %v3194
    %3318 = vmatpush.msra.mxu0 %v3188
    %3319 = vmatpush.msra.mxu0 %v3182
    %3320 = vmatpush.msra.mxu0 %v3176
    %3321 = vmatpush.msra.mxu0 %v3170
    %3322 = vmatpush.msra.mxu0 %v3164
    %3323 = vmatpush.msra.mxu0 %v3158
    %3324 = vmatpush.msra.mxu0 %v3152
    %3325 = vmatpush.msra.mxu0 %v3146
    %3326 = vmatpush.msra.mxu0 %v3140
    %3327 = vmatpush.msra.mxu0 %v3134
    %3328 = vmatpush.msra.mxu0 %v3128
    %3329 = vmatpush.msra.mxu0 %v3122
    %3330 = vmatmul.f32.gmra.mxu0 %v3066
    %v3331 = vpop.f32.mrf.mxu0
    %v3332 = vadd.f32 0.0, %v3331
    %3333 = vdwg.mxu0
    %3334 = vmatpush.msra.mxu0 %v3308
    %3335 = vmatpush.msra.mxu0 %v3302
    %3336 = vmatpush.msra.mxu0 %v3296
    %3337 = vmatpush.msra.mxu0 %v3290
    %3338 = vmatpush.msra.mxu0 %v3284
    %3339 = vmatpush.msra.mxu0 %v3278
    %3340 = vmatpush.msra.mxu0 %v3272
    %3341 = vmatpush.msra.mxu0 %v3266
    %3342 = vmatpush.msra.mxu0 %v3260
    %3343 = vmatpush.msra.mxu0 %v3254
    %3344 = vmatpush.msra.mxu0 %v3248
    %3345 = vmatpush.msra.mxu0 %v3242
    %3346 = vmatpush.msra.mxu0 %v3236
    %3347 = vmatpush.msra.mxu0 %v3230
    %3348 = vmatpush.msra.mxu0 %v3224
    %3349 = vmatpush.msra.mxu0 %v3218
    %3350 = vmatmul.f32.gmra.mxu0 %v3113
    %v3351 = vpop.f32.mrf.mxu0
    %v3352 = vadd.f32 %v3332, %v3351
    %3353 = vdwg.mxu0
    %3354 = vmatpush.msra.mxu0 %v3213
    %3355 = vmatpush.msra.mxu0 %v3207
    %3356 = vmatpush.msra.mxu0 %v3201
    %3357 = vmatpush.msra.mxu0 %v3195
    %3358 = vmatpush.msra.mxu0 %v3189
    %3359 = vmatpush.msra.mxu0 %v3183
    %3360 = vmatpush.msra.mxu0 %v3177
    %3361 = vmatpush.msra.mxu0 %v3171
    %3362 = vmatpush.msra.mxu0 %v3165
    %3363 = vmatpush.msra.mxu0 %v3159
    %3364 = vmatpush.msra.mxu0 %v3153
    %3365 = vmatpush.msra.mxu0 %v3147
    %3366 = vmatpush.msra.mxu0 %v3141
    %3367 = vmatpush.msra.mxu0 %v3135
    %3368 = vmatpush.msra.mxu0 %v3129
    %3369 = vmatpush.msra.mxu0 %v3123
    %3370 = vmatmul.f32.gmra.mxu0 %v3066
    %v3371 = vpop.f32.mrf.mxu0
    %v3372 = vadd.f32 0.0, %v3371
    %3373 = vdwg.mxu0
    %3374 = vmatpush.msra.mxu0 %v3309
    %3375 = vmatpush.msra.mxu0 %v3303
    %3376 = vmatpush.msra.mxu0 %v3297
    %3377 = vmatpush.msra.mxu0 %v3291
    %3378 = vmatpush.msra.mxu0 %v3285
    %3379 = vmatpush.msra.mxu0 %v3279
    %3380 = vmatpush.msra.mxu0 %v3273
    %3381 = vmatpush.msra.mxu0 %v3267
    %3382 = vmatpush.msra.mxu0 %v3261
    %3383 = vmatpush.msra.mxu0 %v3255
    %3384 = vmatpush.msra.mxu0 %v3249
    %3385 = vmatpush.msra.mxu0 %v3243
    %3386 = vmatpush.msra.mxu0 %v3237
    %3387 = vmatpush.msra.mxu0 %v3231
    %3388 = vmatpush.msra.mxu0 %v3225
    %3389 = vmatpush.msra.mxu0 %v3219
    %3390 = vmatmul.f32.gmra.mxu0 %v3113
    %v3391 = vpop.f32.mrf.mxu0
    %v3392 = vadd.f32 %v3372, %v3391
    %3393 = vdwg.mxu0
    %3394 = vmatpush.msra.mxu0 %v3214
    %3395 = vmatpush.msra.mxu0 %v3208
    %3396 = vmatpush.msra.mxu0 %v3202
    %3397 = vmatpush.msra.mxu0 %v3196
    %3398 = vmatpush.msra.mxu0 %v3190
    %3399 = vmatpush.msra.mxu0 %v3184
    %3400 = vmatpush.msra.mxu0 %v3178
    %3401 = vmatpush.msra.mxu0 %v3172
    %3402 = vmatpush.msra.mxu0 %v3166
    %3403 = vmatpush.msra.mxu0 %v3160
    %3404 = vmatpush.msra.mxu0 %v3154
    %3405 = vmatpush.msra.mxu0 %v3148
    %3406 = vmatpush.msra.mxu0 %v3142
    %3407 = vmatpush.msra.mxu0 %v3136
    %3408 = vmatpush.msra.mxu0 %v3130
    %3409 = vmatpush.msra.mxu0 %v3124
    %3410 = vmatmul.f32.gmra.mxu0 %v3066
    %v3411 = vpop.f32.mrf.mxu0
    %v3412 = vadd.f32 0.0, %v3411
    %3413 = vdwg.mxu0
    %3414 = vmatpush.msra.mxu0 %v3310
    %3415 = vmatpush.msra.mxu0 %v3304
    %3416 = vmatpush.msra.mxu0 %v3298
    %3417 = vmatpush.msra.mxu0 %v3292
    %3418 = vmatpush.msra.mxu0 %v3286
    %3419 = vmatpush.msra.mxu0 %v3280
    %3420 = vmatpush.msra.mxu0 %v3274
    %3421 = vmatpush.msra.mxu0 %v3268
    %3422 = vmatpush.msra.mxu0 %v3262
    %3423 = vmatpush.msra.mxu0 %v3256
    %3424 = vmatpush.msra.mxu0 %v3250
    %3425 = vmatpush.msra.mxu0 %v3244
    %3426 = vmatpush.msra.mxu0 %v3238
    %3427 = vmatpush.msra.mxu0 %v3232
    %3428 = vmatpush.msra.mxu0 %v3226
    %3429 = vmatpush.msra.mxu0 %v3220
    %3430 = vmatmul.f32.gmra.mxu0 %v3113
    %v3431 = vpop.f32.mrf.mxu0
    %v3432 = vadd.f32 %v3412, %v3431
    %3433 = vdwg.mxu0
    %3434 = vmatpush.msra.mxu0 %v3215
    %3435 = vmatpush.msra.mxu0 %v3209
    %3436 = vmatpush.msra.mxu0 %v3203
    %3437 = vmatpush.msra.mxu0 %v3197
    %3438 = vmatpush.msra.mxu0 %v3191
    %3439 = vmatpush.msra.mxu0 %v3185
    %3440 = vmatpush.msra.mxu0 %v3179
    %3441 = vmatpush.msra.mxu0 %v3173
    %3442 = vmatpush.msra.mxu0 %v3167
    %3443 = vmatpush.msra.mxu0 %v3161
    %3444 = vmatpush.msra.mxu0 %v3155
    %3445 = vmatpush.msra.mxu0 %v3149
    %3446 = vmatpush.msra.mxu0 %v3143
    %3447 = vmatpush.msra.mxu0 %v3137
    %3448 = vmatpush.msra.mxu0 %v3131
    %3449 = vmatpush.msra.mxu0 %v3125
    %3450 = vmatmul.f32.gmra.mxu0 %v3066
    %v3451 = vpop.f32.mrf.mxu0
    %v3452 = vadd.f32 0.0, %v3451
    %3453 = vdwg.mxu0
    %3454 = vmatpush.msra.mxu0 %v3311
    %3455 = vmatpush.msra.mxu0 %v3305
    %3456 = vmatpush.msra.mxu0 %v3299
    %3457 = vmatpush.msra.mxu0 %v3293
    %3458 = vmatpush.msra.mxu0 %v3287
    %3459 = vmatpush.msra.mxu0 %v3281
    %3460 = vmatpush.msra.mxu0 %v3275
    %3461 = vmatpush.msra.mxu0 %v3269
    %3462 = vmatpush.msra.mxu0 %v3263
    %3463 = vmatpush.msra.mxu0 %v3257
    %3464 = vmatpush.msra.mxu0 %v3251
    %3465 = vmatpush.msra.mxu0 %v3245
    %3466 = vmatpush.msra.mxu0 %v3239
    %3467 = vmatpush.msra.mxu0 %v3233
    %3468 = vmatpush.msra.mxu0 %v3227
    %3469 = vmatpush.msra.mxu0 %v3221
    %3470 = vmatmul.f32.gmra.mxu0 %v3113
    %v3471 = vpop.f32.mrf.mxu0
    %v3472 = vadd.f32 %v3452, %v3471
    %3473 = vdwg.mxu0
    %3474 = vmatpush.msra.mxu0 %v3216
    %3475 = vmatpush.msra.mxu0 %v3210
    %3476 = vmatpush.msra.mxu0 %v3204
    %3477 = vmatpush.msra.mxu0 %v3198
    %3478 = vmatpush.msra.mxu0 %v3192
    %3479 = vmatpush.msra.mxu0 %v3186
    %3480 = vmatpush.msra.mxu0 %v3180
    %3481 = vmatpush.msra.mxu0 %v3174
    %3482 = vmatpush.msra.mxu0 %v3168
    %3483 = vmatpush.msra.mxu0 %v3162
    %3484 = vmatpush.msra.mxu0 %v3156
    %3485 = vmatpush.msra.mxu0 %v3150
    %3486 = vmatpush.msra.mxu0 %v3144
    %3487 = vmatpush.msra.mxu0 %v3138
    %3488 = vmatpush.msra.mxu0 %v3132
    %3489 = vmatpush.msra.mxu0 %v3126
    %3490 = vmatmul.f32.gmra.mxu0 %v3066
    %v3491 = vpop.f32.mrf.mxu0
    %v3492 = vadd.f32 0.0, %v3491
    %3493 = vdwg.mxu0
    %3494 = vmatpush.msra.mxu0 %v3312
    %3495 = vmatpush.msra.mxu0 %v3306
    %3496 = vmatpush.msra.mxu0 %v3300
    %3497 = vmatpush.msra.mxu0 %v3294
    %3498 = vmatpush.msra.mxu0 %v3288
    %3499 = vmatpush.msra.mxu0 %v3282
    %3500 = vmatpush.msra.mxu0 %v3276
    %3501 = vmatpush.msra.mxu0 %v3270
    %3502 = vmatpush.msra.mxu0 %v3264
    %3503 = vmatpush.msra.mxu0 %v3258
    %3504 = vmatpush.msra.mxu0 %v3252
    %3505 = vmatpush.msra.mxu0 %v3246
    %3506 = vmatpush.msra.mxu0 %v3240
    %3507 = vmatpush.msra.mxu0 %v3234
    %3508 = vmatpush.msra.mxu0 %v3228
    %3509 = vmatpush.msra.mxu0 %v3222
    %3510 = vmatmul.f32.gmra.mxu0 %v3113
    %v3511 = vpop.f32.mrf.mxu0
    %v3512 = vadd.f32 %v3492, %v3511
    %3513 = vdwg.mxu0
    %3514 = vmatpush.msra.mxu0 %v3217
    %3515 = vmatpush.msra.mxu0 %v3211
    %3516 = vmatpush.msra.mxu0 %v3205
    %3517 = vmatpush.msra.mxu0 %v3199
    %3518 = vmatpush.msra.mxu0 %v3193
    %3519 = vmatpush.msra.mxu0 %v3187
    %3520 = vmatpush.msra.mxu0 %v3181
    %3521 = vmatpush.msra.mxu0 %v3175
    %3522 = vmatpush.msra.mxu0 %v3169
    %3523 = vmatpush.msra.mxu0 %v3163
    %3524 = vmatpush.msra.mxu0 %v3157
    %3525 = vmatpush.msra.mxu0 %v3151
    %3526 = vmatpush.msra.mxu0 %v3145
    %3527 = vmatpush.msra.mxu0 %v3139
    %3528 = vmatpush.msra.mxu0 %v3133
    %3529 = vmatpush.msra.mxu0 %v3127
    %3530 = vmatmul.f32.gmra.mxu0 %v3066
    %v3531 = vpop.f32.mrf.mxu0
    %v3532 = vadd.f32 0.0, %v3531
    %3533 = vdwg.mxu0
    %3534 = vmatpush.msra.mxu0 %v3313
    %3535 = vmatpush.msra.mxu0 %v3307
    %3536 = vmatpush.msra.mxu0 %v3301
    %3537 = vmatpush.msra.mxu0 %v3295
    %3538 = vmatpush.msra.mxu0 %v3289
    %3539 = vmatpush.msra.mxu0 %v3283
    %3540 = vmatpush.msra.mxu0 %v3277
    %3541 = vmatpush.msra.mxu0 %v3271
    %3542 = vmatpush.msra.mxu0 %v3265
    %3543 = vmatpush.msra.mxu0 %v3259
    %3544 = vmatpush.msra.mxu0 %v3253
    %3545 = vmatpush.msra.mxu0 %v3247
    %3546 = vmatpush.msra.mxu0 %v3241
    %3547 = vmatpush.msra.mxu0 %v3235
    %3548 = vmatpush.msra.mxu0 %v3229
    %3549 = vmatpush.msra.mxu0 %v3223
    %3550 = vmatmul.f32.gmra.mxu0 %v3113
    %v3551 = vpop.f32.mrf.mxu0
    %v3552 = vadd.f32 %v3532, %v3551
    %3553 = vdwg.mxu0
    %v3554 = vadd.f32 %v3116, %v3352
    %v3555 = vxor.u32 %v3554, 2147483648
    %v3556 = vmul.f32 %v3555, 1.442695
    %v3557 = vpow.pop %v3556
    %v3558 = vadd.f32 %v3557, 1.0
    %v3559 = vrcp.pop %v3558
    %v3560 = vmul.f32 %v3558, %v3559
    %v3561 = vsub.f32 1.0, %v3560
    %v3562 = vmul.f32 %v3559, %v3561
    %v3563 = vadd.f32 %v3559, %v3562
    %vm3564 = vweird.f32 %v3558
    %vm3565 = vweird.f32 %v3559
    %vm3566 = vmor %vm3564, %vm3565
    %v3567 = vsel %vm3566, %v3559, %v3563
    %v3568 = vand.u32 2147483647, %v3558
    %vm3569 = vcmp.eq.f32.partialorder %v3568, 8.507059e+37
    %v3570 = vand.u32 %v3558, 2147483648
    %v3571 = vor.u32 1.1754944e-38, %v3570
    %v3572 = vsel %vm3569, %v3571, %v3567
    %v3573 = vmul.f32 1.0, %v3572
    %v3574 = vadd.f32 %v3117, %v3392
    %v3575 = vxor.u32 %v3574, 2147483648
    %v3576 = vmul.f32 %v3575, 1.442695
    %v3577 = vpow.pop %v3576
    %v3578 = vadd.f32 %v3577, 1.0
    %v3579 = vrcp.pop %v3578
    %v3580 = vmul.f32 %v3578, %v3579
    %v3581 = vsub.f32 1.0, %v3580
    %v3582 = vmul.f32 %v3579, %v3581
    %v3583 = vadd.f32 %v3579, %v3582
    %vm3584 = vweird.f32 %v3578
    %vm3585 = vweird.f32 %v3579
    %vm3586 = vmor %vm3584, %vm3585
    %v3587 = vsel %vm3586, %v3579, %v3583
    %v3588 = vand.u32 2147483647, %v3578
    %vm3589 = vcmp.eq.f32.partialorder %v3588, 8.507059e+37
    %v3590 = vand.u32 %v3578, 2147483648
    %v3591 = vor.u32 1.1754944e-38, %v3590
    %v3592 = vsel %vm3589, %v3591, %v3587
    %v3593 = vmul.f32 1.0, %v3592
    %v3594 = vadd.f32 %v3432, %v894
    %v3595 = vmul.f32 %v3573, %v3594
    %v3596 = vadd.f32 %v3118, %v3595
    %v3597 = vtanh.pop %v3596
    %v3598 = vsub.f32 %v3066, %v3597
    %v3599 = vmul.f32 %v3593, %v3598
    %v3600 = vadd.f32 %v3597, %v3599
    %v3601 = vadd.f32 %v3119, %v3472
    %v3602 = vxor.u32 %v3601, 2147483648
    %v3603 = vmul.f32 %v3602, 1.442695
    %v3604 = vpow.pop %v3603
    %v3605 = vadd.f32 %v3604, 1.0
    %v3606 = vrcp.pop %v3605
    %v3607 = vmul.f32 %v3605, %v3606
    %v3608 = vsub.f32 1.0, %v3607
    %v3609 = vmul.f32 %v3606, %v3608
    %v3610 = vadd.f32 %v3606, %v3609
    %vm3611 = vweird.f32 %v3605
    %vm3612 = vweird.f32 %v3606
    %vm3613 = vmor %vm3611, %vm3612
    %v3614 = vsel %vm3613, %v3606, %v3610
    %v3615 = vand.u32 2147483647, %v3605
    %vm3616 = vcmp.eq.f32.partialorder %v3615, 8.507059e+37
    %v3617 = vand.u32 %v3605, 2147483648
    %v3618 = vor.u32 1.1754944e-38, %v3617
    %v3619 = vsel %vm3616, %v3618, %v3614
    %v3620 = vmul.f32 1.0, %v3619
    %v3621 = vadd.f32 %v3120, %v3512
    %v3622 = vxor.u32 %v3621, 2147483648
    %v3623 = vmul.f32 %v3622, 1.442695
    %v3624 = vpow.pop %v3623
    %v3625 = vadd.f32 %v3624, 1.0
    %v3626 = vrcp.pop %v3625
    %v3627 = vmul.f32 %v3625, %v3626
    %v3628 = vsub.f32 1.0, %v3627
    %v3629 = vmul.f32 %v3626, %v3628
    %v3630 = vadd.f32 %v3626, %v3629
    %vm3631 = vweird.f32 %v3625
    %vm3632 = vweird.f32 %v3626
    %vm3633 = vmor %vm3631, %vm3632
    %v3634 = vsel %vm3633, %v3626, %v3630
    %v3635 = vand.u32 2147483647, %v3625
    %vm3636 = vcmp.eq.f32.partialorder %v3635, 8.507059e+37
    %v3637 = vand.u32 %v3625, 2147483648
    %v3638 = vor.u32 1.1754944e-38, %v3637
    %v3639 = vsel %vm3636, %v3638, %v3634
    %v3640 = vmul.f32 1.0, %v3639
    %v3641 = vadd.f32 %v3552, %v944
    %v3642 = vmul.f32 %v3620, %v3641
    %v3643 = vadd.f32 %v3121, %v3642
    %v3644 = vtanh.pop %v3643
    %v3645 = vsub.f32 %v3113, %v3644
    %v3646 = vmul.f32 %v3640, %v3645
    %v3647 = vadd.f32 %v3644, %v3646
    %3648 = vst [vmem:[%s2038] sm:$0xff] %v3600
    %3649 = vst [vmem:[%s2036 + $0x8] sm:$0xff] %v3647
    %v3650 = vld [vmem:[%s964] sm:$0xff]
    %v3651 = vld [vmem:[%s964 + $0x8] sm:$0xff]
    %v3652 = vld [vmem:[%s964 + $0x10] sm:$0xff]
    %v3653 = vld [vmem:[%s958 + $0x18] sm:$0xff]
    %v3654 = vld [vmem:[%s958 + $0x20] sm:$0xff]
    %v3655 = vld [vmem:[%s958 + $0x28] sm:$0xff]
    %v3656 = vld [vmem:[#allocation3] sm:$0xff]
    %v3657 = vld [vmem:[#allocation3 + $0x8] sm:$0xff]
    %v3658 = vld [vmem:[#allocation3 + $0x10] sm:$0xff]
    %v3659 = vld [vmem:[#allocation3 + $0x18] sm:$0xff]
    %v3660 = vld [vmem:[#allocation3 + $0x20] sm:$0xff]
    %v3661 = vld [vmem:[#allocation3 + $0x28] sm:$0xff]
    %v3662 = vld [vmem:[#allocation3 + $0x30] sm:$0xff]
    %v3663 = vld [vmem:[#allocation3 + $0x38] sm:$0xff]
    %v3664 = vld [vmem:[#allocation3 + $0x40] sm:$0xff]
    %v3665 = vld [vmem:[#allocation3 + $0x48] sm:$0xff]
    %v3666 = vld [vmem:[#allocation3 + $0x50] sm:$0xff]
    %v3667 = vld [vmem:[#allocation3 + $0x58] sm:$0xff]
    %v3668 = vld [vmem:[#allocation3 + $0x60] sm:$0xff]
    %v3669 = vld [vmem:[#allocation3 + $0x68] sm:$0xff]
    %v3670 = vld [vmem:[#allocation3 + $0x70] sm:$0xff]
    %v3671 = vld [vmem:[#allocation3 + $0x78] sm:$0xff]
    %v3672 = vld [vmem:[#allocation3 + $0x80] sm:$0xff]
    %v3673 = vld [vmem:[#allocation3 + $0x88] sm:$0xff]
    %v3674 = vld [vmem:[#allocation3 + $0x90] sm:$0xff]
    %v3675 = vld [vmem:[#allocation3 + $0x98] sm:$0xff]
    %v3676 = vld [vmem:[#allocation3 + $0xa0] sm:$0xff]
    %v3677 = vld [vmem:[#allocation3 + $0xa8] sm:$0xff]
    %v3678 = vld [vmem:[#allocation3 + $0xb0] sm:$0xff]
    %v3679 = vld [vmem:[#allocation3 + $0xb8] sm:$0xff]
    %v3680 = vld [vmem:[#allocation3 + $0xc0] sm:$0xff]
    %v3681 = vld [vmem:[#allocation3 + $0xc8] sm:$0xff]
    %v3682 = vld [vmem:[#allocation3 + $0xd0] sm:$0xff]
    %v3683 = vld [vmem:[#allocation3 + $0xd8] sm:$0xff]
    %v3684 = vld [vmem:[#allocation3 + $0xe0] sm:$0xff]
    %v3685 = vld [vmem:[#allocation3 + $0xe8] sm:$0xff]
    %v3686 = vld [vmem:[#allocation3 + $0xf0] sm:$0xff]
    %v3687 = vld [vmem:[#allocation3 + $0xf8] sm:$0xff]
    %v3688 = vld [vmem:[#allocation3 + $0x100] sm:$0xff]
    %v3689 = vld [vmem:[#allocation3 + $0x108] sm:$0xff]
    %v3690 = vld [vmem:[#allocation3 + $0x110] sm:$0xff]
    %v3691 = vld [vmem:[#allocation3 + $0x118] sm:$0xff]
    %v3692 = vld [vmem:[#allocation3 + $0x120] sm:$0xff]
    %v3693 = vld [vmem:[#allocation3 + $0x128] sm:$0xff]
    %v3694 = vld [vmem:[#allocation3 + $0x130] sm:$0xff]
    %v3695 = vld [vmem:[#allocation3 + $0x138] sm:$0xff]
    %v3696 = vld [vmem:[#allocation3 + $0x140] sm:$0xff]
    %v3697 = vld [vmem:[#allocation3 + $0x148] sm:$0xff]
    %v3698 = vld [vmem:[#allocation3 + $0x150] sm:$0xff]
    %v3699 = vld [vmem:[#allocation3 + $0x158] sm:$0xff]
    %v3700 = vld [vmem:[#allocation3 + $0x160] sm:$0xff]
    %v3701 = vld [vmem:[#allocation3 + $0x168] sm:$0xff]
    %v3702 = vld [vmem:[#allocation3 + $0x170] sm:$0xff]
    %v3703 = vld [vmem:[#allocation3 + $0x178] sm:$0xff]
    %v3704 = vld [vmem:[#allocation3 + $0x180] sm:$0xff]
    %v3705 = vld [vmem:[#allocation3 + $0x188] sm:$0xff]
    %v3706 = vld [vmem:[#allocation3 + $0x190] sm:$0xff]
    %v3707 = vld [vmem:[#allocation3 + $0x198] sm:$0xff]
    %v3708 = vld [vmem:[#allocation3 + $0x1a0] sm:$0xff]
    %v3709 = vld [vmem:[#allocation3 + $0x1a8] sm:$0xff]
    %v3710 = vld [vmem:[#allocation3 + $0x1b0] sm:$0xff]
    %v3711 = vld [vmem:[#allocation3 + $0x1b8] sm:$0xff]
    %v3712 = vld [vmem:[#allocation3 + $0x1c0] sm:$0xff]
    %v3713 = vld [vmem:[#allocation3 + $0x1c8] sm:$0xff]
    %v3714 = vld [vmem:[#allocation3 + $0x1d0] sm:$0xff]
    %v3715 = vld [vmem:[#allocation3 + $0x1d8] sm:$0xff]
    %v3716 = vld [vmem:[#allocation3 + $0x1e0] sm:$0xff]
    %v3717 = vld [vmem:[#allocation3 + $0x1e8] sm:$0xff]
    %v3718 = vld [vmem:[#allocation3 + $0x1f0] sm:$0xff]
    %v3719 = vld [vmem:[#allocation3 + $0x1f8] sm:$0xff]
    %v3720 = vld [vmem:[#allocation3 + $0x200] sm:$0xff]
    %v3721 = vld [vmem:[#allocation3 + $0x208] sm:$0xff]
    %v3722 = vld [vmem:[#allocation3 + $0x210] sm:$0xff]
    %v3723 = vld [vmem:[#allocation3 + $0x218] sm:$0xff]
    %v3724 = vld [vmem:[#allocation3 + $0x220] sm:$0xff]
    %v3725 = vld [vmem:[#allocation3 + $0x228] sm:$0xff]
    %v3726 = vld [vmem:[#allocation3 + $0x230] sm:$0xff]
    %v3727 = vld [vmem:[#allocation3 + $0x238] sm:$0xff]
    %v3728 = vld [vmem:[#allocation3 + $0x240] sm:$0xff]
    %v3729 = vld [vmem:[#allocation3 + $0x248] sm:$0xff]
    %v3730 = vld [vmem:[#allocation3 + $0x250] sm:$0xff]
    %v3731 = vld [vmem:[#allocation3 + $0x258] sm:$0xff]
    %v3732 = vld [vmem:[#allocation3 + $0x260] sm:$0xff]
    %v3733 = vld [vmem:[#allocation3 + $0x268] sm:$0xff]
    %v3734 = vld [vmem:[#allocation3 + $0x270] sm:$0xff]
    %v3735 = vld [vmem:[#allocation3 + $0x278] sm:$0xff]
    %v3736 = vld [vmem:[#allocation3 + $0x280] sm:$0xff]
    %v3737 = vld [vmem:[#allocation3 + $0x288] sm:$0xff]
    %v3738 = vld [vmem:[#allocation3 + $0x290] sm:$0xff]
    %v3739 = vld [vmem:[#allocation3 + $0x298] sm:$0xff]
    %v3740 = vld [vmem:[#allocation3 + $0x2a0] sm:$0xff]
    %v3741 = vld [vmem:[#allocation3 + $0x2a8] sm:$0xff]
    %v3742 = vld [vmem:[#allocation3 + $0x2b0] sm:$0xff]
    %v3743 = vld [vmem:[#allocation3 + $0x2b8] sm:$0xff]
    %v3744 = vld [vmem:[#allocation3 + $0x2c0] sm:$0xff]
    %v3745 = vld [vmem:[#allocation3 + $0x2c8] sm:$0xff]
    %v3746 = vld [vmem:[#allocation3 + $0x2d0] sm:$0xff]
    %v3747 = vld [vmem:[#allocation3 + $0x2d8] sm:$0xff]
    %v3748 = vld [vmem:[#allocation3 + $0x2e0] sm:$0xff]
    %v3749 = vld [vmem:[#allocation3 + $0x2e8] sm:$0xff]
    %v3750 = vld [vmem:[#allocation3 + $0x2f0] sm:$0xff]
    %v3751 = vld [vmem:[#allocation3 + $0x2f8] sm:$0xff]
    %v3752 = vld [vmem:[#allocation3 + $0x300] sm:$0xff]
    %v3753 = vld [vmem:[#allocation3 + $0x308] sm:$0xff]
    %v3754 = vld [vmem:[#allocation3 + $0x310] sm:$0xff]
    %v3755 = vld [vmem:[#allocation3 + $0x318] sm:$0xff]
    %v3756 = vld [vmem:[#allocation3 + $0x320] sm:$0xff]
    %v3757 = vld [vmem:[#allocation3 + $0x328] sm:$0xff]
    %v3758 = vld [vmem:[#allocation3 + $0x330] sm:$0xff]
    %v3759 = vld [vmem:[#allocation3 + $0x338] sm:$0xff]
    %v3760 = vld [vmem:[#allocation3 + $0x340] sm:$0xff]
    %v3761 = vld [vmem:[#allocation3 + $0x348] sm:$0xff]
    %v3762 = vld [vmem:[#allocation3 + $0x350] sm:$0xff]
    %v3763 = vld [vmem:[#allocation3 + $0x358] sm:$0xff]
    %v3764 = vld [vmem:[#allocation3 + $0x360] sm:$0xff]
    %v3765 = vld [vmem:[#allocation3 + $0x368] sm:$0xff]
    %v3766 = vld [vmem:[#allocation3 + $0x370] sm:$0xff]
    %v3767 = vld [vmem:[#allocation3 + $0x378] sm:$0xff]
    %v3768 = vld [vmem:[#allocation3 + $0x380] sm:$0xff]
    %v3769 = vld [vmem:[#allocation3 + $0x388] sm:$0xff]
    %v3770 = vld [vmem:[#allocation3 + $0x390] sm:$0xff]
    %v3771 = vld [vmem:[#allocation3 + $0x398] sm:$0xff]
    %v3772 = vld [vmem:[#allocation3 + $0x3a0] sm:$0xff]
    %v3773 = vld [vmem:[#allocation3 + $0x3a8] sm:$0xff]
    %v3774 = vld [vmem:[#allocation3 + $0x3b0] sm:$0xff]
    %v3775 = vld [vmem:[#allocation3 + $0x3b8] sm:$0xff]
    %v3776 = vld [vmem:[#allocation3 + $0x3c0] sm:$0xff]
    %v3777 = vld [vmem:[#allocation3 + $0x3c8] sm:$0xff]
    %v3778 = vld [vmem:[#allocation3 + $0x3d0] sm:$0xff]
    %v3779 = vld [vmem:[#allocation3 + $0x3d8] sm:$0xff]
    %v3780 = vld [vmem:[#allocation3 + $0x3e0] sm:$0xff]
    %v3781 = vld [vmem:[#allocation3 + $0x3e8] sm:$0xff]
    %v3782 = vld [vmem:[#allocation3 + $0x3f0] sm:$0xff]
    %v3783 = vld [vmem:[#allocation3 + $0x3f8] sm:$0xff]
    %v3784 = vld [vmem:[#allocation3 + $0x400] sm:$0xff]
    %v3785 = vld [vmem:[#allocation3 + $0x408] sm:$0xff]
    %v3786 = vld [vmem:[#allocation3 + $0x410] sm:$0xff]
    %v3787 = vld [vmem:[#allocation3 + $0x418] sm:$0xff]
    %v3788 = vld [vmem:[#allocation3 + $0x420] sm:$0xff]
    %v3789 = vld [vmem:[#allocation3 + $0x428] sm:$0xff]
    %v3790 = vld [vmem:[#allocation3 + $0x430] sm:$0xff]
    %v3791 = vld [vmem:[#allocation3 + $0x438] sm:$0xff]
    %v3792 = vld [vmem:[#allocation3 + $0x440] sm:$0xff]
    %v3793 = vld [vmem:[#allocation3 + $0x448] sm:$0xff]
    %v3794 = vld [vmem:[#allocation3 + $0x450] sm:$0xff]
    %v3795 = vld [vmem:[#allocation3 + $0x458] sm:$0xff]
    %v3796 = vld [vmem:[#allocation3 + $0x460] sm:$0xff]
    %v3797 = vld [vmem:[#allocation3 + $0x468] sm:$0xff]
    %v3798 = vld [vmem:[#allocation3 + $0x470] sm:$0xff]
    %v3799 = vld [vmem:[#allocation3 + $0x478] sm:$0xff]
    %v3800 = vld [vmem:[#allocation3 + $0x480] sm:$0xff]
    %v3801 = vld [vmem:[#allocation3 + $0x488] sm:$0xff]
    %v3802 = vld [vmem:[#allocation3 + $0x490] sm:$0xff]
    %v3803 = vld [vmem:[#allocation3 + $0x498] sm:$0xff]
    %v3804 = vld [vmem:[#allocation3 + $0x4a0] sm:$0xff]
    %v3805 = vld [vmem:[#allocation3 + $0x4a8] sm:$0xff]
    %v3806 = vld [vmem:[#allocation3 + $0x4b0] sm:$0xff]
    %v3807 = vld [vmem:[#allocation3 + $0x4b8] sm:$0xff]
    %v3808 = vld [vmem:[#allocation3 + $0x4c0] sm:$0xff]
    %v3809 = vld [vmem:[#allocation3 + $0x4c8] sm:$0xff]
    %v3810 = vld [vmem:[#allocation3 + $0x4d0] sm:$0xff]
    %v3811 = vld [vmem:[#allocation3 + $0x4d8] sm:$0xff]
    %v3812 = vld [vmem:[#allocation3 + $0x4e0] sm:$0xff]
    %v3813 = vld [vmem:[#allocation3 + $0x4e8] sm:$0xff]
    %v3814 = vld [vmem:[#allocation3 + $0x4f0] sm:$0xff]
    %v3815 = vld [vmem:[#allocation3 + $0x4f8] sm:$0xff]
    %v3816 = vld [vmem:[#allocation3 + $0x500] sm:$0xff]
    %v3817 = vld [vmem:[#allocation3 + $0x508] sm:$0xff]
    %v3818 = vld [vmem:[#allocation3 + $0x510] sm:$0xff]
    %v3819 = vld [vmem:[#allocation3 + $0x518] sm:$0xff]
    %v3820 = vld [vmem:[#allocation3 + $0x520] sm:$0xff]
    %v3821 = vld [vmem:[#allocation3 + $0x528] sm:$0xff]
    %v3822 = vld [vmem:[#allocation3 + $0x530] sm:$0xff]
    %v3823 = vld [vmem:[#allocation3 + $0x538] sm:$0xff]
    %v3824 = vld [vmem:[#allocation3 + $0x540] sm:$0xff]
    %v3825 = vld [vmem:[#allocation3 + $0x548] sm:$0xff]
    %v3826 = vld [vmem:[#allocation3 + $0x550] sm:$0xff]
    %v3827 = vld [vmem:[#allocation3 + $0x558] sm:$0xff]
    %v3828 = vld [vmem:[#allocation3 + $0x560] sm:$0xff]
    %v3829 = vld [vmem:[#allocation3 + $0x568] sm:$0xff]
    %v3830 = vld [vmem:[#allocation3 + $0x570] sm:$0xff]
    %v3831 = vld [vmem:[#allocation3 + $0x578] sm:$0xff]
    %v3832 = vld [vmem:[#allocation3 + $0x580] sm:$0xff]
    %v3833 = vld [vmem:[#allocation3 + $0x588] sm:$0xff]
    %v3834 = vld [vmem:[#allocation3 + $0x590] sm:$0xff]
    %v3835 = vld [vmem:[#allocation3 + $0x598] sm:$0xff]
    %v3836 = vld [vmem:[#allocation3 + $0x5a0] sm:$0xff]
    %v3837 = vld [vmem:[#allocation3 + $0x5a8] sm:$0xff]
    %v3838 = vld [vmem:[#allocation3 + $0x5b0] sm:$0xff]
    %v3839 = vld [vmem:[#allocation3 + $0x5b8] sm:$0xff]
    %v3840 = vld [vmem:[#allocation3 + $0x5c0] sm:$0xff]
    %v3841 = vld [vmem:[#allocation3 + $0x5c8] sm:$0xff]
    %v3842 = vld [vmem:[#allocation3 + $0x5d0] sm:$0xff]
    %v3843 = vld [vmem:[#allocation3 + $0x5d8] sm:$0xff]
    %v3844 = vld [vmem:[#allocation3 + $0x5e0] sm:$0xff]
    %v3845 = vld [vmem:[#allocation3 + $0x5e8] sm:$0xff]
    %v3846 = vld [vmem:[#allocation3 + $0x5f0] sm:$0xff]
    %v3847 = vld [vmem:[#allocation3 + $0x5f8] sm:$0xff]
    %3848 = vmatpush.msra.mxu0 %v3746
    %3849 = vmatpush.msra.mxu0 %v3740
    %3850 = vmatpush.msra.mxu0 %v3734
    %3851 = vmatpush.msra.mxu0 %v3728
    %3852 = vmatpush.msra.mxu0 %v3722
    %3853 = vmatpush.msra.mxu0 %v3716
    %3854 = vmatpush.msra.mxu0 %v3710
    %3855 = vmatpush.msra.mxu0 %v3704
    %3856 = vmatpush.msra.mxu0 %v3698
    %3857 = vmatpush.msra.mxu0 %v3692
    %3858 = vmatpush.msra.mxu0 %v3686
    %3859 = vmatpush.msra.mxu0 %v3680
    %3860 = vmatpush.msra.mxu0 %v3674
    %3861 = vmatpush.msra.mxu0 %v3668
    %3862 = vmatpush.msra.mxu0 %v3662
    %3863 = vmatpush.msra.mxu0 %v3656
    %3864 = vmatmul.f32.gmra.mxu0 %v3600
    %v3865 = vpop.f32.mrf.mxu0
    %v3866 = vadd.f32 0.0, %v3865
    %3867 = vdwg.mxu0
    %3868 = vmatpush.msra.mxu0 %v3842
    %3869 = vmatpush.msra.mxu0 %v3836
    %3870 = vmatpush.msra.mxu0 %v3830
    %3871 = vmatpush.msra.mxu0 %v3824
    %3872 = vmatpush.msra.mxu0 %v3818
    %3873 = vmatpush.msra.mxu0 %v3812
    %3874 = vmatpush.msra.mxu0 %v3806
    %3875 = vmatpush.msra.mxu0 %v3800
    %3876 = vmatpush.msra.mxu0 %v3794
    %3877 = vmatpush.msra.mxu0 %v3788
    %3878 = vmatpush.msra.mxu0 %v3782
    %3879 = vmatpush.msra.mxu0 %v3776
    %3880 = vmatpush.msra.mxu0 %v3770
    %3881 = vmatpush.msra.mxu0 %v3764
    %3882 = vmatpush.msra.mxu0 %v3758
    %3883 = vmatpush.msra.mxu0 %v3752
    %3884 = vmatmul.f32.gmra.mxu0 %v3647
    %v3885 = vpop.f32.mrf.mxu0
    %v3886 = vadd.f32 %v3866, %v3885
    %3887 = vdwg.mxu0
    %3888 = vmatpush.msra.mxu0 %v3747
    %3889 = vmatpush.msra.mxu0 %v3741
    %3890 = vmatpush.msra.mxu0 %v3735
    %3891 = vmatpush.msra.mxu0 %v3729
    %3892 = vmatpush.msra.mxu0 %v3723
    %3893 = vmatpush.msra.mxu0 %v3717
    %3894 = vmatpush.msra.mxu0 %v3711
    %3895 = vmatpush.msra.mxu0 %v3705
    %3896 = vmatpush.msra.mxu0 %v3699
    %3897 = vmatpush.msra.mxu0 %v3693
    %3898 = vmatpush.msra.mxu0 %v3687
    %3899 = vmatpush.msra.mxu0 %v3681
    %3900 = vmatpush.msra.mxu0 %v3675
    %3901 = vmatpush.msra.mxu0 %v3669
    %3902 = vmatpush.msra.mxu0 %v3663
    %3903 = vmatpush.msra.mxu0 %v3657
    %3904 = vmatmul.f32.gmra.mxu0 %v3600
    %v3905 = vpop.f32.mrf.mxu0
    %v3906 = vadd.f32 0.0, %v3905
    %3907 = vdwg.mxu0
    %3908 = vmatpush.msra.mxu0 %v3843
    %3909 = vmatpush.msra.mxu0 %v3837
    %3910 = vmatpush.msra.mxu0 %v3831
    %3911 = vmatpush.msra.mxu0 %v3825
    %3912 = vmatpush.msra.mxu0 %v3819
    %3913 = vmatpush.msra.mxu0 %v3813
    %3914 = vmatpush.msra.mxu0 %v3807
    %3915 = vmatpush.msra.mxu0 %v3801
    %3916 = vmatpush.msra.mxu0 %v3795
    %3917 = vmatpush.msra.mxu0 %v3789
    %3918 = vmatpush.msra.mxu0 %v3783
    %3919 = vmatpush.msra.mxu0 %v3777
    %3920 = vmatpush.msra.mxu0 %v3771
    %3921 = vmatpush.msra.mxu0 %v3765
    %3922 = vmatpush.msra.mxu0 %v3759
    %3923 = vmatpush.msra.mxu0 %v3753
    %3924 = vmatmul.f32.gmra.mxu0 %v3647
    %v3925 = vpop.f32.mrf.mxu0
    %v3926 = vadd.f32 %v3906, %v3925
    %3927 = vdwg.mxu0
    %3928 = vmatpush.msra.mxu0 %v3748
    %3929 = vmatpush.msra.mxu0 %v3742
    %3930 = vmatpush.msra.mxu0 %v3736
    %3931 = vmatpush.msra.mxu0 %v3730
    %3932 = vmatpush.msra.mxu0 %v3724
    %3933 = vmatpush.msra.mxu0 %v3718
    %3934 = vmatpush.msra.mxu0 %v3712
    %3935 = vmatpush.msra.mxu0 %v3706
    %3936 = vmatpush.msra.mxu0 %v3700
    %3937 = vmatpush.msra.mxu0 %v3694
    %3938 = vmatpush.msra.mxu0 %v3688
    %3939 = vmatpush.msra.mxu0 %v3682
    %3940 = vmatpush.msra.mxu0 %v3676
    %3941 = vmatpush.msra.mxu0 %v3670
    %3942 = vmatpush.msra.mxu0 %v3664
    %3943 = vmatpush.msra.mxu0 %v3658
    %3944 = vmatmul.f32.gmra.mxu0 %v3600
    %v3945 = vpop.f32.mrf.mxu0
    %v3946 = vadd.f32 0.0, %v3945
    %3947 = vdwg.mxu0
    %3948 = vmatpush.msra.mxu0 %v3844
    %3949 = vmatpush.msra.mxu0 %v3838
    %3950 = vmatpush.msra.mxu0 %v3832
    %3951 = vmatpush.msra.mxu0 %v3826
    %3952 = vmatpush.msra.mxu0 %v3820
    %3953 = vmatpush.msra.mxu0 %v3814
    %3954 = vmatpush.msra.mxu0 %v3808
    %3955 = vmatpush.msra.mxu0 %v3802
    %3956 = vmatpush.msra.mxu0 %v3796
    %3957 = vmatpush.msra.mxu0 %v3790
    %3958 = vmatpush.msra.mxu0 %v3784
    %3959 = vmatpush.msra.mxu0 %v3778
    %3960 = vmatpush.msra.mxu0 %v3772
    %3961 = vmatpush.msra.mxu0 %v3766
    %3962 = vmatpush.msra.mxu0 %v3760
    %3963 = vmatpush.msra.mxu0 %v3754
    %3964 = vmatmul.f32.gmra.mxu0 %v3647
    %v3965 = vpop.f32.mrf.mxu0
    %v3966 = vadd.f32 %v3946, %v3965
    %3967 = vdwg.mxu0
    %3968 = vmatpush.msra.mxu0 %v3749
    %3969 = vmatpush.msra.mxu0 %v3743
    %3970 = vmatpush.msra.mxu0 %v3737
    %3971 = vmatpush.msra.mxu0 %v3731
    %3972 = vmatpush.msra.mxu0 %v3725
    %3973 = vmatpush.msra.mxu0 %v3719
    %3974 = vmatpush.msra.mxu0 %v3713
    %3975 = vmatpush.msra.mxu0 %v3707
    %3976 = vmatpush.msra.mxu0 %v3701
    %3977 = vmatpush.msra.mxu0 %v3695
    %3978 = vmatpush.msra.mxu0 %v3689
    %3979 = vmatpush.msra.mxu0 %v3683
    %3980 = vmatpush.msra.mxu0 %v3677
    %3981 = vmatpush.msra.mxu0 %v3671
    %3982 = vmatpush.msra.mxu0 %v3665
    %3983 = vmatpush.msra.mxu0 %v3659
    %3984 = vmatmul.f32.gmra.mxu0 %v3600
    %v3985 = vpop.f32.mrf.mxu0
    %v3986 = vadd.f32 0.0, %v3985
    %3987 = vdwg.mxu0
    %3988 = vmatpush.msra.mxu0 %v3845
    %3989 = vmatpush.msra.mxu0 %v3839
    %3990 = vmatpush.msra.mxu0 %v3833
    %3991 = vmatpush.msra.mxu0 %v3827
    %3992 = vmatpush.msra.mxu0 %v3821
    %3993 = vmatpush.msra.mxu0 %v3815
    %3994 = vmatpush.msra.mxu0 %v3809
    %3995 = vmatpush.msra.mxu0 %v3803
    %3996 = vmatpush.msra.mxu0 %v3797
    %3997 = vmatpush.msra.mxu0 %v3791
    %3998 = vmatpush.msra.mxu0 %v3785
    %3999 = vmatpush.msra.mxu0 %v3779
    %4000 = vmatpush.msra.mxu0 %v3773
    %4001 = vmatpush.msra.mxu0 %v3767
    %4002 = vmatpush.msra.mxu0 %v3761
    %4003 = vmatpush.msra.mxu0 %v3755
    %4004 = vmatmul.f32.gmra.mxu0 %v3647
    %v4005 = vpop.f32.mrf.mxu0
    %v4006 = vadd.f32 %v3986, %v4005
    %4007 = vdwg.mxu0
    %4008 = vmatpush.msra.mxu0 %v3750
    %4009 = vmatpush.msra.mxu0 %v3744
    %4010 = vmatpush.msra.mxu0 %v3738
    %4011 = vmatpush.msra.mxu0 %v3732
    %4012 = vmatpush.msra.mxu0 %v3726
    %4013 = vmatpush.msra.mxu0 %v3720
    %4014 = vmatpush.msra.mxu0 %v3714
    %4015 = vmatpush.msra.mxu0 %v3708
    %4016 = vmatpush.msra.mxu0 %v3702
    %4017 = vmatpush.msra.mxu0 %v3696
    %4018 = vmatpush.msra.mxu0 %v3690
    %4019 = vmatpush.msra.mxu0 %v3684
    %4020 = vmatpush.msra.mxu0 %v3678
    %4021 = vmatpush.msra.mxu0 %v3672
    %4022 = vmatpush.msra.mxu0 %v3666
    %4023 = vmatpush.msra.mxu0 %v3660
    %4024 = vmatmul.f32.gmra.mxu0 %v3600
    %v4025 = vpop.f32.mrf.mxu0
    %v4026 = vadd.f32 0.0, %v4025
    %4027 = vdwg.mxu0
    %4028 = vmatpush.msra.mxu0 %v3846
    %4029 = vmatpush.msra.mxu0 %v3840
    %4030 = vmatpush.msra.mxu0 %v3834
    %4031 = vmatpush.msra.mxu0 %v3828
    %4032 = vmatpush.msra.mxu0 %v3822
    %4033 = vmatpush.msra.mxu0 %v3816
    %4034 = vmatpush.msra.mxu0 %v3810
    %4035 = vmatpush.msra.mxu0 %v3804
    %4036 = vmatpush.msra.mxu0 %v3798
    %4037 = vmatpush.msra.mxu0 %v3792
    %4038 = vmatpush.msra.mxu0 %v3786
    %4039 = vmatpush.msra.mxu0 %v3780
    %4040 = vmatpush.msra.mxu0 %v3774
    %4041 = vmatpush.msra.mxu0 %v3768
    %4042 = vmatpush.msra.mxu0 %v3762
    %4043 = vmatpush.msra.mxu0 %v3756
    %4044 = vmatmul.f32.gmra.mxu0 %v3647
    %v4045 = vpop.f32.mrf.mxu0
    %v4046 = vadd.f32 %v4026, %v4045
    %4047 = vdwg.mxu0
    %4048 = vmatpush.msra.mxu0 %v3751
    %4049 = vmatpush.msra.mxu0 %v3745
    %4050 = vmatpush.msra.mxu0 %v3739
    %4051 = vmatpush.msra.mxu0 %v3733
    %4052 = vmatpush.msra.mxu0 %v3727
    %4053 = vmatpush.msra.mxu0 %v3721
    %4054 = vmatpush.msra.mxu0 %v3715
    %4055 = vmatpush.msra.mxu0 %v3709
    %4056 = vmatpush.msra.mxu0 %v3703
    %4057 = vmatpush.msra.mxu0 %v3697
    %4058 = vmatpush.msra.mxu0 %v3691
    %4059 = vmatpush.msra.mxu0 %v3685
    %4060 = vmatpush.msra.mxu0 %v3679
    %4061 = vmatpush.msra.mxu0 %v3673
    %4062 = vmatpush.msra.mxu0 %v3667
    %4063 = vmatpush.msra.mxu0 %v3661
    %4064 = vmatmul.f32.gmra.mxu0 %v3600
    %v4065 = vpop.f32.mrf.mxu0
    %v4066 = vadd.f32 0.0, %v4065
    %4067 = vdwg.mxu0
    %4068 = vmatpush.msra.mxu0 %v3847
    %4069 = vmatpush.msra.mxu0 %v3841
    %4070 = vmatpush.msra.mxu0 %v3835
    %4071 = vmatpush.msra.mxu0 %v3829
    %4072 = vmatpush.msra.mxu0 %v3823
    %4073 = vmatpush.msra.mxu0 %v3817
    %4074 = vmatpush.msra.mxu0 %v3811
    %4075 = vmatpush.msra.mxu0 %v3805
    %4076 = vmatpush.msra.mxu0 %v3799
    %4077 = vmatpush.msra.mxu0 %v3793
    %4078 = vmatpush.msra.mxu0 %v3787
    %4079 = vmatpush.msra.mxu0 %v3781
    %4080 = vmatpush.msra.mxu0 %v3775
    %4081 = vmatpush.msra.mxu0 %v3769
    %4082 = vmatpush.msra.mxu0 %v3763
    %4083 = vmatpush.msra.mxu0 %v3757
    %4084 = vmatmul.f32.gmra.mxu0 %v3647
    %v4085 = vpop.f32.mrf.mxu0
    %v4086 = vadd.f32 %v4066, %v4085
    %4087 = vdwg.mxu0
    %v4088 = vadd.f32 %v3650, %v3886
    %v4089 = vxor.u32 %v4088, 2147483648
    %v4090 = vmul.f32 %v4089, 1.442695
    %v4091 = vpow.pop %v4090
    %v4092 = vadd.f32 %v4091, 1.0
    %v4093 = vrcp.pop %v4092
    %v4094 = vmul.f32 %v4092, %v4093
    %v4095 = vsub.f32 1.0, %v4094
    %v4096 = vmul.f32 %v4093, %v4095
    %v4097 = vadd.f32 %v4093, %v4096
    %vm4098 = vweird.f32 %v4092
    %vm4099 = vweird.f32 %v4093
    %vm4100 = vmor %vm4098, %vm4099
    %v4101 = vsel %vm4100, %v4093, %v4097
    %v4102 = vand.u32 2147483647, %v4092
    %vm4103 = vcmp.eq.f32.partialorder %v4102, 8.507059e+37
    %v4104 = vand.u32 %v4092, 2147483648
    %v4105 = vor.u32 1.1754944e-38, %v4104
    %v4106 = vsel %vm4103, %v4105, %v4101
    %v4107 = vmul.f32 1.0, %v4106
    %v4108 = vadd.f32 %v3651, %v3926
    %v4109 = vxor.u32 %v4108, 2147483648
    %v4110 = vmul.f32 %v4109, 1.442695
    %v4111 = vpow.pop %v4110
    %v4112 = vadd.f32 %v4111, 1.0
    %v4113 = vrcp.pop %v4112
    %v4114 = vmul.f32 %v4112, %v4113
    %v4115 = vsub.f32 1.0, %v4114
    %v4116 = vmul.f32 %v4113, %v4115
    %v4117 = vadd.f32 %v4113, %v4116
    %vm4118 = vweird.f32 %v4112
    %vm4119 = vweird.f32 %v4113
    %vm4120 = vmor %vm4118, %vm4119
    %v4121 = vsel %vm4120, %v4113, %v4117
    %v4122 = vand.u32 2147483647, %v4112
    %vm4123 = vcmp.eq.f32.partialorder %v4122, 8.507059e+37
    %v4124 = vand.u32 %v4112, 2147483648
    %v4125 = vor.u32 1.1754944e-38, %v4124
    %v4126 = vsel %vm4123, %v4125, %v4121
    %v4127 = vmul.f32 1.0, %v4126
    %v4128 = vadd.f32 %v3966, %v894
    %v4129 = vmul.f32 %v4107, %v4128
    %v4130 = vadd.f32 %v3652, %v4129
    %v4131 = vtanh.pop %v4130
    %v4132 = vsub.f32 %v3600, %v4131
    %v4133 = vmul.f32 %v4127, %v4132
    %v4134 = vadd.f32 %v4131, %v4133
    %v4135 = vadd.f32 %v3653, %v4006
    %v4136 = vxor.u32 %v4135, 2147483648
    %v4137 = vmul.f32 %v4136, 1.442695
    %v4138 = vpow.pop %v4137
    %v4139 = vadd.f32 %v4138, 1.0
    %v4140 = vrcp.pop %v4139
    %v4141 = vmul.f32 %v4139, %v4140
    %v4142 = vsub.f32 1.0, %v4141
    %v4143 = vmul.f32 %v4140, %v4142
    %v4144 = vadd.f32 %v4140, %v4143
    %vm4145 = vweird.f32 %v4139
    %vm4146 = vweird.f32 %v4140
    %vm4147 = vmor %vm4145, %vm4146
    %v4148 = vsel %vm4147, %v4140, %v4144
    %v4149 = vand.u32 2147483647, %v4139
    %vm4150 = vcmp.eq.f32.partialorder %v4149, 8.507059e+37
    %v4151 = vand.u32 %v4139, 2147483648
    %v4152 = vor.u32 1.1754944e-38, %v4151
    %v4153 = vsel %vm4150, %v4152, %v4148
    %v4154 = vmul.f32 1.0, %v4153
    %v4155 = vadd.f32 %v3654, %v4046
    %v4156 = vxor.u32 %v4155, 2147483648
    %v4157 = vmul.f32 %v4156, 1.442695
    %v4158 = vpow.pop %v4157
    %v4159 = vadd.f32 %v4158, 1.0
    %v4160 = vrcp.pop %v4159
    %v4161 = vmul.f32 %v4159, %v4160
    %v4162 = vsub.f32 1.0, %v4161
    %v4163 = vmul.f32 %v4160, %v4162
    %v4164 = vadd.f32 %v4160, %v4163
    %vm4165 = vweird.f32 %v4159
    %vm4166 = vweird.f32 %v4160
    %vm4167 = vmor %vm4165, %vm4166
    %v4168 = vsel %vm4167, %v4160, %v4164
    %v4169 = vand.u32 2147483647, %v4159
    %vm4170 = vcmp.eq.f32.partialorder %v4169, 8.507059e+37
    %v4171 = vand.u32 %v4159, 2147483648
    %v4172 = vor.u32 1.1754944e-38, %v4171
    %v4173 = vsel %vm4170, %v4172, %v4168
    %v4174 = vmul.f32 1.0, %v4173
    %v4175 = vadd.f32 %v4086, %v944
    %v4176 = vmul.f32 %v4154, %v4175
    %v4177 = vadd.f32 %v3655, %v4176
    %v4178 = vtanh.pop %v4177
    %v4179 = vsub.f32 %v3647, %v4178
    %v4180 = vmul.f32 %v4174, %v4179
    %v4181 = vadd.f32 %v4178, %v4180
    %4182 = vst [vmem:[%s1496] sm:$0xff] %v4134
    %4183 = vst [vmem:[%s1494 + $0x8] sm:$0xff] %v4181
    %v4184 = vld [vmem:[%s417] sm:$0xff]
    %v4185 = vld [vmem:[%s417 + $0x8] sm:$0xff]
    %v4186 = vld [vmem:[%s417 + $0x10] sm:$0xff]
    %v4187 = vld [vmem:[%s411 + $0x18] sm:$0xff]
    %v4188 = vld [vmem:[%s411 + $0x20] sm:$0xff]
    %v4189 = vld [vmem:[%s411 + $0x28] sm:$0xff]
    %v4190 = vld [vmem:[#allocation3] sm:$0xff]
    %v4191 = vld [vmem:[#allocation3 + $0x8] sm:$0xff]
    %v4192 = vld [vmem:[#allocation3 + $0x10] sm:$0xff]
    %v4193 = vld [vmem:[#allocation3 + $0x18] sm:$0xff]
    %v4194 = vld [vmem:[#allocation3 + $0x20] sm:$0xff]
    %v4195 = vld [vmem:[#allocation3 + $0x28] sm:$0xff]
    %v4196 = vld [vmem:[#allocation3 + $0x30] sm:$0xff]
    %v4197 = vld [vmem:[#allocation3 + $0x38] sm:$0xff]
    %v4198 = vld [vmem:[#allocation3 + $0x40] sm:$0xff]
    %v4199 = vld [vmem:[#allocation3 + $0x48] sm:$0xff]
    %v4200 = vld [vmem:[#allocation3 + $0x50] sm:$0xff]
    %v4201 = vld [vmem:[#allocation3 + $0x58] sm:$0xff]
    %v4202 = vld [vmem:[#allocation3 + $0x60] sm:$0xff]
    %v4203 = vld [vmem:[#allocation3 + $0x68] sm:$0xff]
    %v4204 = vld [vmem:[#allocation3 + $0x70] sm:$0xff]
    %v4205 = vld [vmem:[#allocation3 + $0x78] sm:$0xff]
    %v4206 = vld [vmem:[#allocation3 + $0x80] sm:$0xff]
    %v4207 = vld [vmem:[#allocation3 + $0x88] sm:$0xff]
    %v4208 = vld [vmem:[#allocation3 + $0x90] sm:$0xff]
    %v4209 = vld [vmem:[#allocation3 + $0x98] sm:$0xff]
    %v4210 = vld [vmem:[#allocation3 + $0xa0] sm:$0xff]
    %v4211 = vld [vmem:[#allocation3 + $0xa8] sm:$0xff]
    %v4212 = vld [vmem:[#allocation3 + $0xb0] sm:$0xff]
    %v4213 = vld [vmem:[#allocation3 + $0xb8] sm:$0xff]
    %v4214 = vld [vmem:[#allocation3 + $0xc0] sm:$0xff]
    %v4215 = vld [vmem:[#allocation3 + $0xc8] sm:$0xff]
    %v4216 = vld [vmem:[#allocation3 + $0xd0] sm:$0xff]
    %v4217 = vld [vmem:[#allocation3 + $0xd8] sm:$0xff]
    %v4218 = vld [vmem:[#allocation3 + $0xe0] sm:$0xff]
    %v4219 = vld [vmem:[#allocation3 + $0xe8] sm:$0xff]
    %v4220 = vld [vmem:[#allocation3 + $0xf0] sm:$0xff]
    %v4221 = vld [vmem:[#allocation3 + $0xf8] sm:$0xff]
    %v4222 = vld [vmem:[#allocation3 + $0x100] sm:$0xff]
    %v4223 = vld [vmem:[#allocation3 + $0x108] sm:$0xff]
    %v4224 = vld [vmem:[#allocation3 + $0x110] sm:$0xff]
    %v4225 = vld [vmem:[#allocation3 + $0x118] sm:$0xff]
    %v4226 = vld [vmem:[#allocation3 + $0x120] sm:$0xff]
    %v4227 = vld [vmem:[#allocation3 + $0x128] sm:$0xff]
    %v4228 = vld [vmem:[#allocation3 + $0x130] sm:$0xff]
    %v4229 = vld [vmem:[#allocation3 + $0x138] sm:$0xff]
    %v4230 = vld [vmem:[#allocation3 + $0x140] sm:$0xff]
    %v4231 = vld [vmem:[#allocation3 + $0x148] sm:$0xff]
    %v4232 = vld [vmem:[#allocation3 + $0x150] sm:$0xff]
    %v4233 = vld [vmem:[#allocation3 + $0x158] sm:$0xff]
    %v4234 = vld [vmem:[#allocation3 + $0x160] sm:$0xff]
    %v4235 = vld [vmem:[#allocation3 + $0x168] sm:$0xff]
    %v4236 = vld [vmem:[#allocation3 + $0x170] sm:$0xff]
    %v4237 = vld [vmem:[#allocation3 + $0x178] sm:$0xff]
    %v4238 = vld [vmem:[#allocation3 + $0x180] sm:$0xff]
    %v4239 = vld [vmem:[#allocation3 + $0x188] sm:$0xff]
    %v4240 = vld [vmem:[#allocation3 + $0x190] sm:$0xff]
    %v4241 = vld [vmem:[#allocation3 + $0x198] sm:$0xff]
    %v4242 = vld [vmem:[#allocation3 + $0x1a0] sm:$0xff]
    %v4243 = vld [vmem:[#allocation3 + $0x1a8] sm:$0xff]
    %v4244 = vld [vmem:[#allocation3 + $0x1b0] sm:$0xff]
    %v4245 = vld [vmem:[#allocation3 + $0x1b8] sm:$0xff]
    %v4246 = vld [vmem:[#allocation3 + $0x1c0] sm:$0xff]
    %v4247 = vld [vmem:[#allocation3 + $0x1c8] sm:$0xff]
    %v4248 = vld [vmem:[#allocation3 + $0x1d0] sm:$0xff]
    %v4249 = vld [vmem:[#allocation3 + $0x1d8] sm:$0xff]
    %v4250 = vld [vmem:[#allocation3 + $0x1e0] sm:$0xff]
    %v4251 = vld [vmem:[#allocation3 + $0x1e8] sm:$0xff]
    %v4252 = vld [vmem:[#allocation3 + $0x1f0] sm:$0xff]
    %v4253 = vld [vmem:[#allocation3 + $0x1f8] sm:$0xff]
    %v4254 = vld [vmem:[#allocation3 + $0x200] sm:$0xff]
    %v4255 = vld [vmem:[#allocation3 + $0x208] sm:$0xff]
    %v4256 = vld [vmem:[#allocation3 + $0x210] sm:$0xff]
    %v4257 = vld [vmem:[#allocation3 + $0x218] sm:$0xff]
    %v4258 = vld [vmem:[#allocation3 + $0x220] sm:$0xff]
    %v4259 = vld [vmem:[#allocation3 + $0x228] sm:$0xff]
    %v4260 = vld [vmem:[#allocation3 + $0x230] sm:$0xff]
    %v4261 = vld [vmem:[#allocation3 + $0x238] sm:$0xff]
    %v4262 = vld [vmem:[#allocation3 + $0x240] sm:$0xff]
    %v4263 = vld [vmem:[#allocation3 + $0x248] sm:$0xff]
    %v4264 = vld [vmem:[#allocation3 + $0x250] sm:$0xff]
    %v4265 = vld [vmem:[#allocation3 + $0x258] sm:$0xff]
    %v4266 = vld [vmem:[#allocation3 + $0x260] sm:$0xff]
    %v4267 = vld [vmem:[#allocation3 + $0x268] sm:$0xff]
    %v4268 = vld [vmem:[#allocation3 + $0x270] sm:$0xff]
    %v4269 = vld [vmem:[#allocation3 + $0x278] sm:$0xff]
    %v4270 = vld [vmem:[#allocation3 + $0x280] sm:$0xff]
    %v4271 = vld [vmem:[#allocation3 + $0x288] sm:$0xff]
    %v4272 = vld [vmem:[#allocation3 + $0x290] sm:$0xff]
    %v4273 = vld [vmem:[#allocation3 + $0x298] sm:$0xff]
    %v4274 = vld [vmem:[#allocation3 + $0x2a0] sm:$0xff]
    %v4275 = vld [vmem:[#allocation3 + $0x2a8] sm:$0xff]
    %v4276 = vld [vmem:[#allocation3 + $0x2b0] sm:$0xff]
    %v4277 = vld [vmem:[#allocation3 + $0x2b8] sm:$0xff]
    %v4278 = vld [vmem:[#allocation3 + $0x2c0] sm:$0xff]
    %v4279 = vld [vmem:[#allocation3 + $0x2c8] sm:$0xff]
    %v4280 = vld [vmem:[#allocation3 + $0x2d0] sm:$0xff]
    %v4281 = vld [vmem:[#allocation3 + $0x2d8] sm:$0xff]
    %v4282 = vld [vmem:[#allocation3 + $0x2e0] sm:$0xff]
    %v4283 = vld [vmem:[#allocation3 + $0x2e8] sm:$0xff]
    %v4284 = vld [vmem:[#allocation3 + $0x2f0] sm:$0xff]
    %v4285 = vld [vmem:[#allocation3 + $0x2f8] sm:$0xff]
    %v4286 = vld [vmem:[#allocation3 + $0x300] sm:$0xff]
    %v4287 = vld [vmem:[#allocation3 + $0x308] sm:$0xff]
    %v4288 = vld [vmem:[#allocation3 + $0x310] sm:$0xff]
    %v4289 = vld [vmem:[#allocation3 + $0x318] sm:$0xff]
    %v4290 = vld [vmem:[#allocation3 + $0x320] sm:$0xff]
    %v4291 = vld [vmem:[#allocation3 + $0x328] sm:$0xff]
    %v4292 = vld [vmem:[#allocation3 + $0x330] sm:$0xff]
    %v4293 = vld [vmem:[#allocation3 + $0x338] sm:$0xff]
    %v4294 = vld [vmem:[#allocation3 + $0x340] sm:$0xff]
    %v4295 = vld [vmem:[#allocation3 + $0x348] sm:$0xff]
    %v4296 = vld [vmem:[#allocation3 + $0x350] sm:$0xff]
    %v4297 = vld [vmem:[#allocation3 + $0x358] sm:$0xff]
    %v4298 = vld [vmem:[#allocation3 + $0x360] sm:$0xff]
    %v4299 = vld [vmem:[#allocation3 + $0x368] sm:$0xff]
    %v4300 = vld [vmem:[#allocation3 + $0x370] sm:$0xff]
    %v4301 = vld [vmem:[#allocation3 + $0x378] sm:$0xff]
    %v4302 = vld [vmem:[#allocation3 + $0x380] sm:$0xff]
    %v4303 = vld [vmem:[#allocation3 + $0x388] sm:$0xff]
    %v4304 = vld [vmem:[#allocation3 + $0x390] sm:$0xff]
    %v4305 = vld [vmem:[#allocation3 + $0x398] sm:$0xff]
    %v4306 = vld [vmem:[#allocation3 + $0x3a0] sm:$0xff]
    %v4307 = vld [vmem:[#allocation3 + $0x3a8] sm:$0xff]
    %v4308 = vld [vmem:[#allocation3 + $0x3b0] sm:$0xff]
    %v4309 = vld [vmem:[#allocation3 + $0x3b8] sm:$0xff]
    %v4310 = vld [vmem:[#allocation3 + $0x3c0] sm:$0xff]
    %v4311 = vld [vmem:[#allocation3 + $0x3c8] sm:$0xff]
    %v4312 = vld [vmem:[#allocation3 + $0x3d0] sm:$0xff]
    %v4313 = vld [vmem:[#allocation3 + $0x3d8] sm:$0xff]
    %v4314 = vld [vmem:[#allocation3 + $0x3e0] sm:$0xff]
    %v4315 = vld [vmem:[#allocation3 + $0x3e8] sm:$0xff]
    %v4316 = vld [vmem:[#allocation3 + $0x3f0] sm:$0xff]
    %v4317 = vld [vmem:[#allocation3 + $0x3f8] sm:$0xff]
    %v4318 = vld [vmem:[#allocation3 + $0x400] sm:$0xff]
    %v4319 = vld [vmem:[#allocation3 + $0x408] sm:$0xff]
    %v4320 = vld [vmem:[#allocation3 + $0x410] sm:$0xff]
    %v4321 = vld [vmem:[#allocation3 + $0x418] sm:$0xff]
    %v4322 = vld [vmem:[#allocation3 + $0x420] sm:$0xff]
    %v4323 = vld [vmem:[#allocation3 + $0x428] sm:$0xff]
    %v4324 = vld [vmem:[#allocation3 + $0x430] sm:$0xff]
    %v4325 = vld [vmem:[#allocation3 + $0x438] sm:$0xff]
    %v4326 = vld [vmem:[#allocation3 + $0x440] sm:$0xff]
    %v4327 = vld [vmem:[#allocation3 + $0x448] sm:$0xff]
    %v4328 = vld [vmem:[#allocation3 + $0x450] sm:$0xff]
    %v4329 = vld [vmem:[#allocation3 + $0x458] sm:$0xff]
    %v4330 = vld [vmem:[#allocation3 + $0x460] sm:$0xff]
    %v4331 = vld [vmem:[#allocation3 + $0x468] sm:$0xff]
    %v4332 = vld [vmem:[#allocation3 + $0x470] sm:$0xff]
    %v4333 = vld [vmem:[#allocation3 + $0x478] sm:$0xff]
    %v4334 = vld [vmem:[#allocation3 + $0x480] sm:$0xff]
    %v4335 = vld [vmem:[#allocation3 + $0x488] sm:$0xff]
    %v4336 = vld [vmem:[#allocation3 + $0x490] sm:$0xff]
    %v4337 = vld [vmem:[#allocation3 + $0x498] sm:$0xff]
    %v4338 = vld [vmem:[#allocation3 + $0x4a0] sm:$0xff]
    %v4339 = vld [vmem:[#allocation3 + $0x4a8] sm:$0xff]
    %v4340 = vld [vmem:[#allocation3 + $0x4b0] sm:$0xff]
    %v4341 = vld [vmem:[#allocation3 + $0x4b8] sm:$0xff]
    %v4342 = vld [vmem:[#allocation3 + $0x4c0] sm:$0xff]
    %v4343 = vld [vmem:[#allocation3 + $0x4c8] sm:$0xff]
    %v4344 = vld [vmem:[#allocation3 + $0x4d0] sm:$0xff]
    %v4345 = vld [vmem:[#allocation3 + $0x4d8] sm:$0xff]
    %v4346 = vld [vmem:[#allocation3 + $0x4e0] sm:$0xff]
    %v4347 = vld [vmem:[#allocation3 + $0x4e8] sm:$0xff]
    %v4348 = vld [vmem:[#allocation3 + $0x4f0] sm:$0xff]
    %v4349 = vld [vmem:[#allocation3 + $0x4f8] sm:$0xff]
    %v4350 = vld [vmem:[#allocation3 + $0x500] sm:$0xff]
    %v4351 = vld [vmem:[#allocation3 + $0x508] sm:$0xff]
    %v4352 = vld [vmem:[#allocation3 + $0x510] sm:$0xff]
    %v4353 = vld [vmem:[#allocation3 + $0x518] sm:$0xff]
    %v4354 = vld [vmem:[#allocation3 + $0x520] sm:$0xff]
    %v4355 = vld [vmem:[#allocation3 + $0x528] sm:$0xff]
    %v4356 = vld [vmem:[#allocation3 + $0x530] sm:$0xff]
    %v4357 = vld [vmem:[#allocation3 + $0x538] sm:$0xff]
    %v4358 = vld [vmem:[#allocation3 + $0x540] sm:$0xff]
    %v4359 = vld [vmem:[#allocation3 + $0x548] sm:$0xff]
    %v4360 = vld [vmem:[#allocation3 + $0x550] sm:$0xff]
    %v4361 = vld [vmem:[#allocation3 + $0x558] sm:$0xff]
    %v4362 = vld [vmem:[#allocation3 + $0x560] sm:$0xff]
    %v4363 = vld [vmem:[#allocation3 + $0x568] sm:$0xff]
    %v4364 = vld [vmem:[#allocation3 + $0x570] sm:$0xff]
    %v4365 = vld [vmem:[#allocation3 + $0x578] sm:$0xff]
    %v4366 = vld [vmem:[#allocation3 + $0x580] sm:$0xff]
    %v4367 = vld [vmem:[#allocation3 + $0x588] sm:$0xff]
    %v4368 = vld [vmem:[#allocation3 + $0x590] sm:$0xff]
    %v4369 = vld [vmem:[#allocation3 + $0x598] sm:$0xff]
    %v4370 = vld [vmem:[#allocation3 + $0x5a0] sm:$0xff]
    %v4371 = vld [vmem:[#allocation3 + $0x5a8] sm:$0xff]
    %v4372 = vld [vmem:[#allocation3 + $0x5b0] sm:$0xff]
    %v4373 = vld [vmem:[#allocation3 + $0x5b8] sm:$0xff]
    %v4374 = vld [vmem:[#allocation3 + $0x5c0] sm:$0xff]
    %v4375 = vld [vmem:[#allocation3 + $0x5c8] sm:$0xff]
    %v4376 = vld [vmem:[#allocation3 + $0x5d0] sm:$0xff]
    %v4377 = vld [vmem:[#allocation3 + $0x5d8] sm:$0xff]
    %v4378 = vld [vmem:[#allocation3 + $0x5e0] sm:$0xff]
    %v4379 = vld [vmem:[#allocation3 + $0x5e8] sm:$0xff]
    %v4380 = vld [vmem:[#allocation3 + $0x5f0] sm:$0xff]
    %v4381 = vld [vmem:[#allocation3 + $0x5f8] sm:$0xff]
    %4382 = vmatpush.msra.mxu0 %v4280
    %4383 = vmatpush.msra.mxu0 %v4274
    %4384 = vmatpush.msra.mxu0 %v4268
    %4385 = vmatpush.msra.mxu0 %v4262
    %4386 = vmatpush.msra.mxu0 %v4256
    %4387 = vmatpush.msra.mxu0 %v4250
    %4388 = vmatpush.msra.mxu0 %v4244
    %4389 = vmatpush.msra.mxu0 %v4238
    %4390 = vmatpush.msra.mxu0 %v4232
    %4391 = vmatpush.msra.mxu0 %v4226
    %4392 = vmatpush.msra.mxu0 %v4220
    %4393 = vmatpush.msra.mxu0 %v4214
    %4394 = vmatpush.msra.mxu0 %v4208
    %4395 = vmatpush.msra.mxu0 %v4202
    %4396 = vmatpush.msra.mxu0 %v4196
    %4397 = vmatpush.msra.mxu0 %v4190
    %4398 = vmatmul.f32.gmra.mxu0 %v4134
    %v4399 = vpop.f32.mrf.mxu0
    %v4400 = vadd.f32 0.0, %v4399
    %4401 = vdwg.mxu0
    %4402 = vmatpush.msra.mxu0 %v4376
    %4403 = vmatpush.msra.mxu0 %v4370
    %4404 = vmatpush.msra.mxu0 %v4364
    %4405 = vmatpush.msra.mxu0 %v4358
    %4406 = vmatpush.msra.mxu0 %v4352
    %4407 = vmatpush.msra.mxu0 %v4346
    %4408 = vmatpush.msra.mxu0 %v4340
    %4409 = vmatpush.msra.mxu0 %v4334
    %4410 = vmatpush.msra.mxu0 %v4328
    %4411 = vmatpush.msra.mxu0 %v4322
    %4412 = vmatpush.msra.mxu0 %v4316
    %4413 = vmatpush.msra.mxu0 %v4310
    %4414 = vmatpush.msra.mxu0 %v4304
    %4415 = vmatpush.msra.mxu0 %v4298
    %4416 = vmatpush.msra.mxu0 %v4292
    %4417 = vmatpush.msra.mxu0 %v4286
    %4418 = vmatmul.f32.gmra.mxu0 %v4181
    %v4419 = vpop.f32.mrf.mxu0
    %v4420 = vadd.f32 %v4400, %v4419
    %4421 = vdwg.mxu0
    %4422 = vmatpush.msra.mxu0 %v4281
    %4423 = vmatpush.msra.mxu0 %v4275
    %4424 = vmatpush.msra.mxu0 %v4269
    %4425 = vmatpush.msra.mxu0 %v4263
    %4426 = vmatpush.msra.mxu0 %v4257
    %4427 = vmatpush.msra.mxu0 %v4251
    %4428 = vmatpush.msra.mxu0 %v4245
    %4429 = vmatpush.msra.mxu0 %v4239
    %4430 = vmatpush.msra.mxu0 %v4233
    %4431 = vmatpush.msra.mxu0 %v4227
    %4432 = vmatpush.msra.mxu0 %v4221
    %4433 = vmatpush.msra.mxu0 %v4215
    %4434 = vmatpush.msra.mxu0 %v4209
    %4435 = vmatpush.msra.mxu0 %v4203
    %4436 = vmatpush.msra.mxu0 %v4197
    %4437 = vmatpush.msra.mxu0 %v4191
    %4438 = vmatmul.f32.gmra.mxu0 %v4134
    %v4439 = vpop.f32.mrf.mxu0
    %v4440 = vadd.f32 0.0, %v4439
    %4441 = vdwg.mxu0
    %4442 = vmatpush.msra.mxu0 %v4377
    %4443 = vmatpush.msra.mxu0 %v4371
    %4444 = vmatpush.msra.mxu0 %v4365
    %4445 = vmatpush.msra.mxu0 %v4359
    %4446 = vmatpush.msra.mxu0 %v4353
    %4447 = vmatpush.msra.mxu0 %v4347
    %4448 = vmatpush.msra.mxu0 %v4341
    %4449 = vmatpush.msra.mxu0 %v4335
    %4450 = vmatpush.msra.mxu0 %v4329
    %4451 = vmatpush.msra.mxu0 %v4323
    %4452 = vmatpush.msra.mxu0 %v4317
    %4453 = vmatpush.msra.mxu0 %v4311
    %4454 = vmatpush.msra.mxu0 %v4305
    %4455 = vmatpush.msra.mxu0 %v4299
    %4456 = vmatpush.msra.mxu0 %v4293
    %4457 = vmatpush.msra.mxu0 %v4287
    %4458 = vmatmul.f32.gmra.mxu0 %v4181
    %v4459 = vpop.f32.mrf.mxu0
    %v4460 = vadd.f32 %v4440, %v4459
    %4461 = vdwg.mxu0
    %4462 = vmatpush.msra.mxu0 %v4282
    %4463 = vmatpush.msra.mxu0 %v4276
    %4464 = vmatpush.msra.mxu0 %v4270
    %4465 = vmatpush.msra.mxu0 %v4264
    %4466 = vmatpush.msra.mxu0 %v4258
    %4467 = vmatpush.msra.mxu0 %v4252
    %4468 = vmatpush.msra.mxu0 %v4246
    %4469 = vmatpush.msra.mxu0 %v4240
    %4470 = vmatpush.msra.mxu0 %v4234
    %4471 = vmatpush.msra.mxu0 %v4228
    %4472 = vmatpush.msra.mxu0 %v4222
    %4473 = vmatpush.msra.mxu0 %v4216
    %4474 = vmatpush.msra.mxu0 %v4210
    %4475 = vmatpush.msra.mxu0 %v4204
    %4476 = vmatpush.msra.mxu0 %v4198
    %4477 = vmatpush.msra.mxu0 %v4192
    %4478 = vmatmul.f32.gmra.mxu0 %v4134
    %v4479 = vpop.f32.mrf.mxu0
    %v4480 = vadd.f32 0.0, %v4479
    %4481 = vdwg.mxu0
    %4482 = vmatpush.msra.mxu0 %v4378
    %4483 = vmatpush.msra.mxu0 %v4372
    %4484 = vmatpush.msra.mxu0 %v4366
    %4485 = vmatpush.msra.mxu0 %v4360
    %4486 = vmatpush.msra.mxu0 %v4354
    %4487 = vmatpush.msra.mxu0 %v4348
    %4488 = vmatpush.msra.mxu0 %v4342
    %4489 = vmatpush.msra.mxu0 %v4336
    %4490 = vmatpush.msra.mxu0 %v4330
    %4491 = vmatpush.msra.mxu0 %v4324
    %4492 = vmatpush.msra.mxu0 %v4318
    %4493 = vmatpush.msra.mxu0 %v4312
    %4494 = vmatpush.msra.mxu0 %v4306
    %4495 = vmatpush.msra.mxu0 %v4300
    %4496 = vmatpush.msra.mxu0 %v4294
    %4497 = vmatpush.msra.mxu0 %v4288
    %4498 = vmatmul.f32.gmra.mxu0 %v4181
    %v4499 = vpop.f32.mrf.mxu0
    %v4500 = vadd.f32 %v4480, %v4499
    %4501 = vdwg.mxu0
    %4502 = vmatpush.msra.mxu0 %v4283
    %4503 = vmatpush.msra.mxu0 %v4277
    %4504 = vmatpush.msra.mxu0 %v4271
    %4505 = vmatpush.msra.mxu0 %v4265
    %4506 = vmatpush.msra.mxu0 %v4259
    %4507 = vmatpush.msra.mxu0 %v4253
    %4508 = vmatpush.msra.mxu0 %v4247
    %4509 = vmatpush.msra.mxu0 %v4241
    %4510 = vmatpush.msra.mxu0 %v4235
    %4511 = vmatpush.msra.mxu0 %v4229
    %4512 = vmatpush.msra.mxu0 %v4223
    %4513 = vmatpush.msra.mxu0 %v4217
    %4514 = vmatpush.msra.mxu0 %v4211
    %4515 = vmatpush.msra.mxu0 %v4205
    %4516 = vmatpush.msra.mxu0 %v4199
    %4517 = vmatpush.msra.mxu0 %v4193
    %4518 = vmatmul.f32.gmra.mxu0 %v4134
    %v4519 = vpop.f32.mrf.mxu0
    %v4520 = vadd.f32 0.0, %v4519
    %4521 = vdwg.mxu0
    %4522 = vmatpush.msra.mxu0 %v4379
    %4523 = vmatpush.msra.mxu0 %v4373
    %4524 = vmatpush.msra.mxu0 %v4367
    %4525 = vmatpush.msra.mxu0 %v4361
    %4526 = vmatpush.msra.mxu0 %v4355
    %4527 = vmatpush.msra.mxu0 %v4349
    %4528 = vmatpush.msra.mxu0 %v4343
    %4529 = vmatpush.msra.mxu0 %v4337
    %4530 = vmatpush.msra.mxu0 %v4331
    %4531 = vmatpush.msra.mxu0 %v4325
    %4532 = vmatpush.msra.mxu0 %v4319
    %4533 = vmatpush.msra.mxu0 %v4313
    %4534 = vmatpush.msra.mxu0 %v4307
    %4535 = vmatpush.msra.mxu0 %v4301
    %4536 = vmatpush.msra.mxu0 %v4295
    %4537 = vmatpush.msra.mxu0 %v4289
    %4538 = vmatmul.f32.gmra.mxu0 %v4181
    %v4539 = vpop.f32.mrf.mxu0
    %v4540 = vadd.f32 %v4520, %v4539
    %4541 = vdwg.mxu0
    %4542 = vmatpush.msra.mxu0 %v4284
    %4543 = vmatpush.msra.mxu0 %v4278
    %4544 = vmatpush.msra.mxu0 %v4272
    %4545 = vmatpush.msra.mxu0 %v4266
    %4546 = vmatpush.msra.mxu0 %v4260
    %4547 = vmatpush.msra.mxu0 %v4254
    %4548 = vmatpush.msra.mxu0 %v4248
    %4549 = vmatpush.msra.mxu0 %v4242
    %4550 = vmatpush.msra.mxu0 %v4236
    %4551 = vmatpush.msra.mxu0 %v4230
    %4552 = vmatpush.msra.mxu0 %v4224
    %4553 = vmatpush.msra.mxu0 %v4218
    %4554 = vmatpush.msra.mxu0 %v4212
    %4555 = vmatpush.msra.mxu0 %v4206
    %4556 = vmatpush.msra.mxu0 %v4200
    %4557 = vmatpush.msra.mxu0 %v4194
    %4558 = vmatmul.f32.gmra.mxu0 %v4134
    %v4559 = vpop.f32.mrf.mxu0
    %v4560 = vadd.f32 0.0, %v4559
    %4561 = vdwg.mxu0
    %4562 = vmatpush.msra.mxu0 %v4380
    %4563 = vmatpush.msra.mxu0 %v4374
    %4564 = vmatpush.msra.mxu0 %v4368
    %4565 = vmatpush.msra.mxu0 %v4362
    %4566 = vmatpush.msra.mxu0 %v4356
    %4567 = vmatpush.msra.mxu0 %v4350
    %4568 = vmatpush.msra.mxu0 %v4344
    %4569 = vmatpush.msra.mxu0 %v4338
    %4570 = vmatpush.msra.mxu0 %v4332
    %4571 = vmatpush.msra.mxu0 %v4326
    %4572 = vmatpush.msra.mxu0 %v4320
    %4573 = vmatpush.msra.mxu0 %v4314
    %4574 = vmatpush.msra.mxu0 %v4308
    %4575 = vmatpush.msra.mxu0 %v4302
    %4576 = vmatpush.msra.mxu0 %v4296
    %4577 = vmatpush.msra.mxu0 %v4290
    %4578 = vmatmul.f32.gmra.mxu0 %v4181
    %v4579 = vpop.f32.mrf.mxu0
    %v4580 = vadd.f32 %v4560, %v4579
    %4581 = vdwg.mxu0
    %4582 = vmatpush.msra.mxu0 %v4285
    %4583 = vmatpush.msra.mxu0 %v4279
    %4584 = vmatpush.msra.mxu0 %v4273
    %4585 = vmatpush.msra.mxu0 %v4267
    %4586 = vmatpush.msra.mxu0 %v4261
    %4587 = vmatpush.msra.mxu0 %v4255
    %4588 = vmatpush.msra.mxu0 %v4249
    %4589 = vmatpush.msra.mxu0 %v4243
    %4590 = vmatpush.msra.mxu0 %v4237
    %4591 = vmatpush.msra.mxu0 %v4231
    %4592 = vmatpush.msra.mxu0 %v4225
    %4593 = vmatpush.msra.mxu0 %v4219
    %4594 = vmatpush.msra.mxu0 %v4213
    %4595 = vmatpush.msra.mxu0 %v4207
    %4596 = vmatpush.msra.mxu0 %v4201
    %4597 = vmatpush.msra.mxu0 %v4195
    %4598 = vmatmul.f32.gmra.mxu0 %v4134
    %v4599 = vpop.f32.mrf.mxu0
    %v4600 = vadd.f32 0.0, %v4599
    %4601 = vdwg.mxu0
    %4602 = vmatpush.msra.mxu0 %v4381
    %4603 = vmatpush.msra.mxu0 %v4375
    %4604 = vmatpush.msra.mxu0 %v4369
    %4605 = vmatpush.msra.mxu0 %v4363
    %4606 = vmatpush.msra.mxu0 %v4357
    %4607 = vmatpush.msra.mxu0 %v4351
    %4608 = vmatpush.msra.mxu0 %v4345
    %4609 = vmatpush.msra.mxu0 %v4339
    %4610 = vmatpush.msra.mxu0 %v4333
    %4611 = vmatpush.msra.mxu0 %v4327
    %4612 = vmatpush.msra.mxu0 %v4321
    %4613 = vmatpush.msra.mxu0 %v4315
    %4614 = vmatpush.msra.mxu0 %v4309
    %4615 = vmatpush.msra.mxu0 %v4303
    %4616 = vmatpush.msra.mxu0 %v4297
    %4617 = vmatpush.msra.mxu0 %v4291
    %4618 = vmatmul.f32.gmra.mxu0 %v4181
    %v4619 = vpop.f32.mrf.mxu0
    %v4620 = vadd.f32 %v4600, %v4619
    %4621 = vdwg.mxu0
    %v4622 = vadd.f32 %v4184, %v4420
    %v4623 = vxor.u32 %v4622, 2147483648
    %v4624 = vmul.f32 %v4623, 1.442695
    %v4625 = vpow.pop %v4624
    %v4626 = vadd.f32 %v4625, 1.0
    %v4627 = vrcp.pop %v4626
    %v4628 = vmul.f32 %v4626, %v4627
    %v4629 = vsub.f32 1.0, %v4628
    %v4630 = vmul.f32 %v4627, %v4629
    %v4631 = vadd.f32 %v4627, %v4630
    %vm4632 = vweird.f32 %v4626
    %vm4633 = vweird.f32 %v4627
    %vm4634 = vmor %vm4632, %vm4633
    %v4635 = vsel %vm4634, %v4627, %v4631
    %v4636 = vand.u32 2147483647, %v4626
    %vm4637 = vcmp.eq.f32.partialorder %v4636, 8.507059e+37
    %v4638 = vand.u32 %v4626, 2147483648
    %v4639 = vor.u32 1.1754944e-38, %v4638
    %v4640 = vsel %vm4637, %v4639, %v4635
    %v4641 = vmul.f32 1.0, %v4640
    %v4642 = vadd.f32 %v4185, %v4460
    %v4643 = vxor.u32 %v4642, 2147483648
    %v4644 = vmul.f32 %v4643, 1.442695
    %v4645 = vpow.pop %v4644
    %v4646 = vadd.f32 %v4645, 1.0
    %v4647 = vrcp.pop %v4646
    %v4648 = vmul.f32 %v4646, %v4647
    %v4649 = vsub.f32 1.0, %v4648
    %v4650 = vmul.f32 %v4647, %v4649
    %v4651 = vadd.f32 %v4647, %v4650
    %vm4652 = vweird.f32 %v4646
    %vm4653 = vweird.f32 %v4647
    %vm4654 = vmor %vm4652, %vm4653
    %v4655 = vsel %vm4654, %v4647, %v4651
    %v4656 = vand.u32 2147483647, %v4646
    %vm4657 = vcmp.eq.f32.partialorder %v4656, 8.507059e+37
    %v4658 = vand.u32 %v4646, 2147483648
    %v4659 = vor.u32 1.1754944e-38, %v4658
    %v4660 = vsel %vm4657, %v4659, %v4655
    %v4661 = vmul.f32 1.0, %v4660
    %v4662 = vadd.f32 %v4500, %v894
    %v4663 = vmul.f32 %v4641, %v4662
    %v4664 = vadd.f32 %v4186, %v4663
    %v4665 = vtanh.pop %v4664
    %v4666 = vsub.f32 %v4134, %v4665
    %v4667 = vmul.f32 %v4661, %v4666
    %v4668 = vadd.f32 %v4665, %v4667
    %v4669 = vadd.f32 %v4187, %v4540
    %v4670 = vxor.u32 %v4669, 2147483648
    %v4671 = vmul.f32 %v4670, 1.442695
    %v4672 = vpow.pop %v4671
    %v4673 = vadd.f32 %v4672, 1.0
    %v4674 = vrcp.pop %v4673
    %v4675 = vmul.f32 %v4673, %v4674
    %v4676 = vsub.f32 1.0, %v4675
    %v4677 = vmul.f32 %v4674, %v4676
    %v4678 = vadd.f32 %v4674, %v4677
    %vm4679 = vweird.f32 %v4673
    %vm4680 = vweird.f32 %v4674
    %vm4681 = vmor %vm4679, %vm4680
    %v4682 = vsel %vm4681, %v4674, %v4678
    %v4683 = vand.u32 2147483647, %v4673
    %vm4684 = vcmp.eq.f32.partialorder %v4683, 8.507059e+37
    %v4685 = vand.u32 %v4673, 2147483648
    %v4686 = vor.u32 1.1754944e-38, %v4685
    %v4687 = vsel %vm4684, %v4686, %v4682
    %v4688 = vmul.f32 1.0, %v4687
    %v4689 = vadd.f32 %v4188, %v4580
    %v4690 = vxor.u32 %v4689, 2147483648
    %v4691 = vmul.f32 %v4690, 1.442695
    %v4692 = vpow.pop %v4691
    %v4693 = vadd.f32 %v4692, 1.0
    %v4694 = vrcp.pop %v4693
    %v4695 = vmul.f32 %v4693, %v4694
    %v4696 = vsub.f32 1.0, %v4695
    %v4697 = vmul.f32 %v4694, %v4696
    %v4698 = vadd.f32 %v4694, %v4697
    %vm4699 = vweird.f32 %v4693
    %vm4700 = vweird.f32 %v4694
    %vm4701 = vmor %vm4699, %vm4700
    %v4702 = vsel %vm4701, %v4694, %v4698
    %v4703 = vand.u32 2147483647, %v4693
    %vm4704 = vcmp.eq.f32.partialorder %v4703, 8.507059e+37
    %v4705 = vand.u32 %v4693, 2147483648
    %v4706 = vor.u32 1.1754944e-38, %v4705
    %v4707 = vsel %vm4704, %v4706, %v4702
    %v4708 = vmul.f32 1.0, %v4707
    %v4709 = vadd.f32 %v4620, %v944
    %v4710 = vmul.f32 %v4688, %v4709
    %v4711 = vadd.f32 %v4189, %v4710
    %v4712 = vtanh.pop %v4711
    %v4713 = vsub.f32 %v4181, %v4712
    %v4714 = vmul.f32 %v4708, %v4713
    %v4715 = vadd.f32 %v4712, %v4714
    %4716 = vst [vmem:[%s954] sm:$0xff] %v4668
    %4717 = vst [vmem:[%s6 + $0x8] sm:$0xff] %v4715
    %4718 = vst [vmem:[%s7] sm:$0xff] %v4668
    %4719 = vst [vmem:[%s8] sm:$0xff] %v4715
    // Predicated region
    $region30: #{encoder_forward.1} parent=1 // pred_check
      _
    $region31: #{encoder_forward.1} parent=1 // pred_check_branch
      %4721 = sbr.rel (0) target = $region33
    $region32: #{encoder_forward.1} parent=1 // pred_region
      _
    $region33: #{encoder_forward.1} parent=1 // pred_fallthru
      _
    // Predicated region
    $region34: #{encoder_forward.1} parent=1 // pred_check
      _
    $region35: #{encoder_forward.1} parent=1 // pred_check_branch
      %4723 = sbr.rel (0) target = $region37
    $region36: #{encoder_forward.1} parent=1 // pred_region
      _
    $region37: #{encoder_forward.1} parent=1 // pred_fallthru
      _
    // Predicated region
    $region38: #{encoder_forward.1} parent=1 // pred_check
      _
    $region39: #{encoder_forward.1} parent=1 // pred_check_branch
      %4725 = sbr.rel (0) target = $region41
    $region40: #{encoder_forward.1} parent=1 // pred_region
      _
    $region41: #{encoder_forward.1} parent=1 // pred_fallthru
      _
    // Predicated region
    $region42: #{encoder_forward.1} parent=1 // pred_check
      _
    $region43: #{encoder_forward.1} parent=1 // pred_check_branch
      %4727 = sbr.rel (0) target = $region45
    $region44: #{encoder_forward.1} parent=1 // pred_region
      _
    $region45: #{encoder_forward.1} parent=1 // pred_fallthru
      _
    // Predicated region
    $region46: #{encoder_forward.1} parent=1 // pred_check
      _
    $region47: #{encoder_forward.1} parent=1 // pred_check_branch
      %4729 = sbr.rel (0) target = $region49
    $region48: #{encoder_forward.1} parent=1 // pred_region
      _
    $region49: #{encoder_forward.1} parent=1 // pred_fallthru
      _
    // Predicated region
    $region50: #{encoder_forward.1} parent=1 // pred_check
      _
    $region51: #{encoder_forward.1} parent=1 // pred_check_branch
      %4731 = sbr.rel (0) target = $region53
    $region52: #{encoder_forward.1} parent=1 // pred_region
      _
    $region53: #{encoder_forward.1} parent=1 // pred_fallthru
      _
    %4732 = vsyncpa [#allocation4], 1

</llo_original>
